<compile_context>
chip_gen: v7x
topology: tpu7x:2x2x1
jax: 0.10.0
libtpu: 0.0.40
codegen_flags: <defaults>
</compile_context>

<pallas_src>
import functools

import jax
import jax.numpy as jnp
from jax import lax
from jax.experimental import pallas as pl
from jax.experimental.pallas import tpu as pltpu

# Keep the pure-JAX reference at full f32 precision too, so the comparison is
# apples-to-apples with the kernel's explicit HIGHEST-precision dots.
jax.config.update("jax_default_matmul_precision", "highest")

_HIGH = lax.Precision.HIGHEST


# ----------------------------------------------------------------------------
# Fused BasicBlock kernel  (everything stays in VMEM; only (1, HW) goes back)
# ----------------------------------------------------------------------------
def _basic_block_kernel(lam_ref, x_ref, ptp_ref, ptb_ref, pk_ref, pi_ref,
                        alpha_ref, wh_ref, bh_ref, w1_ref, b1_ref, w2_ref,
                        b2_ref, wt_ref, bt_ref, o_ref, *, H, W, n_res):
    f32 = jnp.float32
    HW = H * W
    PADL = ((W + 1 + 7) // 8) * 8          # lane zero-halo, >= W + 1
    lam = lam_ref[0]                       # scalar from SMEM

    def mm(a, b):
        return jnp.dot(a, b, preferred_element_type=f32, precision=_HIGH)

    # ---- gradient step: x_new = x - lam * x @ PhiTPhi + lam * PhiTb  (nb, d)
    x = x_ref[...]
    x_new = x - lam * mm(x, ptp_ref[...]) + lam * ptb_ref[...]

    # ---- block -> image permutation (B.unblockify(B.unvectorize(.))):
    #      Y[i, q] = x_new[i, within_idx(q)]   -> one lane-dense MXU op
    #      img[q]  = Y[blk_idx(q), q]          -> tiny 4-row sublane reduce
    y_rows = mm(x_new, pk_ref[...])                                    # (nb, HW)
    img = jnp.sum(y_rows * pi_ref[...], axis=0, keepdims=True)         # (1, HW)

    # ---- horizontal border masks over the flat pixel (lane) axis
    xq = lax.broadcasted_iota(jnp.int32, (1, HW), 1) % W
    mask_l = (xq >= 1).astype(f32)          # taps with dx = -1
    mask_r = (xq <= W - 2).astype(f32)      # taps with dx = +1

    def im2col(act):
        """(Cin, HW) -> (9*Cin, HW): nine shifted 3x3 taps stacked on sublanes."""
        cin = act.shape[0]
        z = jnp.zeros((cin, PADL), f32)
        buf = jnp.concatenate([z, act, z], axis=1)      # lane zero-halo
        taps = []
        for dy in (-1, 0, 1):
            for dx in (-1, 0, 1):
                s = dy * W + dx
                t = buf[:, PADL + s:PADL + s + HW]       # exact-width lane slice
                if dx == -1:
                    t = t * mask_l
                elif dx == 1:
                    t = t * mask_r
                taps.append(t)
        return jnp.concatenate(taps, axis=0)             # sublane-aligned stack

    def conv(act, w, b):
        """3x3 'same' conv: (Cout, 9*Cin) @ (9*Cin, HW) + (Cout, 1)."""
        return mm(w, im2col(act)) + b

    # ---- head conv (Cin = 1)
    h = conv(img, wh_ref[...], bh_ref[...])                            # (C, HW)

    alpha = alpha_ref[...]                                             # (C, 1)

    # ---- 3x CPMB: conv-ReLU-conv, scaled residual (live ranges bounded)
    def cpmb(i, h_carry):
        h1 = jnp.maximum(conv(h_carry, w1_ref[i], b1_ref[i]), 0.0)
        return h_carry + conv(h1, w2_ref[i], b2_ref[i]) * alpha

    h = lax.fori_loop(0, n_res, cpmb, h)

    # ---- tail conv (Cout = 1) + image residual -> lane-dense (1, HW) store
    o_ref[...] = img + conv(h, wt_ref[...], bt_ref[...])


# ----------------------------------------------------------------------------
# Wrapper: constant-fold the permutation matrices / alpha / weight packing,
# invoke one fused pallas_call, then a little reshape glue.
# ----------------------------------------------------------------------------
def basic_block_forward(params, x, PhiTPhi, PhiTb, cond, B):
    H, W, blk, nbw = B.H, B.W, B.b, B.nbw
    nf = params["head_b"].shape[0]
    HW = H * W
    nb, d = x.shape
    f32 = jnp.float32

    # constant block->image permutation matrices (depend only on H, W, blk)
    q = jnp.arange(HW, dtype=jnp.int32)
    yq, xq = q // W, q % W
    within = (yq % blk) * blk + (xq % blk)          # within-block flat index
    bidx = (yq // blk) * nbw + (xq // blk)          # block index
    PK = (jnp.arange(d)[:, None] == within[None, :]).astype(f32)     # (d, HW)
    PI = (jnp.arange(nb)[:, None] == bidx[None, :]).astype(f32)      # (nb, HW)

    # conditioning scale shared by all CPMBs -> hoisted out of the kernel
    alpha = (jnp.dot(cond, params["rs_w"]) + params["rs_b"]).reshape(nf, 1)

    def pack_lhs(w):                                 # (3,3,Cin,Cout)->(Cout,9*Cin)
        return jnp.transpose(w, (3, 0, 1, 2)).reshape(w.shape[3], -1)

    w_head = pack_lhs(params["head_w"])              # (nf, 9)
    b_head = params["head_b"].reshape(nf, 1)
    w1s = jnp.stack([pack_lhs(c["w1"]) for c in params["cpmb"]])      # (3,nf,9nf)
    b1s = jnp.stack([c["b1"].reshape(nf, 1) for c in params["cpmb"]])
    w2s = jnp.stack([pack_lhs(c["w2"]) for c in params["cpmb"]])
    b2s = jnp.stack([c["b2"].reshape(nf, 1) for c in params["cpmb"]])
    w_tail = pack_lhs(params["tail_w"])              # (1, 9*nf)
    b_tail = params["tail_b"].reshape(1, 1)
    lam = params["lambda_step"].reshape(1).astype(f32)

    kern = functools.partial(_basic_block_kernel, H=H, W=W,
                             n_res=len(params["cpmb"]))
    smem = pl.BlockSpec(memory_space=pltpu.MemorySpace.SMEM)
    vmem = pl.BlockSpec(memory_space=pltpu.MemorySpace.VMEM)

    img_row = pl.pallas_call(
        kern,
        out_shape=jax.ShapeDtypeStruct((1, HW), f32),      # lane-dense output
        in_specs=[smem] + [vmem] * 14,
        out_specs=vmem,
    )(lam, x, PhiTPhi, PhiTb, PK, PI, alpha, w_head, b_head,
      w1s, b1s, w2s, b2s, w_tail, b_tail)

    # glue: flat (1, HW) image row -> (H, W) -> blockified vectors
    x_pred_img = img_row.reshape(H, W)
    return B.vectorize(B.blockify(x_pred_img))


# ----------------------------------------------------------------------------
# Block helper B (blockify / unblockify / vectorize / unvectorize) — pure glue.
# ----------------------------------------------------------------------------
class BlockHelper:
    def __init__(self, img_hw, blk):
        self.H, self.W = img_hw
        self.b = blk
        self.nbh = self.H // blk
        self.nbw = self.W // blk

    def blockify(self, img):        # (H, W) -> (nb, b, b), row-major block order
        b = self.b
        return img.reshape(self.nbh, b, self.nbw, b).transpose(0, 2, 1, 3).reshape(-1, b, b)

    def unblockify(self, blocks):   # (nb, b, b) -> (H, W)
        b = self.b
        return blocks.reshape(self.nbh, self.nbw, b, b).transpose(0, 2, 1, 3).reshape(self.H, self.W)

    def vectorize(self, blocks):    # (nb, b, b) -> (nb, b*b)
        return blocks.reshape(blocks.shape[0], -1)

    def unvectorize(self, x):       # (nb, b*b) -> (nb, b, b)
        return x.reshape(x.shape[0], self.b, self.b)


# ----------------------------------------------------------------------------
# Pure-JAX reference (for correctness check)
# ----------------------------------------------------------------------------
def _conv_ref(x_hwc, w, b):
    y = lax.conv_general_dilated(x_hwc[None], w, (1, 1), "SAME",
                                 dimension_numbers=("NHWC", "HWIO", "NHWC"))[0]
    return y + b


def basic_block_forward_ref(params, x, PhiTPhi, PhiTb, cond, B):
    lam = params["lambda_step"][0]
    x = x - lam * jnp.dot(x, PhiTPhi) + lam * PhiTb
    img = B.unblockify(B.unvectorize(x))
    x_in = img[:, :, None]
    h = _conv_ref(x_in, params["head_w"], params["head_b"])
    for blk in params["cpmb"]:
        h1 = jnp.maximum(_conv_ref(h, blk["w1"], blk["b1"]), 0.0)
        out = _conv_ref(h1, blk["w2"], blk["b2"])
        alpha = jnp.dot(cond, params["rs_w"]) + params["rs_b"]            # (1, 32)
        h = h + out * alpha[0][None, None, :]
    t = _conv_ref(h, params["tail_w"], params["tail_b"])
    x_pred_img = img + t[:, :, 0]
    return B.vectorize(B.blockify(x_pred_img))


# ----------------------------------------------------------------------------
# Deterministic synthetic parameters (shapes from the module's __init__)
# ----------------------------------------------------------------------------
def init_params(key, nf=32, cond_dim=4):
    ks = jax.random.split(key, 10)

    def cw(k, cin, cout):
        return jax.random.normal(k, (3, 3, cin, cout), jnp.float32) * 0.1

    def cb(k, cout):
        return jax.random.normal(k, (cout,), jnp.float32) * 0.01

    params = {
        "lambda_step": jnp.array([0.5], jnp.float32),
        "head_w": cw(ks[0], 1, nf), "head_b": cb(ks[1], nf),
        "tail_w": cw(ks[2], nf, 1), "tail_b": cb(ks[3], 1),
        # shared res_scale_linear: Linear(cond_dim, nf)
        "rs_w": jax.random.normal(ks[4], (cond_dim, nf), jnp.float32) * 0.1,
        "rs_b": jax.random.normal(ks[5], (nf,), jnp.float32) * 0.01 + 1.0,
        "cpmb": [],
    }
    for i in range(3):
        k1, k2, k3, k4 = jax.random.split(ks[6 + i], 4)
        params["cpmb"].append({
            "w1": cw(k1, nf, nf), "b1": cb(k2, nf),
            "w2": cw(k3, nf, nf), "b2": cb(k4, nf),
        })
    return params


if __name__ == "__main__":
    key = jax.random.PRNGKey(0)
    H = W = 16
    blk = 8
    d = blk * blk                       # 64
    nb = (H // blk) * (W // blk)        # 4 blocks
    cond_dim = 4

    B = BlockHelper((H, W), blk)
    ks = jax.random.split(key, 6)

    x = jax.random.normal(ks[0], (nb, d), jnp.float32)                 # vectorized blocks
    Phi = jax.random.normal(ks[1], (d // 4, d), jnp.float32) / jnp.sqrt(d)
    PhiTPhi = Phi.T @ Phi                                              # (d, d)
    PhiTb = jax.random.normal(ks[2], (nb, d), jnp.float32)             # (nb, d)
    cond = jax.random.normal(ks[3], (1, cond_dim), jnp.float32)        # conditioning vector
    params = init_params(ks[4], nf=32, cond_dim=cond_dim)

    fwd = jax.jit(functools.partial(basic_block_forward, B=B))
    out = jax.block_until_ready(fwd(params, x, PhiTPhi, PhiTb, cond))

    ref = basic_block_forward_ref(params, x, PhiTPhi, PhiTb, cond, B)
    assert out.shape == (nb, d)
    assert jnp.allclose(out, ref, rtol=1e-3, atol=1e-3), \
        f"max abs err = {float(jnp.max(jnp.abs(out - ref)))}"

    print("KERNEL_OK")
</pallas_src>

<mosaic_0001>
module attributes {stable_mosaic.version = 11 : i64} {
  func.func @_basic_block_kernel(%arg0: memref<1xf32, #tpu.memory_space<smem>>, %arg1: memref<4x64xf32, #tpu.memory_space<vmem>>, %arg2: memref<64x64xf32, #tpu.memory_space<vmem>>, %arg3: memref<4x64xf32, #tpu.memory_space<vmem>>, %arg4: memref<64x256xf32, #tpu.memory_space<vmem>>, %arg5: memref<4x256xf32, #tpu.memory_space<vmem>>, %arg6: memref<32x1xf32, #tpu.memory_space<vmem>>, %arg7: memref<32x9xf32, #tpu.memory_space<vmem>>, %arg8: memref<32x1xf32, #tpu.memory_space<vmem>>, %arg9: memref<3x32x288xf32, #tpu.memory_space<vmem>>, %arg10: memref<3x32x1xf32, #tpu.memory_space<vmem>>, %arg11: memref<3x32x288xf32, #tpu.memory_space<vmem>>, %arg12: memref<3x32x1xf32, #tpu.memory_space<vmem>>, %arg13: memref<1x288xf32, #tpu.memory_space<vmem>>, %arg14: memref<1x1xf32, #tpu.memory_space<vmem>>, %arg15: memref<1x256xf32, #tpu.memory_space<vmem>>) attributes {dimension_semantics = [], scalar_prefetch = 0 : i64, scratch_operands = 0 : i64, tpu.core_type = #tpu.core_type<tc>} {
    %c0 = arith.constant 0 : index
    %0 = memref.load %arg0[%c0] : memref<1xf32, #tpu.memory_space<smem>>
    %c0_0 = arith.constant 0 : index
    %c0_1 = arith.constant 0 : index
    %1 = vector.load %arg1[%c0_0, %c0_1] : memref<4x64xf32, #tpu.memory_space<vmem>>, vector<4x64xf32>
    %c0_2 = arith.constant 0 : index
    %c0_3 = arith.constant 0 : index
    %2 = vector.load %arg2[%c0_2, %c0_3] : memref<64x64xf32, #tpu.memory_space<vmem>>, vector<64x64xf32>
    %cst = arith.constant dense<0.000000e+00> : vector<4x64xf32>
    %3 = tpu.matmul %1, %2, %cst {dimension_numbers = #tpu.dot_dimension_numbers<[1], [0], [0], [1], [0, 0, 1, 1], [], []>, precision = #tpu.contract_precision<fp32>} : vector<4x64xf32>, vector<64x64xf32>, vector<4x64xf32> -> vector<4x64xf32>
    %4 = vector.broadcast %0 : f32 to vector<4x64xf32>
    %5 = arith.mulf %4, %3 : vector<4x64xf32>
    %6 = arith.subf %1, %5 : vector<4x64xf32>
    %c0_4 = arith.constant 0 : index
    %c0_5 = arith.constant 0 : index
    %7 = vector.load %arg3[%c0_4, %c0_5] : memref<4x64xf32, #tpu.memory_space<vmem>>, vector<4x64xf32>
    %8 = vector.broadcast %0 : f32 to vector<4x64xf32>
    %9 = arith.mulf %8, %7 : vector<4x64xf32>
    %10 = arith.addf %6, %9 : vector<4x64xf32>
    %c0_6 = arith.constant 0 : index
    %c0_7 = arith.constant 0 : index
    %11 = vector.load %arg4[%c0_6, %c0_7] : memref<64x256xf32, #tpu.memory_space<vmem>>, vector<64x256xf32>
    %cst_8 = arith.constant dense<0.000000e+00> : vector<4x256xf32>
    %12 = tpu.matmul %10, %11, %cst_8 {dimension_numbers = #tpu.dot_dimension_numbers<[1], [0], [0], [1], [0, 0, 1, 1], [], []>, precision = #tpu.contract_precision<fp32>} : vector<4x64xf32>, vector<64x256xf32>, vector<4x256xf32> -> vector<4x256xf32>
    %c0_9 = arith.constant 0 : index
    %c0_10 = arith.constant 0 : index
    %13 = vector.load %arg5[%c0_9, %c0_10] : memref<4x256xf32, #tpu.memory_space<vmem>>, vector<4x256xf32>
    %14 = arith.mulf %12, %13 : vector<4x256xf32>
    %cst_11 = arith.constant dense<0.000000e+00> : vector<256xf32>
    %15 = vector.multi_reduction <add>, %14, %cst_11 [0] : vector<4x256xf32> to vector<256xf32>
    %16 = vector.shape_cast %15 : vector<256xf32> to vector<1x256xf32>
    %17 = tpu.iota {dimensions = array<i32: 1>} : vector<1x256xi32>
    %c16_i32 = arith.constant 16 : i32
    %c0_i32 = arith.constant 0 : i32
    %18 = arith.cmpi eq, %c16_i32, %c0_i32 : i32
    %c1_i32 = arith.constant 1 : i32
    %19 = arith.select %18, %c1_i32, %c16_i32 : i32
    %20 = vector.broadcast %19 : i32 to vector<1x256xi32>
    %21 = arith.remsi %17, %20 : vector<1x256xi32>
    %c0_i32_12 = arith.constant 0 : i32
    %22 = vector.broadcast %c0_i32_12 : i32 to vector<1x256xi32>
    %23 = arith.cmpi ne, %21, %22 : vector<1x256xi32>
    %c0_i32_13 = arith.constant 0 : i32
    %24 = vector.broadcast %c0_i32_13 : i32 to vector<1x256xi32>
    %25 = arith.cmpi slt, %21, %24 : vector<1x256xi32>
    %c0_i32_14 = arith.constant 0 : i32
    %26 = arith.cmpi slt, %19, %c0_i32_14 : i32
    %27 = vector.broadcast %26 : i1 to vector<1x256xi1>
    %28 = vector.broadcast %27 : vector<1x256xi1> to vector<1x256xi1>
    %29 = arith.xori %25, %28 : vector<1x256xi1>
    %30 = arith.andi %29, %23 : vector<1x256xi1>
    %31 = vector.broadcast %19 : i32 to vector<1x256xi32>
    %32 = arith.addi %21, %31 : vector<1x256xi32>
    %33 = arith.select %30, %32, %21 : vector<1x256xi1>, vector<1x256xi32>
    %c1_i32_15 = arith.constant 1 : i32
    %34 = vector.broadcast %c1_i32_15 : i32 to vector<1x256xi32>
    %35 = arith.cmpi sge, %33, %34 : vector<1x256xi32>
    %36 = arith.extui %35 : vector<1x256xi1> to vector<1x256xi32>
    %37 = arith.sitofp %36 : vector<1x256xi32> to vector<1x256xf32>
    %c14_i32 = arith.constant 14 : i32
    %38 = vector.broadcast %c14_i32 : i32 to vector<1x256xi32>
    %39 = arith.cmpi sle, %33, %38 : vector<1x256xi32>
    %40 = arith.extui %39 : vector<1x256xi1> to vector<1x256xi32>
    %41 = arith.sitofp %40 : vector<1x256xi32> to vector<1x256xf32>
    %c0_16 = arith.constant 0 : index
    %c0_17 = arith.constant 0 : index
    %42 = vector.load %arg7[%c0_16, %c0_17] : memref<32x9xf32, #tpu.memory_space<vmem>>, vector<32x9xf32>
    %c0_18 = arith.constant 0 : index
    %c0_19 = arith.constant 0 : index
    %43 = vector.load %arg8[%c0_18, %c0_19] : memref<32x1xf32, #tpu.memory_space<vmem>>, vector<32x1xf32>
    %cst_20 = arith.constant 0.000000e+00 : f32
    %44 = vector.broadcast %cst_20 : f32 to vector<1x24xf32>
    %45 = tpu.concatenate %44, %16, %44 in 1 : vector<1x24xf32>, vector<1x256xf32>, vector<1x24xf32> -> vector<1x304xf32>
    %46 = vector.extract_strided_slice %45 {offsets = [0, 7], sizes = [1, 256], strides = [1, 1]} : vector<1x304xf32> to vector<1x256xf32>
    %47 = arith.mulf %46, %37 : vector<1x256xf32>
    %48 = vector.extract_strided_slice %45 {offsets = [0, 8], sizes = [1, 256], strides = [1, 1]} : vector<1x304xf32> to vector<1x256xf32>
    %49 = vector.extract_strided_slice %45 {offsets = [0, 9], sizes = [1, 256], strides = [1, 1]} : vector<1x304xf32> to vector<1x256xf32>
    %50 = arith.mulf %49, %41 : vector<1x256xf32>
    %51 = vector.extract_strided_slice %45 {offsets = [0, 23], sizes = [1, 256], strides = [1, 1]} : vector<1x304xf32> to vector<1x256xf32>
    %52 = arith.mulf %51, %37 : vector<1x256xf32>
    %53 = vector.extract_strided_slice %45 {offsets = [0, 24], sizes = [1, 256], strides = [1, 1]} : vector<1x304xf32> to vector<1x256xf32>
    %54 = vector.extract_strided_slice %45 {offsets = [0, 25], sizes = [1, 256], strides = [1, 1]} : vector<1x304xf32> to vector<1x256xf32>
    %55 = arith.mulf %54, %41 : vector<1x256xf32>
    %56 = vector.extract_strided_slice %45 {offsets = [0, 39], sizes = [1, 256], strides = [1, 1]} : vector<1x304xf32> to vector<1x256xf32>
    %57 = arith.mulf %56, %37 : vector<1x256xf32>
    %58 = vector.extract_strided_slice %45 {offsets = [0, 40], sizes = [1, 256], strides = [1, 1]} : vector<1x304xf32> to vector<1x256xf32>
    %59 = vector.extract_strided_slice %45 {offsets = [0, 41], sizes = [1, 256], strides = [1, 1]} : vector<1x304xf32> to vector<1x256xf32>
    %60 = arith.mulf %59, %41 : vector<1x256xf32>
    %61 = tpu.concatenate %47, %48, %50, %52, %53, %55, %57, %58, %60 in 0 : vector<1x256xf32>, vector<1x256xf32>, vector<1x256xf32>, vector<1x256xf32>, vector<1x256xf32>, vector<1x256xf32>, vector<1x256xf32>, vector<1x256xf32>, vector<1x256xf32> -> vector<9x256xf32>
    %cst_21 = arith.constant dense<0.000000e+00> : vector<32x256xf32>
    %62 = tpu.matmul %42, %61, %cst_21 {dimension_numbers = #tpu.dot_dimension_numbers<[1], [0], [0], [1], [0, 0, 1, 1], [], []>, precision = #tpu.contract_precision<fp32>} : vector<32x9xf32>, vector<9x256xf32>, vector<32x256xf32> -> vector<32x256xf32>
    %63 = vector.broadcast %43 : vector<32x1xf32> to vector<32x256xf32>
    %64 = arith.addf %62, %63 : vector<32x256xf32>
    %c0_22 = arith.constant 0 : index
    %c0_23 = arith.constant 0 : index
    %65 = vector.load %arg6[%c0_22, %c0_23] : memref<32x1xf32, #tpu.memory_space<vmem>>, vector<32x1xf32>
    %c0_i32_24 = arith.constant 0 : i32
    %c3_i32 = arith.constant 3 : i32
    %66 = arith.addi %c0_i32_24, %c3_i32 : i32
    %c1_i32_25 = arith.constant 1 : i32
    %67 = scf.for %arg16 = %c0_i32_24 to %66 step %c1_i32_25 iter_args(%arg17 = %64) -> (vector<32x256xf32>)  : i32 {
      %99 = arith.index_cast %arg16 : i32 to index
      %c0_35 = arith.constant 0 : index
      %c0_36 = arith.constant 0 : index
      %100 = vector.load %arg9[%99, %c0_35, %c0_36] : memref<3x32x288xf32, #tpu.memory_space<vmem>>, vector<1x32x288xf32>
      %101 = vector.shape_cast %100 : vector<1x32x288xf32> to vector<32x288xf32>
      %102 = arith.index_cast %arg16 : i32 to index
      %c0_37 = arith.constant 0 : index
      %c0_38 = arith.constant 0 : index
      %103 = vector.load %arg10[%102, %c0_37, %c0_38] : memref<3x32x1xf32, #tpu.memory_space<vmem>>, vector<1x32x1xf32>
      %104 = vector.shape_cast %103 : vector<1x32x1xf32> to vector<32x1xf32>
      %cst_39 = arith.constant 0.000000e+00 : f32
      %105 = vector.broadcast %cst_39 : f32 to vector<32x24xf32>
      %106 = tpu.concatenate %105, %arg17, %105 in 1 : vector<32x24xf32>, vector<32x256xf32>, vector<32x24xf32> -> vector<32x304xf32>
      %107 = vector.extract_strided_slice %106 {offsets = [0, 7], sizes = [32, 256], strides = [1, 1]} : vector<32x304xf32> to vector<32x256xf32>
      %108 = vector.broadcast %37 : vector<1x256xf32> to vector<32x256xf32>
      %109 = arith.mulf %107, %108 : vector<32x256xf32>
      %110 = vector.extract_strided_slice %106 {offsets = [0, 8], sizes = [32, 256], strides = [1, 1]} : vector<32x304xf32> to vector<32x256xf32>
      %111 = vector.extract_strided_slice %106 {offsets = [0, 9], sizes = [32, 256], strides = [1, 1]} : vector<32x304xf32> to vector<32x256xf32>
      %112 = vector.broadcast %41 : vector<1x256xf32> to vector<32x256xf32>
      %113 = arith.mulf %111, %112 : vector<32x256xf32>
      %114 = vector.extract_strided_slice %106 {offsets = [0, 23], sizes = [32, 256], strides = [1, 1]} : vector<32x304xf32> to vector<32x256xf32>
      %115 = vector.broadcast %37 : vector<1x256xf32> to vector<32x256xf32>
      %116 = arith.mulf %114, %115 : vector<32x256xf32>
      %117 = vector.extract_strided_slice %106 {offsets = [0, 24], sizes = [32, 256], strides = [1, 1]} : vector<32x304xf32> to vector<32x256xf32>
      %118 = vector.extract_strided_slice %106 {offsets = [0, 25], sizes = [32, 256], strides = [1, 1]} : vector<32x304xf32> to vector<32x256xf32>
      %119 = vector.broadcast %41 : vector<1x256xf32> to vector<32x256xf32>
      %120 = arith.mulf %118, %119 : vector<32x256xf32>
      %121 = vector.extract_strided_slice %106 {offsets = [0, 39], sizes = [32, 256], strides = [1, 1]} : vector<32x304xf32> to vector<32x256xf32>
      %122 = vector.broadcast %37 : vector<1x256xf32> to vector<32x256xf32>
      %123 = arith.mulf %121, %122 : vector<32x256xf32>
      %124 = vector.extract_strided_slice %106 {offsets = [0, 40], sizes = [32, 256], strides = [1, 1]} : vector<32x304xf32> to vector<32x256xf32>
      %125 = vector.extract_strided_slice %106 {offsets = [0, 41], sizes = [32, 256], strides = [1, 1]} : vector<32x304xf32> to vector<32x256xf32>
      %126 = vector.broadcast %41 : vector<1x256xf32> to vector<32x256xf32>
      %127 = arith.mulf %125, %126 : vector<32x256xf32>
      %128 = tpu.concatenate %109, %110, %113, %116, %117, %120, %123, %124, %127 in 0 : vector<32x256xf32>, vector<32x256xf32>, vector<32x256xf32>, vector<32x256xf32>, vector<32x256xf32>, vector<32x256xf32>, vector<32x256xf32>, vector<32x256xf32>, vector<32x256xf32> -> vector<288x256xf32>
      %cst_40 = arith.constant dense<0.000000e+00> : vector<32x256xf32>
      %129 = tpu.matmul %101, %128, %cst_40 {dimension_numbers = #tpu.dot_dimension_numbers<[1], [0], [0], [1], [0, 0, 1, 1], [], []>, precision = #tpu.contract_precision<fp32>} : vector<32x288xf32>, vector<288x256xf32>, vector<32x256xf32> -> vector<32x256xf32>
      %130 = vector.broadcast %104 : vector<32x1xf32> to vector<32x256xf32>
      %131 = arith.addf %129, %130 : vector<32x256xf32>
      %cst_41 = arith.constant 0.000000e+00 : f32
      %132 = vector.broadcast %cst_41 : f32 to vector<32x256xf32>
      %133 = arith.maximumf %131, %132 : vector<32x256xf32>
      %134 = arith.index_cast %arg16 : i32 to index
      %c0_42 = arith.constant 0 : index
      %c0_43 = arith.constant 0 : index
      %135 = vector.load %arg11[%134, %c0_42, %c0_43] : memref<3x32x288xf32, #tpu.memory_space<vmem>>, vector<1x32x288xf32>
      %136 = vector.shape_cast %135 : vector<1x32x288xf32> to vector<32x288xf32>
      %137 = arith.index_cast %arg16 : i32 to index
      %c0_44 = arith.constant 0 : index
      %c0_45 = arith.constant 0 : index
      %138 = vector.load %arg12[%137, %c0_44, %c0_45] : memref<3x32x1xf32, #tpu.memory_space<vmem>>, vector<1x32x1xf32>
      %139 = vector.shape_cast %138 : vector<1x32x1xf32> to vector<32x1xf32>
      %cst_46 = arith.constant 0.000000e+00 : f32
      %140 = vector.broadcast %cst_46 : f32 to vector<32x24xf32>
      %141 = tpu.concatenate %140, %133, %140 in 1 : vector<32x24xf32>, vector<32x256xf32>, vector<32x24xf32> -> vector<32x304xf32>
      %142 = vector.extract_strided_slice %141 {offsets = [0, 7], sizes = [32, 256], strides = [1, 1]} : vector<32x304xf32> to vector<32x256xf32>
      %143 = vector.broadcast %37 : vector<1x256xf32> to vector<32x256xf32>
      %144 = arith.mulf %142, %143 : vector<32x256xf32>
      %145 = vector.extract_strided_slice %141 {offsets = [0, 8], sizes = [32, 256], strides = [1, 1]} : vector<32x304xf32> to vector<32x256xf32>
      %146 = vector.extract_strided_slice %141 {offsets = [0, 9], sizes = [32, 256], strides = [1, 1]} : vector<32x304xf32> to vector<32x256xf32>
      %147 = vector.broadcast %41 : vector<1x256xf32> to vector<32x256xf32>
      %148 = arith.mulf %146, %147 : vector<32x256xf32>
      %149 = vector.extract_strided_slice %141 {offsets = [0, 23], sizes = [32, 256], strides = [1, 1]} : vector<32x304xf32> to vector<32x256xf32>
      %150 = vector.broadcast %37 : vector<1x256xf32> to vector<32x256xf32>
      %151 = arith.mulf %149, %150 : vector<32x256xf32>
      %152 = vector.extract_strided_slice %141 {offsets = [0, 24], sizes = [32, 256], strides = [1, 1]} : vector<32x304xf32> to vector<32x256xf32>
      %153 = vector.extract_strided_slice %141 {offsets = [0, 25], sizes = [32, 256], strides = [1, 1]} : vector<32x304xf32> to vector<32x256xf32>
      %154 = vector.broadcast %41 : vector<1x256xf32> to vector<32x256xf32>
      %155 = arith.mulf %153, %154 : vector<32x256xf32>
      %156 = vector.extract_strided_slice %141 {offsets = [0, 39], sizes = [32, 256], strides = [1, 1]} : vector<32x304xf32> to vector<32x256xf32>
      %157 = vector.broadcast %37 : vector<1x256xf32> to vector<32x256xf32>
      %158 = arith.mulf %156, %157 : vector<32x256xf32>
      %159 = vector.extract_strided_slice %141 {offsets = [0, 40], sizes = [32, 256], strides = [1, 1]} : vector<32x304xf32> to vector<32x256xf32>
      %160 = vector.extract_strided_slice %141 {offsets = [0, 41], sizes = [32, 256], strides = [1, 1]} : vector<32x304xf32> to vector<32x256xf32>
      %161 = vector.broadcast %41 : vector<1x256xf32> to vector<32x256xf32>
      %162 = arith.mulf %160, %161 : vector<32x256xf32>
      %163 = tpu.concatenate %144, %145, %148, %151, %152, %155, %158, %159, %162 in 0 : vector<32x256xf32>, vector<32x256xf32>, vector<32x256xf32>, vector<32x256xf32>, vector<32x256xf32>, vector<32x256xf32>, vector<32x256xf32>, vector<32x256xf32>, vector<32x256xf32> -> vector<288x256xf32>
      %cst_47 = arith.constant dense<0.000000e+00> : vector<32x256xf32>
      %164 = tpu.matmul %136, %163, %cst_47 {dimension_numbers = #tpu.dot_dimension_numbers<[1], [0], [0], [1], [0, 0, 1, 1], [], []>, precision = #tpu.contract_precision<fp32>} : vector<32x288xf32>, vector<288x256xf32>, vector<32x256xf32> -> vector<32x256xf32>
      %165 = vector.broadcast %139 : vector<32x1xf32> to vector<32x256xf32>
      %166 = arith.addf %164, %165 : vector<32x256xf32>
      %167 = vector.broadcast %65 : vector<32x1xf32> to vector<32x256xf32>
      %168 = arith.mulf %166, %167 : vector<32x256xf32>
      %169 = arith.addf %arg17, %168 : vector<32x256xf32>
      scf.yield %169 : vector<32x256xf32>
    }
    %c3_i32_26 = arith.constant 3 : i32
    %c0_27 = arith.constant 0 : index
    %c0_28 = arith.constant 0 : index
    %68 = vector.load %arg13[%c0_27, %c0_28] : memref<1x288xf32, #tpu.memory_space<vmem>>, vector<1x288xf32>
    %c0_29 = arith.constant 0 : index
    %c0_30 = arith.constant 0 : index
    %69 = vector.load %arg14[%c0_29, %c0_30] : memref<1x1xf32, #tpu.memory_space<vmem>>, vector<1x1xf32>
    %cst_31 = arith.constant 0.000000e+00 : f32
    %70 = vector.broadcast %cst_31 : f32 to vector<32x24xf32>
    %71 = tpu.concatenate %70, %67, %70 in 1 : vector<32x24xf32>, vector<32x256xf32>, vector<32x24xf32> -> vector<32x304xf32>
    %72 = vector.extract_strided_slice %71 {offsets = [0, 7], sizes = [32, 256], strides = [1, 1]} : vector<32x304xf32> to vector<32x256xf32>
    %73 = vector.broadcast %37 : vector<1x256xf32> to vector<32x256xf32>
    %74 = arith.mulf %72, %73 : vector<32x256xf32>
    %75 = vector.extract_strided_slice %71 {offsets = [0, 8], sizes = [32, 256], strides = [1, 1]} : vector<32x304xf32> to vector<32x256xf32>
    %76 = vector.extract_strided_slice %71 {offsets = [0, 9], sizes = [32, 256], strides = [1, 1]} : vector<32x304xf32> to vector<32x256xf32>
    %77 = vector.broadcast %41 : vector<1x256xf32> to vector<32x256xf32>
    %78 = arith.mulf %76, %77 : vector<32x256xf32>
    %79 = vector.extract_strided_slice %71 {offsets = [0, 23], sizes = [32, 256], strides = [1, 1]} : vector<32x304xf32> to vector<32x256xf32>
    %80 = vector.broadcast %37 : vector<1x256xf32> to vector<32x256xf32>
    %81 = arith.mulf %79, %80 : vector<32x256xf32>
    %82 = vector.extract_strided_slice %71 {offsets = [0, 24], sizes = [32, 256], strides = [1, 1]} : vector<32x304xf32> to vector<32x256xf32>
    %83 = vector.extract_strided_slice %71 {offsets = [0, 25], sizes = [32, 256], strides = [1, 1]} : vector<32x304xf32> to vector<32x256xf32>
    %84 = vector.broadcast %41 : vector<1x256xf32> to vector<32x256xf32>
    %85 = arith.mulf %83, %84 : vector<32x256xf32>
    %86 = vector.extract_strided_slice %71 {offsets = [0, 39], sizes = [32, 256], strides = [1, 1]} : vector<32x304xf32> to vector<32x256xf32>
    %87 = vector.broadcast %37 : vector<1x256xf32> to vector<32x256xf32>
    %88 = arith.mulf %86, %87 : vector<32x256xf32>
    %89 = vector.extract_strided_slice %71 {offsets = [0, 40], sizes = [32, 256], strides = [1, 1]} : vector<32x304xf32> to vector<32x256xf32>
    %90 = vector.extract_strided_slice %71 {offsets = [0, 41], sizes = [32, 256], strides = [1, 1]} : vector<32x304xf32> to vector<32x256xf32>
    %91 = vector.broadcast %41 : vector<1x256xf32> to vector<32x256xf32>
    %92 = arith.mulf %90, %91 : vector<32x256xf32>
    %93 = tpu.concatenate %74, %75, %78, %81, %82, %85, %88, %89, %92 in 0 : vector<32x256xf32>, vector<32x256xf32>, vector<32x256xf32>, vector<32x256xf32>, vector<32x256xf32>, vector<32x256xf32>, vector<32x256xf32>, vector<32x256xf32>, vector<32x256xf32> -> vector<288x256xf32>
    %cst_32 = arith.constant dense<0.000000e+00> : vector<1x256xf32>
    %94 = tpu.matmul %68, %93, %cst_32 {dimension_numbers = #tpu.dot_dimension_numbers<[1], [0], [0], [1], [0, 0, 1, 1], [], []>, precision = #tpu.contract_precision<fp32>} : vector<1x288xf32>, vector<288x256xf32>, vector<1x256xf32> -> vector<1x256xf32>
    %95 = vector.broadcast %69 : vector<1x1xf32> to vector<1x256xf32>
    %96 = arith.addf %94, %95 : vector<1x256xf32>
    %97 = arith.addf %16, %96 : vector<1x256xf32>
    %c0_33 = arith.constant 0 : index
    %c0_34 = arith.constant 0 : index
    %98 = vector.load %arg15[%c0_33, %c0_34] : memref<1x256xf32, #tpu.memory_space<vmem>>, vector<1x256xf32>
    tpu.vector_store %arg15[%c0_33, %c0_34], %97 {strides = array<i32>} : memref<1x256xf32, #tpu.memory_space<vmem>>, vector<1x256xf32>,
    return
  }
}

</mosaic_0001>

<llo_original>
// kernel: basic_block_forward.1
$region0: #{basic_block_forward.1}
  #allocation0 [shape = 'u32[]', space=smem, size = 0x4, offset = 0x4, fixed_abs, tag = 'smem constant byte address 0x4 - core index']
  #allocation1 [shape = 'u32[144,128]{1,0:T(1,128)}', space=vmem, size = 0x12000, scoped, tag = 'internal scratch']
  #allocation2 [shape = 'f32[1]{0:T(128)S(6)}', space=smem, size = 0x200, scoped, tag = 'scoped memory for basic_block_forward.1']
  #allocation3 [shape = 'f32[1,1]{1,0:T(1,128)S(1)}', space=vmem, size = 0x200, scoped, tag = 'scoped memory for basic_block_forward.1']
  %s0 = inlined_call_operand.<no memory space> [shape: f32[1], index: 0, kind: input, shape index: {}]
  %s1 = inlined_call_operand.vmem [shape: f32[4,64], index: 1, kind: input, shape index: {}]
  %s2 = inlined_call_operand.vmem [shape: f32[64,64], index: 2, kind: input, shape index: {}]
  %s3 = inlined_call_operand.vmem [shape: f32[4,64], index: 3, kind: input, shape index: {}]
  %s4 = inlined_call_operand.vmem [shape: f32[64,256], index: 4, kind: input, shape index: {}]
  %s5 = inlined_call_operand.vmem [shape: f32[4,256], index: 5, kind: input, shape index: {}]
  %s6 = inlined_call_operand.vmem [shape: f32[32,1], index: 6, kind: input, shape index: {}]
  %s7 = inlined_call_operand.vmem [shape: f32[32,9], index: 7, kind: input, shape index: {}]
  %s8 = inlined_call_operand.vmem [shape: f32[32,1], index: 8, kind: input, shape index: {}]
  %s9 = inlined_call_operand.vmem [shape: f32[3,32,288], index: 9, kind: input, shape index: {}]
  %s10 = inlined_call_operand.vmem [shape: f32[3,32,1], index: 10, kind: input, shape index: {}]
  %s11 = inlined_call_operand.vmem [shape: f32[3,32,288], index: 11, kind: input, shape index: {}]
  %s12 = inlined_call_operand.vmem [shape: f32[3,32,1], index: 12, kind: input, shape index: {}]
  %s13 = inlined_call_operand.vmem [shape: f32[1,288], index: 13, kind: input, shape index: {}]
  %s14 = inlined_call_operand.<no memory space> [shape: f32[1,1], index: 14, kind: input, shape index: {}]
  %s15 = inlined_call_operand.vmem [shape: f32[1,256], index: 15, kind: output, shape index: {}]
  %s16 = sld [smem:[#allocation0]]
  $region77: #{basic_block_forward.1} parent=0
    _
  %s18 = ssub.s32 1, %s16
  %s19 = scalar_select 0, %s18, %s16
  %20 = sst [smem:[#allocation2]] %s0
  %v21 = vstv %s14
  %22 = vst [vmem:[#allocation3] sm:$0x1] %v21
  // Predicated region
  $region2: #{basic_block_forward.1} parent=0 // pred_check
    _
  $region3: #{basic_block_forward.1} parent=0 // pred_check_branch
    %24 = sbr.rel (0) target = $region5
  $region4: #{basic_block_forward.1} parent=0 // pred_region
    _
  $region5: #{basic_block_forward.1} parent=0 // pred_fallthru
    _
  // Predicated region
  $region6: #{basic_block_forward.1} parent=0 // pred_check
    _
  $region7: #{basic_block_forward.1} parent=0 // pred_check_branch
    %26 = sbr.rel (0) target = $region9
  $region8: #{basic_block_forward.1} parent=0 // pred_region
    _
  $region9: #{basic_block_forward.1} parent=0 // pred_fallthru
    _
  // Predicated region
  $region10: #{basic_block_forward.1} parent=0 // pred_check
    _
  $region11: #{basic_block_forward.1} parent=0 // pred_check_branch
    %28 = sbr.rel (0) target = $region13
  $region12: #{basic_block_forward.1} parent=0 // pred_region
    _
  $region13: #{basic_block_forward.1} parent=0 // pred_fallthru
    _
  // Predicated region
  $region14: #{basic_block_forward.1} parent=0 // pred_check
    _
  $region15: #{basic_block_forward.1} parent=0 // pred_check_branch
    %30 = sbr.rel (0) target = $region17
  $region16: #{basic_block_forward.1} parent=0 // pred_region
    _
  $region17: #{basic_block_forward.1} parent=0 // pred_fallthru
    _
  // Predicated region
  $region18: #{basic_block_forward.1} parent=0 // pred_check
    _
  $region19: #{basic_block_forward.1} parent=0 // pred_check_branch
    %32 = sbr.rel (0) target = $region21
  $region20: #{basic_block_forward.1} parent=0 // pred_region
    _
  $region21: #{basic_block_forward.1} parent=0 // pred_fallthru
    _
  // Predicated region
  $region22: #{basic_block_forward.1} parent=0 // pred_check
    _
  $region23: #{basic_block_forward.1} parent=0 // pred_check_branch
    %34 = sbr.rel (0) target = $region25
  $region24: #{basic_block_forward.1} parent=0 // pred_region
    _
  $region25: #{basic_block_forward.1} parent=0 // pred_fallthru
    _
  // Predicated region
  $region26: #{basic_block_forward.1} parent=0 // pred_check
    _
  $region27: #{basic_block_forward.1} parent=0 // pred_check_branch
    %36 = sbr.rel (0) target = $region29
  $region28: #{basic_block_forward.1} parent=0 // pred_region
    _
  $region29: #{basic_block_forward.1} parent=0 // pred_fallthru
    _
  // Predicated region
  $region30: #{basic_block_forward.1} parent=0 // pred_check
    _
  $region31: #{basic_block_forward.1} parent=0 // pred_check_branch
    %38 = sbr.rel (0) target = $region33
  $region32: #{basic_block_forward.1} parent=0 // pred_region
    _
  $region33: #{basic_block_forward.1} parent=0 // pred_fallthru
    _
  // Predicated region
  $region34: #{basic_block_forward.1} parent=0 // pred_check
    _
  $region35: #{basic_block_forward.1} parent=0 // pred_check_branch
    %40 = sbr.rel (0) target = $region37
  $region36: #{basic_block_forward.1} parent=0 // pred_region
    _
  $region37: #{basic_block_forward.1} parent=0 // pred_fallthru
    _
  // Predicated region
  $region38: #{basic_block_forward.1} parent=0 // pred_check
    _
  $region39: #{basic_block_forward.1} parent=0 // pred_check_branch
    %42 = sbr.rel (0) target = $region41
  $region40: #{basic_block_forward.1} parent=0 // pred_region
    _
  $region41: #{basic_block_forward.1} parent=0 // pred_fallthru
    _
  // Predicated region
  $region42: #{basic_block_forward.1} parent=0 // pred_check
    _
  $region43: #{basic_block_forward.1} parent=0 // pred_check_branch
    %44 = sbr.rel (0) target = $region45
  $region44: #{basic_block_forward.1} parent=0 // pred_region
    _
  $region45: #{basic_block_forward.1} parent=0 // pred_fallthru
    _
  // Predicated region
  $region46: #{basic_block_forward.1} parent=0 // pred_check
    _
  $region47: #{basic_block_forward.1} parent=0 // pred_check_branch
    %46 = sbr.rel (0) target = $region49
  $region48: #{basic_block_forward.1} parent=0 // pred_region
    _
  $region49: #{basic_block_forward.1} parent=0 // pred_fallthru
    _
  // Predicated region
  $region50: #{basic_block_forward.1} parent=0 // pred_check
    _
  $region51: #{basic_block_forward.1} parent=0 // pred_check_branch
    %48 = sbr.rel (0) target = $region53
  $region52: #{basic_block_forward.1} parent=0 // pred_region
    _
  $region53: #{basic_block_forward.1} parent=0 // pred_fallthru
    _
  // Predicated region
  $region54: #{basic_block_forward.1} parent=0 // pred_check
    _
  $region55: #{basic_block_forward.1} parent=0 // pred_check_branch
    %50 = sbr.rel (0) target = $region57
  $region56: #{basic_block_forward.1} parent=0 // pred_region
    _
  $region57: #{basic_block_forward.1} parent=0 // pred_fallthru
    _
  // Predicated region
  $region58: #{basic_block_forward.1} parent=0 // pred_check
    _
  $region59: #{basic_block_forward.1} parent=0 // pred_check_branch
    %52 = sbr.rel (0) target = $region61
  $region60: #{basic_block_forward.1} parent=0 // pred_region
    _
  $region61: #{basic_block_forward.1} parent=0 // pred_fallthru
    _
  %s53 = sld [smem:[#allocation2]]
  %v54 = vld [vmem:[%s1] sm:$0xf]
  %v55 = vld [vmem:[%s2] sm:$0xff]
  %v56 = vld [vmem:[%s2 + $0x8] sm:$0xff]
  %v57 = vld [vmem:[%s2 + $0x10] sm:$0xff]
  %v58 = vld [vmem:[%s2 + $0x18] sm:$0xff]
  %v59 = vld [vmem:[%s2 + $0x20] sm:$0xff]
  %v60 = vld [vmem:[%s2 + $0x28] sm:$0xff]
  %v61 = vld [vmem:[%s2 + $0x30] sm:$0xff]
  %v62 = vld [vmem:[%s2 + $0x38] sm:$0xff]
  %vm63 = vcmask 523264
  %v65 = vsel %vm63, %v54, 0
  %67 = vmatprep.subr.mxu0 0.0
  %v68 = vand.u32 %v55, 4294901760
  %69 = vmatpush1.msra.mxu0 %v68
  %70 = vmatprep.subr.mxu0 0.0
  %v71 = vand.u32 %v56, 4294901760
  %72 = vmatpush1.msra.mxu0 %v71
  %73 = vmatprep.subr.mxu0 0.0
  %v74 = vand.u32 %v57, 4294901760
  %75 = vmatpush1.msra.mxu0 %v74
  %76 = vmatprep.subr.mxu0 0.0
  %v77 = vand.u32 %v58, 4294901760
  %78 = vmatpush1.msra.mxu0 %v77
  %79 = vmatprep.subr.mxu0 0.0
  %v80 = vand.u32 %v59, 4294901760
  %81 = vmatpush1.msra.mxu0 %v80
  %82 = vmatprep.subr.mxu0 0.0
  %v83 = vand.u32 %v60, 4294901760
  %84 = vmatpush1.msra.mxu0 %v83
  %85 = vmatprep.subr.mxu0 0.0
  %v86 = vand.u32 %v61, 4294901760
  %87 = vmatpush1.msra.mxu0 %v86
  %88 = vmatprep.subr.mxu0 0.0
  %v89 = vand.u32 %v62, 4294901760
  %90 = vmatpush1.msra.mxu0 %v89
  %91 = vmatprep.subr.mxu0 0.0
  %92 = vmatpush1.msra.mxu0 0.0
  %93 = vmatprep.subr.mxu0 0.0
  %94 = vmatpush1.msra.mxu0 0.0
  %95 = vmatprep.subr.mxu0 0.0
  %96 = vmatpush1.msra.mxu0 0.0
  %97 = vmatprep.subr.mxu0 0.0
  %98 = vmatpush1.msra.mxu0 0.0
  %99 = vmatprep.subr.mxu0 0.0
  %100 = vmatpush1.msra.mxu0 0.0
  %101 = vmatprep.subr.mxu0 0.0
  %102 = vmatpush1.msra.mxu0 0.0
  %103 = vmatprep.subr.mxu0 0.0
  %104 = vmatpush1.msra.mxu0 0.0
  %105 = vmatprep.subr.mxu0 0.0
  %106 = vmatpush1.msra.mxu0 0.0
  %107 = vmatprep.subr.mxu0 0.0
  %108 = vmatpush1.msra.mxu0 0.0
  %109 = vmatprep.subr.mxu0 0.0
  %110 = vmatpush1.msra.mxu0 0.0
  %111 = vmatprep.subr.mxu0 0.0
  %112 = vmatpush1.msra.mxu0 0.0
  %113 = vmatprep.subr.mxu0 0.0
  %114 = vmatpush1.msra.mxu0 0.0
  %115 = vmatprep.subr.mxu0 0.0
  %116 = vmatpush1.msra.mxu0 0.0
  %117 = vmatprep.subr.mxu0 0.0
  %118 = vmatpush1.msra.mxu0 0.0
  %119 = vmatprep.subr.mxu0 0.0
  %120 = vmatpush1.msra.mxu0 0.0
  %121 = vmatprep.subr.mxu0 0.0
  %122 = vmatpush1.msra.mxu0 0.0
  %123 = vmatprep.subr.mxu0 0.0
  %124 = vmatpush1.msra.mxu0 0.0
  %125 = vmatprep.subr.mxu0 0.0
  %126 = vmatpush1.msra.mxu0 0.0
  %127 = vmatprep.subr.mxu0 0.0
  %128 = vmatpush1.msra.mxu0 0.0
  %129 = vmatprep.subr.mxu0 0.0
  %130 = vmatpush1.msra.mxu0 0.0
  %131 = vmatprep.subr.mxu0 0.0
  %132 = vmatpush1.msra.mxu0 0.0
  %133 = vmatprep.subr.mxu0 0.0
  %134 = vmatpush1.msra.mxu0 0.0
  %135 = vmatprep.subr.mxu0 0.0
  %136 = vmatpush1.msra.mxu0 0.0
  %137 = vmatprep.subr.mxu0 0.0
  %138 = vmatpush1.msra.mxu0 0.0
  %139 = vmatprep.mubr.f32.mxu0 0.0
  %v140 = vand.u32 %v65, 4294901760
  %v141 = vsub.f32 %v65, %v140
  %v142 = vand.u32 %v141, 4294901760
  %v143 = vsub.f32 %v141, %v142
  %v144 = vand.u32 %v143, 4294901760
  %145 = vmatmul.mubr.f32.gmra.mrb[0].mxu0 %v144
  %v146 = vpop.f32.mrb[0].mxu0
  %v147 = vadd.f32 0.0, %v146
  %v148 = vpop.f32.mrb[0].mxu0
  %149 = vdwg.mxu0
  %150 = vmatprep.subr.mxu0 0.0
  %v151 = vand.u32 %v55, 4294901760
  %v152 = vsub.f32 %v55, %v151
  %v153 = vand.u32 %v152, 4294901760
  %v154 = vsub.f32 %v152, %v153
  %v155 = vand.u32 %v154, 4294901760
  %156 = vmatpush1.msra.mxu0 %v155
  %157 = vmatprep.subr.mxu0 0.0
  %v158 = vand.u32 %v56, 4294901760
  %v159 = vsub.f32 %v56, %v158
  %v160 = vand.u32 %v159, 4294901760
  %v161 = vsub.f32 %v159, %v160
  %v162 = vand.u32 %v161, 4294901760
  %163 = vmatpush1.msra.mxu0 %v162
  %164 = vmatprep.subr.mxu0 0.0
  %v165 = vand.u32 %v57, 4294901760
  %v166 = vsub.f32 %v57, %v165
  %v167 = vand.u32 %v166, 4294901760
  %v168 = vsub.f32 %v166, %v167
  %v169 = vand.u32 %v168, 4294901760
  %170 = vmatpush1.msra.mxu0 %v169
  %171 = vmatprep.subr.mxu0 0.0
  %v172 = vand.u32 %v58, 4294901760
  %v173 = vsub.f32 %v58, %v172
  %v174 = vand.u32 %v173, 4294901760
  %v175 = vsub.f32 %v173, %v174
  %v176 = vand.u32 %v175, 4294901760
  %177 = vmatpush1.msra.mxu0 %v176
  %178 = vmatprep.subr.mxu0 0.0
  %v179 = vand.u32 %v59, 4294901760
  %v180 = vsub.f32 %v59, %v179
  %v181 = vand.u32 %v180, 4294901760
  %v182 = vsub.f32 %v180, %v181
  %v183 = vand.u32 %v182, 4294901760
  %184 = vmatpush1.msra.mxu0 %v183
  %185 = vmatprep.subr.mxu0 0.0
  %v186 = vand.u32 %v60, 4294901760
  %v187 = vsub.f32 %v60, %v186
  %v188 = vand.u32 %v187, 4294901760
  %v189 = vsub.f32 %v187, %v188
  %v190 = vand.u32 %v189, 4294901760
  %191 = vmatpush1.msra.mxu0 %v190
  %192 = vmatprep.subr.mxu0 0.0
  %v193 = vand.u32 %v61, 4294901760
  %v194 = vsub.f32 %v61, %v193
  %v195 = vand.u32 %v194, 4294901760
  %v196 = vsub.f32 %v194, %v195
  %v197 = vand.u32 %v196, 4294901760
  %198 = vmatpush1.msra.mxu0 %v197
  %199 = vmatprep.subr.mxu0 0.0
  %v200 = vand.u32 %v62, 4294901760
  %v201 = vsub.f32 %v62, %v200
  %v202 = vand.u32 %v201, 4294901760
  %v203 = vsub.f32 %v201, %v202
  %v204 = vand.u32 %v203, 4294901760
  %205 = vmatpush1.msra.mxu0 %v204
  %206 = vmatprep.subr.mxu0 0.0
  %207 = vmatpush1.msra.mxu0 0.0
  %208 = vmatprep.subr.mxu0 0.0
  %209 = vmatpush1.msra.mxu0 0.0
  %210 = vmatprep.subr.mxu0 0.0
  %211 = vmatpush1.msra.mxu0 0.0
  %212 = vmatprep.subr.mxu0 0.0
  %213 = vmatpush1.msra.mxu0 0.0
  %214 = vmatprep.subr.mxu0 0.0
  %215 = vmatpush1.msra.mxu0 0.0
  %216 = vmatprep.subr.mxu0 0.0
  %217 = vmatpush1.msra.mxu0 0.0
  %218 = vmatprep.subr.mxu0 0.0
  %219 = vmatpush1.msra.mxu0 0.0
  %220 = vmatprep.subr.mxu0 0.0
  %221 = vmatpush1.msra.mxu0 0.0
  %222 = vmatprep.subr.mxu0 0.0
  %223 = vmatpush1.msra.mxu0 0.0
  %224 = vmatprep.subr.mxu0 0.0
  %225 = vmatpush1.msra.mxu0 0.0
  %226 = vmatprep.subr.mxu0 0.0
  %227 = vmatpush1.msra.mxu0 0.0
  %228 = vmatprep.subr.mxu0 0.0
  %229 = vmatpush1.msra.mxu0 0.0
  %230 = vmatprep.subr.mxu0 0.0
  %231 = vmatpush1.msra.mxu0 0.0
  %232 = vmatprep.subr.mxu0 0.0
  %233 = vmatpush1.msra.mxu0 0.0
  %234 = vmatprep.subr.mxu0 0.0
  %235 = vmatpush1.msra.mxu0 0.0
  %236 = vmatprep.subr.mxu0 0.0
  %237 = vmatpush1.msra.mxu0 0.0
  %238 = vmatprep.subr.mxu0 0.0
  %239 = vmatpush1.msra.mxu0 0.0
  %240 = vmatprep.subr.mxu0 0.0
  %241 = vmatpush1.msra.mxu0 0.0
  %242 = vmatprep.subr.mxu0 0.0
  %243 = vmatpush1.msra.mxu0 0.0
  %244 = vmatprep.subr.mxu0 0.0
  %245 = vmatpush1.msra.mxu0 0.0
  %246 = vmatprep.subr.mxu0 0.0
  %247 = vmatpush1.msra.mxu0 0.0
  %248 = vmatprep.subr.mxu0 0.0
  %249 = vmatpush1.msra.mxu0 0.0
  %250 = vmatprep.subr.mxu0 0.0
  %251 = vmatpush1.msra.mxu0 0.0
  %252 = vmatprep.subr.mxu0 0.0
  %253 = vmatpush1.msra.mxu0 0.0
  %254 = vmatprep.mubr.f32.mxu0 0.0
  %v255 = vand.u32 %v65, 4294901760
  %256 = vmatmul.mubr.f32.gmra.mrb[0].mxu0 %v255
  %v257 = vpop.f32.mrb[0].mxu0
  %v258 = vadd.f32 %v147, %v257
  %v259 = vpop.f32.mrb[0].mxu0
  %260 = vdwg.mxu0
  %261 = vmatprep.subr.mxu0 0.0
  %v262 = vand.u32 %v55, 4294901760
  %v263 = vsub.f32 %v55, %v262
  %264 = vmatpush1.msra.mxu0 %v263
  %265 = vmatprep.subr.mxu0 0.0
  %v266 = vand.u32 %v56, 4294901760
  %v267 = vsub.f32 %v56, %v266
  %268 = vmatpush1.msra.mxu0 %v267
  %269 = vmatprep.subr.mxu0 0.0
  %v270 = vand.u32 %v57, 4294901760
  %v271 = vsub.f32 %v57, %v270
  %272 = vmatpush1.msra.mxu0 %v271
  %273 = vmatprep.subr.mxu0 0.0
  %v274 = vand.u32 %v58, 4294901760
  %v275 = vsub.f32 %v58, %v274
  %276 = vmatpush1.msra.mxu0 %v275
  %277 = vmatprep.subr.mxu0 0.0
  %v278 = vand.u32 %v59, 4294901760
  %v279 = vsub.f32 %v59, %v278
  %280 = vmatpush1.msra.mxu0 %v279
  %281 = vmatprep.subr.mxu0 0.0
  %v282 = vand.u32 %v60, 4294901760
  %v283 = vsub.f32 %v60, %v282
  %284 = vmatpush1.msra.mxu0 %v283
  %285 = vmatprep.subr.mxu0 0.0
  %v286 = vand.u32 %v61, 4294901760
  %v287 = vsub.f32 %v61, %v286
  %288 = vmatpush1.msra.mxu0 %v287
  %289 = vmatprep.subr.mxu0 0.0
  %v290 = vand.u32 %v62, 4294901760
  %v291 = vsub.f32 %v62, %v290
  %292 = vmatpush1.msra.mxu0 %v291
  %293 = vmatprep.subr.mxu0 0.0
  %294 = vmatpush1.msra.mxu0 0.0
  %295 = vmatprep.subr.mxu0 0.0
  %296 = vmatpush1.msra.mxu0 0.0
  %297 = vmatprep.subr.mxu0 0.0
  %298 = vmatpush1.msra.mxu0 0.0
  %299 = vmatprep.subr.mxu0 0.0
  %300 = vmatpush1.msra.mxu0 0.0
  %301 = vmatprep.subr.mxu0 0.0
  %302 = vmatpush1.msra.mxu0 0.0
  %303 = vmatprep.subr.mxu0 0.0
  %304 = vmatpush1.msra.mxu0 0.0
  %305 = vmatprep.subr.mxu0 0.0
  %306 = vmatpush1.msra.mxu0 0.0
  %307 = vmatprep.subr.mxu0 0.0
  %308 = vmatpush1.msra.mxu0 0.0
  %309 = vmatprep.subr.mxu0 0.0
  %310 = vmatpush1.msra.mxu0 0.0
  %311 = vmatprep.subr.mxu0 0.0
  %312 = vmatpush1.msra.mxu0 0.0
  %313 = vmatprep.subr.mxu0 0.0
  %314 = vmatpush1.msra.mxu0 0.0
  %315 = vmatprep.subr.mxu0 0.0
  %316 = vmatpush1.msra.mxu0 0.0
  %317 = vmatprep.subr.mxu0 0.0
  %318 = vmatpush1.msra.mxu0 0.0
  %319 = vmatprep.subr.mxu0 0.0
  %320 = vmatpush1.msra.mxu0 0.0
  %321 = vmatprep.subr.mxu0 0.0
  %322 = vmatpush1.msra.mxu0 0.0
  %323 = vmatprep.subr.mxu0 0.0
  %324 = vmatpush1.msra.mxu0 0.0
  %325 = vmatprep.subr.mxu0 0.0
  %326 = vmatpush1.msra.mxu0 0.0
  %327 = vmatprep.subr.mxu0 0.0
  %328 = vmatpush1.msra.mxu0 0.0
  %329 = vmatprep.subr.mxu0 0.0
  %330 = vmatpush1.msra.mxu0 0.0
  %331 = vmatprep.subr.mxu0 0.0
  %332 = vmatpush1.msra.mxu0 0.0
  %333 = vmatprep.subr.mxu0 0.0
  %334 = vmatpush1.msra.mxu0 0.0
  %335 = vmatprep.subr.mxu0 0.0
  %336 = vmatpush1.msra.mxu0 0.0
  %337 = vmatprep.subr.mxu0 0.0
  %338 = vmatpush1.msra.mxu0 0.0
  %339 = vmatprep.subr.mxu0 0.0
  %340 = vmatpush1.msra.mxu0 0.0
  %341 = vmatprep.mubr.f32.mxu0 0.0
  %v342 = vand.u32 %v65, 4294901760
  %v343 = vsub.f32 %v65, %v342
  %344 = vmatmul.mubr.f32.gmra.mrb[0].mxu0 %v343
  %v345 = vpop.f32.mrb[0].mxu0
  %v346 = vadd.f32 %v258, %v345
  %v347 = vpop.f32.mrb[0].mxu0
  %348 = vdwg.mxu0
  %349 = vmatprep.subr.mxu0 0.0
  %v350 = vand.u32 %v55, 4294901760
  %351 = vmatpush1.msra.mxu0 %v350
  %352 = vmatprep.subr.mxu0 0.0
  %v353 = vand.u32 %v56, 4294901760
  %354 = vmatpush1.msra.mxu0 %v353
  %355 = vmatprep.subr.mxu0 0.0
  %v356 = vand.u32 %v57, 4294901760
  %357 = vmatpush1.msra.mxu0 %v356
  %358 = vmatprep.subr.mxu0 0.0
  %v359 = vand.u32 %v58, 4294901760
  %360 = vmatpush1.msra.mxu0 %v359
  %361 = vmatprep.subr.mxu0 0.0
  %v362 = vand.u32 %v59, 4294901760
  %363 = vmatpush1.msra.mxu0 %v362
  %364 = vmatprep.subr.mxu0 0.0
  %v365 = vand.u32 %v60, 4294901760
  %366 = vmatpush1.msra.mxu0 %v365
  %367 = vmatprep.subr.mxu0 0.0
  %v368 = vand.u32 %v61, 4294901760
  %369 = vmatpush1.msra.mxu0 %v368
  %370 = vmatprep.subr.mxu0 0.0
  %v371 = vand.u32 %v62, 4294901760
  %372 = vmatpush1.msra.mxu0 %v371
  %373 = vmatprep.subr.mxu0 0.0
  %374 = vmatpush1.msra.mxu0 0.0
  %375 = vmatprep.subr.mxu0 0.0
  %376 = vmatpush1.msra.mxu0 0.0
  %377 = vmatprep.subr.mxu0 0.0
  %378 = vmatpush1.msra.mxu0 0.0
  %379 = vmatprep.subr.mxu0 0.0
  %380 = vmatpush1.msra.mxu0 0.0
  %381 = vmatprep.subr.mxu0 0.0
  %382 = vmatpush1.msra.mxu0 0.0
  %383 = vmatprep.subr.mxu0 0.0
  %384 = vmatpush1.msra.mxu0 0.0
  %385 = vmatprep.subr.mxu0 0.0
  %386 = vmatpush1.msra.mxu0 0.0
  %387 = vmatprep.subr.mxu0 0.0
  %388 = vmatpush1.msra.mxu0 0.0
  %389 = vmatprep.subr.mxu0 0.0
  %390 = vmatpush1.msra.mxu0 0.0
  %391 = vmatprep.subr.mxu0 0.0
  %392 = vmatpush1.msra.mxu0 0.0
  %393 = vmatprep.subr.mxu0 0.0
  %394 = vmatpush1.msra.mxu0 0.0
  %395 = vmatprep.subr.mxu0 0.0
  %396 = vmatpush1.msra.mxu0 0.0
  %397 = vmatprep.subr.mxu0 0.0
  %398 = vmatpush1.msra.mxu0 0.0
  %399 = vmatprep.subr.mxu0 0.0
  %400 = vmatpush1.msra.mxu0 0.0
  %401 = vmatprep.subr.mxu0 0.0
  %402 = vmatpush1.msra.mxu0 0.0
  %403 = vmatprep.subr.mxu0 0.0
  %404 = vmatpush1.msra.mxu0 0.0
  %405 = vmatprep.subr.mxu0 0.0
  %406 = vmatpush1.msra.mxu0 0.0
  %407 = vmatprep.subr.mxu0 0.0
  %408 = vmatpush1.msra.mxu0 0.0
  %409 = vmatprep.subr.mxu0 0.0
  %410 = vmatpush1.msra.mxu0 0.0
  %411 = vmatprep.subr.mxu0 0.0
  %412 = vmatpush1.msra.mxu0 0.0
  %413 = vmatprep.subr.mxu0 0.0
  %414 = vmatpush1.msra.mxu0 0.0
  %415 = vmatprep.subr.mxu0 0.0
  %416 = vmatpush1.msra.mxu0 0.0
  %417 = vmatprep.subr.mxu0 0.0
  %418 = vmatpush1.msra.mxu0 0.0
  %419 = vmatprep.subr.mxu0 0.0
  %420 = vmatpush1.msra.mxu0 0.0
  %421 = vmatprep.mubr.f32.mxu0 0.0
  %v422 = vand.u32 %v65, 4294901760
  %v423 = vsub.f32 %v65, %v422
  %v424 = vand.u32 %v423, 4294901760
  %425 = vmatmul.mubr.f32.gmra.mrb[0].mxu0 %v424
  %v426 = vpop.f32.mrb[0].mxu0
  %v427 = vadd.f32 %v346, %v426
  %v428 = vpop.f32.mrb[0].mxu0
  %429 = vdwg.mxu0
  %430 = vmatprep.subr.mxu0 0.0
  %v431 = vand.u32 %v55, 4294901760
  %v432 = vsub.f32 %v55, %v431
  %v433 = vand.u32 %v432, 4294901760
  %434 = vmatpush1.msra.mxu0 %v433
  %435 = vmatprep.subr.mxu0 0.0
  %v436 = vand.u32 %v56, 4294901760
  %v437 = vsub.f32 %v56, %v436
  %v438 = vand.u32 %v437, 4294901760
  %439 = vmatpush1.msra.mxu0 %v438
  %440 = vmatprep.subr.mxu0 0.0
  %v441 = vand.u32 %v57, 4294901760
  %v442 = vsub.f32 %v57, %v441
  %v443 = vand.u32 %v442, 4294901760
  %444 = vmatpush1.msra.mxu0 %v443
  %445 = vmatprep.subr.mxu0 0.0
  %v446 = vand.u32 %v58, 4294901760
  %v447 = vsub.f32 %v58, %v446
  %v448 = vand.u32 %v447, 4294901760
  %449 = vmatpush1.msra.mxu0 %v448
  %450 = vmatprep.subr.mxu0 0.0
  %v451 = vand.u32 %v59, 4294901760
  %v452 = vsub.f32 %v59, %v451
  %v453 = vand.u32 %v452, 4294901760
  %454 = vmatpush1.msra.mxu0 %v453
  %455 = vmatprep.subr.mxu0 0.0
  %v456 = vand.u32 %v60, 4294901760
  %v457 = vsub.f32 %v60, %v456
  %v458 = vand.u32 %v457, 4294901760
  %459 = vmatpush1.msra.mxu0 %v458
  %460 = vmatprep.subr.mxu0 0.0
  %v461 = vand.u32 %v61, 4294901760
  %v462 = vsub.f32 %v61, %v461
  %v463 = vand.u32 %v462, 4294901760
  %464 = vmatpush1.msra.mxu0 %v463
  %465 = vmatprep.subr.mxu0 0.0
  %v466 = vand.u32 %v62, 4294901760
  %v467 = vsub.f32 %v62, %v466
  %v468 = vand.u32 %v467, 4294901760
  %469 = vmatpush1.msra.mxu0 %v468
  %470 = vmatprep.subr.mxu0 0.0
  %471 = vmatpush1.msra.mxu0 0.0
  %472 = vmatprep.subr.mxu0 0.0
  %473 = vmatpush1.msra.mxu0 0.0
  %474 = vmatprep.subr.mxu0 0.0
  %475 = vmatpush1.msra.mxu0 0.0
  %476 = vmatprep.subr.mxu0 0.0
  %477 = vmatpush1.msra.mxu0 0.0
  %478 = vmatprep.subr.mxu0 0.0
  %479 = vmatpush1.msra.mxu0 0.0
  %480 = vmatprep.subr.mxu0 0.0
  %481 = vmatpush1.msra.mxu0 0.0
  %482 = vmatprep.subr.mxu0 0.0
  %483 = vmatpush1.msra.mxu0 0.0
  %484 = vmatprep.subr.mxu0 0.0
  %485 = vmatpush1.msra.mxu0 0.0
  %486 = vmatprep.subr.mxu0 0.0
  %487 = vmatpush1.msra.mxu0 0.0
  %488 = vmatprep.subr.mxu0 0.0
  %489 = vmatpush1.msra.mxu0 0.0
  %490 = vmatprep.subr.mxu0 0.0
  %491 = vmatpush1.msra.mxu0 0.0
  %492 = vmatprep.subr.mxu0 0.0
  %493 = vmatpush1.msra.mxu0 0.0
  %494 = vmatprep.subr.mxu0 0.0
  %495 = vmatpush1.msra.mxu0 0.0
  %496 = vmatprep.subr.mxu0 0.0
  %497 = vmatpush1.msra.mxu0 0.0
  %498 = vmatprep.subr.mxu0 0.0
  %499 = vmatpush1.msra.mxu0 0.0
  %500 = vmatprep.subr.mxu0 0.0
  %501 = vmatpush1.msra.mxu0 0.0
  %502 = vmatprep.subr.mxu0 0.0
  %503 = vmatpush1.msra.mxu0 0.0
  %504 = vmatprep.subr.mxu0 0.0
  %505 = vmatpush1.msra.mxu0 0.0
  %506 = vmatprep.subr.mxu0 0.0
  %507 = vmatpush1.msra.mxu0 0.0
  %508 = vmatprep.subr.mxu0 0.0
  %509 = vmatpush1.msra.mxu0 0.0
  %510 = vmatprep.subr.mxu0 0.0
  %511 = vmatpush1.msra.mxu0 0.0
  %512 = vmatprep.subr.mxu0 0.0
  %513 = vmatpush1.msra.mxu0 0.0
  %514 = vmatprep.subr.mxu0 0.0
  %515 = vmatpush1.msra.mxu0 0.0
  %516 = vmatprep.subr.mxu0 0.0
  %517 = vmatpush1.msra.mxu0 0.0
  %518 = vmatprep.mubr.f32.mxu0 0.0
  %v519 = vand.u32 %v65, 4294901760
  %520 = vmatmul.mubr.f32.gmra.mrb[0].mxu0 %v519
  %v521 = vpop.f32.mrb[0].mxu0
  %v522 = vadd.f32 %v427, %v521
  %v523 = vpop.f32.mrb[0].mxu0
  %524 = vdwg.mxu0
  %525 = vmatprep.subr.mxu0 0.0
  %v526 = vand.u32 %v55, 4294901760
  %527 = vmatpush1.msra.mxu0 %v526
  %528 = vmatprep.subr.mxu0 0.0
  %v529 = vand.u32 %v56, 4294901760
  %530 = vmatpush1.msra.mxu0 %v529
  %531 = vmatprep.subr.mxu0 0.0
  %v532 = vand.u32 %v57, 4294901760
  %533 = vmatpush1.msra.mxu0 %v532
  %534 = vmatprep.subr.mxu0 0.0
  %v535 = vand.u32 %v58, 4294901760
  %536 = vmatpush1.msra.mxu0 %v535
  %537 = vmatprep.subr.mxu0 0.0
  %v538 = vand.u32 %v59, 4294901760
  %539 = vmatpush1.msra.mxu0 %v538
  %540 = vmatprep.subr.mxu0 0.0
  %v541 = vand.u32 %v60, 4294901760
  %542 = vmatpush1.msra.mxu0 %v541
  %543 = vmatprep.subr.mxu0 0.0
  %v544 = vand.u32 %v61, 4294901760
  %545 = vmatpush1.msra.mxu0 %v544
  %546 = vmatprep.subr.mxu0 0.0
  %v547 = vand.u32 %v62, 4294901760
  %548 = vmatpush1.msra.mxu0 %v547
  %549 = vmatprep.subr.mxu0 0.0
  %550 = vmatpush1.msra.mxu0 0.0
  %551 = vmatprep.subr.mxu0 0.0
  %552 = vmatpush1.msra.mxu0 0.0
  %553 = vmatprep.subr.mxu0 0.0
  %554 = vmatpush1.msra.mxu0 0.0
  %555 = vmatprep.subr.mxu0 0.0
  %556 = vmatpush1.msra.mxu0 0.0
  %557 = vmatprep.subr.mxu0 0.0
  %558 = vmatpush1.msra.mxu0 0.0
  %559 = vmatprep.subr.mxu0 0.0
  %560 = vmatpush1.msra.mxu0 0.0
  %561 = vmatprep.subr.mxu0 0.0
  %562 = vmatpush1.msra.mxu0 0.0
  %563 = vmatprep.subr.mxu0 0.0
  %564 = vmatpush1.msra.mxu0 0.0
  %565 = vmatprep.subr.mxu0 0.0
  %566 = vmatpush1.msra.mxu0 0.0
  %567 = vmatprep.subr.mxu0 0.0
  %568 = vmatpush1.msra.mxu0 0.0
  %569 = vmatprep.subr.mxu0 0.0
  %570 = vmatpush1.msra.mxu0 0.0
  %571 = vmatprep.subr.mxu0 0.0
  %572 = vmatpush1.msra.mxu0 0.0
  %573 = vmatprep.subr.mxu0 0.0
  %574 = vmatpush1.msra.mxu0 0.0
  %575 = vmatprep.subr.mxu0 0.0
  %576 = vmatpush1.msra.mxu0 0.0
  %577 = vmatprep.subr.mxu0 0.0
  %578 = vmatpush1.msra.mxu0 0.0
  %579 = vmatprep.subr.mxu0 0.0
  %580 = vmatpush1.msra.mxu0 0.0
  %581 = vmatprep.subr.mxu0 0.0
  %582 = vmatpush1.msra.mxu0 0.0
  %583 = vmatprep.subr.mxu0 0.0
  %584 = vmatpush1.msra.mxu0 0.0
  %585 = vmatprep.subr.mxu0 0.0
  %586 = vmatpush1.msra.mxu0 0.0
  %587 = vmatprep.subr.mxu0 0.0
  %588 = vmatpush1.msra.mxu0 0.0
  %589 = vmatprep.subr.mxu0 0.0
  %590 = vmatpush1.msra.mxu0 0.0
  %591 = vmatprep.subr.mxu0 0.0
  %592 = vmatpush1.msra.mxu0 0.0
  %593 = vmatprep.subr.mxu0 0.0
  %594 = vmatpush1.msra.mxu0 0.0
  %595 = vmatprep.subr.mxu0 0.0
  %596 = vmatpush1.msra.mxu0 0.0
  %597 = vmatprep.mubr.f32.mxu0 0.0
  %v598 = vand.u32 %v65, 4294901760
  %599 = vmatmul.mubr.f32.gmra.mrb[0].mxu0 %v598
  %v600 = vpop.f32.mrb[0].mxu0
  %v601 = vadd.f32 %v522, %v600
  %v602 = vpop.f32.mrb[0].mxu0
  %603 = vdwg.mxu0
  %v604 = vstv %s53
  %v605 = vmul.f32 %v604, %v601
  %v606 = vsub.f32 %v54, %v605
  %v607 = vld [vmem:[%s3] sm:$0xf]
  %v608 = vmul.f32 %v604, %v607
  %v609 = vadd.f32 %v606, %v608
  %v610 = vld [vmem:[%s4] sm:$0xff]
  %v611 = vld [vmem:[%s4 + $0x8] sm:$0xff]
  %v612 = vld [vmem:[%s4 + $0x10] sm:$0xff]
  %v613 = vld [vmem:[%s4 + $0x18] sm:$0xff]
  %v614 = vld [vmem:[%s4 + $0x20] sm:$0xff]
  %v615 = vld [vmem:[%s4 + $0x28] sm:$0xff]
  %v616 = vld [vmem:[%s4 + $0x30] sm:$0xff]
  %v617 = vld [vmem:[%s4 + $0x38] sm:$0xff]
  %v618 = vld [vmem:[%s4 + $0x40] sm:$0xff]
  %v619 = vld [vmem:[%s4 + $0x48] sm:$0xff]
  %v620 = vld [vmem:[%s4 + $0x50] sm:$0xff]
  %v621 = vld [vmem:[%s4 + $0x58] sm:$0xff]
  %v622 = vld [vmem:[%s4 + $0x60] sm:$0xff]
  %v623 = vld [vmem:[%s4 + $0x68] sm:$0xff]
  %v624 = vld [vmem:[%s4 + $0x70] sm:$0xff]
  %v625 = vld [vmem:[%s4 + $0x78] sm:$0xff]
  %v627 = vsel %vm63, %v609, 0
  %v629 = vand.u32 %v611, 4294901760
  %630 = vmatprep.subr.mxu0 %v629
  %v631 = vand.u32 %v610, 4294901760
  %632 = vmatpush1.msra.mxu0 %v631
  %v633 = vand.u32 %v613, 4294901760
  %634 = vmatprep.subr.mxu0 %v633
  %v635 = vand.u32 %v612, 4294901760
  %636 = vmatpush1.msra.mxu0 %v635
  %v637 = vand.u32 %v615, 4294901760
  %638 = vmatprep.subr.mxu0 %v637
  %v639 = vand.u32 %v614, 4294901760
  %640 = vmatpush1.msra.mxu0 %v639
  %v641 = vand.u32 %v617, 4294901760
  %642 = vmatprep.subr.mxu0 %v641
  %v643 = vand.u32 %v616, 4294901760
  %644 = vmatpush1.msra.mxu0 %v643
  %v645 = vand.u32 %v619, 4294901760
  %646 = vmatprep.subr.mxu0 %v645
  %v647 = vand.u32 %v618, 4294901760
  %648 = vmatpush1.msra.mxu0 %v647
  %v649 = vand.u32 %v621, 4294901760
  %650 = vmatprep.subr.mxu0 %v649
  %v651 = vand.u32 %v620, 4294901760
  %652 = vmatpush1.msra.mxu0 %v651
  %v653 = vand.u32 %v623, 4294901760
  %654 = vmatprep.subr.mxu0 %v653
  %v655 = vand.u32 %v622, 4294901760
  %656 = vmatpush1.msra.mxu0 %v655
  %v657 = vand.u32 %v625, 4294901760
  %658 = vmatprep.subr.mxu0 %v657
  %v659 = vand.u32 %v624, 4294901760
  %660 = vmatpush1.msra.mxu0 %v659
  %661 = vmatprep.subr.mxu0 0.0
  %662 = vmatpush1.msra.mxu0 0.0
  %663 = vmatprep.subr.mxu0 0.0
  %664 = vmatpush1.msra.mxu0 0.0
  %665 = vmatprep.subr.mxu0 0.0
  %666 = vmatpush1.msra.mxu0 0.0
  %667 = vmatprep.subr.mxu0 0.0
  %668 = vmatpush1.msra.mxu0 0.0
  %669 = vmatprep.subr.mxu0 0.0
  %670 = vmatpush1.msra.mxu0 0.0
  %671 = vmatprep.subr.mxu0 0.0
  %672 = vmatpush1.msra.mxu0 0.0
  %673 = vmatprep.subr.mxu0 0.0
  %674 = vmatpush1.msra.mxu0 0.0
  %675 = vmatprep.subr.mxu0 0.0
  %676 = vmatpush1.msra.mxu0 0.0
  %677 = vmatprep.subr.mxu0 0.0
  %678 = vmatpush1.msra.mxu0 0.0
  %679 = vmatprep.subr.mxu0 0.0
  %680 = vmatpush1.msra.mxu0 0.0
  %681 = vmatprep.subr.mxu0 0.0
  %682 = vmatpush1.msra.mxu0 0.0
  %683 = vmatprep.subr.mxu0 0.0
  %684 = vmatpush1.msra.mxu0 0.0
  %685 = vmatprep.subr.mxu0 0.0
  %686 = vmatpush1.msra.mxu0 0.0
  %687 = vmatprep.subr.mxu0 0.0
  %688 = vmatpush1.msra.mxu0 0.0
  %689 = vmatprep.subr.mxu0 0.0
  %690 = vmatpush1.msra.mxu0 0.0
  %691 = vmatprep.subr.mxu0 0.0
  %692 = vmatpush1.msra.mxu0 0.0
  %693 = vmatprep.subr.mxu0 0.0
  %694 = vmatpush1.msra.mxu0 0.0
  %695 = vmatprep.subr.mxu0 0.0
  %696 = vmatpush1.msra.mxu0 0.0
  %697 = vmatprep.subr.mxu0 0.0
  %698 = vmatpush1.msra.mxu0 0.0
  %699 = vmatprep.subr.mxu0 0.0
  %700 = vmatpush1.msra.mxu0 0.0
  %701 = vmatprep.subr.mxu0 0.0
  %702 = vmatpush1.msra.mxu0 0.0
  %703 = vmatprep.subr.mxu0 0.0
  %704 = vmatpush1.msra.mxu0 0.0
  %705 = vmatprep.subr.mxu0 0.0
  %706 = vmatpush1.msra.mxu0 0.0
  %707 = vmatprep.subr.mxu0 0.0
  %708 = vmatpush1.msra.mxu0 0.0
  %709 = vmatprep.mubr.f32.mxu0 0.0
  %v710 = vand.u32 %v627, 4294901760
  %v711 = vsub.f32 %v627, %v710
  %v712 = vand.u32 %v711, 4294901760
  %v713 = vsub.f32 %v711, %v712
  %v714 = vand.u32 %v713, 4294901760
  %715 = vmatmul.mubr.f32.gmra.mrb[0].mxu0 %v714
  %v716 = vpop.f32.mrb[0].mxu0
  %v717 = vadd.f32 0.0, %v716
  %v718 = vpop.f32.mrb[0].mxu0
  %v719 = vadd.f32 0.0, %v718
  %720 = vdwg.mxu0
  %v721 = vand.u32 %v611, 4294901760
  %v722 = vsub.f32 %v611, %v721
  %v723 = vand.u32 %v722, 4294901760
  %v724 = vsub.f32 %v722, %v723
  %v725 = vand.u32 %v724, 4294901760
  %726 = vmatprep.subr.mxu0 %v725
  %v727 = vand.u32 %v610, 4294901760
  %v728 = vsub.f32 %v610, %v727
  %v729 = vand.u32 %v728, 4294901760
  %v730 = vsub.f32 %v728, %v729
  %v731 = vand.u32 %v730, 4294901760
  %732 = vmatpush1.msra.mxu0 %v731
  %v733 = vand.u32 %v613, 4294901760
  %v734 = vsub.f32 %v613, %v733
  %v735 = vand.u32 %v734, 4294901760
  %v736 = vsub.f32 %v734, %v735
  %v737 = vand.u32 %v736, 4294901760
  %738 = vmatprep.subr.mxu0 %v737
  %v739 = vand.u32 %v612, 4294901760
  %v740 = vsub.f32 %v612, %v739
  %v741 = vand.u32 %v740, 4294901760
  %v742 = vsub.f32 %v740, %v741
  %v743 = vand.u32 %v742, 4294901760
  %744 = vmatpush1.msra.mxu0 %v743
  %v745 = vand.u32 %v615, 4294901760
  %v746 = vsub.f32 %v615, %v745
  %v747 = vand.u32 %v746, 4294901760
  %v748 = vsub.f32 %v746, %v747
  %v749 = vand.u32 %v748, 4294901760
  %750 = vmatprep.subr.mxu0 %v749
  %v751 = vand.u32 %v614, 4294901760
  %v752 = vsub.f32 %v614, %v751
  %v753 = vand.u32 %v752, 4294901760
  %v754 = vsub.f32 %v752, %v753
  %v755 = vand.u32 %v754, 4294901760
  %756 = vmatpush1.msra.mxu0 %v755
  %v757 = vand.u32 %v617, 4294901760
  %v758 = vsub.f32 %v617, %v757
  %v759 = vand.u32 %v758, 4294901760
  %v760 = vsub.f32 %v758, %v759
  %v761 = vand.u32 %v760, 4294901760
  %762 = vmatprep.subr.mxu0 %v761
  %v763 = vand.u32 %v616, 4294901760
  %v764 = vsub.f32 %v616, %v763
  %v765 = vand.u32 %v764, 4294901760
  %v766 = vsub.f32 %v764, %v765
  %v767 = vand.u32 %v766, 4294901760
  %768 = vmatpush1.msra.mxu0 %v767
  %v769 = vand.u32 %v619, 4294901760
  %v770 = vsub.f32 %v619, %v769
  %v771 = vand.u32 %v770, 4294901760
  %v772 = vsub.f32 %v770, %v771
  %v773 = vand.u32 %v772, 4294901760
  %774 = vmatprep.subr.mxu0 %v773
  %v775 = vand.u32 %v618, 4294901760
  %v776 = vsub.f32 %v618, %v775
  %v777 = vand.u32 %v776, 4294901760
  %v778 = vsub.f32 %v776, %v777
  %v779 = vand.u32 %v778, 4294901760
  %780 = vmatpush1.msra.mxu0 %v779
  %v781 = vand.u32 %v621, 4294901760
  %v782 = vsub.f32 %v621, %v781
  %v783 = vand.u32 %v782, 4294901760
  %v784 = vsub.f32 %v782, %v783
  %v785 = vand.u32 %v784, 4294901760
  %786 = vmatprep.subr.mxu0 %v785
  %v787 = vand.u32 %v620, 4294901760
  %v788 = vsub.f32 %v620, %v787
  %v789 = vand.u32 %v788, 4294901760
  %v790 = vsub.f32 %v788, %v789
  %v791 = vand.u32 %v790, 4294901760
  %792 = vmatpush1.msra.mxu0 %v791
  %v793 = vand.u32 %v623, 4294901760
  %v794 = vsub.f32 %v623, %v793
  %v795 = vand.u32 %v794, 4294901760
  %v796 = vsub.f32 %v794, %v795
  %v797 = vand.u32 %v796, 4294901760
  %798 = vmatprep.subr.mxu0 %v797
  %v799 = vand.u32 %v622, 4294901760
  %v800 = vsub.f32 %v622, %v799
  %v801 = vand.u32 %v800, 4294901760
  %v802 = vsub.f32 %v800, %v801
  %v803 = vand.u32 %v802, 4294901760
  %804 = vmatpush1.msra.mxu0 %v803
  %v805 = vand.u32 %v625, 4294901760
  %v806 = vsub.f32 %v625, %v805
  %v807 = vand.u32 %v806, 4294901760
  %v808 = vsub.f32 %v806, %v807
  %v809 = vand.u32 %v808, 4294901760
  %810 = vmatprep.subr.mxu0 %v809
  %v811 = vand.u32 %v624, 4294901760
  %v812 = vsub.f32 %v624, %v811
  %v813 = vand.u32 %v812, 4294901760
  %v814 = vsub.f32 %v812, %v813
  %v815 = vand.u32 %v814, 4294901760
  %816 = vmatpush1.msra.mxu0 %v815
  %817 = vmatprep.subr.mxu0 0.0
  %818 = vmatpush1.msra.mxu0 0.0
  %819 = vmatprep.subr.mxu0 0.0
  %820 = vmatpush1.msra.mxu0 0.0
  %821 = vmatprep.subr.mxu0 0.0
  %822 = vmatpush1.msra.mxu0 0.0
  %823 = vmatprep.subr.mxu0 0.0
  %824 = vmatpush1.msra.mxu0 0.0
  %825 = vmatprep.subr.mxu0 0.0
  %826 = vmatpush1.msra.mxu0 0.0
  %827 = vmatprep.subr.mxu0 0.0
  %828 = vmatpush1.msra.mxu0 0.0
  %829 = vmatprep.subr.mxu0 0.0
  %830 = vmatpush1.msra.mxu0 0.0
  %831 = vmatprep.subr.mxu0 0.0
  %832 = vmatpush1.msra.mxu0 0.0
  %833 = vmatprep.subr.mxu0 0.0
  %834 = vmatpush1.msra.mxu0 0.0
  %835 = vmatprep.subr.mxu0 0.0
  %836 = vmatpush1.msra.mxu0 0.0
  %837 = vmatprep.subr.mxu0 0.0
  %838 = vmatpush1.msra.mxu0 0.0
  %839 = vmatprep.subr.mxu0 0.0
  %840 = vmatpush1.msra.mxu0 0.0
  %841 = vmatprep.subr.mxu0 0.0
  %842 = vmatpush1.msra.mxu0 0.0
  %843 = vmatprep.subr.mxu0 0.0
  %844 = vmatpush1.msra.mxu0 0.0
  %845 = vmatprep.subr.mxu0 0.0
  %846 = vmatpush1.msra.mxu0 0.0
  %847 = vmatprep.subr.mxu0 0.0
  %848 = vmatpush1.msra.mxu0 0.0
  %849 = vmatprep.subr.mxu0 0.0
  %850 = vmatpush1.msra.mxu0 0.0
  %851 = vmatprep.subr.mxu0 0.0
  %852 = vmatpush1.msra.mxu0 0.0
  %853 = vmatprep.subr.mxu0 0.0
  %854 = vmatpush1.msra.mxu0 0.0
  %855 = vmatprep.subr.mxu0 0.0
  %856 = vmatpush1.msra.mxu0 0.0
  %857 = vmatprep.subr.mxu0 0.0
  %858 = vmatpush1.msra.mxu0 0.0
  %859 = vmatprep.subr.mxu0 0.0
  %860 = vmatpush1.msra.mxu0 0.0
  %861 = vmatprep.subr.mxu0 0.0
  %862 = vmatpush1.msra.mxu0 0.0
  %863 = vmatprep.subr.mxu0 0.0
  %864 = vmatpush1.msra.mxu0 0.0
  %865 = vmatprep.mubr.f32.mxu0 0.0
  %v866 = vand.u32 %v627, 4294901760
  %867 = vmatmul.mubr.f32.gmra.mrb[0].mxu0 %v866
  %v868 = vpop.f32.mrb[0].mxu0
  %v869 = vadd.f32 %v717, %v868
  %v870 = vpop.f32.mrb[0].mxu0
  %v871 = vadd.f32 %v719, %v870
  %872 = vdwg.mxu0
  %v873 = vand.u32 %v611, 4294901760
  %v874 = vsub.f32 %v611, %v873
  %875 = vmatprep.subr.mxu0 %v874
  %v876 = vand.u32 %v610, 4294901760
  %v877 = vsub.f32 %v610, %v876
  %878 = vmatpush1.msra.mxu0 %v877
  %v879 = vand.u32 %v613, 4294901760
  %v880 = vsub.f32 %v613, %v879
  %881 = vmatprep.subr.mxu0 %v880
  %v882 = vand.u32 %v612, 4294901760
  %v883 = vsub.f32 %v612, %v882
  %884 = vmatpush1.msra.mxu0 %v883
  %v885 = vand.u32 %v615, 4294901760
  %v886 = vsub.f32 %v615, %v885
  %887 = vmatprep.subr.mxu0 %v886
  %v888 = vand.u32 %v614, 4294901760
  %v889 = vsub.f32 %v614, %v888
  %890 = vmatpush1.msra.mxu0 %v889
  %v891 = vand.u32 %v617, 4294901760
  %v892 = vsub.f32 %v617, %v891
  %893 = vmatprep.subr.mxu0 %v892
  %v894 = vand.u32 %v616, 4294901760
  %v895 = vsub.f32 %v616, %v894
  %896 = vmatpush1.msra.mxu0 %v895
  %v897 = vand.u32 %v619, 4294901760
  %v898 = vsub.f32 %v619, %v897
  %899 = vmatprep.subr.mxu0 %v898
  %v900 = vand.u32 %v618, 4294901760
  %v901 = vsub.f32 %v618, %v900
  %902 = vmatpush1.msra.mxu0 %v901
  %v903 = vand.u32 %v621, 4294901760
  %v904 = vsub.f32 %v621, %v903
  %905 = vmatprep.subr.mxu0 %v904
  %v906 = vand.u32 %v620, 4294901760
  %v907 = vsub.f32 %v620, %v906
  %908 = vmatpush1.msra.mxu0 %v907
  %v909 = vand.u32 %v623, 4294901760
  %v910 = vsub.f32 %v623, %v909
  %911 = vmatprep.subr.mxu0 %v910
  %v912 = vand.u32 %v622, 4294901760
  %v913 = vsub.f32 %v622, %v912
  %914 = vmatpush1.msra.mxu0 %v913
  %v915 = vand.u32 %v625, 4294901760
  %v916 = vsub.f32 %v625, %v915
  %917 = vmatprep.subr.mxu0 %v916
  %v918 = vand.u32 %v624, 4294901760
  %v919 = vsub.f32 %v624, %v918
  %920 = vmatpush1.msra.mxu0 %v919
  %921 = vmatprep.subr.mxu0 0.0
  %922 = vmatpush1.msra.mxu0 0.0
  %923 = vmatprep.subr.mxu0 0.0
  %924 = vmatpush1.msra.mxu0 0.0
  %925 = vmatprep.subr.mxu0 0.0
  %926 = vmatpush1.msra.mxu0 0.0
  %927 = vmatprep.subr.mxu0 0.0
  %928 = vmatpush1.msra.mxu0 0.0
  %929 = vmatprep.subr.mxu0 0.0
  %930 = vmatpush1.msra.mxu0 0.0
  %931 = vmatprep.subr.mxu0 0.0
  %932 = vmatpush1.msra.mxu0 0.0
  %933 = vmatprep.subr.mxu0 0.0
  %934 = vmatpush1.msra.mxu0 0.0
  %935 = vmatprep.subr.mxu0 0.0
  %936 = vmatpush1.msra.mxu0 0.0
  %937 = vmatprep.subr.mxu0 0.0
  %938 = vmatpush1.msra.mxu0 0.0
  %939 = vmatprep.subr.mxu0 0.0
  %940 = vmatpush1.msra.mxu0 0.0
  %941 = vmatprep.subr.mxu0 0.0
  %942 = vmatpush1.msra.mxu0 0.0
  %943 = vmatprep.subr.mxu0 0.0
  %944 = vmatpush1.msra.mxu0 0.0
  %945 = vmatprep.subr.mxu0 0.0
  %946 = vmatpush1.msra.mxu0 0.0
  %947 = vmatprep.subr.mxu0 0.0
  %948 = vmatpush1.msra.mxu0 0.0
  %949 = vmatprep.subr.mxu0 0.0
  %950 = vmatpush1.msra.mxu0 0.0
  %951 = vmatprep.subr.mxu0 0.0
  %952 = vmatpush1.msra.mxu0 0.0
  %953 = vmatprep.subr.mxu0 0.0
  %954 = vmatpush1.msra.mxu0 0.0
  %955 = vmatprep.subr.mxu0 0.0
  %956 = vmatpush1.msra.mxu0 0.0
  %957 = vmatprep.subr.mxu0 0.0
  %958 = vmatpush1.msra.mxu0 0.0
  %959 = vmatprep.subr.mxu0 0.0
  %960 = vmatpush1.msra.mxu0 0.0
  %961 = vmatprep.subr.mxu0 0.0
  %962 = vmatpush1.msra.mxu0 0.0
  %963 = vmatprep.subr.mxu0 0.0
  %964 = vmatpush1.msra.mxu0 0.0
  %965 = vmatprep.subr.mxu0 0.0
  %966 = vmatpush1.msra.mxu0 0.0
  %967 = vmatprep.subr.mxu0 0.0
  %968 = vmatpush1.msra.mxu0 0.0
  %969 = vmatprep.mubr.f32.mxu0 0.0
  %v970 = vand.u32 %v627, 4294901760
  %v971 = vsub.f32 %v627, %v970
  %972 = vmatmul.mubr.f32.gmra.mrb[0].mxu0 %v971
  %v973 = vpop.f32.mrb[0].mxu0
  %v974 = vadd.f32 %v869, %v973
  %v975 = vpop.f32.mrb[0].mxu0
  %v976 = vadd.f32 %v871, %v975
  %977 = vdwg.mxu0
  %v978 = vand.u32 %v611, 4294901760
  %979 = vmatprep.subr.mxu0 %v978
  %v980 = vand.u32 %v610, 4294901760
  %981 = vmatpush1.msra.mxu0 %v980
  %v982 = vand.u32 %v613, 4294901760
  %983 = vmatprep.subr.mxu0 %v982
  %v984 = vand.u32 %v612, 4294901760
  %985 = vmatpush1.msra.mxu0 %v984
  %v986 = vand.u32 %v615, 4294901760
  %987 = vmatprep.subr.mxu0 %v986
  %v988 = vand.u32 %v614, 4294901760
  %989 = vmatpush1.msra.mxu0 %v988
  %v990 = vand.u32 %v617, 4294901760
  %991 = vmatprep.subr.mxu0 %v990
  %v992 = vand.u32 %v616, 4294901760
  %993 = vmatpush1.msra.mxu0 %v992
  %v994 = vand.u32 %v619, 4294901760
  %995 = vmatprep.subr.mxu0 %v994
  %v996 = vand.u32 %v618, 4294901760
  %997 = vmatpush1.msra.mxu0 %v996
  %v998 = vand.u32 %v621, 4294901760
  %999 = vmatprep.subr.mxu0 %v998
  %v1000 = vand.u32 %v620, 4294901760
  %1001 = vmatpush1.msra.mxu0 %v1000
  %v1002 = vand.u32 %v623, 4294901760
  %1003 = vmatprep.subr.mxu0 %v1002
  %v1004 = vand.u32 %v622, 4294901760
  %1005 = vmatpush1.msra.mxu0 %v1004
  %v1006 = vand.u32 %v625, 4294901760
  %1007 = vmatprep.subr.mxu0 %v1006
  %v1008 = vand.u32 %v624, 4294901760
  %1009 = vmatpush1.msra.mxu0 %v1008
  %1010 = vmatprep.subr.mxu0 0.0
  %1011 = vmatpush1.msra.mxu0 0.0
  %1012 = vmatprep.subr.mxu0 0.0
  %1013 = vmatpush1.msra.mxu0 0.0
  %1014 = vmatprep.subr.mxu0 0.0
  %1015 = vmatpush1.msra.mxu0 0.0
  %1016 = vmatprep.subr.mxu0 0.0
  %1017 = vmatpush1.msra.mxu0 0.0
  %1018 = vmatprep.subr.mxu0 0.0
  %1019 = vmatpush1.msra.mxu0 0.0
  %1020 = vmatprep.subr.mxu0 0.0
  %1021 = vmatpush1.msra.mxu0 0.0
  %1022 = vmatprep.subr.mxu0 0.0
  %1023 = vmatpush1.msra.mxu0 0.0
  %1024 = vmatprep.subr.mxu0 0.0
  %1025 = vmatpush1.msra.mxu0 0.0
  %1026 = vmatprep.subr.mxu0 0.0
  %1027 = vmatpush1.msra.mxu0 0.0
  %1028 = vmatprep.subr.mxu0 0.0
  %1029 = vmatpush1.msra.mxu0 0.0
  %1030 = vmatprep.subr.mxu0 0.0
  %1031 = vmatpush1.msra.mxu0 0.0
  %1032 = vmatprep.subr.mxu0 0.0
  %1033 = vmatpush1.msra.mxu0 0.0
  %1034 = vmatprep.subr.mxu0 0.0
  %1035 = vmatpush1.msra.mxu0 0.0
  %1036 = vmatprep.subr.mxu0 0.0
  %1037 = vmatpush1.msra.mxu0 0.0
  %1038 = vmatprep.subr.mxu0 0.0
  %1039 = vmatpush1.msra.mxu0 0.0
  %1040 = vmatprep.subr.mxu0 0.0
  %1041 = vmatpush1.msra.mxu0 0.0
  %1042 = vmatprep.subr.mxu0 0.0
  %1043 = vmatpush1.msra.mxu0 0.0
  %1044 = vmatprep.subr.mxu0 0.0
  %1045 = vmatpush1.msra.mxu0 0.0
  %1046 = vmatprep.subr.mxu0 0.0
  %1047 = vmatpush1.msra.mxu0 0.0
  %1048 = vmatprep.subr.mxu0 0.0
  %1049 = vmatpush1.msra.mxu0 0.0
  %1050 = vmatprep.subr.mxu0 0.0
  %1051 = vmatpush1.msra.mxu0 0.0
  %1052 = vmatprep.subr.mxu0 0.0
  %1053 = vmatpush1.msra.mxu0 0.0
  %1054 = vmatprep.subr.mxu0 0.0
  %1055 = vmatpush1.msra.mxu0 0.0
  %1056 = vmatprep.subr.mxu0 0.0
  %1057 = vmatpush1.msra.mxu0 0.0
  %1058 = vmatprep.mubr.f32.mxu0 0.0
  %v1059 = vand.u32 %v627, 4294901760
  %v1060 = vsub.f32 %v627, %v1059
  %v1061 = vand.u32 %v1060, 4294901760
  %1062 = vmatmul.mubr.f32.gmra.mrb[0].mxu0 %v1061
  %v1063 = vpop.f32.mrb[0].mxu0
  %v1064 = vadd.f32 %v974, %v1063
  %v1065 = vpop.f32.mrb[0].mxu0
  %v1066 = vadd.f32 %v976, %v1065
  %1067 = vdwg.mxu0
  %v1068 = vand.u32 %v611, 4294901760
  %v1069 = vsub.f32 %v611, %v1068
  %v1070 = vand.u32 %v1069, 4294901760
  %1071 = vmatprep.subr.mxu0 %v1070
  %v1072 = vand.u32 %v610, 4294901760
  %v1073 = vsub.f32 %v610, %v1072
  %v1074 = vand.u32 %v1073, 4294901760
  %1075 = vmatpush1.msra.mxu0 %v1074
  %v1076 = vand.u32 %v613, 4294901760
  %v1077 = vsub.f32 %v613, %v1076
  %v1078 = vand.u32 %v1077, 4294901760
  %1079 = vmatprep.subr.mxu0 %v1078
  %v1080 = vand.u32 %v612, 4294901760
  %v1081 = vsub.f32 %v612, %v1080
  %v1082 = vand.u32 %v1081, 4294901760
  %1083 = vmatpush1.msra.mxu0 %v1082
  %v1084 = vand.u32 %v615, 4294901760
  %v1085 = vsub.f32 %v615, %v1084
  %v1086 = vand.u32 %v1085, 4294901760
  %1087 = vmatprep.subr.mxu0 %v1086
  %v1088 = vand.u32 %v614, 4294901760
  %v1089 = vsub.f32 %v614, %v1088
  %v1090 = vand.u32 %v1089, 4294901760
  %1091 = vmatpush1.msra.mxu0 %v1090
  %v1092 = vand.u32 %v617, 4294901760
  %v1093 = vsub.f32 %v617, %v1092
  %v1094 = vand.u32 %v1093, 4294901760
  %1095 = vmatprep.subr.mxu0 %v1094
  %v1096 = vand.u32 %v616, 4294901760
  %v1097 = vsub.f32 %v616, %v1096
  %v1098 = vand.u32 %v1097, 4294901760
  %1099 = vmatpush1.msra.mxu0 %v1098
  %v1100 = vand.u32 %v619, 4294901760
  %v1101 = vsub.f32 %v619, %v1100
  %v1102 = vand.u32 %v1101, 4294901760
  %1103 = vmatprep.subr.mxu0 %v1102
  %v1104 = vand.u32 %v618, 4294901760
  %v1105 = vsub.f32 %v618, %v1104
  %v1106 = vand.u32 %v1105, 4294901760
  %1107 = vmatpush1.msra.mxu0 %v1106
  %v1108 = vand.u32 %v621, 4294901760
  %v1109 = vsub.f32 %v621, %v1108
  %v1110 = vand.u32 %v1109, 4294901760
  %1111 = vmatprep.subr.mxu0 %v1110
  %v1112 = vand.u32 %v620, 4294901760
  %v1113 = vsub.f32 %v620, %v1112
  %v1114 = vand.u32 %v1113, 4294901760
  %1115 = vmatpush1.msra.mxu0 %v1114
  %v1116 = vand.u32 %v623, 4294901760
  %v1117 = vsub.f32 %v623, %v1116
  %v1118 = vand.u32 %v1117, 4294901760
  %1119 = vmatprep.subr.mxu0 %v1118
  %v1120 = vand.u32 %v622, 4294901760
  %v1121 = vsub.f32 %v622, %v1120
  %v1122 = vand.u32 %v1121, 4294901760
  %1123 = vmatpush1.msra.mxu0 %v1122
  %v1124 = vand.u32 %v625, 4294901760
  %v1125 = vsub.f32 %v625, %v1124
  %v1126 = vand.u32 %v1125, 4294901760
  %1127 = vmatprep.subr.mxu0 %v1126
  %v1128 = vand.u32 %v624, 4294901760
  %v1129 = vsub.f32 %v624, %v1128
  %v1130 = vand.u32 %v1129, 4294901760
  %1131 = vmatpush1.msra.mxu0 %v1130
  %1132 = vmatprep.subr.mxu0 0.0
  %1133 = vmatpush1.msra.mxu0 0.0
  %1134 = vmatprep.subr.mxu0 0.0
  %1135 = vmatpush1.msra.mxu0 0.0
  %1136 = vmatprep.subr.mxu0 0.0
  %1137 = vmatpush1.msra.mxu0 0.0
  %1138 = vmatprep.subr.mxu0 0.0
  %1139 = vmatpush1.msra.mxu0 0.0
  %1140 = vmatprep.subr.mxu0 0.0
  %1141 = vmatpush1.msra.mxu0 0.0
  %1142 = vmatprep.subr.mxu0 0.0
  %1143 = vmatpush1.msra.mxu0 0.0
  %1144 = vmatprep.subr.mxu0 0.0
  %1145 = vmatpush1.msra.mxu0 0.0
  %1146 = vmatprep.subr.mxu0 0.0
  %1147 = vmatpush1.msra.mxu0 0.0
  %1148 = vmatprep.subr.mxu0 0.0
  %1149 = vmatpush1.msra.mxu0 0.0
  %1150 = vmatprep.subr.mxu0 0.0
  %1151 = vmatpush1.msra.mxu0 0.0
  %1152 = vmatprep.subr.mxu0 0.0
  %1153 = vmatpush1.msra.mxu0 0.0
  %1154 = vmatprep.subr.mxu0 0.0
  %1155 = vmatpush1.msra.mxu0 0.0
  %1156 = vmatprep.subr.mxu0 0.0
  %1157 = vmatpush1.msra.mxu0 0.0
  %1158 = vmatprep.subr.mxu0 0.0
  %1159 = vmatpush1.msra.mxu0 0.0
  %1160 = vmatprep.subr.mxu0 0.0
  %1161 = vmatpush1.msra.mxu0 0.0
  %1162 = vmatprep.subr.mxu0 0.0
  %1163 = vmatpush1.msra.mxu0 0.0
  %1164 = vmatprep.subr.mxu0 0.0
  %1165 = vmatpush1.msra.mxu0 0.0
  %1166 = vmatprep.subr.mxu0 0.0
  %1167 = vmatpush1.msra.mxu0 0.0
  %1168 = vmatprep.subr.mxu0 0.0
  %1169 = vmatpush1.msra.mxu0 0.0
  %1170 = vmatprep.subr.mxu0 0.0
  %1171 = vmatpush1.msra.mxu0 0.0
  %1172 = vmatprep.subr.mxu0 0.0
  %1173 = vmatpush1.msra.mxu0 0.0
  %1174 = vmatprep.subr.mxu0 0.0
  %1175 = vmatpush1.msra.mxu0 0.0
  %1176 = vmatprep.subr.mxu0 0.0
  %1177 = vmatpush1.msra.mxu0 0.0
  %1178 = vmatprep.subr.mxu0 0.0
  %1179 = vmatpush1.msra.mxu0 0.0
  %1180 = vmatprep.mubr.f32.mxu0 0.0
  %v1181 = vand.u32 %v627, 4294901760
  %1182 = vmatmul.mubr.f32.gmra.mrb[0].mxu0 %v1181
  %v1183 = vpop.f32.mrb[0].mxu0
  %v1184 = vadd.f32 %v1064, %v1183
  %v1185 = vpop.f32.mrb[0].mxu0
  %v1186 = vadd.f32 %v1066, %v1185
  %1187 = vdwg.mxu0
  %v1188 = vand.u32 %v611, 4294901760
  %1189 = vmatprep.subr.mxu0 %v1188
  %v1190 = vand.u32 %v610, 4294901760
  %1191 = vmatpush1.msra.mxu0 %v1190
  %v1192 = vand.u32 %v613, 4294901760
  %1193 = vmatprep.subr.mxu0 %v1192
  %v1194 = vand.u32 %v612, 4294901760
  %1195 = vmatpush1.msra.mxu0 %v1194
  %v1196 = vand.u32 %v615, 4294901760
  %1197 = vmatprep.subr.mxu0 %v1196
  %v1198 = vand.u32 %v614, 4294901760
  %1199 = vmatpush1.msra.mxu0 %v1198
  %v1200 = vand.u32 %v617, 4294901760
  %1201 = vmatprep.subr.mxu0 %v1200
  %v1202 = vand.u32 %v616, 4294901760
  %1203 = vmatpush1.msra.mxu0 %v1202
  %v1204 = vand.u32 %v619, 4294901760
  %1205 = vmatprep.subr.mxu0 %v1204
  %v1206 = vand.u32 %v618, 4294901760
  %1207 = vmatpush1.msra.mxu0 %v1206
  %v1208 = vand.u32 %v621, 4294901760
  %1209 = vmatprep.subr.mxu0 %v1208
  %v1210 = vand.u32 %v620, 4294901760
  %1211 = vmatpush1.msra.mxu0 %v1210
  %v1212 = vand.u32 %v623, 4294901760
  %1213 = vmatprep.subr.mxu0 %v1212
  %v1214 = vand.u32 %v622, 4294901760
  %1215 = vmatpush1.msra.mxu0 %v1214
  %v1216 = vand.u32 %v625, 4294901760
  %1217 = vmatprep.subr.mxu0 %v1216
  %v1218 = vand.u32 %v624, 4294901760
  %1219 = vmatpush1.msra.mxu0 %v1218
  %1220 = vmatprep.subr.mxu0 0.0
  %1221 = vmatpush1.msra.mxu0 0.0
  %1222 = vmatprep.subr.mxu0 0.0
  %1223 = vmatpush1.msra.mxu0 0.0
  %1224 = vmatprep.subr.mxu0 0.0
  %1225 = vmatpush1.msra.mxu0 0.0
  %1226 = vmatprep.subr.mxu0 0.0
  %1227 = vmatpush1.msra.mxu0 0.0
  %1228 = vmatprep.subr.mxu0 0.0
  %1229 = vmatpush1.msra.mxu0 0.0
  %1230 = vmatprep.subr.mxu0 0.0
  %1231 = vmatpush1.msra.mxu0 0.0
  %1232 = vmatprep.subr.mxu0 0.0
  %1233 = vmatpush1.msra.mxu0 0.0
  %1234 = vmatprep.subr.mxu0 0.0
  %1235 = vmatpush1.msra.mxu0 0.0
  %1236 = vmatprep.subr.mxu0 0.0
  %1237 = vmatpush1.msra.mxu0 0.0
  %1238 = vmatprep.subr.mxu0 0.0
  %1239 = vmatpush1.msra.mxu0 0.0
  %1240 = vmatprep.subr.mxu0 0.0
  %1241 = vmatpush1.msra.mxu0 0.0
  %1242 = vmatprep.subr.mxu0 0.0
  %1243 = vmatpush1.msra.mxu0 0.0
  %1244 = vmatprep.subr.mxu0 0.0
  %1245 = vmatpush1.msra.mxu0 0.0
  %1246 = vmatprep.subr.mxu0 0.0
  %1247 = vmatpush1.msra.mxu0 0.0
  %1248 = vmatprep.subr.mxu0 0.0
  %1249 = vmatpush1.msra.mxu0 0.0
  %1250 = vmatprep.subr.mxu0 0.0
  %1251 = vmatpush1.msra.mxu0 0.0
  %1252 = vmatprep.subr.mxu0 0.0
  %1253 = vmatpush1.msra.mxu0 0.0
  %1254 = vmatprep.subr.mxu0 0.0
  %1255 = vmatpush1.msra.mxu0 0.0
  %1256 = vmatprep.subr.mxu0 0.0
  %1257 = vmatpush1.msra.mxu0 0.0
  %1258 = vmatprep.subr.mxu0 0.0
  %1259 = vmatpush1.msra.mxu0 0.0
  %1260 = vmatprep.subr.mxu0 0.0
  %1261 = vmatpush1.msra.mxu0 0.0
  %1262 = vmatprep.subr.mxu0 0.0
  %1263 = vmatpush1.msra.mxu0 0.0
  %1264 = vmatprep.subr.mxu0 0.0
  %1265 = vmatpush1.msra.mxu0 0.0
  %1266 = vmatprep.subr.mxu0 0.0
  %1267 = vmatpush1.msra.mxu0 0.0
  %1268 = vmatprep.mubr.f32.mxu0 0.0
  %v1269 = vand.u32 %v627, 4294901760
  %1270 = vmatmul.mubr.f32.gmra.mrb[0].mxu0 %v1269
  %v1271 = vpop.f32.mrb[0].mxu0
  %v1272 = vadd.f32 %v1184, %v1271
  %v1273 = vpop.f32.mrb[0].mxu0
  %v1274 = vadd.f32 %v1186, %v1273
  %1275 = vdwg.mxu0
  %v1276 = vld [vmem:[%s5] sm:$0xff]
  %v1278 = vcombine.high %v1276, %v1276
  %v1280 = vmul.f32 %v1272, %v1276
  %v1281 = vmul.f32 %v1274, %v1278
  %vm1282 = vcmask 1043456
  %v1283 = vsel %vm1282, %v1280, 0.0
  %v1284 = vrot.slane %v1283, 4
  %v1285 = vadd.f32 %v1283, %v1284
  %v1286 = vrot.slane %v1285, 2
  %v1287 = vadd.f32 %v1285, %v1286
  %v1288 = vrot.slane %v1287, 1
  %v1289 = vadd.f32 %v1287, %v1288
  %v1290 = vsel %vm1282, %v1281, 0.0
  %v1291 = vrot.slane %v1290, 4
  %v1292 = vadd.f32 %v1290, %v1291
  %v1293 = vrot.slane %v1292, 2
  %v1294 = vadd.f32 %v1292, %v1293
  %v1295 = vrot.slane %v1294, 1
  %v1296 = vadd.f32 %v1294, %v1295
  %v1297 = vlaneseq
  %v1298 = vand.u32 %v1297, 127
  %v1299 = vadd.s32 %v1298, 128
  %vm1300 = vcmp.lt.s32.totalorder %v1298, 0
  %v1301 = vsub.s32 0, %v1298
  %v1302 = vsel %vm1300, %v1301, %v1298
  %v1303 = vshrl.u32 %v1302, 4
  %v1304 = vand.u32 %v1302, 15
  %v1305 = vsub.s32 0, %v1304
  %v1306 = vsel %vm1300, %v1305, %v1304
  %vm1307 = vcmp.lt.s32.totalorder %v1299, 0
  %v1308 = vsub.s32 0, %v1299
  %v1309 = vsel %vm1307, %v1308, %v1299
  %v1310 = vshrl.u32 %v1309, 4
  %v1311 = vand.u32 %v1309, 15
  %v1312 = vsub.s32 0, %v1311
  %v1313 = vsel %vm1307, %v1312, %v1311
  %vm1314 = vcmp.ne.s32.totalorder %v1306, 0
  %vm1315 = vcmp.ne.s32.totalorder %v1313, 0
  %vm1316 = vcmp.lt.s32.totalorder %v1306, 0
  %vm1317 = vcmp.lt.s32.totalorder %v1313, 0
  %vm1318 = vmand %vm1316, %vm1314
  %vm1319 = vmand %vm1317, %vm1315
  %v1320 = vadd.s32 %v1306, 16
  %v1321 = vadd.s32 %v1313, 16
  %v1322 = vsel %vm1318, %v1320, %v1306
  %v1323 = vsel %vm1319, %v1321, %v1313
  %vm1324 = vcmp.ge.s32.totalorder %v1322, 1
  %vm1325 = vcmp.ge.s32.totalorder %v1323, 1
  %v1326 = vsel %vm1324, 1, 0
  %v1327 = vsel %vm1325, 1, 0
  %v1328 = vcvt.s32.f32 %v1326
  %v1329 = vcvt.s32.f32 %v1327
  %vm1330 = vcmp.le.s32.totalorder %v1322, 14
  %vm1331 = vcmp.le.s32.totalorder %v1323, 14
  %v1332 = vsel %vm1330, 1, 0
  %v1333 = vsel %vm1331, 1, 0
  %v1334 = vcvt.s32.f32 %v1332
  %v1335 = vcvt.s32.f32 %v1333
  %v1336 = vld [vmem:[%s7] sm:$0xff]
  %v1337 = vld [vmem:[%s7 + $0x8] sm:$0xff]
  %v1338 = vld [vmem:[%s7 + $0x10] sm:$0xff]
  %v1339 = vld [vmem:[%s7 + $0x18] sm:$0xff]
  %v1340 = vld [vmem:[%s8] sm:$0xff]
  %v1341 = vld [vmem:[%s8 + $0x8] sm:$0xff]
  %v1342 = vld [vmem:[%s8 + $0x10] sm:$0xff]
  %v1343 = vld [vmem:[%s8 + $0x18] sm:$0xff]
  %1346 = vrot.lane.b32.xlu0 %v1289, 24
  %v1347 = vpop.permute.xlu0 %1346
  %1348 = vrot.lane.b32.xlu0 %v1296, 24
  %v1349 = vpop.permute.xlu0 %1348
  %vm1350 = vcmask 195584
  %v1351 = vsel %vm1350, %v1347, %v1349
  %v1355 = vsel %vm1350, 0.0, %v1347
  %v1356 = vsel %vm1350, %v1349, 0.0
  %1359 = vrot.lane.b32.xlu0 %v1328, 7
  %v1360 = vpop.permute.xlu0 %1359
  %1361 = vrot.lane.b32.xlu0 %v1329, 7
  %v1362 = vpop.permute.xlu0 %1361
  %vm1363 = vcmask 56320
  %v1364 = vsel %vm1363, %v1360, %v1362
  %v1368 = vmul.f32 %v1355, %v1360
  %v1369 = vmul.f32 %v1351, %v1364
  %v1370 = vmul.f32 %v1356, %v1362
  %1373 = vrot.lane.b32.xlu0 %v1334, 9
  %v1374 = vpop.permute.xlu0 %1373
  %1375 = vrot.lane.b32.xlu0 %v1335, 9
  %v1376 = vpop.permute.xlu0 %1375
  %vm1377 = vcmask 72704
  %v1378 = vsel %vm1377, %v1374, %v1376
  %v1382 = vmul.f32 %v1355, %v1374
  %v1383 = vmul.f32 %v1351, %v1378
  %v1384 = vmul.f32 %v1356, %v1376
  %1385 = vrot.lane.b32.xlu0 %v1328, 23
  %v1386 = vpop.permute.xlu0 %1385
  %1387 = vrot.lane.b32.xlu0 %v1329, 23
  %v1388 = vpop.permute.xlu0 %1387
  %vm1389 = vcmask 187392
  %v1390 = vsel %vm1389, %v1386, %v1388
  %v1394 = vmul.f32 %v1355, %v1386
  %v1395 = vmul.f32 %v1351, %v1390
  %v1396 = vmul.f32 %v1356, %v1388
  %1397 = vrot.lane.b32.xlu0 %v1334, 25
  %v1398 = vpop.permute.xlu0 %1397
  %1399 = vrot.lane.b32.xlu0 %v1335, 25
  %v1400 = vpop.permute.xlu0 %1399
  %vm1401 = vcmask 203776
  %v1402 = vsel %vm1401, %v1398, %v1400
  %v1406 = vmul.f32 %v1355, %v1398
  %v1407 = vmul.f32 %v1351, %v1402
  %v1408 = vmul.f32 %v1356, %v1400
  %1409 = vrot.lane.b32.xlu0 %v1328, 39
  %v1410 = vpop.permute.xlu0 %1409
  %1411 = vrot.lane.b32.xlu0 %v1329, 39
  %v1412 = vpop.permute.xlu0 %1411
  %vm1413 = vcmask 318464
  %v1414 = vsel %vm1413, %v1410, %v1412
  %v1418 = vmul.f32 %v1355, %v1410
  %v1419 = vmul.f32 %v1351, %v1414
  %v1420 = vmul.f32 %v1356, %v1412
  %1421 = vrot.lane.b32.xlu0 %v1334, 41
  %v1422 = vpop.permute.xlu0 %1421
  %1423 = vrot.lane.b32.xlu0 %v1335, 41
  %v1424 = vpop.permute.xlu0 %1423
  %vm1425 = vcmask 334848
  %v1426 = vsel %vm1425, %v1422, %v1424
  %v1430 = vmul.f32 %v1355, %v1422
  %v1431 = vmul.f32 %v1351, %v1426
  %v1432 = vmul.f32 %v1356, %v1424
  %v1435 = vrot.slane %v1355, 7
  %v1436 = vrot.slane %v1351, 7
  %v1437 = vrot.slane %v1356, 7
  %1438 = vrot.lane.b32.xlu0 %v1435, 127
  %v1439 = vpop.permute.xlu0 %1438
  %1440 = vrot.lane.b32.xlu0 %v1436, 127
  %v1441 = vpop.permute.xlu0 %1440
  %1442 = vrot.lane.b32.xlu0 %v1437, 127
  %v1443 = vpop.permute.xlu0 %1442
  %vm1444 = vcmask 1039360
  %v1445 = vsel %vm1444, %v1439, %v1441
  %v1446 = vsel %vm1444, %v1441, %v1443
  %v1453 = vrot.slane %v1382, 6
  %v1454 = vrot.slane %v1383, 6
  %v1455 = vrot.slane %v1384, 6
  %1456 = vrot.lane.b32.xlu0 %v1453, 126
  %v1457 = vpop.permute.xlu0 %1456
  %1458 = vrot.lane.b32.xlu0 %v1454, 126
  %v1459 = vpop.permute.xlu0 %1458
  %1460 = vrot.lane.b32.xlu0 %v1455, 126
  %v1461 = vpop.permute.xlu0 %1460
  %vm1462 = vcmask 1031168
  %v1463 = vsel %vm1462, %v1457, %v1459
  %v1464 = vsel %vm1462, %v1459, %v1461
  %v1471 = vrot.slane %v1394, 5
  %v1472 = vrot.slane %v1395, 5
  %v1473 = vrot.slane %v1396, 5
  %1474 = vrot.lane.b32.xlu0 %v1471, 112
  %v1475 = vpop.permute.xlu0 %1474
  %1476 = vrot.lane.b32.xlu0 %v1472, 112
  %v1477 = vpop.permute.xlu0 %1476
  %1478 = vrot.lane.b32.xlu0 %v1473, 112
  %v1479 = vpop.permute.xlu0 %1478
  %vm1480 = vcmask 916480
  %v1481 = vsel %vm1480, %v1475, %v1477
  %v1482 = vsel %vm1480, %v1477, %v1479
  %v1486 = vrot.slane %v1355, 4
  %v1487 = vrot.slane %v1351, 4
  %v1488 = vrot.slane %v1356, 4
  %1489 = vrot.lane.b32.xlu0 %v1486, 111
  %v1490 = vpop.permute.xlu0 %1489
  %1491 = vrot.lane.b32.xlu0 %v1487, 111
  %v1492 = vpop.permute.xlu0 %1491
  %1493 = vrot.lane.b32.xlu0 %v1488, 111
  %v1494 = vpop.permute.xlu0 %1493
  %vm1495 = vcmask 908288
  %v1496 = vsel %vm1495, %v1490, %v1492
  %v1497 = vsel %vm1495, %v1492, %v1494
  %v1504 = vrot.slane %v1406, 3
  %v1505 = vrot.slane %v1407, 3
  %v1506 = vrot.slane %v1408, 3
  %1507 = vrot.lane.b32.xlu0 %v1504, 110
  %v1508 = vpop.permute.xlu0 %1507
  %1509 = vrot.lane.b32.xlu0 %v1505, 110
  %v1510 = vpop.permute.xlu0 %1509
  %1511 = vrot.lane.b32.xlu0 %v1506, 110
  %v1512 = vpop.permute.xlu0 %1511
  %vm1513 = vcmask 900096
  %v1514 = vsel %vm1513, %v1508, %v1510
  %v1515 = vsel %vm1513, %v1510, %v1512
  %v1522 = vrot.slane %v1418, 2
  %v1523 = vrot.slane %v1419, 2
  %v1524 = vrot.slane %v1420, 2
  %1525 = vrot.lane.b32.xlu0 %v1522, 96
  %v1526 = vpop.permute.xlu0 %1525
  %1527 = vrot.lane.b32.xlu0 %v1523, 96
  %v1528 = vpop.permute.xlu0 %1527
  %1529 = vrot.lane.b32.xlu0 %v1524, 96
  %v1530 = vpop.permute.xlu0 %1529
  %vm1531 = vcmask 785408
  %v1532 = vsel %vm1531, %v1526, %v1528
  %v1533 = vsel %vm1531, %v1528, %v1530
  %v1537 = vrot.slane %v1355, 1
  %v1538 = vrot.slane %v1351, 1
  %v1539 = vrot.slane %v1356, 1
  %1540 = vrot.lane.b32.xlu0 %v1537, 95
  %v1541 = vpop.permute.xlu0 %1540
  %1542 = vrot.lane.b32.xlu0 %v1538, 95
  %v1543 = vpop.permute.xlu0 %1542
  %1544 = vrot.lane.b32.xlu0 %v1539, 95
  %v1545 = vpop.permute.xlu0 %1544
  %vm1546 = vcmask 777216
  %v1547 = vsel %vm1546, %v1541, %v1543
  %v1548 = vsel %vm1546, %v1543, %v1545
  %1555 = vrot.lane.b32.xlu0 %v1430, 94
  %v1556 = vpop.permute.xlu0 %1555
  %1557 = vrot.lane.b32.xlu0 %v1431, 94
  %v1558 = vpop.permute.xlu0 %1557
  %1559 = vrot.lane.b32.xlu0 %v1432, 94
  %v1560 = vpop.permute.xlu0 %1559
  %vm1561 = vcmask 769024
  %v1562 = vsel %vm1561, %v1556, %v1558
  %v1563 = vsel %vm1561, %v1558, %v1560
  %vm1564 = vcmask 1040384
  %v1565 = vsel %vm1564, %v1368, %v1445
  %v1566 = vsel %vm1564, %v1369, %v1446
  %v1567 = vsel %vm1564, %v1370, %v1443
  %vm1568 = vcmask 1041408
  %v1569 = vsel %vm1568, %v1565, %v1463
  %v1570 = vsel %vm1568, %v1566, %v1464
  %v1571 = vsel %vm1568, %v1567, %v1461
  %vm1572 = vcmask 1042432
  %v1573 = vsel %vm1572, %v1569, %v1481
  %v1574 = vsel %vm1572, %v1570, %v1482
  %v1575 = vsel %vm1572, %v1571, %v1479
  %v1576 = vsel %vm1282, %v1573, %v1496
  %v1577 = vsel %vm1282, %v1574, %v1497
  %v1578 = vsel %vm1282, %v1575, %v1494
  %vm1579 = vcmask 1044480
  %v1580 = vsel %vm1579, %v1576, %v1514
  %v1581 = vsel %vm1579, %v1577, %v1515
  %v1582 = vsel %vm1579, %v1578, %v1512
  %vm1583 = vcmask 1045504
  %v1584 = vsel %vm1583, %v1580, %v1532
  %v1585 = vsel %vm1583, %v1581, %v1533
  %v1586 = vsel %vm1583, %v1582, %v1530
  %vm1587 = vcmask 1046528
  %v1588 = vsel %vm1587, %v1584, %v1547
  %v1589 = vsel %vm1587, %v1585, %v1548
  %v1590 = vsel %vm1587, %v1586, %v1545
  %1592 = vset.pattern.permute.xlu0 0
  %1593 = vperm.xlu0 %1592, %v1340
  %v1594 = vpop.permute.xlu0 %1593
  %1597 = vset.pattern.permute.xlu0 0
  %1598 = vperm.xlu0 %1597, %v1341
  %v1599 = vpop.permute.xlu0 %1598
  %1602 = vset.pattern.permute.xlu0 0
  %1603 = vperm.xlu0 %1602, %v1342
  %v1604 = vpop.permute.xlu0 %1603
  %1607 = vset.pattern.permute.xlu0 0
  %1608 = vperm.xlu0 %1607, %v1343
  %v1609 = vpop.permute.xlu0 %1608
  %1614 = vrot.lane.b32.xlu0 %v1588, 121
  %v1615 = vpop.permute.xlu0 %1614
  %1616 = vrot.lane.b32.xlu0 %v1589, 121
  %v1617 = vpop.permute.xlu0 %1616
  %1618 = vrot.lane.b32.xlu0 %v1590, 121
  %v1619 = vpop.permute.xlu0 %1618
  %1620 = vrot.lane.b32.xlu0 %v1562, 121
  %v1621 = vpop.permute.xlu0 %1620
  %1622 = vrot.lane.b32.xlu0 %v1563, 121
  %v1623 = vpop.permute.xlu0 %1622
  %1624 = vrot.lane.b32.xlu0 %v1560, 121
  %v1625 = vpop.permute.xlu0 %1624
  %vm1626 = vcmask 990208
  %v1627 = vsel %vm1626, %v1615, %v1617
  %v1628 = vsel %vm1626, %v1617, %v1619
  %v1629 = vsel %vm1626, %v1621, %v1623
  %v1630 = vsel %vm1626, %v1623, %v1625
  %v1634 = vsel %vm1377, %v1336, 0
  %v1637 = vsel %vm1377, %v1337, 0
  %v1640 = vsel %vm1377, %v1338, 0
  %v1643 = vsel %vm1377, %v1339, 0
  %v1645 = vsel %vm1564, %v1629, 0
  %v1647 = vsel %vm1564, %v1630, 0
  %v1649 = vand.u32 %v1628, 4294901760
  %1650 = vmatprep.subr.mxu0 %v1649
  %v1651 = vand.u32 %v1627, 4294901760
  %1652 = vmatpush1.msra.mxu0 %v1651
  %v1653 = vand.u32 %v1647, 4294901760
  %1654 = vmatprep.subr.mxu0 %v1653
  %v1655 = vand.u32 %v1645, 4294901760
  %1656 = vmatpush1.msra.mxu0 %v1655
  %1657 = vmatprep.subr.mxu0 0.0
  %1658 = vmatpush1.msra.mxu0 0.0
  %1659 = vmatprep.subr.mxu0 0.0
  %1660 = vmatpush1.msra.mxu0 0.0
  %1661 = vmatprep.subr.mxu0 0.0
  %1662 = vmatpush1.msra.mxu0 0.0
  %1663 = vmatprep.subr.mxu0 0.0
  %1664 = vmatpush1.msra.mxu0 0.0
  %1665 = vmatprep.subr.mxu0 0.0
  %1666 = vmatpush1.msra.mxu0 0.0
  %1667 = vmatprep.subr.mxu0 0.0
  %1668 = vmatpush1.msra.mxu0 0.0
  %1669 = vmatprep.subr.mxu0 0.0
  %1670 = vmatpush1.msra.mxu0 0.0
  %1671 = vmatprep.subr.mxu0 0.0
  %1672 = vmatpush1.msra.mxu0 0.0
  %1673 = vmatprep.subr.mxu0 0.0
  %1674 = vmatpush1.msra.mxu0 0.0
  %1675 = vmatprep.subr.mxu0 0.0
  %1676 = vmatpush1.msra.mxu0 0.0
  %1677 = vmatprep.subr.mxu0 0.0
  %1678 = vmatpush1.msra.mxu0 0.0
  %1679 = vmatprep.subr.mxu0 0.0
  %1680 = vmatpush1.msra.mxu0 0.0
  %1681 = vmatprep.subr.mxu0 0.0
  %1682 = vmatpush1.msra.mxu0 0.0
  %1683 = vmatprep.subr.mxu0 0.0
  %1684 = vmatpush1.msra.mxu0 0.0
  %1685 = vmatprep.subr.mxu0 0.0
  %1686 = vmatpush1.msra.mxu0 0.0
  %1687 = vmatprep.subr.mxu0 0.0
  %1688 = vmatpush1.msra.mxu0 0.0
  %1689 = vmatprep.subr.mxu0 0.0
  %1690 = vmatpush1.msra.mxu0 0.0
  %1691 = vmatprep.subr.mxu0 0.0
  %1692 = vmatpush1.msra.mxu0 0.0
  %1693 = vmatprep.subr.mxu0 0.0
  %1694 = vmatpush1.msra.mxu0 0.0
  %1695 = vmatprep.subr.mxu0 0.0
  %1696 = vmatpush1.msra.mxu0 0.0
  %1697 = vmatprep.subr.mxu0 0.0
  %1698 = vmatpush1.msra.mxu0 0.0
  %1699 = vmatprep.subr.mxu0 0.0
  %1700 = vmatpush1.msra.mxu0 0.0
  %1701 = vmatprep.subr.mxu0 0.0
  %1702 = vmatpush1.msra.mxu0 0.0
  %1703 = vmatprep.subr.mxu0 0.0
  %1704 = vmatpush1.msra.mxu0 0.0
  %1705 = vmatprep.subr.mxu0 0.0
  %1706 = vmatpush1.msra.mxu0 0.0
  %1707 = vmatprep.subr.mxu0 0.0
  %1708 = vmatpush1.msra.mxu0 0.0
  %1709 = vmatprep.subr.mxu0 0.0
  %1710 = vmatpush1.msra.mxu0 0.0
  %1711 = vmatprep.subr.mxu0 0.0
  %1712 = vmatpush1.msra.mxu0 0.0
  %1713 = vmatprep.subr.mxu0 0.0
  %1714 = vmatpush1.msra.mxu0 0.0
  %1715 = vmatprep.subr.mxu0 0.0
  %1716 = vmatpush1.msra.mxu0 0.0
  %1717 = vmatprep.mubr.f32.mxu0 0.0
  %v1718 = vand.u32 %v1634, 4294901760
  %v1719 = vsub.f32 %v1634, %v1718
  %v1720 = vand.u32 %v1719, 4294901760
  %v1721 = vsub.f32 %v1719, %v1720
  %v1722 = vand.u32 %v1721, 4294901760
  %1723 = vmatmul.mubr.f32.gmra.mrb[0].mxu0 %v1722
  %v1724 = vpop.f32.mrb[0].mxu0
  %v1725 = vadd.f32 %v1594, %v1724
  %v1726 = vpop.f32.mrb[0].mxu0
  %v1727 = vadd.f32 %v1594, %v1726
  %1728 = vmatprep.mubr.f32.mxu0 0.0
  %v1729 = vand.u32 %v1637, 4294901760
  %v1730 = vsub.f32 %v1637, %v1729
  %v1731 = vand.u32 %v1730, 4294901760
  %v1732 = vsub.f32 %v1730, %v1731
  %v1733 = vand.u32 %v1732, 4294901760
  %1734 = vmatmul.mubr.f32.gmra.mrb[0].mxu0 %v1733
  %v1735 = vpop.f32.mrb[0].mxu0
  %v1736 = vadd.f32 %v1599, %v1735
  %v1737 = vpop.f32.mrb[0].mxu0
  %v1738 = vadd.f32 %v1599, %v1737
  %1739 = vmatprep.mubr.f32.mxu0 0.0
  %v1740 = vand.u32 %v1640, 4294901760
  %v1741 = vsub.f32 %v1640, %v1740
  %v1742 = vand.u32 %v1741, 4294901760
  %v1743 = vsub.f32 %v1741, %v1742
  %v1744 = vand.u32 %v1743, 4294901760
  %1745 = vmatmul.mubr.f32.gmra.mrb[0].mxu0 %v1744
  %v1746 = vpop.f32.mrb[0].mxu0
  %v1747 = vadd.f32 %v1604, %v1746
  %v1748 = vpop.f32.mrb[0].mxu0
  %v1749 = vadd.f32 %v1604, %v1748
  %1750 = vmatprep.mubr.f32.mxu0 0.0
  %v1751 = vand.u32 %v1643, 4294901760
  %v1752 = vsub.f32 %v1643, %v1751
  %v1753 = vand.u32 %v1752, 4294901760
  %v1754 = vsub.f32 %v1752, %v1753
  %v1755 = vand.u32 %v1754, 4294901760
  %1756 = vmatmul.mubr.f32.gmra.mrb[0].mxu0 %v1755
  %v1757 = vpop.f32.mrb[0].mxu0
  %v1758 = vadd.f32 %v1609, %v1757
  %v1759 = vpop.f32.mrb[0].mxu0
  %v1760 = vadd.f32 %v1609, %v1759
  %1761 = vdwg.mxu0
  %v1762 = vand.u32 %v1628, 4294901760
  %v1763 = vsub.f32 %v1628, %v1762
  %v1764 = vand.u32 %v1763, 4294901760
  %v1765 = vsub.f32 %v1763, %v1764
  %v1766 = vand.u32 %v1765, 4294901760
  %1767 = vmatprep.subr.mxu0 %v1766
  %v1768 = vand.u32 %v1627, 4294901760
  %v1769 = vsub.f32 %v1627, %v1768
  %v1770 = vand.u32 %v1769, 4294901760
  %v1771 = vsub.f32 %v1769, %v1770
  %v1772 = vand.u32 %v1771, 4294901760
  %1773 = vmatpush1.msra.mxu0 %v1772
  %v1774 = vand.u32 %v1647, 4294901760
  %v1775 = vsub.f32 %v1647, %v1774
  %v1776 = vand.u32 %v1775, 4294901760
  %v1777 = vsub.f32 %v1775, %v1776
  %v1778 = vand.u32 %v1777, 4294901760
  %1779 = vmatprep.subr.mxu0 %v1778
  %v1780 = vand.u32 %v1645, 4294901760
  %v1781 = vsub.f32 %v1645, %v1780
  %v1782 = vand.u32 %v1781, 4294901760
  %v1783 = vsub.f32 %v1781, %v1782
  %v1784 = vand.u32 %v1783, 4294901760
  %1785 = vmatpush1.msra.mxu0 %v1784
  %1786 = vmatprep.subr.mxu0 0.0
  %1787 = vmatpush1.msra.mxu0 0.0
  %1788 = vmatprep.subr.mxu0 0.0
  %1789 = vmatpush1.msra.mxu0 0.0
  %1790 = vmatprep.subr.mxu0 0.0
  %1791 = vmatpush1.msra.mxu0 0.0
  %1792 = vmatprep.subr.mxu0 0.0
  %1793 = vmatpush1.msra.mxu0 0.0
  %1794 = vmatprep.subr.mxu0 0.0
  %1795 = vmatpush1.msra.mxu0 0.0
  %1796 = vmatprep.subr.mxu0 0.0
  %1797 = vmatpush1.msra.mxu0 0.0
  %1798 = vmatprep.subr.mxu0 0.0
  %1799 = vmatpush1.msra.mxu0 0.0
  %1800 = vmatprep.subr.mxu0 0.0
  %1801 = vmatpush1.msra.mxu0 0.0
  %1802 = vmatprep.subr.mxu0 0.0
  %1803 = vmatpush1.msra.mxu0 0.0
  %1804 = vmatprep.subr.mxu0 0.0
  %1805 = vmatpush1.msra.mxu0 0.0
  %1806 = vmatprep.subr.mxu0 0.0
  %1807 = vmatpush1.msra.mxu0 0.0
  %1808 = vmatprep.subr.mxu0 0.0
  %1809 = vmatpush1.msra.mxu0 0.0
  %1810 = vmatprep.subr.mxu0 0.0
  %1811 = vmatpush1.msra.mxu0 0.0
  %1812 = vmatprep.subr.mxu0 0.0
  %1813 = vmatpush1.msra.mxu0 0.0
  %1814 = vmatprep.subr.mxu0 0.0
  %1815 = vmatpush1.msra.mxu0 0.0
  %1816 = vmatprep.subr.mxu0 0.0
  %1817 = vmatpush1.msra.mxu0 0.0
  %1818 = vmatprep.subr.mxu0 0.0
  %1819 = vmatpush1.msra.mxu0 0.0
  %1820 = vmatprep.subr.mxu0 0.0
  %1821 = vmatpush1.msra.mxu0 0.0
  %1822 = vmatprep.subr.mxu0 0.0
  %1823 = vmatpush1.msra.mxu0 0.0
  %1824 = vmatprep.subr.mxu0 0.0
  %1825 = vmatpush1.msra.mxu0 0.0
  %1826 = vmatprep.subr.mxu0 0.0
  %1827 = vmatpush1.msra.mxu0 0.0
  %1828 = vmatprep.subr.mxu0 0.0
  %1829 = vmatpush1.msra.mxu0 0.0
  %1830 = vmatprep.subr.mxu0 0.0
  %1831 = vmatpush1.msra.mxu0 0.0
  %1832 = vmatprep.subr.mxu0 0.0
  %1833 = vmatpush1.msra.mxu0 0.0
  %1834 = vmatprep.subr.mxu0 0.0
  %1835 = vmatpush1.msra.mxu0 0.0
  %1836 = vmatprep.subr.mxu0 0.0
  %1837 = vmatpush1.msra.mxu0 0.0
  %1838 = vmatprep.subr.mxu0 0.0
  %1839 = vmatpush1.msra.mxu0 0.0
  %1840 = vmatprep.subr.mxu0 0.0
  %1841 = vmatpush1.msra.mxu0 0.0
  %1842 = vmatprep.subr.mxu0 0.0
  %1843 = vmatpush1.msra.mxu0 0.0
  %1844 = vmatprep.subr.mxu0 0.0
  %1845 = vmatpush1.msra.mxu0 0.0
  %1846 = vmatprep.mubr.f32.mxu0 0.0
  %v1847 = vand.u32 %v1634, 4294901760
  %1848 = vmatmul.mubr.f32.gmra.mrb[0].mxu0 %v1847
  %v1849 = vpop.f32.mrb[0].mxu0
  %v1850 = vadd.f32 %v1725, %v1849
  %v1851 = vpop.f32.mrb[0].mxu0
  %v1852 = vadd.f32 %v1727, %v1851
  %1853 = vmatprep.mubr.f32.mxu0 0.0
  %v1854 = vand.u32 %v1637, 4294901760
  %1855 = vmatmul.mubr.f32.gmra.mrb[0].mxu0 %v1854
  %v1856 = vpop.f32.mrb[0].mxu0
  %v1857 = vadd.f32 %v1736, %v1856
  %v1858 = vpop.f32.mrb[0].mxu0
  %v1859 = vadd.f32 %v1738, %v1858
  %1860 = vmatprep.mubr.f32.mxu0 0.0
  %v1861 = vand.u32 %v1640, 4294901760
  %1862 = vmatmul.mubr.f32.gmra.mrb[0].mxu0 %v1861
  %v1863 = vpop.f32.mrb[0].mxu0
  %v1864 = vadd.f32 %v1747, %v1863
  %v1865 = vpop.f32.mrb[0].mxu0
  %v1866 = vadd.f32 %v1749, %v1865
  %1867 = vmatprep.mubr.f32.mxu0 0.0
  %v1868 = vand.u32 %v1643, 4294901760
  %1869 = vmatmul.mubr.f32.gmra.mrb[0].mxu0 %v1868
  %v1870 = vpop.f32.mrb[0].mxu0
  %v1871 = vadd.f32 %v1758, %v1870
  %v1872 = vpop.f32.mrb[0].mxu0
  %v1873 = vadd.f32 %v1760, %v1872
  %1874 = vdwg.mxu0
  %v1875 = vand.u32 %v1628, 4294901760
  %v1876 = vsub.f32 %v1628, %v1875
  %1877 = vmatprep.subr.mxu0 %v1876
  %v1878 = vand.u32 %v1627, 4294901760
  %v1879 = vsub.f32 %v1627, %v1878
  %1880 = vmatpush1.msra.mxu0 %v1879
  %v1881 = vand.u32 %v1647, 4294901760
  %v1882 = vsub.f32 %v1647, %v1881
  %1883 = vmatprep.subr.mxu0 %v1882
  %v1884 = vand.u32 %v1645, 4294901760
  %v1885 = vsub.f32 %v1645, %v1884
  %1886 = vmatpush1.msra.mxu0 %v1885
  %1887 = vmatprep.subr.mxu0 0.0
  %1888 = vmatpush1.msra.mxu0 0.0
  %1889 = vmatprep.subr.mxu0 0.0
  %1890 = vmatpush1.msra.mxu0 0.0
  %1891 = vmatprep.subr.mxu0 0.0
  %1892 = vmatpush1.msra.mxu0 0.0
  %1893 = vmatprep.subr.mxu0 0.0
  %1894 = vmatpush1.msra.mxu0 0.0
  %1895 = vmatprep.subr.mxu0 0.0
  %1896 = vmatpush1.msra.mxu0 0.0
  %1897 = vmatprep.subr.mxu0 0.0
  %1898 = vmatpush1.msra.mxu0 0.0
  %1899 = vmatprep.subr.mxu0 0.0
  %1900 = vmatpush1.msra.mxu0 0.0
  %1901 = vmatprep.subr.mxu0 0.0
  %1902 = vmatpush1.msra.mxu0 0.0
  %1903 = vmatprep.subr.mxu0 0.0
  %1904 = vmatpush1.msra.mxu0 0.0
  %1905 = vmatprep.subr.mxu0 0.0
  %1906 = vmatpush1.msra.mxu0 0.0
  %1907 = vmatprep.subr.mxu0 0.0
  %1908 = vmatpush1.msra.mxu0 0.0
  %1909 = vmatprep.subr.mxu0 0.0
  %1910 = vmatpush1.msra.mxu0 0.0
  %1911 = vmatprep.subr.mxu0 0.0
  %1912 = vmatpush1.msra.mxu0 0.0
  %1913 = vmatprep.subr.mxu0 0.0
  %1914 = vmatpush1.msra.mxu0 0.0
  %1915 = vmatprep.subr.mxu0 0.0
  %1916 = vmatpush1.msra.mxu0 0.0
  %1917 = vmatprep.subr.mxu0 0.0
  %1918 = vmatpush1.msra.mxu0 0.0
  %1919 = vmatprep.subr.mxu0 0.0
  %1920 = vmatpush1.msra.mxu0 0.0
  %1921 = vmatprep.subr.mxu0 0.0
  %1922 = vmatpush1.msra.mxu0 0.0
  %1923 = vmatprep.subr.mxu0 0.0
  %1924 = vmatpush1.msra.mxu0 0.0
  %1925 = vmatprep.subr.mxu0 0.0
  %1926 = vmatpush1.msra.mxu0 0.0
  %1927 = vmatprep.subr.mxu0 0.0
  %1928 = vmatpush1.msra.mxu0 0.0
  %1929 = vmatprep.subr.mxu0 0.0
  %1930 = vmatpush1.msra.mxu0 0.0
  %1931 = vmatprep.subr.mxu0 0.0
  %1932 = vmatpush1.msra.mxu0 0.0
  %1933 = vmatprep.subr.mxu0 0.0
  %1934 = vmatpush1.msra.mxu0 0.0
  %1935 = vmatprep.subr.mxu0 0.0
  %1936 = vmatpush1.msra.mxu0 0.0
  %1937 = vmatprep.subr.mxu0 0.0
  %1938 = vmatpush1.msra.mxu0 0.0
  %1939 = vmatprep.subr.mxu0 0.0
  %1940 = vmatpush1.msra.mxu0 0.0
  %1941 = vmatprep.subr.mxu0 0.0
  %1942 = vmatpush1.msra.mxu0 0.0
  %1943 = vmatprep.subr.mxu0 0.0
  %1944 = vmatpush1.msra.mxu0 0.0
  %1945 = vmatprep.subr.mxu0 0.0
  %1946 = vmatpush1.msra.mxu0 0.0
  %1947 = vmatprep.mubr.f32.mxu0 0.0
  %v1948 = vand.u32 %v1634, 4294901760
  %v1949 = vsub.f32 %v1634, %v1948
  %1950 = vmatmul.mubr.f32.gmra.mrb[0].mxu0 %v1949
  %v1951 = vpop.f32.mrb[0].mxu0
  %v1952 = vadd.f32 %v1850, %v1951
  %v1953 = vpop.f32.mrb[0].mxu0
  %v1954 = vadd.f32 %v1852, %v1953
  %1955 = vmatprep.mubr.f32.mxu0 0.0
  %v1956 = vand.u32 %v1637, 4294901760
  %v1957 = vsub.f32 %v1637, %v1956
  %1958 = vmatmul.mubr.f32.gmra.mrb[0].mxu0 %v1957
  %v1959 = vpop.f32.mrb[0].mxu0
  %v1960 = vadd.f32 %v1857, %v1959
  %v1961 = vpop.f32.mrb[0].mxu0
  %v1962 = vadd.f32 %v1859, %v1961
  %1963 = vmatprep.mubr.f32.mxu0 0.0
  %v1964 = vand.u32 %v1640, 4294901760
  %v1965 = vsub.f32 %v1640, %v1964
  %1966 = vmatmul.mubr.f32.gmra.mrb[0].mxu0 %v1965
  %v1967 = vpop.f32.mrb[0].mxu0
  %v1968 = vadd.f32 %v1864, %v1967
  %v1969 = vpop.f32.mrb[0].mxu0
  %v1970 = vadd.f32 %v1866, %v1969
  %1971 = vmatprep.mubr.f32.mxu0 0.0
  %v1972 = vand.u32 %v1643, 4294901760
  %v1973 = vsub.f32 %v1643, %v1972
  %1974 = vmatmul.mubr.f32.gmra.mrb[0].mxu0 %v1973
  %v1975 = vpop.f32.mrb[0].mxu0
  %v1976 = vadd.f32 %v1871, %v1975
  %v1977 = vpop.f32.mrb[0].mxu0
  %v1978 = vadd.f32 %v1873, %v1977
  %1979 = vdwg.mxu0
  %v1980 = vand.u32 %v1628, 4294901760
  %1981 = vmatprep.subr.mxu0 %v1980
  %v1982 = vand.u32 %v1627, 4294901760
  %1983 = vmatpush1.msra.mxu0 %v1982
  %v1984 = vand.u32 %v1647, 4294901760
  %1985 = vmatprep.subr.mxu0 %v1984
  %v1986 = vand.u32 %v1645, 4294901760
  %1987 = vmatpush1.msra.mxu0 %v1986
  %1988 = vmatprep.subr.mxu0 0.0
  %1989 = vmatpush1.msra.mxu0 0.0
  %1990 = vmatprep.subr.mxu0 0.0
  %1991 = vmatpush1.msra.mxu0 0.0
  %1992 = vmatprep.subr.mxu0 0.0
  %1993 = vmatpush1.msra.mxu0 0.0
  %1994 = vmatprep.subr.mxu0 0.0
  %1995 = vmatpush1.msra.mxu0 0.0
  %1996 = vmatprep.subr.mxu0 0.0
  %1997 = vmatpush1.msra.mxu0 0.0
  %1998 = vmatprep.subr.mxu0 0.0
  %1999 = vmatpush1.msra.mxu0 0.0
  %2000 = vmatprep.subr.mxu0 0.0
  %2001 = vmatpush1.msra.mxu0 0.0
  %2002 = vmatprep.subr.mxu0 0.0
  %2003 = vmatpush1.msra.mxu0 0.0
  %2004 = vmatprep.subr.mxu0 0.0
  %2005 = vmatpush1.msra.mxu0 0.0
  %2006 = vmatprep.subr.mxu0 0.0
  %2007 = vmatpush1.msra.mxu0 0.0
  %2008 = vmatprep.subr.mxu0 0.0
  %2009 = vmatpush1.msra.mxu0 0.0
  %2010 = vmatprep.subr.mxu0 0.0
  %2011 = vmatpush1.msra.mxu0 0.0
  %2012 = vmatprep.subr.mxu0 0.0
  %2013 = vmatpush1.msra.mxu0 0.0
  %2014 = vmatprep.subr.mxu0 0.0
  %2015 = vmatpush1.msra.mxu0 0.0
  %2016 = vmatprep.subr.mxu0 0.0
  %2017 = vmatpush1.msra.mxu0 0.0
  %2018 = vmatprep.subr.mxu0 0.0
  %2019 = vmatpush1.msra.mxu0 0.0
  %2020 = vmatprep.subr.mxu0 0.0
  %2021 = vmatpush1.msra.mxu0 0.0
  %2022 = vmatprep.subr.mxu0 0.0
  %2023 = vmatpush1.msra.mxu0 0.0
  %2024 = vmatprep.subr.mxu0 0.0
  %2025 = vmatpush1.msra.mxu0 0.0
  %2026 = vmatprep.subr.mxu0 0.0
  %2027 = vmatpush1.msra.mxu0 0.0
  %2028 = vmatprep.subr.mxu0 0.0
  %2029 = vmatpush1.msra.mxu0 0.0
  %2030 = vmatprep.subr.mxu0 0.0
  %2031 = vmatpush1.msra.mxu0 0.0
  %2032 = vmatprep.subr.mxu0 0.0
  %2033 = vmatpush1.msra.mxu0 0.0
  %2034 = vmatprep.subr.mxu0 0.0
  %2035 = vmatpush1.msra.mxu0 0.0
  %2036 = vmatprep.subr.mxu0 0.0
  %2037 = vmatpush1.msra.mxu0 0.0
  %2038 = vmatprep.subr.mxu0 0.0
  %2039 = vmatpush1.msra.mxu0 0.0
  %2040 = vmatprep.subr.mxu0 0.0
  %2041 = vmatpush1.msra.mxu0 0.0
  %2042 = vmatprep.subr.mxu0 0.0
  %2043 = vmatpush1.msra.mxu0 0.0
  %2044 = vmatprep.subr.mxu0 0.0
  %2045 = vmatpush1.msra.mxu0 0.0
  %2046 = vmatprep.subr.mxu0 0.0
  %2047 = vmatpush1.msra.mxu0 0.0
  %2048 = vmatprep.mubr.f32.mxu0 0.0
  %v2049 = vand.u32 %v1634, 4294901760
  %v2050 = vsub.f32 %v1634, %v2049
  %v2051 = vand.u32 %v2050, 4294901760
  %2052 = vmatmul.mubr.f32.gmra.mrb[0].mxu0 %v2051
  %v2053 = vpop.f32.mrb[0].mxu0
  %v2054 = vadd.f32 %v1952, %v2053
  %v2055 = vpop.f32.mrb[0].mxu0
  %v2056 = vadd.f32 %v1954, %v2055
  %2057 = vmatprep.mubr.f32.mxu0 0.0
  %v2058 = vand.u32 %v1637, 4294901760
  %v2059 = vsub.f32 %v1637, %v2058
  %v2060 = vand.u32 %v2059, 4294901760
  %2061 = vmatmul.mubr.f32.gmra.mrb[0].mxu0 %v2060
  %v2062 = vpop.f32.mrb[0].mxu0
  %v2063 = vadd.f32 %v1960, %v2062
  %v2064 = vpop.f32.mrb[0].mxu0
  %v2065 = vadd.f32 %v1962, %v2064
  %2066 = vmatprep.mubr.f32.mxu0 0.0
  %v2067 = vand.u32 %v1640, 4294901760
  %v2068 = vsub.f32 %v1640, %v2067
  %v2069 = vand.u32 %v2068, 4294901760
  %2070 = vmatmul.mubr.f32.gmra.mrb[0].mxu0 %v2069
  %v2071 = vpop.f32.mrb[0].mxu0
  %v2072 = vadd.f32 %v1968, %v2071
  %v2073 = vpop.f32.mrb[0].mxu0
  %v2074 = vadd.f32 %v1970, %v2073
  %2075 = vmatprep.mubr.f32.mxu0 0.0
  %v2076 = vand.u32 %v1643, 4294901760
  %v2077 = vsub.f32 %v1643, %v2076
  %v2078 = vand.u32 %v2077, 4294901760
  %2079 = vmatmul.mubr.f32.gmra.mrb[0].mxu0 %v2078
  %v2080 = vpop.f32.mrb[0].mxu0
  %v2081 = vadd.f32 %v1976, %v2080
  %v2082 = vpop.f32.mrb[0].mxu0
  %v2083 = vadd.f32 %v1978, %v2082
  %2084 = vdwg.mxu0
  %v2085 = vand.u32 %v1628, 4294901760
  %v2086 = vsub.f32 %v1628, %v2085
  %v2087 = vand.u32 %v2086, 4294901760
  %2088 = vmatprep.subr.mxu0 %v2087
  %v2089 = vand.u32 %v1627, 4294901760
  %v2090 = vsub.f32 %v1627, %v2089
  %v2091 = vand.u32 %v2090, 4294901760
  %2092 = vmatpush1.msra.mxu0 %v2091
  %v2093 = vand.u32 %v1647, 4294901760
  %v2094 = vsub.f32 %v1647, %v2093
  %v2095 = vand.u32 %v2094, 4294901760
  %2096 = vmatprep.subr.mxu0 %v2095
  %v2097 = vand.u32 %v1645, 4294901760
  %v2098 = vsub.f32 %v1645, %v2097
  %v2099 = vand.u32 %v2098, 4294901760
  %2100 = vmatpush1.msra.mxu0 %v2099
  %2101 = vmatprep.subr.mxu0 0.0
  %2102 = vmatpush1.msra.mxu0 0.0
  %2103 = vmatprep.subr.mxu0 0.0
  %2104 = vmatpush1.msra.mxu0 0.0
  %2105 = vmatprep.subr.mxu0 0.0
  %2106 = vmatpush1.msra.mxu0 0.0
  %2107 = vmatprep.subr.mxu0 0.0
  %2108 = vmatpush1.msra.mxu0 0.0
  %2109 = vmatprep.subr.mxu0 0.0
  %2110 = vmatpush1.msra.mxu0 0.0
  %2111 = vmatprep.subr.mxu0 0.0
  %2112 = vmatpush1.msra.mxu0 0.0
  %2113 = vmatprep.subr.mxu0 0.0
  %2114 = vmatpush1.msra.mxu0 0.0
  %2115 = vmatprep.subr.mxu0 0.0
  %2116 = vmatpush1.msra.mxu0 0.0
  %2117 = vmatprep.subr.mxu0 0.0
  %2118 = vmatpush1.msra.mxu0 0.0
  %2119 = vmatprep.subr.mxu0 0.0
  %2120 = vmatpush1.msra.mxu0 0.0
  %2121 = vmatprep.subr.mxu0 0.0
  %2122 = vmatpush1.msra.mxu0 0.0
  %2123 = vmatprep.subr.mxu0 0.0
  %2124 = vmatpush1.msra.mxu0 0.0
  %2125 = vmatprep.subr.mxu0 0.0
  %2126 = vmatpush1.msra.mxu0 0.0
  %2127 = vmatprep.subr.mxu0 0.0
  %2128 = vmatpush1.msra.mxu0 0.0
  %2129 = vmatprep.subr.mxu0 0.0
  %2130 = vmatpush1.msra.mxu0 0.0
  %2131 = vmatprep.subr.mxu0 0.0
  %2132 = vmatpush1.msra.mxu0 0.0
  %2133 = vmatprep.subr.mxu0 0.0
  %2134 = vmatpush1.msra.mxu0 0.0
  %2135 = vmatprep.subr.mxu0 0.0
  %2136 = vmatpush1.msra.mxu0 0.0
  %2137 = vmatprep.subr.mxu0 0.0
  %2138 = vmatpush1.msra.mxu0 0.0
  %2139 = vmatprep.subr.mxu0 0.0
  %2140 = vmatpush1.msra.mxu0 0.0
  %2141 = vmatprep.subr.mxu0 0.0
  %2142 = vmatpush1.msra.mxu0 0.0
  %2143 = vmatprep.subr.mxu0 0.0
  %2144 = vmatpush1.msra.mxu0 0.0
  %2145 = vmatprep.subr.mxu0 0.0
  %2146 = vmatpush1.msra.mxu0 0.0
  %2147 = vmatprep.subr.mxu0 0.0
  %2148 = vmatpush1.msra.mxu0 0.0
  %2149 = vmatprep.subr.mxu0 0.0
  %2150 = vmatpush1.msra.mxu0 0.0
  %2151 = vmatprep.subr.mxu0 0.0
  %2152 = vmatpush1.msra.mxu0 0.0
  %2153 = vmatprep.subr.mxu0 0.0
  %2154 = vmatpush1.msra.mxu0 0.0
  %2155 = vmatprep.subr.mxu0 0.0
  %2156 = vmatpush1.msra.mxu0 0.0
  %2157 = vmatprep.subr.mxu0 0.0
  %2158 = vmatpush1.msra.mxu0 0.0
  %2159 = vmatprep.subr.mxu0 0.0
  %2160 = vmatpush1.msra.mxu0 0.0
  %2161 = vmatprep.mubr.f32.mxu0 0.0
  %v2162 = vand.u32 %v1634, 4294901760
  %2163 = vmatmul.mubr.f32.gmra.mrb[0].mxu0 %v2162
  %v2164 = vpop.f32.mrb[0].mxu0
  %v2165 = vadd.f32 %v2054, %v2164
  %v2166 = vpop.f32.mrb[0].mxu0
  %v2167 = vadd.f32 %v2056, %v2166
  %2168 = vmatprep.mubr.f32.mxu0 0.0
  %v2169 = vand.u32 %v1637, 4294901760
  %2170 = vmatmul.mubr.f32.gmra.mrb[0].mxu0 %v2169
  %v2171 = vpop.f32.mrb[0].mxu0
  %v2172 = vadd.f32 %v2063, %v2171
  %v2173 = vpop.f32.mrb[0].mxu0
  %v2174 = vadd.f32 %v2065, %v2173
  %2175 = vmatprep.mubr.f32.mxu0 0.0
  %v2176 = vand.u32 %v1640, 4294901760
  %2177 = vmatmul.mubr.f32.gmra.mrb[0].mxu0 %v2176
  %v2178 = vpop.f32.mrb[0].mxu0
  %v2179 = vadd.f32 %v2072, %v2178
  %v2180 = vpop.f32.mrb[0].mxu0
  %v2181 = vadd.f32 %v2074, %v2180
  %2182 = vmatprep.mubr.f32.mxu0 0.0
  %v2183 = vand.u32 %v1643, 4294901760
  %2184 = vmatmul.mubr.f32.gmra.mrb[0].mxu0 %v2183
  %v2185 = vpop.f32.mrb[0].mxu0
  %v2186 = vadd.f32 %v2081, %v2185
  %v2187 = vpop.f32.mrb[0].mxu0
  %v2188 = vadd.f32 %v2083, %v2187
  %2189 = vdwg.mxu0
  %v2190 = vand.u32 %v1628, 4294901760
  %2191 = vmatprep.subr.mxu0 %v2190
  %v2192 = vand.u32 %v1627, 4294901760
  %2193 = vmatpush1.msra.mxu0 %v2192
  %v2194 = vand.u32 %v1647, 4294901760
  %2195 = vmatprep.subr.mxu0 %v2194
  %v2196 = vand.u32 %v1645, 4294901760
  %2197 = vmatpush1.msra.mxu0 %v2196
  %2198 = vmatprep.subr.mxu0 0.0
  %2199 = vmatpush1.msra.mxu0 0.0
  %2200 = vmatprep.subr.mxu0 0.0
  %2201 = vmatpush1.msra.mxu0 0.0
  %2202 = vmatprep.subr.mxu0 0.0
  %2203 = vmatpush1.msra.mxu0 0.0
  %2204 = vmatprep.subr.mxu0 0.0
  %2205 = vmatpush1.msra.mxu0 0.0
  %2206 = vmatprep.subr.mxu0 0.0
  %2207 = vmatpush1.msra.mxu0 0.0
  %2208 = vmatprep.subr.mxu0 0.0
  %2209 = vmatpush1.msra.mxu0 0.0
  %2210 = vmatprep.subr.mxu0 0.0
  %2211 = vmatpush1.msra.mxu0 0.0
  %2212 = vmatprep.subr.mxu0 0.0
  %2213 = vmatpush1.msra.mxu0 0.0
  %2214 = vmatprep.subr.mxu0 0.0
  %2215 = vmatpush1.msra.mxu0 0.0
  %2216 = vmatprep.subr.mxu0 0.0
  %2217 = vmatpush1.msra.mxu0 0.0
  %2218 = vmatprep.subr.mxu0 0.0
  %2219 = vmatpush1.msra.mxu0 0.0
  %2220 = vmatprep.subr.mxu0 0.0
  %2221 = vmatpush1.msra.mxu0 0.0
  %2222 = vmatprep.subr.mxu0 0.0
  %2223 = vmatpush1.msra.mxu0 0.0
  %2224 = vmatprep.subr.mxu0 0.0
  %2225 = vmatpush1.msra.mxu0 0.0
  %2226 = vmatprep.subr.mxu0 0.0
  %2227 = vmatpush1.msra.mxu0 0.0
  %2228 = vmatprep.subr.mxu0 0.0
  %2229 = vmatpush1.msra.mxu0 0.0
  %2230 = vmatprep.subr.mxu0 0.0
  %2231 = vmatpush1.msra.mxu0 0.0
  %2232 = vmatprep.subr.mxu0 0.0
  %2233 = vmatpush1.msra.mxu0 0.0
  %2234 = vmatprep.subr.mxu0 0.0
  %2235 = vmatpush1.msra.mxu0 0.0
  %2236 = vmatprep.subr.mxu0 0.0
  %2237 = vmatpush1.msra.mxu0 0.0
  %2238 = vmatprep.subr.mxu0 0.0
  %2239 = vmatpush1.msra.mxu0 0.0
  %2240 = vmatprep.subr.mxu0 0.0
  %2241 = vmatpush1.msra.mxu0 0.0
  %2242 = vmatprep.subr.mxu0 0.0
  %2243 = vmatpush1.msra.mxu0 0.0
  %2244 = vmatprep.subr.mxu0 0.0
  %2245 = vmatpush1.msra.mxu0 0.0
  %2246 = vmatprep.subr.mxu0 0.0
  %2247 = vmatpush1.msra.mxu0 0.0
  %2248 = vmatprep.subr.mxu0 0.0
  %2249 = vmatpush1.msra.mxu0 0.0
  %2250 = vmatprep.subr.mxu0 0.0
  %2251 = vmatpush1.msra.mxu0 0.0
  %2252 = vmatprep.subr.mxu0 0.0
  %2253 = vmatpush1.msra.mxu0 0.0
  %2254 = vmatprep.subr.mxu0 0.0
  %2255 = vmatpush1.msra.mxu0 0.0
  %2256 = vmatprep.subr.mxu0 0.0
  %2257 = vmatpush1.msra.mxu0 0.0
  %2258 = vmatprep.mubr.f32.mxu0 0.0
  %v2259 = vand.u32 %v1634, 4294901760
  %2260 = vmatmul.mubr.f32.gmra.mrb[0].mxu0 %v2259
  %v2261 = vpop.f32.mrb[0].mxu0
  %v2262 = vadd.f32 %v2165, %v2261
  %v2263 = vpop.f32.mrb[0].mxu0
  %v2264 = vadd.f32 %v2167, %v2263
  %2265 = vmatprep.mubr.f32.mxu0 0.0
  %v2266 = vand.u32 %v1637, 4294901760
  %2267 = vmatmul.mubr.f32.gmra.mrb[0].mxu0 %v2266
  %v2268 = vpop.f32.mrb[0].mxu0
  %v2269 = vadd.f32 %v2172, %v2268
  %v2270 = vpop.f32.mrb[0].mxu0
  %v2271 = vadd.f32 %v2174, %v2270
  %2272 = vmatprep.mubr.f32.mxu0 0.0
  %v2273 = vand.u32 %v1640, 4294901760
  %2274 = vmatmul.mubr.f32.gmra.mrb[0].mxu0 %v2273
  %v2275 = vpop.f32.mrb[0].mxu0
  %v2276 = vadd.f32 %v2179, %v2275
  %v2277 = vpop.f32.mrb[0].mxu0
  %v2278 = vadd.f32 %v2181, %v2277
  %2279 = vmatprep.mubr.f32.mxu0 0.0
  %v2280 = vand.u32 %v1643, 4294901760
  %2281 = vmatmul.mubr.f32.gmra.mrb[0].mxu0 %v2280
  %v2282 = vpop.f32.mrb[0].mxu0
  %v2283 = vadd.f32 %v2186, %v2282
  %v2284 = vpop.f32.mrb[0].mxu0
  %v2285 = vadd.f32 %v2188, %v2284
  %2286 = vdwg.mxu0
  %v2287 = vld [vmem:[%s6] sm:$0xff]
  %v2288 = vld [vmem:[%s6 + $0x8] sm:$0xff]
  %v2289 = vld [vmem:[%s6 + $0x10] sm:$0xff]
  %v2290 = vld [vmem:[%s6 + $0x18] sm:$0xff]
  loop: start=0, step=1, limit=3
  $region62: #{basic_block_forward.1} parent=0 // loop_pre_header
    _
  $region63: #{basic_block_forward.1} parent=0 // loop_header
    %s2292 = sphi 0, %s2296
    %p2293 = scmp.ge.s32.totalorder %s2292, 3
    %v2297 = vphi %v2262, %v8398
    %v2298 = vphi %v2264, %v8399
    %v2299 = vphi %v2269, %v8400
    %v2300 = vphi %v2271, %v8401
    %v2301 = vphi %v2276, %v8402
    %v2302 = vphi %v2278, %v8403
    %v2303 = vphi %v2283, %v8404
    %v2304 = vphi %v2285, %v8405
  $region64: #{basic_block_forward.1} parent=0 // loop_header_branch
    %2295 = sbr.rel (%p2293) target = $region68
  $region65: #{basic_block_forward.1} parent=0 // loop_body
    %s2305 = smul.u32 %s2292, 12
    %s2306 = smul.addr %s2305, 8
    %s2307 = scalar_lea.vmem %s9, %s2306
    %v2308 = vld [vmem:[%s2307] sm:$0xff]
    %v2309 = vld [vmem:[%s2307 + $0x8] sm:$0xff]
    %v2310 = vld [vmem:[%s2307 + $0x10] sm:$0xff]
    %v2311 = vld [vmem:[%s2307 + $0x18] sm:$0xff]
    %v2312 = vld [vmem:[%s2307 + $0x20] sm:$0xff]
    %v2313 = vld [vmem:[%s2307 + $0x28] sm:$0xff]
    %v2314 = vld [vmem:[%s2307 + $0x30] sm:$0xff]
    %v2315 = vld [vmem:[%s2307 + $0x38] sm:$0xff]
    %v2316 = vld [vmem:[%s2307 + $0x40] sm:$0xff]
    %v2317 = vld [vmem:[%s2307 + $0x48] sm:$0xff]
    %v2318 = vld [vmem:[%s2307 + $0x50] sm:$0xff]
    %v2319 = vld [vmem:[%s2307 + $0x58] sm:$0xff]
    %s2320 = smul.u32 %s2292, 32
    %s2321 = scalar_lea.vmem %s10, %s2320
    %v2322 = vld [vmem:[%s2321] sm:$0xff]
    %v2323 = vld [vmem:[%s2321 + $0x8] sm:$0xff]
    %v2324 = vld [vmem:[%s2321 + $0x10] sm:$0xff]
    %v2325 = vld [vmem:[%s2321 + $0x18] sm:$0xff]
    %2334 = vrot.lane.b32.xlu0 %v2297, 24
    %v2335 = vpop.permute.xlu0 %2334
    %2336 = vrot.lane.b32.xlu0 %v2298, 24
    %v2337 = vpop.permute.xlu0 %2336
    %2338 = vrot.lane.b32.xlu0 %v2299, 24
    %v2339 = vpop.permute.xlu0 %2338
    %2340 = vrot.lane.b32.xlu0 %v2300, 24
    %v2341 = vpop.permute.xlu0 %2340
    %2342 = vrot.lane.b32.xlu0 %v2301, 24
    %v2343 = vpop.permute.xlu0 %2342
    %2344 = vrot.lane.b32.xlu0 %v2302, 24
    %v2345 = vpop.permute.xlu0 %2344
    %2346 = vrot.lane.b32.xlu0 %v2303, 24
    %v2347 = vpop.permute.xlu0 %2346
    %2348 = vrot.lane.b32.xlu0 %v2304, 24
    %v2349 = vpop.permute.xlu0 %2348
    %v2350 = vsel %vm1350, %v2335, %v2337
    %v2351 = vsel %vm1350, %v2339, %v2341
    %v2352 = vsel %vm1350, %v2343, %v2345
    %v2353 = vsel %vm1350, %v2347, %v2349
    %v2366 = vsel %vm1350, 0.0, %v2335
    %v2367 = vsel %vm1350, 0.0, %v2339
    %v2368 = vsel %vm1350, 0.0, %v2343
    %v2369 = vsel %vm1350, 0.0, %v2347
    %v2370 = vsel %vm1350, %v2337, 0.0
    %v2371 = vsel %vm1350, %v2341, 0.0
    %v2372 = vsel %vm1350, %v2345, 0.0
    %v2373 = vsel %vm1350, %v2349, 0.0
    %v2374 = vmul.f32 %v2366, %v1360
    %v2375 = vmul.f32 %v2350, %v1364
    %v2376 = vmul.f32 %v2370, %v1362
    %v2377 = vmul.f32 %v2367, %v1360
    %v2378 = vmul.f32 %v2351, %v1364
    %v2379 = vmul.f32 %v2371, %v1362
    %v2380 = vmul.f32 %v2368, %v1360
    %v2381 = vmul.f32 %v2352, %v1364
    %v2382 = vmul.f32 %v2372, %v1362
    %v2383 = vmul.f32 %v2369, %v1360
    %v2384 = vmul.f32 %v2353, %v1364
    %v2385 = vmul.f32 %v2373, %v1362
    %v2386 = vmul.f32 %v2366, %v1374
    %v2387 = vmul.f32 %v2350, %v1378
    %v2388 = vmul.f32 %v2370, %v1376
    %v2389 = vmul.f32 %v2367, %v1374
    %v2390 = vmul.f32 %v2351, %v1378
    %v2391 = vmul.f32 %v2371, %v1376
    %v2392 = vmul.f32 %v2368, %v1374
    %v2393 = vmul.f32 %v2352, %v1378
    %v2394 = vmul.f32 %v2372, %v1376
    %v2395 = vmul.f32 %v2369, %v1374
    %v2396 = vmul.f32 %v2353, %v1378
    %v2397 = vmul.f32 %v2373, %v1376
    %v2398 = vmul.f32 %v2366, %v1386
    %v2399 = vmul.f32 %v2350, %v1390
    %v2400 = vmul.f32 %v2370, %v1388
    %v2401 = vmul.f32 %v2367, %v1386
    %v2402 = vmul.f32 %v2351, %v1390
    %v2403 = vmul.f32 %v2371, %v1388
    %v2404 = vmul.f32 %v2368, %v1386
    %v2405 = vmul.f32 %v2352, %v1390
    %v2406 = vmul.f32 %v2372, %v1388
    %v2407 = vmul.f32 %v2369, %v1386
    %v2408 = vmul.f32 %v2353, %v1390
    %v2409 = vmul.f32 %v2373, %v1388
    %v2410 = vmul.f32 %v2366, %v1398
    %v2411 = vmul.f32 %v2350, %v1402
    %v2412 = vmul.f32 %v2370, %v1400
    %v2413 = vmul.f32 %v2367, %v1398
    %v2414 = vmul.f32 %v2351, %v1402
    %v2415 = vmul.f32 %v2371, %v1400
    %v2416 = vmul.f32 %v2368, %v1398
    %v2417 = vmul.f32 %v2352, %v1402
    %v2418 = vmul.f32 %v2372, %v1400
    %v2419 = vmul.f32 %v2369, %v1398
    %v2420 = vmul.f32 %v2353, %v1402
    %v2421 = vmul.f32 %v2373, %v1400
    %v2422 = vmul.f32 %v2366, %v1410
    %v2423 = vmul.f32 %v2350, %v1414
    %v2424 = vmul.f32 %v2370, %v1412
    %v2425 = vmul.f32 %v2367, %v1410
    %v2426 = vmul.f32 %v2351, %v1414
    %v2427 = vmul.f32 %v2371, %v1412
    %v2428 = vmul.f32 %v2368, %v1410
    %v2429 = vmul.f32 %v2352, %v1414
    %v2430 = vmul.f32 %v2372, %v1412
    %v2431 = vmul.f32 %v2369, %v1410
    %v2432 = vmul.f32 %v2353, %v1414
    %v2433 = vmul.f32 %v2373, %v1412
    %v2434 = vmul.f32 %v2366, %v1422
    %v2435 = vmul.f32 %v2350, %v1426
    %v2436 = vmul.f32 %v2370, %v1424
    %v2437 = vmul.f32 %v2367, %v1422
    %v2438 = vmul.f32 %v2351, %v1426
    %v2439 = vmul.f32 %v2371, %v1424
    %v2440 = vmul.f32 %v2368, %v1422
    %v2441 = vmul.f32 %v2352, %v1426
    %v2442 = vmul.f32 %v2372, %v1424
    %v2443 = vmul.f32 %v2369, %v1422
    %v2444 = vmul.f32 %v2353, %v1426
    %v2445 = vmul.f32 %v2373, %v1424
    %2454 = vrot.lane.b32.xlu0 %v2366, 127
    %v2455 = vpop.permute.xlu0 %2454
    %2456 = vrot.lane.b32.xlu0 %v2350, 127
    %v2457 = vpop.permute.xlu0 %2456
    %2458 = vrot.lane.b32.xlu0 %v2370, 127
    %v2459 = vpop.permute.xlu0 %2458
    %2460 = vrot.lane.b32.xlu0 %v2367, 127
    %v2461 = vpop.permute.xlu0 %2460
    %2462 = vrot.lane.b32.xlu0 %v2351, 127
    %v2463 = vpop.permute.xlu0 %2462
    %2464 = vrot.lane.b32.xlu0 %v2371, 127
    %v2465 = vpop.permute.xlu0 %2464
    %2466 = vrot.lane.b32.xlu0 %v2368, 127
    %v2467 = vpop.permute.xlu0 %2466
    %2468 = vrot.lane.b32.xlu0 %v2352, 127
    %v2469 = vpop.permute.xlu0 %2468
    %2470 = vrot.lane.b32.xlu0 %v2372, 127
    %v2471 = vpop.permute.xlu0 %2470
    %2472 = vrot.lane.b32.xlu0 %v2369, 127
    %v2473 = vpop.permute.xlu0 %2472
    %2474 = vrot.lane.b32.xlu0 %v2353, 127
    %v2475 = vpop.permute.xlu0 %2474
    %2476 = vrot.lane.b32.xlu0 %v2373, 127
    %v2477 = vpop.permute.xlu0 %2476
    %v2478 = vsel %vm1444, %v2455, %v2457
    %v2479 = vsel %vm1444, %v2457, %v2459
    %v2480 = vsel %vm1444, %v2461, %v2463
    %v2481 = vsel %vm1444, %v2463, %v2465
    %v2482 = vsel %vm1444, %v2467, %v2469
    %v2483 = vsel %vm1444, %v2469, %v2471
    %v2484 = vsel %vm1444, %v2473, %v2475
    %v2485 = vsel %vm1444, %v2475, %v2477
    %2498 = vrot.lane.b32.xlu0 %v2386, 126
    %v2499 = vpop.permute.xlu0 %2498
    %2500 = vrot.lane.b32.xlu0 %v2387, 126
    %v2501 = vpop.permute.xlu0 %2500
    %2502 = vrot.lane.b32.xlu0 %v2388, 126
    %v2503 = vpop.permute.xlu0 %2502
    %2504 = vrot.lane.b32.xlu0 %v2389, 126
    %v2505 = vpop.permute.xlu0 %2504
    %2506 = vrot.lane.b32.xlu0 %v2390, 126
    %v2507 = vpop.permute.xlu0 %2506
    %2508 = vrot.lane.b32.xlu0 %v2391, 126
    %v2509 = vpop.permute.xlu0 %2508
    %2510 = vrot.lane.b32.xlu0 %v2392, 126
    %v2511 = vpop.permute.xlu0 %2510
    %2512 = vrot.lane.b32.xlu0 %v2393, 126
    %v2513 = vpop.permute.xlu0 %2512
    %2514 = vrot.lane.b32.xlu0 %v2394, 126
    %v2515 = vpop.permute.xlu0 %2514
    %2516 = vrot.lane.b32.xlu0 %v2395, 126
    %v2517 = vpop.permute.xlu0 %2516
    %2518 = vrot.lane.b32.xlu0 %v2396, 126
    %v2519 = vpop.permute.xlu0 %2518
    %2520 = vrot.lane.b32.xlu0 %v2397, 126
    %v2521 = vpop.permute.xlu0 %2520
    %v2522 = vsel %vm1462, %v2499, %v2501
    %v2523 = vsel %vm1462, %v2501, %v2503
    %v2524 = vsel %vm1462, %v2505, %v2507
    %v2525 = vsel %vm1462, %v2507, %v2509
    %v2526 = vsel %vm1462, %v2511, %v2513
    %v2527 = vsel %vm1462, %v2513, %v2515
    %v2528 = vsel %vm1462, %v2517, %v2519
    %v2529 = vsel %vm1462, %v2519, %v2521
    %2542 = vrot.lane.b32.xlu0 %v2398, 112
    %v2543 = vpop.permute.xlu0 %2542
    %2544 = vrot.lane.b32.xlu0 %v2399, 112
    %v2545 = vpop.permute.xlu0 %2544
    %2546 = vrot.lane.b32.xlu0 %v2400, 112
    %v2547 = vpop.permute.xlu0 %2546
    %2548 = vrot.lane.b32.xlu0 %v2401, 112
    %v2549 = vpop.permute.xlu0 %2548
    %2550 = vrot.lane.b32.xlu0 %v2402, 112
    %v2551 = vpop.permute.xlu0 %2550
    %2552 = vrot.lane.b32.xlu0 %v2403, 112
    %v2553 = vpop.permute.xlu0 %2552
    %2554 = vrot.lane.b32.xlu0 %v2404, 112
    %v2555 = vpop.permute.xlu0 %2554
    %2556 = vrot.lane.b32.xlu0 %v2405, 112
    %v2557 = vpop.permute.xlu0 %2556
    %2558 = vrot.lane.b32.xlu0 %v2406, 112
    %v2559 = vpop.permute.xlu0 %2558
    %2560 = vrot.lane.b32.xlu0 %v2407, 112
    %v2561 = vpop.permute.xlu0 %2560
    %2562 = vrot.lane.b32.xlu0 %v2408, 112
    %v2563 = vpop.permute.xlu0 %2562
    %2564 = vrot.lane.b32.xlu0 %v2409, 112
    %v2565 = vpop.permute.xlu0 %2564
    %v2566 = vsel %vm1480, %v2543, %v2545
    %v2567 = vsel %vm1480, %v2545, %v2547
    %v2568 = vsel %vm1480, %v2549, %v2551
    %v2569 = vsel %vm1480, %v2551, %v2553
    %v2570 = vsel %vm1480, %v2555, %v2557
    %v2571 = vsel %vm1480, %v2557, %v2559
    %v2572 = vsel %vm1480, %v2561, %v2563
    %v2573 = vsel %vm1480, %v2563, %v2565
    %2574 = vrot.lane.b32.xlu0 %v2366, 111
    %v2575 = vpop.permute.xlu0 %2574
    %2576 = vrot.lane.b32.xlu0 %v2350, 111
    %v2577 = vpop.permute.xlu0 %2576
    %2578 = vrot.lane.b32.xlu0 %v2370, 111
    %v2579 = vpop.permute.xlu0 %2578
    %2580 = vrot.lane.b32.xlu0 %v2367, 111
    %v2581 = vpop.permute.xlu0 %2580
    %2582 = vrot.lane.b32.xlu0 %v2351, 111
    %v2583 = vpop.permute.xlu0 %2582
    %2584 = vrot.lane.b32.xlu0 %v2371, 111
    %v2585 = vpop.permute.xlu0 %2584
    %2586 = vrot.lane.b32.xlu0 %v2368, 111
    %v2587 = vpop.permute.xlu0 %2586
    %2588 = vrot.lane.b32.xlu0 %v2352, 111
    %v2589 = vpop.permute.xlu0 %2588
    %2590 = vrot.lane.b32.xlu0 %v2372, 111
    %v2591 = vpop.permute.xlu0 %2590
    %2592 = vrot.lane.b32.xlu0 %v2369, 111
    %v2593 = vpop.permute.xlu0 %2592
    %2594 = vrot.lane.b32.xlu0 %v2353, 111
    %v2595 = vpop.permute.xlu0 %2594
    %2596 = vrot.lane.b32.xlu0 %v2373, 111
    %v2597 = vpop.permute.xlu0 %2596
    %v2598 = vsel %vm1495, %v2575, %v2577
    %v2599 = vsel %vm1495, %v2577, %v2579
    %v2600 = vsel %vm1495, %v2581, %v2583
    %v2601 = vsel %vm1495, %v2583, %v2585
    %v2602 = vsel %vm1495, %v2587, %v2589
    %v2603 = vsel %vm1495, %v2589, %v2591
    %v2604 = vsel %vm1495, %v2593, %v2595
    %v2605 = vsel %vm1495, %v2595, %v2597
    %2618 = vrot.lane.b32.xlu0 %v2410, 110
    %v2619 = vpop.permute.xlu0 %2618
    %2620 = vrot.lane.b32.xlu0 %v2411, 110
    %v2621 = vpop.permute.xlu0 %2620
    %2622 = vrot.lane.b32.xlu0 %v2412, 110
    %v2623 = vpop.permute.xlu0 %2622
    %2624 = vrot.lane.b32.xlu0 %v2413, 110
    %v2625 = vpop.permute.xlu0 %2624
    %2626 = vrot.lane.b32.xlu0 %v2414, 110
    %v2627 = vpop.permute.xlu0 %2626
    %2628 = vrot.lane.b32.xlu0 %v2415, 110
    %v2629 = vpop.permute.xlu0 %2628
    %2630 = vrot.lane.b32.xlu0 %v2416, 110
    %v2631 = vpop.permute.xlu0 %2630
    %2632 = vrot.lane.b32.xlu0 %v2417, 110
    %v2633 = vpop.permute.xlu0 %2632
    %2634 = vrot.lane.b32.xlu0 %v2418, 110
    %v2635 = vpop.permute.xlu0 %2634
    %2636 = vrot.lane.b32.xlu0 %v2419, 110
    %v2637 = vpop.permute.xlu0 %2636
    %2638 = vrot.lane.b32.xlu0 %v2420, 110
    %v2639 = vpop.permute.xlu0 %2638
    %2640 = vrot.lane.b32.xlu0 %v2421, 110
    %v2641 = vpop.permute.xlu0 %2640
    %v2642 = vsel %vm1513, %v2619, %v2621
    %v2643 = vsel %vm1513, %v2621, %v2623
    %v2644 = vsel %vm1513, %v2625, %v2627
    %v2645 = vsel %vm1513, %v2627, %v2629
    %v2646 = vsel %vm1513, %v2631, %v2633
    %v2647 = vsel %vm1513, %v2633, %v2635
    %v2648 = vsel %vm1513, %v2637, %v2639
    %v2649 = vsel %vm1513, %v2639, %v2641
    %2662 = vrot.lane.b32.xlu0 %v2422, 96
    %v2663 = vpop.permute.xlu0 %2662
    %2664 = vrot.lane.b32.xlu0 %v2423, 96
    %v2665 = vpop.permute.xlu0 %2664
    %2666 = vrot.lane.b32.xlu0 %v2424, 96
    %v2667 = vpop.permute.xlu0 %2666
    %2668 = vrot.lane.b32.xlu0 %v2425, 96
    %v2669 = vpop.permute.xlu0 %2668
    %2670 = vrot.lane.b32.xlu0 %v2426, 96
    %v2671 = vpop.permute.xlu0 %2670
    %2672 = vrot.lane.b32.xlu0 %v2427, 96
    %v2673 = vpop.permute.xlu0 %2672
    %2674 = vrot.lane.b32.xlu0 %v2428, 96
    %v2675 = vpop.permute.xlu0 %2674
    %2676 = vrot.lane.b32.xlu0 %v2429, 96
    %v2677 = vpop.permute.xlu0 %2676
    %2678 = vrot.lane.b32.xlu0 %v2430, 96
    %v2679 = vpop.permute.xlu0 %2678
    %2680 = vrot.lane.b32.xlu0 %v2431, 96
    %v2681 = vpop.permute.xlu0 %2680
    %2682 = vrot.lane.b32.xlu0 %v2432, 96
    %v2683 = vpop.permute.xlu0 %2682
    %2684 = vrot.lane.b32.xlu0 %v2433, 96
    %v2685 = vpop.permute.xlu0 %2684
    %v2686 = vsel %vm1531, %v2663, %v2665
    %v2687 = vsel %vm1531, %v2665, %v2667
    %v2688 = vsel %vm1531, %v2669, %v2671
    %v2689 = vsel %vm1531, %v2671, %v2673
    %v2690 = vsel %vm1531, %v2675, %v2677
    %v2691 = vsel %vm1531, %v2677, %v2679
    %v2692 = vsel %vm1531, %v2681, %v2683
    %v2693 = vsel %vm1531, %v2683, %v2685
    %2694 = vrot.lane.b32.xlu0 %v2366, 95
    %v2695 = vpop.permute.xlu0 %2694
    %2696 = vrot.lane.b32.xlu0 %v2350, 95
    %v2697 = vpop.permute.xlu0 %2696
    %2698 = vrot.lane.b32.xlu0 %v2370, 95
    %v2699 = vpop.permute.xlu0 %2698
    %2700 = vrot.lane.b32.xlu0 %v2367, 95
    %v2701 = vpop.permute.xlu0 %2700
    %2702 = vrot.lane.b32.xlu0 %v2351, 95
    %v2703 = vpop.permute.xlu0 %2702
    %2704 = vrot.lane.b32.xlu0 %v2371, 95
    %v2705 = vpop.permute.xlu0 %2704
    %2706 = vrot.lane.b32.xlu0 %v2368, 95
    %v2707 = vpop.permute.xlu0 %2706
    %2708 = vrot.lane.b32.xlu0 %v2352, 95
    %v2709 = vpop.permute.xlu0 %2708
    %2710 = vrot.lane.b32.xlu0 %v2372, 95
    %v2711 = vpop.permute.xlu0 %2710
    %2712 = vrot.lane.b32.xlu0 %v2369, 95
    %v2713 = vpop.permute.xlu0 %2712
    %2714 = vrot.lane.b32.xlu0 %v2353, 95
    %v2715 = vpop.permute.xlu0 %2714
    %2716 = vrot.lane.b32.xlu0 %v2373, 95
    %v2717 = vpop.permute.xlu0 %2716
    %v2718 = vsel %vm1546, %v2695, %v2697
    %v2719 = vsel %vm1546, %v2697, %v2699
    %v2720 = vsel %vm1546, %v2701, %v2703
    %v2721 = vsel %vm1546, %v2703, %v2705
    %v2722 = vsel %vm1546, %v2707, %v2709
    %v2723 = vsel %vm1546, %v2709, %v2711
    %v2724 = vsel %vm1546, %v2713, %v2715
    %v2725 = vsel %vm1546, %v2715, %v2717
    %2738 = vrot.lane.b32.xlu0 %v2434, 94
    %v2739 = vpop.permute.xlu0 %2738
    %2740 = vrot.lane.b32.xlu0 %v2435, 94
    %v2741 = vpop.permute.xlu0 %2740
    %2742 = vrot.lane.b32.xlu0 %v2436, 94
    %v2743 = vpop.permute.xlu0 %2742
    %2744 = vrot.lane.b32.xlu0 %v2437, 94
    %v2745 = vpop.permute.xlu0 %2744
    %2746 = vrot.lane.b32.xlu0 %v2438, 94
    %v2747 = vpop.permute.xlu0 %2746
    %2748 = vrot.lane.b32.xlu0 %v2439, 94
    %v2749 = vpop.permute.xlu0 %2748
    %2750 = vrot.lane.b32.xlu0 %v2440, 94
    %v2751 = vpop.permute.xlu0 %2750
    %2752 = vrot.lane.b32.xlu0 %v2441, 94
    %v2753 = vpop.permute.xlu0 %2752
    %2754 = vrot.lane.b32.xlu0 %v2442, 94
    %v2755 = vpop.permute.xlu0 %2754
    %2756 = vrot.lane.b32.xlu0 %v2443, 94
    %v2757 = vpop.permute.xlu0 %2756
    %2758 = vrot.lane.b32.xlu0 %v2444, 94
    %v2759 = vpop.permute.xlu0 %2758
    %2760 = vrot.lane.b32.xlu0 %v2445, 94
    %v2761 = vpop.permute.xlu0 %2760
    %v2762 = vsel %vm1561, %v2739, %v2741
    %v2763 = vsel %vm1561, %v2741, %v2743
    %v2764 = vsel %vm1561, %v2745, %v2747
    %v2765 = vsel %vm1561, %v2747, %v2749
    %v2766 = vsel %vm1561, %v2751, %v2753
    %v2767 = vsel %vm1561, %v2753, %v2755
    %v2768 = vsel %vm1561, %v2757, %v2759
    %v2769 = vsel %vm1561, %v2759, %v2761
    %2771 = vset.pattern.permute.xlu0 0
    %2772 = vperm.xlu0 %2771, %v2322
    %v2773 = vpop.permute.xlu0 %2772
    %2776 = vset.pattern.permute.xlu0 0
    %2777 = vperm.xlu0 %2776, %v2323
    %v2778 = vpop.permute.xlu0 %2777
    %2781 = vset.pattern.permute.xlu0 0
    %2782 = vperm.xlu0 %2781, %v2324
    %v2783 = vpop.permute.xlu0 %2782
    %2786 = vset.pattern.permute.xlu0 0
    %2787 = vperm.xlu0 %2786, %v2325
    %v2788 = vpop.permute.xlu0 %2787
    %2802 = vrot.lane.b32.xlu0 %v2374, 121
    %v2803 = vpop.permute.xlu0 %2802
    %2804 = vrot.lane.b32.xlu0 %v2375, 121
    %v2805 = vpop.permute.xlu0 %2804
    %2806 = vrot.lane.b32.xlu0 %v2376, 121
    %v2807 = vpop.permute.xlu0 %2806
    %2808 = vrot.lane.b32.xlu0 %v2377, 121
    %v2809 = vpop.permute.xlu0 %2808
    %2810 = vrot.lane.b32.xlu0 %v2378, 121
    %v2811 = vpop.permute.xlu0 %2810
    %2812 = vrot.lane.b32.xlu0 %v2379, 121
    %v2813 = vpop.permute.xlu0 %2812
    %2814 = vrot.lane.b32.xlu0 %v2380, 121
    %v2815 = vpop.permute.xlu0 %2814
    %2816 = vrot.lane.b32.xlu0 %v2381, 121
    %v2817 = vpop.permute.xlu0 %2816
    %2818 = vrot.lane.b32.xlu0 %v2382, 121
    %v2819 = vpop.permute.xlu0 %2818
    %2820 = vrot.lane.b32.xlu0 %v2383, 121
    %v2821 = vpop.permute.xlu0 %2820
    %2822 = vrot.lane.b32.xlu0 %v2384, 121
    %v2823 = vpop.permute.xlu0 %2822
    %2824 = vrot.lane.b32.xlu0 %v2385, 121
    %v2825 = vpop.permute.xlu0 %2824
    %2826 = vrot.lane.b32.xlu0 %v2478, 121
    %v2827 = vpop.permute.xlu0 %2826
    %2828 = vrot.lane.b32.xlu0 %v2479, 121
    %v2829 = vpop.permute.xlu0 %2828
    %2830 = vrot.lane.b32.xlu0 %v2459, 121
    %v2831 = vpop.permute.xlu0 %2830
    %2832 = vrot.lane.b32.xlu0 %v2480, 121
    %v2833 = vpop.permute.xlu0 %2832
    %2834 = vrot.lane.b32.xlu0 %v2481, 121
    %v2835 = vpop.permute.xlu0 %2834
    %2836 = vrot.lane.b32.xlu0 %v2465, 121
    %v2837 = vpop.permute.xlu0 %2836
    %2838 = vrot.lane.b32.xlu0 %v2482, 121
    %v2839 = vpop.permute.xlu0 %2838
    %2840 = vrot.lane.b32.xlu0 %v2483, 121
    %v2841 = vpop.permute.xlu0 %2840
    %2842 = vrot.lane.b32.xlu0 %v2471, 121
    %v2843 = vpop.permute.xlu0 %2842
    %2844 = vrot.lane.b32.xlu0 %v2484, 121
    %v2845 = vpop.permute.xlu0 %2844
    %2846 = vrot.lane.b32.xlu0 %v2485, 121
    %v2847 = vpop.permute.xlu0 %2846
    %2848 = vrot.lane.b32.xlu0 %v2477, 121
    %v2849 = vpop.permute.xlu0 %2848
    %2850 = vrot.lane.b32.xlu0 %v2522, 121
    %v2851 = vpop.permute.xlu0 %2850
    %2852 = vrot.lane.b32.xlu0 %v2523, 121
    %v2853 = vpop.permute.xlu0 %2852
    %2854 = vrot.lane.b32.xlu0 %v2503, 121
    %v2855 = vpop.permute.xlu0 %2854
    %2856 = vrot.lane.b32.xlu0 %v2524, 121
    %v2857 = vpop.permute.xlu0 %2856
    %2858 = vrot.lane.b32.xlu0 %v2525, 121
    %v2859 = vpop.permute.xlu0 %2858
    %2860 = vrot.lane.b32.xlu0 %v2509, 121
    %v2861 = vpop.permute.xlu0 %2860
    %2862 = vrot.lane.b32.xlu0 %v2526, 121
    %v2863 = vpop.permute.xlu0 %2862
    %2864 = vrot.lane.b32.xlu0 %v2527, 121
    %v2865 = vpop.permute.xlu0 %2864
    %2866 = vrot.lane.b32.xlu0 %v2515, 121
    %v2867 = vpop.permute.xlu0 %2866
    %2868 = vrot.lane.b32.xlu0 %v2528, 121
    %v2869 = vpop.permute.xlu0 %2868
    %2870 = vrot.lane.b32.xlu0 %v2529, 121
    %v2871 = vpop.permute.xlu0 %2870
    %2872 = vrot.lane.b32.xlu0 %v2521, 121
    %v2873 = vpop.permute.xlu0 %2872
    %2874 = vrot.lane.b32.xlu0 %v2566, 121
    %v2875 = vpop.permute.xlu0 %2874
    %2876 = vrot.lane.b32.xlu0 %v2567, 121
    %v2877 = vpop.permute.xlu0 %2876
    %2878 = vrot.lane.b32.xlu0 %v2547, 121
    %v2879 = vpop.permute.xlu0 %2878
    %2880 = vrot.lane.b32.xlu0 %v2568, 121
    %v2881 = vpop.permute.xlu0 %2880
    %2882 = vrot.lane.b32.xlu0 %v2569, 121
    %v2883 = vpop.permute.xlu0 %2882
    %2884 = vrot.lane.b32.xlu0 %v2553, 121
    %v2885 = vpop.permute.xlu0 %2884
    %2886 = vrot.lane.b32.xlu0 %v2570, 121
    %v2887 = vpop.permute.xlu0 %2886
    %2888 = vrot.lane.b32.xlu0 %v2571, 121
    %v2889 = vpop.permute.xlu0 %2888
    %2890 = vrot.lane.b32.xlu0 %v2559, 121
    %v2891 = vpop.permute.xlu0 %2890
    %2892 = vrot.lane.b32.xlu0 %v2572, 121
    %v2893 = vpop.permute.xlu0 %2892
    %2894 = vrot.lane.b32.xlu0 %v2573, 121
    %v2895 = vpop.permute.xlu0 %2894
    %2896 = vrot.lane.b32.xlu0 %v2565, 121
    %v2897 = vpop.permute.xlu0 %2896
    %2898 = vrot.lane.b32.xlu0 %v2598, 121
    %v2899 = vpop.permute.xlu0 %2898
    %2900 = vrot.lane.b32.xlu0 %v2599, 121
    %v2901 = vpop.permute.xlu0 %2900
    %2902 = vrot.lane.b32.xlu0 %v2579, 121
    %v2903 = vpop.permute.xlu0 %2902
    %2904 = vrot.lane.b32.xlu0 %v2600, 121
    %v2905 = vpop.permute.xlu0 %2904
    %2906 = vrot.lane.b32.xlu0 %v2601, 121
    %v2907 = vpop.permute.xlu0 %2906
    %2908 = vrot.lane.b32.xlu0 %v2585, 121
    %v2909 = vpop.permute.xlu0 %2908
    %2910 = vrot.lane.b32.xlu0 %v2602, 121
    %v2911 = vpop.permute.xlu0 %2910
    %2912 = vrot.lane.b32.xlu0 %v2603, 121
    %v2913 = vpop.permute.xlu0 %2912
    %2914 = vrot.lane.b32.xlu0 %v2591, 121
    %v2915 = vpop.permute.xlu0 %2914
    %2916 = vrot.lane.b32.xlu0 %v2604, 121
    %v2917 = vpop.permute.xlu0 %2916
    %2918 = vrot.lane.b32.xlu0 %v2605, 121
    %v2919 = vpop.permute.xlu0 %2918
    %2920 = vrot.lane.b32.xlu0 %v2597, 121
    %v2921 = vpop.permute.xlu0 %2920
    %2922 = vrot.lane.b32.xlu0 %v2642, 121
    %v2923 = vpop.permute.xlu0 %2922
    %2924 = vrot.lane.b32.xlu0 %v2643, 121
    %v2925 = vpop.permute.xlu0 %2924
    %2926 = vrot.lane.b32.xlu0 %v2623, 121
    %v2927 = vpop.permute.xlu0 %2926
    %2928 = vrot.lane.b32.xlu0 %v2644, 121
    %v2929 = vpop.permute.xlu0 %2928
    %2930 = vrot.lane.b32.xlu0 %v2645, 121
    %v2931 = vpop.permute.xlu0 %2930
    %2932 = vrot.lane.b32.xlu0 %v2629, 121
    %v2933 = vpop.permute.xlu0 %2932
    %2934 = vrot.lane.b32.xlu0 %v2646, 121
    %v2935 = vpop.permute.xlu0 %2934
    %2936 = vrot.lane.b32.xlu0 %v2647, 121
    %v2937 = vpop.permute.xlu0 %2936
    %2938 = vrot.lane.b32.xlu0 %v2635, 121
    %v2939 = vpop.permute.xlu0 %2938
    %2940 = vrot.lane.b32.xlu0 %v2648, 121
    %v2941 = vpop.permute.xlu0 %2940
    %2942 = vrot.lane.b32.xlu0 %v2649, 121
    %v2943 = vpop.permute.xlu0 %2942
    %2944 = vrot.lane.b32.xlu0 %v2641, 121
    %v2945 = vpop.permute.xlu0 %2944
    %2946 = vrot.lane.b32.xlu0 %v2686, 121
    %v2947 = vpop.permute.xlu0 %2946
    %2948 = vrot.lane.b32.xlu0 %v2687, 121
    %v2949 = vpop.permute.xlu0 %2948
    %2950 = vrot.lane.b32.xlu0 %v2667, 121
    %v2951 = vpop.permute.xlu0 %2950
    %2952 = vrot.lane.b32.xlu0 %v2688, 121
    %v2953 = vpop.permute.xlu0 %2952
    %2954 = vrot.lane.b32.xlu0 %v2689, 121
    %v2955 = vpop.permute.xlu0 %2954
    %2956 = vrot.lane.b32.xlu0 %v2673, 121
    %v2957 = vpop.permute.xlu0 %2956
    %2958 = vrot.lane.b32.xlu0 %v2690, 121
    %v2959 = vpop.permute.xlu0 %2958
    %2960 = vrot.lane.b32.xlu0 %v2691, 121
    %v2961 = vpop.permute.xlu0 %2960
    %2962 = vrot.lane.b32.xlu0 %v2679, 121
    %v2963 = vpop.permute.xlu0 %2962
    %2964 = vrot.lane.b32.xlu0 %v2692, 121
    %v2965 = vpop.permute.xlu0 %2964
    %2966 = vrot.lane.b32.xlu0 %v2693, 121
    %v2967 = vpop.permute.xlu0 %2966
    %2968 = vrot.lane.b32.xlu0 %v2685, 121
    %v2969 = vpop.permute.xlu0 %2968
    %2970 = vrot.lane.b32.xlu0 %v2718, 121
    %v2971 = vpop.permute.xlu0 %2970
    %2972 = vrot.lane.b32.xlu0 %v2719, 121
    %v2973 = vpop.permute.xlu0 %2972
    %2974 = vrot.lane.b32.xlu0 %v2699, 121
    %v2975 = vpop.permute.xlu0 %2974
    %2976 = vrot.lane.b32.xlu0 %v2720, 121
    %v2977 = vpop.permute.xlu0 %2976
    %2978 = vrot.lane.b32.xlu0 %v2721, 121
    %v2979 = vpop.permute.xlu0 %2978
    %2980 = vrot.lane.b32.xlu0 %v2705, 121
    %v2981 = vpop.permute.xlu0 %2980
    %2982 = vrot.lane.b32.xlu0 %v2722, 121
    %v2983 = vpop.permute.xlu0 %2982
    %2984 = vrot.lane.b32.xlu0 %v2723, 121
    %v2985 = vpop.permute.xlu0 %2984
    %2986 = vrot.lane.b32.xlu0 %v2711, 121
    %v2987 = vpop.permute.xlu0 %2986
    %2988 = vrot.lane.b32.xlu0 %v2724, 121
    %v2989 = vpop.permute.xlu0 %2988
    %2990 = vrot.lane.b32.xlu0 %v2725, 121
    %v2991 = vpop.permute.xlu0 %2990
    %2992 = vrot.lane.b32.xlu0 %v2717, 121
    %v2993 = vpop.permute.xlu0 %2992
    %2994 = vrot.lane.b32.xlu0 %v2762, 121
    %v2995 = vpop.permute.xlu0 %2994
    %2996 = vrot.lane.b32.xlu0 %v2763, 121
    %v2997 = vpop.permute.xlu0 %2996
    %2998 = vrot.lane.b32.xlu0 %v2743, 121
    %v2999 = vpop.permute.xlu0 %2998
    %3000 = vrot.lane.b32.xlu0 %v2764, 121
    %v3001 = vpop.permute.xlu0 %3000
    %3002 = vrot.lane.b32.xlu0 %v2765, 121
    %v3003 = vpop.permute.xlu0 %3002
    %3004 = vrot.lane.b32.xlu0 %v2749, 121
    %v3005 = vpop.permute.xlu0 %3004
    %3006 = vrot.lane.b32.xlu0 %v2766, 121
    %v3007 = vpop.permute.xlu0 %3006
    %3008 = vrot.lane.b32.xlu0 %v2767, 121
    %v3009 = vpop.permute.xlu0 %3008
    %3010 = vrot.lane.b32.xlu0 %v2755, 121
    %v3011 = vpop.permute.xlu0 %3010
    %3012 = vrot.lane.b32.xlu0 %v2768, 121
    %v3013 = vpop.permute.xlu0 %3012
    %3014 = vrot.lane.b32.xlu0 %v2769, 121
    %v3015 = vpop.permute.xlu0 %3014
    %3016 = vrot.lane.b32.xlu0 %v2761, 121
    %v3017 = vpop.permute.xlu0 %3016
    %v3018 = vsel %vm1626, %v2803, %v2805
    %v3019 = vsel %vm1626, %v2805, %v2807
    %v3020 = vsel %vm1626, %v2809, %v2811
    %v3021 = vsel %vm1626, %v2811, %v2813
    %v3022 = vsel %vm1626, %v2815, %v2817
    %v3023 = vsel %vm1626, %v2817, %v2819
    %v3024 = vsel %vm1626, %v2821, %v2823
    %v3025 = vsel %vm1626, %v2823, %v2825
    %v3026 = vsel %vm1626, %v2827, %v2829
    %v3027 = vsel %vm1626, %v2829, %v2831
    %v3028 = vsel %vm1626, %v2833, %v2835
    %v3029 = vsel %vm1626, %v2835, %v2837
    %v3030 = vsel %vm1626, %v2839, %v2841
    %v3031 = vsel %vm1626, %v2841, %v2843
    %v3032 = vsel %vm1626, %v2845, %v2847
    %v3033 = vsel %vm1626, %v2847, %v2849
    %v3034 = vsel %vm1626, %v2851, %v2853
    %v3035 = vsel %vm1626, %v2853, %v2855
    %v3036 = vsel %vm1626, %v2857, %v2859
    %v3037 = vsel %vm1626, %v2859, %v2861
    %v3038 = vsel %vm1626, %v2863, %v2865
    %v3039 = vsel %vm1626, %v2865, %v2867
    %v3040 = vsel %vm1626, %v2869, %v2871
    %v3041 = vsel %vm1626, %v2871, %v2873
    %v3042 = vsel %vm1626, %v2875, %v2877
    %v3043 = vsel %vm1626, %v2877, %v2879
    %v3044 = vsel %vm1626, %v2881, %v2883
    %v3045 = vsel %vm1626, %v2883, %v2885
    %v3046 = vsel %vm1626, %v2887, %v2889
    %v3047 = vsel %vm1626, %v2889, %v2891
    %v3048 = vsel %vm1626, %v2893, %v2895
    %v3049 = vsel %vm1626, %v2895, %v2897
    %v3050 = vsel %vm1626, %v2899, %v2901
    %v3051 = vsel %vm1626, %v2901, %v2903
    %v3052 = vsel %vm1626, %v2905, %v2907
    %v3053 = vsel %vm1626, %v2907, %v2909
    %v3054 = vsel %vm1626, %v2911, %v2913
    %v3055 = vsel %vm1626, %v2913, %v2915
    %v3056 = vsel %vm1626, %v2917, %v2919
    %v3057 = vsel %vm1626, %v2919, %v2921
    %v3058 = vsel %vm1626, %v2923, %v2925
    %v3059 = vsel %vm1626, %v2925, %v2927
    %v3060 = vsel %vm1626, %v2929, %v2931
    %v3061 = vsel %vm1626, %v2931, %v2933
    %v3062 = vsel %vm1626, %v2935, %v2937
    %v3063 = vsel %vm1626, %v2937, %v2939
    %v3064 = vsel %vm1626, %v2941, %v2943
    %v3065 = vsel %vm1626, %v2943, %v2945
    %v3066 = vsel %vm1626, %v2947, %v2949
    %v3067 = vsel %vm1626, %v2949, %v2951
    %v3068 = vsel %vm1626, %v2953, %v2955
    %v3069 = vsel %vm1626, %v2955, %v2957
    %v3070 = vsel %vm1626, %v2959, %v2961
    %v3071 = vsel %vm1626, %v2961, %v2963
    %v3072 = vsel %vm1626, %v2965, %v2967
    %v3073 = vsel %vm1626, %v2967, %v2969
    %v3074 = vsel %vm1626, %v2971, %v2973
    %v3075 = vsel %vm1626, %v2973, %v2975
    %v3076 = vsel %vm1626, %v2977, %v2979
    %v3077 = vsel %vm1626, %v2979, %v2981
    %v3078 = vsel %vm1626, %v2983, %v2985
    %v3079 = vsel %vm1626, %v2985, %v2987
    %v3080 = vsel %vm1626, %v2989, %v2991
    %v3081 = vsel %vm1626, %v2991, %v2993
    %v3082 = vsel %vm1626, %v2995, %v2997
    %v3083 = vsel %vm1626, %v2997, %v2999
    %v3084 = vsel %vm1626, %v3001, %v3003
    %v3085 = vsel %vm1626, %v3003, %v3005
    %v3086 = vsel %vm1626, %v3007, %v3009
    %v3087 = vsel %vm1626, %v3009, %v3011
    %v3088 = vsel %vm1626, %v3013, %v3015
    %v3089 = vsel %vm1626, %v3015, %v3017
    %vm3162 = vcmask 261120
    %v3164 = vsel %vm3162, %v2310, 0
    %v3167 = vsel %vm3162, %v2313, 0
    %v3170 = vsel %vm3162, %v2316, 0
    %v3173 = vsel %vm3162, %v2319, 0
    %v3175 = vand.u32 %v3019, 4294901760
    %3176 = vmatprep.subr.mxu0 %v3175
    %v3177 = vand.u32 %v3018, 4294901760
    %3178 = vmatpush1.msra.mxu0 %v3177
    %v3179 = vand.u32 %v3021, 4294901760
    %3180 = vmatprep.subr.mxu0 %v3179
    %v3181 = vand.u32 %v3020, 4294901760
    %3182 = vmatpush1.msra.mxu0 %v3181
    %v3183 = vand.u32 %v3023, 4294901760
    %3184 = vmatprep.subr.mxu0 %v3183
    %v3185 = vand.u32 %v3022, 4294901760
    %3186 = vmatpush1.msra.mxu0 %v3185
    %v3187 = vand.u32 %v3025, 4294901760
    %3188 = vmatprep.subr.mxu0 %v3187
    %v3189 = vand.u32 %v3024, 4294901760
    %3190 = vmatpush1.msra.mxu0 %v3189
    %v3191 = vand.u32 %v3027, 4294901760
    %3192 = vmatprep.subr.mxu0 %v3191
    %v3193 = vand.u32 %v3026, 4294901760
    %3194 = vmatpush1.msra.mxu0 %v3193
    %v3195 = vand.u32 %v3029, 4294901760
    %3196 = vmatprep.subr.mxu0 %v3195
    %v3197 = vand.u32 %v3028, 4294901760
    %3198 = vmatpush1.msra.mxu0 %v3197
    %v3199 = vand.u32 %v3031, 4294901760
    %3200 = vmatprep.subr.mxu0 %v3199
    %v3201 = vand.u32 %v3030, 4294901760
    %3202 = vmatpush1.msra.mxu0 %v3201
    %v3203 = vand.u32 %v3033, 4294901760
    %3204 = vmatprep.subr.mxu0 %v3203
    %v3205 = vand.u32 %v3032, 4294901760
    %3206 = vmatpush1.msra.mxu0 %v3205
    %v3207 = vand.u32 %v3035, 4294901760
    %3208 = vmatprep.subr.mxu0 %v3207
    %v3209 = vand.u32 %v3034, 4294901760
    %3210 = vmatpush1.msra.mxu0 %v3209
    %v3211 = vand.u32 %v3037, 4294901760
    %3212 = vmatprep.subr.mxu0 %v3211
    %v3213 = vand.u32 %v3036, 4294901760
    %3214 = vmatpush1.msra.mxu0 %v3213
    %v3215 = vand.u32 %v3039, 4294901760
    %3216 = vmatprep.subr.mxu0 %v3215
    %v3217 = vand.u32 %v3038, 4294901760
    %3218 = vmatpush1.msra.mxu0 %v3217
    %v3219 = vand.u32 %v3041, 4294901760
    %3220 = vmatprep.subr.mxu0 %v3219
    %v3221 = vand.u32 %v3040, 4294901760
    %3222 = vmatpush1.msra.mxu0 %v3221
    %v3223 = vand.u32 %v3043, 4294901760
    %3224 = vmatprep.subr.mxu0 %v3223
    %v3225 = vand.u32 %v3042, 4294901760
    %3226 = vmatpush1.msra.mxu0 %v3225
    %v3227 = vand.u32 %v3045, 4294901760
    %3228 = vmatprep.subr.mxu0 %v3227
    %v3229 = vand.u32 %v3044, 4294901760
    %3230 = vmatpush1.msra.mxu0 %v3229
    %v3231 = vand.u32 %v3047, 4294901760
    %3232 = vmatprep.subr.mxu0 %v3231
    %v3233 = vand.u32 %v3046, 4294901760
    %3234 = vmatpush1.msra.mxu0 %v3233
    %v3235 = vand.u32 %v3049, 4294901760
    %3236 = vmatprep.subr.mxu0 %v3235
    %v3237 = vand.u32 %v3048, 4294901760
    %3238 = vmatpush1.msra.mxu0 %v3237
    %v3239 = vand.u32 %v3051, 4294901760
    %3240 = vmatprep.subr.mxu0 %v3239
    %v3241 = vand.u32 %v3050, 4294901760
    %3242 = vmatpush1.msra.mxu0 %v3241
    %v3243 = vand.u32 %v3053, 4294901760
    %3244 = vmatprep.subr.mxu0 %v3243
    %v3245 = vand.u32 %v3052, 4294901760
    %3246 = vmatpush1.msra.mxu0 %v3245
    %v3247 = vand.u32 %v3055, 4294901760
    %3248 = vmatprep.subr.mxu0 %v3247
    %v3249 = vand.u32 %v3054, 4294901760
    %3250 = vmatpush1.msra.mxu0 %v3249
    %v3251 = vand.u32 %v3057, 4294901760
    %3252 = vmatprep.subr.mxu0 %v3251
    %v3253 = vand.u32 %v3056, 4294901760
    %3254 = vmatpush1.msra.mxu0 %v3253
    %v3255 = vand.u32 %v3059, 4294901760
    %3256 = vmatprep.subr.mxu0 %v3255
    %v3257 = vand.u32 %v3058, 4294901760
    %3258 = vmatpush1.msra.mxu0 %v3257
    %v3259 = vand.u32 %v3061, 4294901760
    %3260 = vmatprep.subr.mxu0 %v3259
    %v3261 = vand.u32 %v3060, 4294901760
    %3262 = vmatpush1.msra.mxu0 %v3261
    %v3263 = vand.u32 %v3063, 4294901760
    %3264 = vmatprep.subr.mxu0 %v3263
    %v3265 = vand.u32 %v3062, 4294901760
    %3266 = vmatpush1.msra.mxu0 %v3265
    %v3267 = vand.u32 %v3065, 4294901760
    %3268 = vmatprep.subr.mxu0 %v3267
    %v3269 = vand.u32 %v3064, 4294901760
    %3270 = vmatpush1.msra.mxu0 %v3269
    %v3271 = vand.u32 %v3067, 4294901760
    %3272 = vmatprep.subr.mxu0 %v3271
    %v3273 = vand.u32 %v3066, 4294901760
    %3274 = vmatpush1.msra.mxu0 %v3273
    %v3275 = vand.u32 %v3069, 4294901760
    %3276 = vmatprep.subr.mxu0 %v3275
    %v3277 = vand.u32 %v3068, 4294901760
    %3278 = vmatpush1.msra.mxu0 %v3277
    %v3279 = vand.u32 %v3071, 4294901760
    %3280 = vmatprep.subr.mxu0 %v3279
    %v3281 = vand.u32 %v3070, 4294901760
    %3282 = vmatpush1.msra.mxu0 %v3281
    %v3283 = vand.u32 %v3073, 4294901760
    %3284 = vmatprep.subr.mxu0 %v3283
    %v3285 = vand.u32 %v3072, 4294901760
    %3286 = vmatpush1.msra.mxu0 %v3285
    %v3287 = vand.u32 %v3075, 4294901760
    %3288 = vmatprep.subr.mxu0 %v3287
    %v3289 = vand.u32 %v3074, 4294901760
    %3290 = vmatpush1.msra.mxu0 %v3289
    %v3291 = vand.u32 %v3077, 4294901760
    %3292 = vmatprep.subr.mxu0 %v3291
    %v3293 = vand.u32 %v3076, 4294901760
    %3294 = vmatpush1.msra.mxu0 %v3293
    %v3295 = vand.u32 %v3079, 4294901760
    %3296 = vmatprep.subr.mxu0 %v3295
    %v3297 = vand.u32 %v3078, 4294901760
    %3298 = vmatpush1.msra.mxu0 %v3297
    %v3299 = vand.u32 %v3081, 4294901760
    %3300 = vmatprep.subr.mxu0 %v3299
    %v3301 = vand.u32 %v3080, 4294901760
    %3302 = vmatpush1.msra.mxu0 %v3301
    %v3303 = vand.u32 %v2309, 4294901760
    %v3304 = vsub.f32 %v2309, %v3303
    %v3305 = vand.u32 %v3304, 4294901760
    %v3306 = vsub.f32 %v3304, %v3305
    %v3307 = vand.u32 %v3306, 4294901760
    %3308 = vmatprep.mubr.f32.mxu0 %v3307
    %v3309 = vand.u32 %v2308, 4294901760
    %v3310 = vsub.f32 %v2308, %v3309
    %v3311 = vand.u32 %v3310, 4294901760
    %v3312 = vsub.f32 %v3310, %v3311
    %v3313 = vand.u32 %v3312, 4294901760
    %3314 = vmatmul.mubr.f32.gmra.mrb[0].mxu0 %v3313
    %v3315 = vpop.f32.mrb[0].mxu0
    %v3316 = vadd.f32 %v2773, %v3315
    %v3317 = vpop.f32.mrb[0].mxu0
    %v3318 = vadd.f32 %v2773, %v3317
    %v3319 = vand.u32 %v2312, 4294901760
    %v3320 = vsub.f32 %v2312, %v3319
    %v3321 = vand.u32 %v3320, 4294901760
    %v3322 = vsub.f32 %v3320, %v3321
    %v3323 = vand.u32 %v3322, 4294901760
    %3324 = vmatprep.mubr.f32.mxu0 %v3323
    %v3325 = vand.u32 %v2311, 4294901760
    %v3326 = vsub.f32 %v2311, %v3325
    %v3327 = vand.u32 %v3326, 4294901760
    %v3328 = vsub.f32 %v3326, %v3327
    %v3329 = vand.u32 %v3328, 4294901760
    %3330 = vmatmul.mubr.f32.gmra.mrb[0].mxu0 %v3329
    %v3331 = vpop.f32.mrb[0].mxu0
    %v3332 = vadd.f32 %v2778, %v3331
    %v3333 = vpop.f32.mrb[0].mxu0
    %v3334 = vadd.f32 %v2778, %v3333
    %v3335 = vand.u32 %v2315, 4294901760
    %v3336 = vsub.f32 %v2315, %v3335
    %v3337 = vand.u32 %v3336, 4294901760
    %v3338 = vsub.f32 %v3336, %v3337
    %v3339 = vand.u32 %v3338, 4294901760
    %3340 = vmatprep.mubr.f32.mxu0 %v3339
    %v3341 = vand.u32 %v2314, 4294901760
    %v3342 = vsub.f32 %v2314, %v3341
    %v3343 = vand.u32 %v3342, 4294901760
    %v3344 = vsub.f32 %v3342, %v3343
    %v3345 = vand.u32 %v3344, 4294901760
    %3346 = vmatmul.mubr.f32.gmra.mrb[0].mxu0 %v3345
    %v3347 = vpop.f32.mrb[0].mxu0
    %v3348 = vadd.f32 %v2783, %v3347
    %v3349 = vpop.f32.mrb[0].mxu0
    %v3350 = vadd.f32 %v2783, %v3349
    %v3351 = vand.u32 %v2318, 4294901760
    %v3352 = vsub.f32 %v2318, %v3351
    %v3353 = vand.u32 %v3352, 4294901760
    %v3354 = vsub.f32 %v3352, %v3353
    %v3355 = vand.u32 %v3354, 4294901760
    %3356 = vmatprep.mubr.f32.mxu0 %v3355
    %v3357 = vand.u32 %v2317, 4294901760
    %v3358 = vsub.f32 %v2317, %v3357
    %v3359 = vand.u32 %v3358, 4294901760
    %v3360 = vsub.f32 %v3358, %v3359
    %v3361 = vand.u32 %v3360, 4294901760
    %3362 = vmatmul.mubr.f32.gmra.mrb[0].mxu0 %v3361
    %v3363 = vpop.f32.mrb[0].mxu0
    %v3364 = vadd.f32 %v2788, %v3363
    %v3365 = vpop.f32.mrb[0].mxu0
    %v3366 = vadd.f32 %v2788, %v3365
    %3367 = vdwg.mxu0
    %v3368 = vand.u32 %v3019, 4294901760
    %v3369 = vsub.f32 %v3019, %v3368
    %v3370 = vand.u32 %v3369, 4294901760
    %v3371 = vsub.f32 %v3369, %v3370
    %v3372 = vand.u32 %v3371, 4294901760
    %3373 = vmatprep.subr.mxu0 %v3372
    %v3374 = vand.u32 %v3018, 4294901760
    %v3375 = vsub.f32 %v3018, %v3374
    %v3376 = vand.u32 %v3375, 4294901760
    %v3377 = vsub.f32 %v3375, %v3376
    %v3378 = vand.u32 %v3377, 4294901760
    %3379 = vmatpush1.msra.mxu0 %v3378
    %v3380 = vand.u32 %v3021, 4294901760
    %v3381 = vsub.f32 %v3021, %v3380
    %v3382 = vand.u32 %v3381, 4294901760
    %v3383 = vsub.f32 %v3381, %v3382
    %v3384 = vand.u32 %v3383, 4294901760
    %3385 = vmatprep.subr.mxu0 %v3384
    %v3386 = vand.u32 %v3020, 4294901760
    %v3387 = vsub.f32 %v3020, %v3386
    %v3388 = vand.u32 %v3387, 4294901760
    %v3389 = vsub.f32 %v3387, %v3388
    %v3390 = vand.u32 %v3389, 4294901760
    %3391 = vmatpush1.msra.mxu0 %v3390
    %v3392 = vand.u32 %v3023, 4294901760
    %v3393 = vsub.f32 %v3023, %v3392
    %v3394 = vand.u32 %v3393, 4294901760
    %v3395 = vsub.f32 %v3393, %v3394
    %v3396 = vand.u32 %v3395, 4294901760
    %3397 = vmatprep.subr.mxu0 %v3396
    %v3398 = vand.u32 %v3022, 4294901760
    %v3399 = vsub.f32 %v3022, %v3398
    %v3400 = vand.u32 %v3399, 4294901760
    %v3401 = vsub.f32 %v3399, %v3400
    %v3402 = vand.u32 %v3401, 4294901760
    %3403 = vmatpush1.msra.mxu0 %v3402
    %v3404 = vand.u32 %v3025, 4294901760
    %v3405 = vsub.f32 %v3025, %v3404
    %v3406 = vand.u32 %v3405, 4294901760
    %v3407 = vsub.f32 %v3405, %v3406
    %v3408 = vand.u32 %v3407, 4294901760
    %3409 = vmatprep.subr.mxu0 %v3408
    %v3410 = vand.u32 %v3024, 4294901760
    %v3411 = vsub.f32 %v3024, %v3410
    %v3412 = vand.u32 %v3411, 4294901760
    %v3413 = vsub.f32 %v3411, %v3412
    %v3414 = vand.u32 %v3413, 4294901760
    %3415 = vmatpush1.msra.mxu0 %v3414
    %v3416 = vand.u32 %v3027, 4294901760
    %v3417 = vsub.f32 %v3027, %v3416
    %v3418 = vand.u32 %v3417, 4294901760
    %v3419 = vsub.f32 %v3417, %v3418
    %v3420 = vand.u32 %v3419, 4294901760
    %3421 = vmatprep.subr.mxu0 %v3420
    %v3422 = vand.u32 %v3026, 4294901760
    %v3423 = vsub.f32 %v3026, %v3422
    %v3424 = vand.u32 %v3423, 4294901760
    %v3425 = vsub.f32 %v3423, %v3424
    %v3426 = vand.u32 %v3425, 4294901760
    %3427 = vmatpush1.msra.mxu0 %v3426
    %v3428 = vand.u32 %v3029, 4294901760
    %v3429 = vsub.f32 %v3029, %v3428
    %v3430 = vand.u32 %v3429, 4294901760
    %v3431 = vsub.f32 %v3429, %v3430
    %v3432 = vand.u32 %v3431, 4294901760
    %3433 = vmatprep.subr.mxu0 %v3432
    %v3434 = vand.u32 %v3028, 4294901760
    %v3435 = vsub.f32 %v3028, %v3434
    %v3436 = vand.u32 %v3435, 4294901760
    %v3437 = vsub.f32 %v3435, %v3436
    %v3438 = vand.u32 %v3437, 4294901760
    %3439 = vmatpush1.msra.mxu0 %v3438
    %v3440 = vand.u32 %v3031, 4294901760
    %v3441 = vsub.f32 %v3031, %v3440
    %v3442 = vand.u32 %v3441, 4294901760
    %v3443 = vsub.f32 %v3441, %v3442
    %v3444 = vand.u32 %v3443, 4294901760
    %3445 = vmatprep.subr.mxu0 %v3444
    %v3446 = vand.u32 %v3030, 4294901760
    %v3447 = vsub.f32 %v3030, %v3446
    %v3448 = vand.u32 %v3447, 4294901760
    %v3449 = vsub.f32 %v3447, %v3448
    %v3450 = vand.u32 %v3449, 4294901760
    %3451 = vmatpush1.msra.mxu0 %v3450
    %v3452 = vand.u32 %v3033, 4294901760
    %v3453 = vsub.f32 %v3033, %v3452
    %v3454 = vand.u32 %v3453, 4294901760
    %v3455 = vsub.f32 %v3453, %v3454
    %v3456 = vand.u32 %v3455, 4294901760
    %3457 = vmatprep.subr.mxu0 %v3456
    %v3458 = vand.u32 %v3032, 4294901760
    %v3459 = vsub.f32 %v3032, %v3458
    %v3460 = vand.u32 %v3459, 4294901760
    %v3461 = vsub.f32 %v3459, %v3460
    %v3462 = vand.u32 %v3461, 4294901760
    %3463 = vmatpush1.msra.mxu0 %v3462
    %v3464 = vand.u32 %v3035, 4294901760
    %v3465 = vsub.f32 %v3035, %v3464
    %v3466 = vand.u32 %v3465, 4294901760
    %v3467 = vsub.f32 %v3465, %v3466
    %v3468 = vand.u32 %v3467, 4294901760
    %3469 = vmatprep.subr.mxu0 %v3468
    %v3470 = vand.u32 %v3034, 4294901760
    %v3471 = vsub.f32 %v3034, %v3470
    %v3472 = vand.u32 %v3471, 4294901760
    %v3473 = vsub.f32 %v3471, %v3472
    %v3474 = vand.u32 %v3473, 4294901760
    %3475 = vmatpush1.msra.mxu0 %v3474
    %v3476 = vand.u32 %v3037, 4294901760
    %v3477 = vsub.f32 %v3037, %v3476
    %v3478 = vand.u32 %v3477, 4294901760
    %v3479 = vsub.f32 %v3477, %v3478
    %v3480 = vand.u32 %v3479, 4294901760
    %3481 = vmatprep.subr.mxu0 %v3480
    %v3482 = vand.u32 %v3036, 4294901760
    %v3483 = vsub.f32 %v3036, %v3482
    %v3484 = vand.u32 %v3483, 4294901760
    %v3485 = vsub.f32 %v3483, %v3484
    %v3486 = vand.u32 %v3485, 4294901760
    %3487 = vmatpush1.msra.mxu0 %v3486
    %v3488 = vand.u32 %v3039, 4294901760
    %v3489 = vsub.f32 %v3039, %v3488
    %v3490 = vand.u32 %v3489, 4294901760
    %v3491 = vsub.f32 %v3489, %v3490
    %v3492 = vand.u32 %v3491, 4294901760
    %3493 = vmatprep.subr.mxu0 %v3492
    %v3494 = vand.u32 %v3038, 4294901760
    %v3495 = vsub.f32 %v3038, %v3494
    %v3496 = vand.u32 %v3495, 4294901760
    %v3497 = vsub.f32 %v3495, %v3496
    %v3498 = vand.u32 %v3497, 4294901760
    %3499 = vmatpush1.msra.mxu0 %v3498
    %v3500 = vand.u32 %v3041, 4294901760
    %v3501 = vsub.f32 %v3041, %v3500
    %v3502 = vand.u32 %v3501, 4294901760
    %v3503 = vsub.f32 %v3501, %v3502
    %v3504 = vand.u32 %v3503, 4294901760
    %3505 = vmatprep.subr.mxu0 %v3504
    %v3506 = vand.u32 %v3040, 4294901760
    %v3507 = vsub.f32 %v3040, %v3506
    %v3508 = vand.u32 %v3507, 4294901760
    %v3509 = vsub.f32 %v3507, %v3508
    %v3510 = vand.u32 %v3509, 4294901760
    %3511 = vmatpush1.msra.mxu0 %v3510
    %v3512 = vand.u32 %v3043, 4294901760
    %v3513 = vsub.f32 %v3043, %v3512
    %v3514 = vand.u32 %v3513, 4294901760
    %v3515 = vsub.f32 %v3513, %v3514
    %v3516 = vand.u32 %v3515, 4294901760
    %3517 = vmatprep.subr.mxu0 %v3516
    %v3518 = vand.u32 %v3042, 4294901760
    %v3519 = vsub.f32 %v3042, %v3518
    %v3520 = vand.u32 %v3519, 4294901760
    %v3521 = vsub.f32 %v3519, %v3520
    %v3522 = vand.u32 %v3521, 4294901760
    %3523 = vmatpush1.msra.mxu0 %v3522
    %v3524 = vand.u32 %v3045, 4294901760
    %v3525 = vsub.f32 %v3045, %v3524
    %v3526 = vand.u32 %v3525, 4294901760
    %v3527 = vsub.f32 %v3525, %v3526
    %v3528 = vand.u32 %v3527, 4294901760
    %3529 = vmatprep.subr.mxu0 %v3528
    %v3530 = vand.u32 %v3044, 4294901760
    %v3531 = vsub.f32 %v3044, %v3530
    %v3532 = vand.u32 %v3531, 4294901760
    %v3533 = vsub.f32 %v3531, %v3532
    %v3534 = vand.u32 %v3533, 4294901760
    %3535 = vmatpush1.msra.mxu0 %v3534
    %v3536 = vand.u32 %v3047, 4294901760
    %v3537 = vsub.f32 %v3047, %v3536
    %v3538 = vand.u32 %v3537, 4294901760
    %v3539 = vsub.f32 %v3537, %v3538
    %v3540 = vand.u32 %v3539, 4294901760
    %3541 = vmatprep.subr.mxu0 %v3540
    %v3542 = vand.u32 %v3046, 4294901760
    %v3543 = vsub.f32 %v3046, %v3542
    %v3544 = vand.u32 %v3543, 4294901760
    %v3545 = vsub.f32 %v3543, %v3544
    %v3546 = vand.u32 %v3545, 4294901760
    %3547 = vmatpush1.msra.mxu0 %v3546
    %v3548 = vand.u32 %v3049, 4294901760
    %v3549 = vsub.f32 %v3049, %v3548
    %v3550 = vand.u32 %v3549, 4294901760
    %v3551 = vsub.f32 %v3549, %v3550
    %v3552 = vand.u32 %v3551, 4294901760
    %3553 = vmatprep.subr.mxu0 %v3552
    %v3554 = vand.u32 %v3048, 4294901760
    %v3555 = vsub.f32 %v3048, %v3554
    %v3556 = vand.u32 %v3555, 4294901760
    %v3557 = vsub.f32 %v3555, %v3556
    %v3558 = vand.u32 %v3557, 4294901760
    %3559 = vmatpush1.msra.mxu0 %v3558
    %v3560 = vand.u32 %v3051, 4294901760
    %v3561 = vsub.f32 %v3051, %v3560
    %v3562 = vand.u32 %v3561, 4294901760
    %v3563 = vsub.f32 %v3561, %v3562
    %v3564 = vand.u32 %v3563, 4294901760
    %3565 = vmatprep.subr.mxu0 %v3564
    %v3566 = vand.u32 %v3050, 4294901760
    %v3567 = vsub.f32 %v3050, %v3566
    %v3568 = vand.u32 %v3567, 4294901760
    %v3569 = vsub.f32 %v3567, %v3568
    %v3570 = vand.u32 %v3569, 4294901760
    %3571 = vmatpush1.msra.mxu0 %v3570
    %v3572 = vand.u32 %v3053, 4294901760
    %v3573 = vsub.f32 %v3053, %v3572
    %v3574 = vand.u32 %v3573, 4294901760
    %v3575 = vsub.f32 %v3573, %v3574
    %v3576 = vand.u32 %v3575, 4294901760
    %3577 = vmatprep.subr.mxu0 %v3576
    %v3578 = vand.u32 %v3052, 4294901760
    %v3579 = vsub.f32 %v3052, %v3578
    %v3580 = vand.u32 %v3579, 4294901760
    %v3581 = vsub.f32 %v3579, %v3580
    %v3582 = vand.u32 %v3581, 4294901760
    %3583 = vmatpush1.msra.mxu0 %v3582
    %v3584 = vand.u32 %v3055, 4294901760
    %v3585 = vsub.f32 %v3055, %v3584
    %v3586 = vand.u32 %v3585, 4294901760
    %v3587 = vsub.f32 %v3585, %v3586
    %v3588 = vand.u32 %v3587, 4294901760
    %3589 = vmatprep.subr.mxu0 %v3588
    %v3590 = vand.u32 %v3054, 4294901760
    %v3591 = vsub.f32 %v3054, %v3590
    %v3592 = vand.u32 %v3591, 4294901760
    %v3593 = vsub.f32 %v3591, %v3592
    %v3594 = vand.u32 %v3593, 4294901760
    %3595 = vmatpush1.msra.mxu0 %v3594
    %v3596 = vand.u32 %v3057, 4294901760
    %v3597 = vsub.f32 %v3057, %v3596
    %v3598 = vand.u32 %v3597, 4294901760
    %v3599 = vsub.f32 %v3597, %v3598
    %v3600 = vand.u32 %v3599, 4294901760
    %3601 = vmatprep.subr.mxu0 %v3600
    %v3602 = vand.u32 %v3056, 4294901760
    %v3603 = vsub.f32 %v3056, %v3602
    %v3604 = vand.u32 %v3603, 4294901760
    %v3605 = vsub.f32 %v3603, %v3604
    %v3606 = vand.u32 %v3605, 4294901760
    %3607 = vmatpush1.msra.mxu0 %v3606
    %v3608 = vand.u32 %v3059, 4294901760
    %v3609 = vsub.f32 %v3059, %v3608
    %v3610 = vand.u32 %v3609, 4294901760
    %v3611 = vsub.f32 %v3609, %v3610
    %v3612 = vand.u32 %v3611, 4294901760
    %3613 = vmatprep.subr.mxu0 %v3612
    %v3614 = vand.u32 %v3058, 4294901760
    %v3615 = vsub.f32 %v3058, %v3614
    %v3616 = vand.u32 %v3615, 4294901760
    %v3617 = vsub.f32 %v3615, %v3616
    %v3618 = vand.u32 %v3617, 4294901760
    %3619 = vmatpush1.msra.mxu0 %v3618
    %v3620 = vand.u32 %v3061, 4294901760
    %v3621 = vsub.f32 %v3061, %v3620
    %v3622 = vand.u32 %v3621, 4294901760
    %v3623 = vsub.f32 %v3621, %v3622
    %v3624 = vand.u32 %v3623, 4294901760
    %3625 = vmatprep.subr.mxu0 %v3624
    %v3626 = vand.u32 %v3060, 4294901760
    %v3627 = vsub.f32 %v3060, %v3626
    %v3628 = vand.u32 %v3627, 4294901760
    %v3629 = vsub.f32 %v3627, %v3628
    %v3630 = vand.u32 %v3629, 4294901760
    %3631 = vmatpush1.msra.mxu0 %v3630
    %v3632 = vand.u32 %v3063, 4294901760
    %v3633 = vsub.f32 %v3063, %v3632
    %v3634 = vand.u32 %v3633, 4294901760
    %v3635 = vsub.f32 %v3633, %v3634
    %v3636 = vand.u32 %v3635, 4294901760
    %3637 = vmatprep.subr.mxu0 %v3636
    %v3638 = vand.u32 %v3062, 4294901760
    %v3639 = vsub.f32 %v3062, %v3638
    %v3640 = vand.u32 %v3639, 4294901760
    %v3641 = vsub.f32 %v3639, %v3640
    %v3642 = vand.u32 %v3641, 4294901760
    %3643 = vmatpush1.msra.mxu0 %v3642
    %v3644 = vand.u32 %v3065, 4294901760
    %v3645 = vsub.f32 %v3065, %v3644
    %v3646 = vand.u32 %v3645, 4294901760
    %v3647 = vsub.f32 %v3645, %v3646
    %v3648 = vand.u32 %v3647, 4294901760
    %3649 = vmatprep.subr.mxu0 %v3648
    %v3650 = vand.u32 %v3064, 4294901760
    %v3651 = vsub.f32 %v3064, %v3650
    %v3652 = vand.u32 %v3651, 4294901760
    %v3653 = vsub.f32 %v3651, %v3652
    %v3654 = vand.u32 %v3653, 4294901760
    %3655 = vmatpush1.msra.mxu0 %v3654
    %v3656 = vand.u32 %v3067, 4294901760
    %v3657 = vsub.f32 %v3067, %v3656
    %v3658 = vand.u32 %v3657, 4294901760
    %v3659 = vsub.f32 %v3657, %v3658
    %v3660 = vand.u32 %v3659, 4294901760
    %3661 = vmatprep.subr.mxu0 %v3660
    %v3662 = vand.u32 %v3066, 4294901760
    %v3663 = vsub.f32 %v3066, %v3662
    %v3664 = vand.u32 %v3663, 4294901760
    %v3665 = vsub.f32 %v3663, %v3664
    %v3666 = vand.u32 %v3665, 4294901760
    %3667 = vmatpush1.msra.mxu0 %v3666
    %v3668 = vand.u32 %v3069, 4294901760
    %v3669 = vsub.f32 %v3069, %v3668
    %v3670 = vand.u32 %v3669, 4294901760
    %v3671 = vsub.f32 %v3669, %v3670
    %v3672 = vand.u32 %v3671, 4294901760
    %3673 = vmatprep.subr.mxu0 %v3672
    %v3674 = vand.u32 %v3068, 4294901760
    %v3675 = vsub.f32 %v3068, %v3674
    %v3676 = vand.u32 %v3675, 4294901760
    %v3677 = vsub.f32 %v3675, %v3676
    %v3678 = vand.u32 %v3677, 4294901760
    %3679 = vmatpush1.msra.mxu0 %v3678
    %v3680 = vand.u32 %v3071, 4294901760
    %v3681 = vsub.f32 %v3071, %v3680
    %v3682 = vand.u32 %v3681, 4294901760
    %v3683 = vsub.f32 %v3681, %v3682
    %v3684 = vand.u32 %v3683, 4294901760
    %3685 = vmatprep.subr.mxu0 %v3684
    %v3686 = vand.u32 %v3070, 4294901760
    %v3687 = vsub.f32 %v3070, %v3686
    %v3688 = vand.u32 %v3687, 4294901760
    %v3689 = vsub.f32 %v3687, %v3688
    %v3690 = vand.u32 %v3689, 4294901760
    %3691 = vmatpush1.msra.mxu0 %v3690
    %v3692 = vand.u32 %v3073, 4294901760
    %v3693 = vsub.f32 %v3073, %v3692
    %v3694 = vand.u32 %v3693, 4294901760
    %v3695 = vsub.f32 %v3693, %v3694
    %v3696 = vand.u32 %v3695, 4294901760
    %3697 = vmatprep.subr.mxu0 %v3696
    %v3698 = vand.u32 %v3072, 4294901760
    %v3699 = vsub.f32 %v3072, %v3698
    %v3700 = vand.u32 %v3699, 4294901760
    %v3701 = vsub.f32 %v3699, %v3700
    %v3702 = vand.u32 %v3701, 4294901760
    %3703 = vmatpush1.msra.mxu0 %v3702
    %v3704 = vand.u32 %v3075, 4294901760
    %v3705 = vsub.f32 %v3075, %v3704
    %v3706 = vand.u32 %v3705, 4294901760
    %v3707 = vsub.f32 %v3705, %v3706
    %v3708 = vand.u32 %v3707, 4294901760
    %3709 = vmatprep.subr.mxu0 %v3708
    %v3710 = vand.u32 %v3074, 4294901760
    %v3711 = vsub.f32 %v3074, %v3710
    %v3712 = vand.u32 %v3711, 4294901760
    %v3713 = vsub.f32 %v3711, %v3712
    %v3714 = vand.u32 %v3713, 4294901760
    %3715 = vmatpush1.msra.mxu0 %v3714
    %v3716 = vand.u32 %v3077, 4294901760
    %v3717 = vsub.f32 %v3077, %v3716
    %v3718 = vand.u32 %v3717, 4294901760
    %v3719 = vsub.f32 %v3717, %v3718
    %v3720 = vand.u32 %v3719, 4294901760
    %3721 = vmatprep.subr.mxu0 %v3720
    %v3722 = vand.u32 %v3076, 4294901760
    %v3723 = vsub.f32 %v3076, %v3722
    %v3724 = vand.u32 %v3723, 4294901760
    %v3725 = vsub.f32 %v3723, %v3724
    %v3726 = vand.u32 %v3725, 4294901760
    %3727 = vmatpush1.msra.mxu0 %v3726
    %v3728 = vand.u32 %v3079, 4294901760
    %v3729 = vsub.f32 %v3079, %v3728
    %v3730 = vand.u32 %v3729, 4294901760
    %v3731 = vsub.f32 %v3729, %v3730
    %v3732 = vand.u32 %v3731, 4294901760
    %3733 = vmatprep.subr.mxu0 %v3732
    %v3734 = vand.u32 %v3078, 4294901760
    %v3735 = vsub.f32 %v3078, %v3734
    %v3736 = vand.u32 %v3735, 4294901760
    %v3737 = vsub.f32 %v3735, %v3736
    %v3738 = vand.u32 %v3737, 4294901760
    %3739 = vmatpush1.msra.mxu0 %v3738
    %v3740 = vand.u32 %v3081, 4294901760
    %v3741 = vsub.f32 %v3081, %v3740
    %v3742 = vand.u32 %v3741, 4294901760
    %v3743 = vsub.f32 %v3741, %v3742
    %v3744 = vand.u32 %v3743, 4294901760
    %3745 = vmatprep.subr.mxu0 %v3744
    %v3746 = vand.u32 %v3080, 4294901760
    %v3747 = vsub.f32 %v3080, %v3746
    %v3748 = vand.u32 %v3747, 4294901760
    %v3749 = vsub.f32 %v3747, %v3748
    %v3750 = vand.u32 %v3749, 4294901760
    %3751 = vmatpush1.msra.mxu0 %v3750
    %v3752 = vand.u32 %v2309, 4294901760
    %3753 = vmatprep.mubr.f32.mxu0 %v3752
    %v3754 = vand.u32 %v2308, 4294901760
    %3755 = vmatmul.mubr.f32.gmra.mrb[0].mxu0 %v3754
    %v3756 = vpop.f32.mrb[0].mxu0
    %v3757 = vadd.f32 %v3316, %v3756
    %v3758 = vpop.f32.mrb[0].mxu0
    %v3759 = vadd.f32 %v3318, %v3758
    %v3760 = vand.u32 %v2312, 4294901760
    %3761 = vmatprep.mubr.f32.mxu0 %v3760
    %v3762 = vand.u32 %v2311, 4294901760
    %3763 = vmatmul.mubr.f32.gmra.mrb[0].mxu0 %v3762
    %v3764 = vpop.f32.mrb[0].mxu0
    %v3765 = vadd.f32 %v3332, %v3764
    %v3766 = vpop.f32.mrb[0].mxu0
    %v3767 = vadd.f32 %v3334, %v3766
    %v3768 = vand.u32 %v2315, 4294901760
    %3769 = vmatprep.mubr.f32.mxu0 %v3768
    %v3770 = vand.u32 %v2314, 4294901760
    %3771 = vmatmul.mubr.f32.gmra.mrb[0].mxu0 %v3770
    %v3772 = vpop.f32.mrb[0].mxu0
    %v3773 = vadd.f32 %v3348, %v3772
    %v3774 = vpop.f32.mrb[0].mxu0
    %v3775 = vadd.f32 %v3350, %v3774
    %v3776 = vand.u32 %v2318, 4294901760
    %3777 = vmatprep.mubr.f32.mxu0 %v3776
    %v3778 = vand.u32 %v2317, 4294901760
    %3779 = vmatmul.mubr.f32.gmra.mrb[0].mxu0 %v3778
    %v3780 = vpop.f32.mrb[0].mxu0
    %v3781 = vadd.f32 %v3364, %v3780
    %v3782 = vpop.f32.mrb[0].mxu0
    %v3783 = vadd.f32 %v3366, %v3782
    %3784 = vdwg.mxu0
    %v3785 = vand.u32 %v3019, 4294901760
    %v3786 = vsub.f32 %v3019, %v3785
    %3787 = vmatprep.subr.mxu0 %v3786
    %v3788 = vand.u32 %v3018, 4294901760
    %v3789 = vsub.f32 %v3018, %v3788
    %3790 = vmatpush1.msra.mxu0 %v3789
    %v3791 = vand.u32 %v3021, 4294901760
    %v3792 = vsub.f32 %v3021, %v3791
    %3793 = vmatprep.subr.mxu0 %v3792
    %v3794 = vand.u32 %v3020, 4294901760
    %v3795 = vsub.f32 %v3020, %v3794
    %3796 = vmatpush1.msra.mxu0 %v3795
    %v3797 = vand.u32 %v3023, 4294901760
    %v3798 = vsub.f32 %v3023, %v3797
    %3799 = vmatprep.subr.mxu0 %v3798
    %v3800 = vand.u32 %v3022, 4294901760
    %v3801 = vsub.f32 %v3022, %v3800
    %3802 = vmatpush1.msra.mxu0 %v3801
    %v3803 = vand.u32 %v3025, 4294901760
    %v3804 = vsub.f32 %v3025, %v3803
    %3805 = vmatprep.subr.mxu0 %v3804
    %v3806 = vand.u32 %v3024, 4294901760
    %v3807 = vsub.f32 %v3024, %v3806
    %3808 = vmatpush1.msra.mxu0 %v3807
    %v3809 = vand.u32 %v3027, 4294901760
    %v3810 = vsub.f32 %v3027, %v3809
    %3811 = vmatprep.subr.mxu0 %v3810
    %v3812 = vand.u32 %v3026, 4294901760
    %v3813 = vsub.f32 %v3026, %v3812
    %3814 = vmatpush1.msra.mxu0 %v3813
    %v3815 = vand.u32 %v3029, 4294901760
    %v3816 = vsub.f32 %v3029, %v3815
    %3817 = vmatprep.subr.mxu0 %v3816
    %v3818 = vand.u32 %v3028, 4294901760
    %v3819 = vsub.f32 %v3028, %v3818
    %3820 = vmatpush1.msra.mxu0 %v3819
    %v3821 = vand.u32 %v3031, 4294901760
    %v3822 = vsub.f32 %v3031, %v3821
    %3823 = vmatprep.subr.mxu0 %v3822
    %v3824 = vand.u32 %v3030, 4294901760
    %v3825 = vsub.f32 %v3030, %v3824
    %3826 = vmatpush1.msra.mxu0 %v3825
    %v3827 = vand.u32 %v3033, 4294901760
    %v3828 = vsub.f32 %v3033, %v3827
    %3829 = vmatprep.subr.mxu0 %v3828
    %v3830 = vand.u32 %v3032, 4294901760
    %v3831 = vsub.f32 %v3032, %v3830
    %3832 = vmatpush1.msra.mxu0 %v3831
    %v3833 = vand.u32 %v3035, 4294901760
    %v3834 = vsub.f32 %v3035, %v3833
    %3835 = vmatprep.subr.mxu0 %v3834
    %v3836 = vand.u32 %v3034, 4294901760
    %v3837 = vsub.f32 %v3034, %v3836
    %3838 = vmatpush1.msra.mxu0 %v3837
    %v3839 = vand.u32 %v3037, 4294901760
    %v3840 = vsub.f32 %v3037, %v3839
    %3841 = vmatprep.subr.mxu0 %v3840
    %v3842 = vand.u32 %v3036, 4294901760
    %v3843 = vsub.f32 %v3036, %v3842
    %3844 = vmatpush1.msra.mxu0 %v3843
    %v3845 = vand.u32 %v3039, 4294901760
    %v3846 = vsub.f32 %v3039, %v3845
    %3847 = vmatprep.subr.mxu0 %v3846
    %v3848 = vand.u32 %v3038, 4294901760
    %v3849 = vsub.f32 %v3038, %v3848
    %3850 = vmatpush1.msra.mxu0 %v3849
    %v3851 = vand.u32 %v3041, 4294901760
    %v3852 = vsub.f32 %v3041, %v3851
    %3853 = vmatprep.subr.mxu0 %v3852
    %v3854 = vand.u32 %v3040, 4294901760
    %v3855 = vsub.f32 %v3040, %v3854
    %3856 = vmatpush1.msra.mxu0 %v3855
    %v3857 = vand.u32 %v3043, 4294901760
    %v3858 = vsub.f32 %v3043, %v3857
    %3859 = vmatprep.subr.mxu0 %v3858
    %v3860 = vand.u32 %v3042, 4294901760
    %v3861 = vsub.f32 %v3042, %v3860
    %3862 = vmatpush1.msra.mxu0 %v3861
    %v3863 = vand.u32 %v3045, 4294901760
    %v3864 = vsub.f32 %v3045, %v3863
    %3865 = vmatprep.subr.mxu0 %v3864
    %v3866 = vand.u32 %v3044, 4294901760
    %v3867 = vsub.f32 %v3044, %v3866
    %3868 = vmatpush1.msra.mxu0 %v3867
    %v3869 = vand.u32 %v3047, 4294901760
    %v3870 = vsub.f32 %v3047, %v3869
    %3871 = vmatprep.subr.mxu0 %v3870
    %v3872 = vand.u32 %v3046, 4294901760
    %v3873 = vsub.f32 %v3046, %v3872
    %3874 = vmatpush1.msra.mxu0 %v3873
    %v3875 = vand.u32 %v3049, 4294901760
    %v3876 = vsub.f32 %v3049, %v3875
    %3877 = vmatprep.subr.mxu0 %v3876
    %v3878 = vand.u32 %v3048, 4294901760
    %v3879 = vsub.f32 %v3048, %v3878
    %3880 = vmatpush1.msra.mxu0 %v3879
    %v3881 = vand.u32 %v3051, 4294901760
    %v3882 = vsub.f32 %v3051, %v3881
    %3883 = vmatprep.subr.mxu0 %v3882
    %v3884 = vand.u32 %v3050, 4294901760
    %v3885 = vsub.f32 %v3050, %v3884
    %3886 = vmatpush1.msra.mxu0 %v3885
    %v3887 = vand.u32 %v3053, 4294901760
    %v3888 = vsub.f32 %v3053, %v3887
    %3889 = vmatprep.subr.mxu0 %v3888
    %v3890 = vand.u32 %v3052, 4294901760
    %v3891 = vsub.f32 %v3052, %v3890
    %3892 = vmatpush1.msra.mxu0 %v3891
    %v3893 = vand.u32 %v3055, 4294901760
    %v3894 = vsub.f32 %v3055, %v3893
    %3895 = vmatprep.subr.mxu0 %v3894
    %v3896 = vand.u32 %v3054, 4294901760
    %v3897 = vsub.f32 %v3054, %v3896
    %3898 = vmatpush1.msra.mxu0 %v3897
    %v3899 = vand.u32 %v3057, 4294901760
    %v3900 = vsub.f32 %v3057, %v3899
    %3901 = vmatprep.subr.mxu0 %v3900
    %v3902 = vand.u32 %v3056, 4294901760
    %v3903 = vsub.f32 %v3056, %v3902
    %3904 = vmatpush1.msra.mxu0 %v3903
    %v3905 = vand.u32 %v3059, 4294901760
    %v3906 = vsub.f32 %v3059, %v3905
    %3907 = vmatprep.subr.mxu0 %v3906
    %v3908 = vand.u32 %v3058, 4294901760
    %v3909 = vsub.f32 %v3058, %v3908
    %3910 = vmatpush1.msra.mxu0 %v3909
    %v3911 = vand.u32 %v3061, 4294901760
    %v3912 = vsub.f32 %v3061, %v3911
    %3913 = vmatprep.subr.mxu0 %v3912
    %v3914 = vand.u32 %v3060, 4294901760
    %v3915 = vsub.f32 %v3060, %v3914
    %3916 = vmatpush1.msra.mxu0 %v3915
    %v3917 = vand.u32 %v3063, 4294901760
    %v3918 = vsub.f32 %v3063, %v3917
    %3919 = vmatprep.subr.mxu0 %v3918
    %v3920 = vand.u32 %v3062, 4294901760
    %v3921 = vsub.f32 %v3062, %v3920
    %3922 = vmatpush1.msra.mxu0 %v3921
    %v3923 = vand.u32 %v3065, 4294901760
    %v3924 = vsub.f32 %v3065, %v3923
    %3925 = vmatprep.subr.mxu0 %v3924
    %v3926 = vand.u32 %v3064, 4294901760
    %v3927 = vsub.f32 %v3064, %v3926
    %3928 = vmatpush1.msra.mxu0 %v3927
    %v3929 = vand.u32 %v3067, 4294901760
    %v3930 = vsub.f32 %v3067, %v3929
    %3931 = vmatprep.subr.mxu0 %v3930
    %v3932 = vand.u32 %v3066, 4294901760
    %v3933 = vsub.f32 %v3066, %v3932
    %3934 = vmatpush1.msra.mxu0 %v3933
    %v3935 = vand.u32 %v3069, 4294901760
    %v3936 = vsub.f32 %v3069, %v3935
    %3937 = vmatprep.subr.mxu0 %v3936
    %v3938 = vand.u32 %v3068, 4294901760
    %v3939 = vsub.f32 %v3068, %v3938
    %3940 = vmatpush1.msra.mxu0 %v3939
    %v3941 = vand.u32 %v3071, 4294901760
    %v3942 = vsub.f32 %v3071, %v3941
    %3943 = vmatprep.subr.mxu0 %v3942
    %v3944 = vand.u32 %v3070, 4294901760
    %v3945 = vsub.f32 %v3070, %v3944
    %3946 = vmatpush1.msra.mxu0 %v3945
    %v3947 = vand.u32 %v3073, 4294901760
    %v3948 = vsub.f32 %v3073, %v3947
    %3949 = vmatprep.subr.mxu0 %v3948
    %v3950 = vand.u32 %v3072, 4294901760
    %v3951 = vsub.f32 %v3072, %v3950
    %3952 = vmatpush1.msra.mxu0 %v3951
    %v3953 = vand.u32 %v3075, 4294901760
    %v3954 = vsub.f32 %v3075, %v3953
    %3955 = vmatprep.subr.mxu0 %v3954
    %v3956 = vand.u32 %v3074, 4294901760
    %v3957 = vsub.f32 %v3074, %v3956
    %3958 = vmatpush1.msra.mxu0 %v3957
    %v3959 = vand.u32 %v3077, 4294901760
    %v3960 = vsub.f32 %v3077, %v3959
    %3961 = vmatprep.subr.mxu0 %v3960
    %v3962 = vand.u32 %v3076, 4294901760
    %v3963 = vsub.f32 %v3076, %v3962
    %3964 = vmatpush1.msra.mxu0 %v3963
    %v3965 = vand.u32 %v3079, 4294901760
    %v3966 = vsub.f32 %v3079, %v3965
    %3967 = vmatprep.subr.mxu0 %v3966
    %v3968 = vand.u32 %v3078, 4294901760
    %v3969 = vsub.f32 %v3078, %v3968
    %3970 = vmatpush1.msra.mxu0 %v3969
    %v3971 = vand.u32 %v3081, 4294901760
    %v3972 = vsub.f32 %v3081, %v3971
    %3973 = vmatprep.subr.mxu0 %v3972
    %v3974 = vand.u32 %v3080, 4294901760
    %v3975 = vsub.f32 %v3080, %v3974
    %3976 = vmatpush1.msra.mxu0 %v3975
    %v3977 = vand.u32 %v2309, 4294901760
    %v3978 = vsub.f32 %v2309, %v3977
    %3979 = vmatprep.mubr.f32.mxu0 %v3978
    %v3980 = vand.u32 %v2308, 4294901760
    %v3981 = vsub.f32 %v2308, %v3980
    %3982 = vmatmul.mubr.f32.gmra.mrb[0].mxu0 %v3981
    %v3983 = vpop.f32.mrb[0].mxu0
    %v3984 = vadd.f32 %v3757, %v3983
    %v3985 = vpop.f32.mrb[0].mxu0
    %v3986 = vadd.f32 %v3759, %v3985
    %v3987 = vand.u32 %v2312, 4294901760
    %v3988 = vsub.f32 %v2312, %v3987
    %3989 = vmatprep.mubr.f32.mxu0 %v3988
    %v3990 = vand.u32 %v2311, 4294901760
    %v3991 = vsub.f32 %v2311, %v3990
    %3992 = vmatmul.mubr.f32.gmra.mrb[0].mxu0 %v3991
    %v3993 = vpop.f32.mrb[0].mxu0
    %v3994 = vadd.f32 %v3765, %v3993
    %v3995 = vpop.f32.mrb[0].mxu0
    %v3996 = vadd.f32 %v3767, %v3995
    %v3997 = vand.u32 %v2315, 4294901760
    %v3998 = vsub.f32 %v2315, %v3997
    %3999 = vmatprep.mubr.f32.mxu0 %v3998
    %v4000 = vand.u32 %v2314, 4294901760
    %v4001 = vsub.f32 %v2314, %v4000
    %4002 = vmatmul.mubr.f32.gmra.mrb[0].mxu0 %v4001
    %v4003 = vpop.f32.mrb[0].mxu0
    %v4004 = vadd.f32 %v3773, %v4003
    %v4005 = vpop.f32.mrb[0].mxu0
    %v4006 = vadd.f32 %v3775, %v4005
    %v4007 = vand.u32 %v2318, 4294901760
    %v4008 = vsub.f32 %v2318, %v4007
    %4009 = vmatprep.mubr.f32.mxu0 %v4008
    %v4010 = vand.u32 %v2317, 4294901760
    %v4011 = vsub.f32 %v2317, %v4010
    %4012 = vmatmul.mubr.f32.gmra.mrb[0].mxu0 %v4011
    %v4013 = vpop.f32.mrb[0].mxu0
    %v4014 = vadd.f32 %v3781, %v4013
    %v4015 = vpop.f32.mrb[0].mxu0
    %v4016 = vadd.f32 %v3783, %v4015
    %4017 = vdwg.mxu0
    %v4018 = vand.u32 %v3019, 4294901760
    %4019 = vmatprep.subr.mxu0 %v4018
    %v4020 = vand.u32 %v3018, 4294901760
    %4021 = vmatpush1.msra.mxu0 %v4020
    %v4022 = vand.u32 %v3021, 4294901760
    %4023 = vmatprep.subr.mxu0 %v4022
    %v4024 = vand.u32 %v3020, 4294901760
    %4025 = vmatpush1.msra.mxu0 %v4024
    %v4026 = vand.u32 %v3023, 4294901760
    %4027 = vmatprep.subr.mxu0 %v4026
    %v4028 = vand.u32 %v3022, 4294901760
    %4029 = vmatpush1.msra.mxu0 %v4028
    %v4030 = vand.u32 %v3025, 4294901760
    %4031 = vmatprep.subr.mxu0 %v4030
    %v4032 = vand.u32 %v3024, 4294901760
    %4033 = vmatpush1.msra.mxu0 %v4032
    %v4034 = vand.u32 %v3027, 4294901760
    %4035 = vmatprep.subr.mxu0 %v4034
    %v4036 = vand.u32 %v3026, 4294901760
    %4037 = vmatpush1.msra.mxu0 %v4036
    %v4038 = vand.u32 %v3029, 4294901760
    %4039 = vmatprep.subr.mxu0 %v4038
    %v4040 = vand.u32 %v3028, 4294901760
    %4041 = vmatpush1.msra.mxu0 %v4040
    %v4042 = vand.u32 %v3031, 4294901760
    %4043 = vmatprep.subr.mxu0 %v4042
    %v4044 = vand.u32 %v3030, 4294901760
    %4045 = vmatpush1.msra.mxu0 %v4044
    %v4046 = vand.u32 %v3033, 4294901760
    %4047 = vmatprep.subr.mxu0 %v4046
    %v4048 = vand.u32 %v3032, 4294901760
    %4049 = vmatpush1.msra.mxu0 %v4048
    %v4050 = vand.u32 %v3035, 4294901760
    %4051 = vmatprep.subr.mxu0 %v4050
    %v4052 = vand.u32 %v3034, 4294901760
    %4053 = vmatpush1.msra.mxu0 %v4052
    %v4054 = vand.u32 %v3037, 4294901760
    %4055 = vmatprep.subr.mxu0 %v4054
    %v4056 = vand.u32 %v3036, 4294901760
    %4057 = vmatpush1.msra.mxu0 %v4056
    %v4058 = vand.u32 %v3039, 4294901760
    %4059 = vmatprep.subr.mxu0 %v4058
    %v4060 = vand.u32 %v3038, 4294901760
    %4061 = vmatpush1.msra.mxu0 %v4060
    %v4062 = vand.u32 %v3041, 4294901760
    %4063 = vmatprep.subr.mxu0 %v4062
    %v4064 = vand.u32 %v3040, 4294901760
    %4065 = vmatpush1.msra.mxu0 %v4064
    %v4066 = vand.u32 %v3043, 4294901760
    %4067 = vmatprep.subr.mxu0 %v4066
    %v4068 = vand.u32 %v3042, 4294901760
    %4069 = vmatpush1.msra.mxu0 %v4068
    %v4070 = vand.u32 %v3045, 4294901760
    %4071 = vmatprep.subr.mxu0 %v4070
    %v4072 = vand.u32 %v3044, 4294901760
    %4073 = vmatpush1.msra.mxu0 %v4072
    %v4074 = vand.u32 %v3047, 4294901760
    %4075 = vmatprep.subr.mxu0 %v4074
    %v4076 = vand.u32 %v3046, 4294901760
    %4077 = vmatpush1.msra.mxu0 %v4076
    %v4078 = vand.u32 %v3049, 4294901760
    %4079 = vmatprep.subr.mxu0 %v4078
    %v4080 = vand.u32 %v3048, 4294901760
    %4081 = vmatpush1.msra.mxu0 %v4080
    %v4082 = vand.u32 %v3051, 4294901760
    %4083 = vmatprep.subr.mxu0 %v4082
    %v4084 = vand.u32 %v3050, 4294901760
    %4085 = vmatpush1.msra.mxu0 %v4084
    %v4086 = vand.u32 %v3053, 4294901760
    %4087 = vmatprep.subr.mxu0 %v4086
    %v4088 = vand.u32 %v3052, 4294901760
    %4089 = vmatpush1.msra.mxu0 %v4088
    %v4090 = vand.u32 %v3055, 4294901760
    %4091 = vmatprep.subr.mxu0 %v4090
    %v4092 = vand.u32 %v3054, 4294901760
    %4093 = vmatpush1.msra.mxu0 %v4092
    %v4094 = vand.u32 %v3057, 4294901760
    %4095 = vmatprep.subr.mxu0 %v4094
    %v4096 = vand.u32 %v3056, 4294901760
    %4097 = vmatpush1.msra.mxu0 %v4096
    %v4098 = vand.u32 %v3059, 4294901760
    %4099 = vmatprep.subr.mxu0 %v4098
    %v4100 = vand.u32 %v3058, 4294901760
    %4101 = vmatpush1.msra.mxu0 %v4100
    %v4102 = vand.u32 %v3061, 4294901760
    %4103 = vmatprep.subr.mxu0 %v4102
    %v4104 = vand.u32 %v3060, 4294901760
    %4105 = vmatpush1.msra.mxu0 %v4104
    %v4106 = vand.u32 %v3063, 4294901760
    %4107 = vmatprep.subr.mxu0 %v4106
    %v4108 = vand.u32 %v3062, 4294901760
    %4109 = vmatpush1.msra.mxu0 %v4108
    %v4110 = vand.u32 %v3065, 4294901760
    %4111 = vmatprep.subr.mxu0 %v4110
    %v4112 = vand.u32 %v3064, 4294901760
    %4113 = vmatpush1.msra.mxu0 %v4112
    %v4114 = vand.u32 %v3067, 4294901760
    %4115 = vmatprep.subr.mxu0 %v4114
    %v4116 = vand.u32 %v3066, 4294901760
    %4117 = vmatpush1.msra.mxu0 %v4116
    %v4118 = vand.u32 %v3069, 4294901760
    %4119 = vmatprep.subr.mxu0 %v4118
    %v4120 = vand.u32 %v3068, 4294901760
    %4121 = vmatpush1.msra.mxu0 %v4120
    %v4122 = vand.u32 %v3071, 4294901760
    %4123 = vmatprep.subr.mxu0 %v4122
    %v4124 = vand.u32 %v3070, 4294901760
    %4125 = vmatpush1.msra.mxu0 %v4124
    %v4126 = vand.u32 %v3073, 4294901760
    %4127 = vmatprep.subr.mxu0 %v4126
    %v4128 = vand.u32 %v3072, 4294901760
    %4129 = vmatpush1.msra.mxu0 %v4128
    %v4130 = vand.u32 %v3075, 4294901760
    %4131 = vmatprep.subr.mxu0 %v4130
    %v4132 = vand.u32 %v3074, 4294901760
    %4133 = vmatpush1.msra.mxu0 %v4132
    %v4134 = vand.u32 %v3077, 4294901760
    %4135 = vmatprep.subr.mxu0 %v4134
    %v4136 = vand.u32 %v3076, 4294901760
    %4137 = vmatpush1.msra.mxu0 %v4136
    %v4138 = vand.u32 %v3079, 4294901760
    %4139 = vmatprep.subr.mxu0 %v4138
    %v4140 = vand.u32 %v3078, 4294901760
    %4141 = vmatpush1.msra.mxu0 %v4140
    %v4142 = vand.u32 %v3081, 4294901760
    %4143 = vmatprep.subr.mxu0 %v4142
    %v4144 = vand.u32 %v3080, 4294901760
    %4145 = vmatpush1.msra.mxu0 %v4144
    %v4146 = vand.u32 %v2309, 4294901760
    %v4147 = vsub.f32 %v2309, %v4146
    %v4148 = vand.u32 %v4147, 4294901760
    %4149 = vmatprep.mubr.f32.mxu0 %v4148
    %v4150 = vand.u32 %v2308, 4294901760
    %v4151 = vsub.f32 %v2308, %v4150
    %v4152 = vand.u32 %v4151, 4294901760
    %4153 = vmatmul.mubr.f32.gmra.mrb[0].mxu0 %v4152
    %v4154 = vpop.f32.mrb[0].mxu0
    %v4155 = vadd.f32 %v3984, %v4154
    %v4156 = vpop.f32.mrb[0].mxu0
    %v4157 = vadd.f32 %v3986, %v4156
    %v4158 = vand.u32 %v2312, 4294901760
    %v4159 = vsub.f32 %v2312, %v4158
    %v4160 = vand.u32 %v4159, 4294901760
    %4161 = vmatprep.mubr.f32.mxu0 %v4160
    %v4162 = vand.u32 %v2311, 4294901760
    %v4163 = vsub.f32 %v2311, %v4162
    %v4164 = vand.u32 %v4163, 4294901760
    %4165 = vmatmul.mubr.f32.gmra.mrb[0].mxu0 %v4164
    %v4166 = vpop.f32.mrb[0].mxu0
    %v4167 = vadd.f32 %v3994, %v4166
    %v4168 = vpop.f32.mrb[0].mxu0
    %v4169 = vadd.f32 %v3996, %v4168
    %v4170 = vand.u32 %v2315, 4294901760
    %v4171 = vsub.f32 %v2315, %v4170
    %v4172 = vand.u32 %v4171, 4294901760
    %4173 = vmatprep.mubr.f32.mxu0 %v4172
    %v4174 = vand.u32 %v2314, 4294901760
    %v4175 = vsub.f32 %v2314, %v4174
    %v4176 = vand.u32 %v4175, 4294901760
    %4177 = vmatmul.mubr.f32.gmra.mrb[0].mxu0 %v4176
    %v4178 = vpop.f32.mrb[0].mxu0
    %v4179 = vadd.f32 %v4004, %v4178
    %v4180 = vpop.f32.mrb[0].mxu0
    %v4181 = vadd.f32 %v4006, %v4180
    %v4182 = vand.u32 %v2318, 4294901760
    %v4183 = vsub.f32 %v2318, %v4182
    %v4184 = vand.u32 %v4183, 4294901760
    %4185 = vmatprep.mubr.f32.mxu0 %v4184
    %v4186 = vand.u32 %v2317, 4294901760
    %v4187 = vsub.f32 %v2317, %v4186
    %v4188 = vand.u32 %v4187, 4294901760
    %4189 = vmatmul.mubr.f32.gmra.mrb[0].mxu0 %v4188
    %v4190 = vpop.f32.mrb[0].mxu0
    %v4191 = vadd.f32 %v4014, %v4190
    %v4192 = vpop.f32.mrb[0].mxu0
    %v4193 = vadd.f32 %v4016, %v4192
    %4194 = vdwg.mxu0
    %v4195 = vand.u32 %v3019, 4294901760
    %v4196 = vsub.f32 %v3019, %v4195
    %v4197 = vand.u32 %v4196, 4294901760
    %4198 = vmatprep.subr.mxu0 %v4197
    %v4199 = vand.u32 %v3018, 4294901760
    %v4200 = vsub.f32 %v3018, %v4199
    %v4201 = vand.u32 %v4200, 4294901760
    %4202 = vmatpush1.msra.mxu0 %v4201
    %v4203 = vand.u32 %v3021, 4294901760
    %v4204 = vsub.f32 %v3021, %v4203
    %v4205 = vand.u32 %v4204, 4294901760
    %4206 = vmatprep.subr.mxu0 %v4205
    %v4207 = vand.u32 %v3020, 4294901760
    %v4208 = vsub.f32 %v3020, %v4207
    %v4209 = vand.u32 %v4208, 4294901760
    %4210 = vmatpush1.msra.mxu0 %v4209
    %v4211 = vand.u32 %v3023, 4294901760
    %v4212 = vsub.f32 %v3023, %v4211
    %v4213 = vand.u32 %v4212, 4294901760
    %4214 = vmatprep.subr.mxu0 %v4213
    %v4215 = vand.u32 %v3022, 4294901760
    %v4216 = vsub.f32 %v3022, %v4215
    %v4217 = vand.u32 %v4216, 4294901760
    %4218 = vmatpush1.msra.mxu0 %v4217
    %v4219 = vand.u32 %v3025, 4294901760
    %v4220 = vsub.f32 %v3025, %v4219
    %v4221 = vand.u32 %v4220, 4294901760
    %4222 = vmatprep.subr.mxu0 %v4221
    %v4223 = vand.u32 %v3024, 4294901760
    %v4224 = vsub.f32 %v3024, %v4223
    %v4225 = vand.u32 %v4224, 4294901760
    %4226 = vmatpush1.msra.mxu0 %v4225
    %v4227 = vand.u32 %v3027, 4294901760
    %v4228 = vsub.f32 %v3027, %v4227
    %v4229 = vand.u32 %v4228, 4294901760
    %4230 = vmatprep.subr.mxu0 %v4229
    %v4231 = vand.u32 %v3026, 4294901760
    %v4232 = vsub.f32 %v3026, %v4231
    %v4233 = vand.u32 %v4232, 4294901760
    %4234 = vmatpush1.msra.mxu0 %v4233
    %v4235 = vand.u32 %v3029, 4294901760
    %v4236 = vsub.f32 %v3029, %v4235
    %v4237 = vand.u32 %v4236, 4294901760
    %4238 = vmatprep.subr.mxu0 %v4237
    %v4239 = vand.u32 %v3028, 4294901760
    %v4240 = vsub.f32 %v3028, %v4239
    %v4241 = vand.u32 %v4240, 4294901760
    %4242 = vmatpush1.msra.mxu0 %v4241
    %v4243 = vand.u32 %v3031, 4294901760
    %v4244 = vsub.f32 %v3031, %v4243
    %v4245 = vand.u32 %v4244, 4294901760
    %4246 = vmatprep.subr.mxu0 %v4245
    %v4247 = vand.u32 %v3030, 4294901760
    %v4248 = vsub.f32 %v3030, %v4247
    %v4249 = vand.u32 %v4248, 4294901760
    %4250 = vmatpush1.msra.mxu0 %v4249
    %v4251 = vand.u32 %v3033, 4294901760
    %v4252 = vsub.f32 %v3033, %v4251
    %v4253 = vand.u32 %v4252, 4294901760
    %4254 = vmatprep.subr.mxu0 %v4253
    %v4255 = vand.u32 %v3032, 4294901760
    %v4256 = vsub.f32 %v3032, %v4255
    %v4257 = vand.u32 %v4256, 4294901760
    %4258 = vmatpush1.msra.mxu0 %v4257
    %v4259 = vand.u32 %v3035, 4294901760
    %v4260 = vsub.f32 %v3035, %v4259
    %v4261 = vand.u32 %v4260, 4294901760
    %4262 = vmatprep.subr.mxu0 %v4261
    %v4263 = vand.u32 %v3034, 4294901760
    %v4264 = vsub.f32 %v3034, %v4263
    %v4265 = vand.u32 %v4264, 4294901760
    %4266 = vmatpush1.msra.mxu0 %v4265
    %v4267 = vand.u32 %v3037, 4294901760
    %v4268 = vsub.f32 %v3037, %v4267
    %v4269 = vand.u32 %v4268, 4294901760
    %4270 = vmatprep.subr.mxu0 %v4269
    %v4271 = vand.u32 %v3036, 4294901760
    %v4272 = vsub.f32 %v3036, %v4271
    %v4273 = vand.u32 %v4272, 4294901760
    %4274 = vmatpush1.msra.mxu0 %v4273
    %v4275 = vand.u32 %v3039, 4294901760
    %v4276 = vsub.f32 %v3039, %v4275
    %v4277 = vand.u32 %v4276, 4294901760
    %4278 = vmatprep.subr.mxu0 %v4277
    %v4279 = vand.u32 %v3038, 4294901760
    %v4280 = vsub.f32 %v3038, %v4279
    %v4281 = vand.u32 %v4280, 4294901760
    %4282 = vmatpush1.msra.mxu0 %v4281
    %v4283 = vand.u32 %v3041, 4294901760
    %v4284 = vsub.f32 %v3041, %v4283
    %v4285 = vand.u32 %v4284, 4294901760
    %4286 = vmatprep.subr.mxu0 %v4285
    %v4287 = vand.u32 %v3040, 4294901760
    %v4288 = vsub.f32 %v3040, %v4287
    %v4289 = vand.u32 %v4288, 4294901760
    %4290 = vmatpush1.msra.mxu0 %v4289
    %v4291 = vand.u32 %v3043, 4294901760
    %v4292 = vsub.f32 %v3043, %v4291
    %v4293 = vand.u32 %v4292, 4294901760
    %4294 = vmatprep.subr.mxu0 %v4293
    %v4295 = vand.u32 %v3042, 4294901760
    %v4296 = vsub.f32 %v3042, %v4295
    %v4297 = vand.u32 %v4296, 4294901760
    %4298 = vmatpush1.msra.mxu0 %v4297
    %v4299 = vand.u32 %v3045, 4294901760
    %v4300 = vsub.f32 %v3045, %v4299
    %v4301 = vand.u32 %v4300, 4294901760
    %4302 = vmatprep.subr.mxu0 %v4301
    %v4303 = vand.u32 %v3044, 4294901760
    %v4304 = vsub.f32 %v3044, %v4303
    %v4305 = vand.u32 %v4304, 4294901760
    %4306 = vmatpush1.msra.mxu0 %v4305
    %v4307 = vand.u32 %v3047, 4294901760
    %v4308 = vsub.f32 %v3047, %v4307
    %v4309 = vand.u32 %v4308, 4294901760
    %4310 = vmatprep.subr.mxu0 %v4309
    %v4311 = vand.u32 %v3046, 4294901760
    %v4312 = vsub.f32 %v3046, %v4311
    %v4313 = vand.u32 %v4312, 4294901760
    %4314 = vmatpush1.msra.mxu0 %v4313
    %v4315 = vand.u32 %v3049, 4294901760
    %v4316 = vsub.f32 %v3049, %v4315
    %v4317 = vand.u32 %v4316, 4294901760
    %4318 = vmatprep.subr.mxu0 %v4317
    %v4319 = vand.u32 %v3048, 4294901760
    %v4320 = vsub.f32 %v3048, %v4319
    %v4321 = vand.u32 %v4320, 4294901760
    %4322 = vmatpush1.msra.mxu0 %v4321
    %v4323 = vand.u32 %v3051, 4294901760
    %v4324 = vsub.f32 %v3051, %v4323
    %v4325 = vand.u32 %v4324, 4294901760
    %4326 = vmatprep.subr.mxu0 %v4325
    %v4327 = vand.u32 %v3050, 4294901760
    %v4328 = vsub.f32 %v3050, %v4327
    %v4329 = vand.u32 %v4328, 4294901760
    %4330 = vmatpush1.msra.mxu0 %v4329
    %v4331 = vand.u32 %v3053, 4294901760
    %v4332 = vsub.f32 %v3053, %v4331
    %v4333 = vand.u32 %v4332, 4294901760
    %4334 = vmatprep.subr.mxu0 %v4333
    %v4335 = vand.u32 %v3052, 4294901760
    %v4336 = vsub.f32 %v3052, %v4335
    %v4337 = vand.u32 %v4336, 4294901760
    %4338 = vmatpush1.msra.mxu0 %v4337
    %v4339 = vand.u32 %v3055, 4294901760
    %v4340 = vsub.f32 %v3055, %v4339
    %v4341 = vand.u32 %v4340, 4294901760
    %4342 = vmatprep.subr.mxu0 %v4341
    %v4343 = vand.u32 %v3054, 4294901760
    %v4344 = vsub.f32 %v3054, %v4343
    %v4345 = vand.u32 %v4344, 4294901760
    %4346 = vmatpush1.msra.mxu0 %v4345
    %v4347 = vand.u32 %v3057, 4294901760
    %v4348 = vsub.f32 %v3057, %v4347
    %v4349 = vand.u32 %v4348, 4294901760
    %4350 = vmatprep.subr.mxu0 %v4349
    %v4351 = vand.u32 %v3056, 4294901760
    %v4352 = vsub.f32 %v3056, %v4351
    %v4353 = vand.u32 %v4352, 4294901760
    %4354 = vmatpush1.msra.mxu0 %v4353
    %v4355 = vand.u32 %v3059, 4294901760
    %v4356 = vsub.f32 %v3059, %v4355
    %v4357 = vand.u32 %v4356, 4294901760
    %4358 = vmatprep.subr.mxu0 %v4357
    %v4359 = vand.u32 %v3058, 4294901760
    %v4360 = vsub.f32 %v3058, %v4359
    %v4361 = vand.u32 %v4360, 4294901760
    %4362 = vmatpush1.msra.mxu0 %v4361
    %v4363 = vand.u32 %v3061, 4294901760
    %v4364 = vsub.f32 %v3061, %v4363
    %v4365 = vand.u32 %v4364, 4294901760
    %4366 = vmatprep.subr.mxu0 %v4365
    %v4367 = vand.u32 %v3060, 4294901760
    %v4368 = vsub.f32 %v3060, %v4367
    %v4369 = vand.u32 %v4368, 4294901760
    %4370 = vmatpush1.msra.mxu0 %v4369
    %v4371 = vand.u32 %v3063, 4294901760
    %v4372 = vsub.f32 %v3063, %v4371
    %v4373 = vand.u32 %v4372, 4294901760
    %4374 = vmatprep.subr.mxu0 %v4373
    %v4375 = vand.u32 %v3062, 4294901760
    %v4376 = vsub.f32 %v3062, %v4375
    %v4377 = vand.u32 %v4376, 4294901760
    %4378 = vmatpush1.msra.mxu0 %v4377
    %v4379 = vand.u32 %v3065, 4294901760
    %v4380 = vsub.f32 %v3065, %v4379
    %v4381 = vand.u32 %v4380, 4294901760
    %4382 = vmatprep.subr.mxu0 %v4381
    %v4383 = vand.u32 %v3064, 4294901760
    %v4384 = vsub.f32 %v3064, %v4383
    %v4385 = vand.u32 %v4384, 4294901760
    %4386 = vmatpush1.msra.mxu0 %v4385
    %v4387 = vand.u32 %v3067, 4294901760
    %v4388 = vsub.f32 %v3067, %v4387
    %v4389 = vand.u32 %v4388, 4294901760
    %4390 = vmatprep.subr.mxu0 %v4389
    %v4391 = vand.u32 %v3066, 4294901760
    %v4392 = vsub.f32 %v3066, %v4391
    %v4393 = vand.u32 %v4392, 4294901760
    %4394 = vmatpush1.msra.mxu0 %v4393
    %v4395 = vand.u32 %v3069, 4294901760
    %v4396 = vsub.f32 %v3069, %v4395
    %v4397 = vand.u32 %v4396, 4294901760
    %4398 = vmatprep.subr.mxu0 %v4397
    %v4399 = vand.u32 %v3068, 4294901760
    %v4400 = vsub.f32 %v3068, %v4399
    %v4401 = vand.u32 %v4400, 4294901760
    %4402 = vmatpush1.msra.mxu0 %v4401
    %v4403 = vand.u32 %v3071, 4294901760
    %v4404 = vsub.f32 %v3071, %v4403
    %v4405 = vand.u32 %v4404, 4294901760
    %4406 = vmatprep.subr.mxu0 %v4405
    %v4407 = vand.u32 %v3070, 4294901760
    %v4408 = vsub.f32 %v3070, %v4407
    %v4409 = vand.u32 %v4408, 4294901760
    %4410 = vmatpush1.msra.mxu0 %v4409
    %v4411 = vand.u32 %v3073, 4294901760
    %v4412 = vsub.f32 %v3073, %v4411
    %v4413 = vand.u32 %v4412, 4294901760
    %4414 = vmatprep.subr.mxu0 %v4413
    %v4415 = vand.u32 %v3072, 4294901760
    %v4416 = vsub.f32 %v3072, %v4415
    %v4417 = vand.u32 %v4416, 4294901760
    %4418 = vmatpush1.msra.mxu0 %v4417
    %v4419 = vand.u32 %v3075, 4294901760
    %v4420 = vsub.f32 %v3075, %v4419
    %v4421 = vand.u32 %v4420, 4294901760
    %4422 = vmatprep.subr.mxu0 %v4421
    %v4423 = vand.u32 %v3074, 4294901760
    %v4424 = vsub.f32 %v3074, %v4423
    %v4425 = vand.u32 %v4424, 4294901760
    %4426 = vmatpush1.msra.mxu0 %v4425
    %v4427 = vand.u32 %v3077, 4294901760
    %v4428 = vsub.f32 %v3077, %v4427
    %v4429 = vand.u32 %v4428, 4294901760
    %4430 = vmatprep.subr.mxu0 %v4429
    %v4431 = vand.u32 %v3076, 4294901760
    %v4432 = vsub.f32 %v3076, %v4431
    %v4433 = vand.u32 %v4432, 4294901760
    %4434 = vmatpush1.msra.mxu0 %v4433
    %v4435 = vand.u32 %v3079, 4294901760
    %v4436 = vsub.f32 %v3079, %v4435
    %v4437 = vand.u32 %v4436, 4294901760
    %4438 = vmatprep.subr.mxu0 %v4437
    %v4439 = vand.u32 %v3078, 4294901760
    %v4440 = vsub.f32 %v3078, %v4439
    %v4441 = vand.u32 %v4440, 4294901760
    %4442 = vmatpush1.msra.mxu0 %v4441
    %v4443 = vand.u32 %v3081, 4294901760
    %v4444 = vsub.f32 %v3081, %v4443
    %v4445 = vand.u32 %v4444, 4294901760
    %4446 = vmatprep.subr.mxu0 %v4445
    %v4447 = vand.u32 %v3080, 4294901760
    %v4448 = vsub.f32 %v3080, %v4447
    %v4449 = vand.u32 %v4448, 4294901760
    %4450 = vmatpush1.msra.mxu0 %v4449
    %v4451 = vand.u32 %v2309, 4294901760
    %4452 = vmatprep.mubr.f32.mxu0 %v4451
    %v4453 = vand.u32 %v2308, 4294901760
    %4454 = vmatmul.mubr.f32.gmra.mrb[0].mxu0 %v4453
    %v4455 = vpop.f32.mrb[0].mxu0
    %v4456 = vadd.f32 %v4155, %v4455
    %v4457 = vpop.f32.mrb[0].mxu0
    %v4458 = vadd.f32 %v4157, %v4457
    %v4459 = vand.u32 %v2312, 4294901760
    %4460 = vmatprep.mubr.f32.mxu0 %v4459
    %v4461 = vand.u32 %v2311, 4294901760
    %4462 = vmatmul.mubr.f32.gmra.mrb[0].mxu0 %v4461
    %v4463 = vpop.f32.mrb[0].mxu0
    %v4464 = vadd.f32 %v4167, %v4463
    %v4465 = vpop.f32.mrb[0].mxu0
    %v4466 = vadd.f32 %v4169, %v4465
    %v4467 = vand.u32 %v2315, 4294901760
    %4468 = vmatprep.mubr.f32.mxu0 %v4467
    %v4469 = vand.u32 %v2314, 4294901760
    %4470 = vmatmul.mubr.f32.gmra.mrb[0].mxu0 %v4469
    %v4471 = vpop.f32.mrb[0].mxu0
    %v4472 = vadd.f32 %v4179, %v4471
    %v4473 = vpop.f32.mrb[0].mxu0
    %v4474 = vadd.f32 %v4181, %v4473
    %v4475 = vand.u32 %v2318, 4294901760
    %4476 = vmatprep.mubr.f32.mxu0 %v4475
    %v4477 = vand.u32 %v2317, 4294901760
    %4478 = vmatmul.mubr.f32.gmra.mrb[0].mxu0 %v4477
    %v4479 = vpop.f32.mrb[0].mxu0
    %v4480 = vadd.f32 %v4191, %v4479
    %v4481 = vpop.f32.mrb[0].mxu0
    %v4482 = vadd.f32 %v4193, %v4481
    %4483 = vdwg.mxu0
    %v4484 = vand.u32 %v3019, 4294901760
    %4485 = vmatprep.subr.mxu0 %v4484
    %v4486 = vand.u32 %v3018, 4294901760
    %4487 = vmatpush1.msra.mxu0 %v4486
    %v4488 = vand.u32 %v3021, 4294901760
    %4489 = vmatprep.subr.mxu0 %v4488
    %v4490 = vand.u32 %v3020, 4294901760
    %4491 = vmatpush1.msra.mxu0 %v4490
    %v4492 = vand.u32 %v3023, 4294901760
    %4493 = vmatprep.subr.mxu0 %v4492
    %v4494 = vand.u32 %v3022, 4294901760
    %4495 = vmatpush1.msra.mxu0 %v4494
    %v4496 = vand.u32 %v3025, 4294901760
    %4497 = vmatprep.subr.mxu0 %v4496
    %v4498 = vand.u32 %v3024, 4294901760
    %4499 = vmatpush1.msra.mxu0 %v4498
    %v4500 = vand.u32 %v3027, 4294901760
    %4501 = vmatprep.subr.mxu0 %v4500
    %v4502 = vand.u32 %v3026, 4294901760
    %4503 = vmatpush1.msra.mxu0 %v4502
    %v4504 = vand.u32 %v3029, 4294901760
    %4505 = vmatprep.subr.mxu0 %v4504
    %v4506 = vand.u32 %v3028, 4294901760
    %4507 = vmatpush1.msra.mxu0 %v4506
    %v4508 = vand.u32 %v3031, 4294901760
    %4509 = vmatprep.subr.mxu0 %v4508
    %v4510 = vand.u32 %v3030, 4294901760
    %4511 = vmatpush1.msra.mxu0 %v4510
    %v4512 = vand.u32 %v3033, 4294901760
    %4513 = vmatprep.subr.mxu0 %v4512
    %v4514 = vand.u32 %v3032, 4294901760
    %4515 = vmatpush1.msra.mxu0 %v4514
    %v4516 = vand.u32 %v3035, 4294901760
    %4517 = vmatprep.subr.mxu0 %v4516
    %v4518 = vand.u32 %v3034, 4294901760
    %4519 = vmatpush1.msra.mxu0 %v4518
    %v4520 = vand.u32 %v3037, 4294901760
    %4521 = vmatprep.subr.mxu0 %v4520
    %v4522 = vand.u32 %v3036, 4294901760
    %4523 = vmatpush1.msra.mxu0 %v4522
    %v4524 = vand.u32 %v3039, 4294901760
    %4525 = vmatprep.subr.mxu0 %v4524
    %v4526 = vand.u32 %v3038, 4294901760
    %4527 = vmatpush1.msra.mxu0 %v4526
    %v4528 = vand.u32 %v3041, 4294901760
    %4529 = vmatprep.subr.mxu0 %v4528
    %v4530 = vand.u32 %v3040, 4294901760
    %4531 = vmatpush1.msra.mxu0 %v4530
    %v4532 = vand.u32 %v3043, 4294901760
    %4533 = vmatprep.subr.mxu0 %v4532
    %v4534 = vand.u32 %v3042, 4294901760
    %4535 = vmatpush1.msra.mxu0 %v4534
    %v4536 = vand.u32 %v3045, 4294901760
    %4537 = vmatprep.subr.mxu0 %v4536
    %v4538 = vand.u32 %v3044, 4294901760
    %4539 = vmatpush1.msra.mxu0 %v4538
    %v4540 = vand.u32 %v3047, 4294901760
    %4541 = vmatprep.subr.mxu0 %v4540
    %v4542 = vand.u32 %v3046, 4294901760
    %4543 = vmatpush1.msra.mxu0 %v4542
    %v4544 = vand.u32 %v3049, 4294901760
    %4545 = vmatprep.subr.mxu0 %v4544
    %v4546 = vand.u32 %v3048, 4294901760
    %4547 = vmatpush1.msra.mxu0 %v4546
    %v4548 = vand.u32 %v3051, 4294901760
    %4549 = vmatprep.subr.mxu0 %v4548
    %v4550 = vand.u32 %v3050, 4294901760
    %4551 = vmatpush1.msra.mxu0 %v4550
    %v4552 = vand.u32 %v3053, 4294901760
    %4553 = vmatprep.subr.mxu0 %v4552
    %v4554 = vand.u32 %v3052, 4294901760
    %4555 = vmatpush1.msra.mxu0 %v4554
    %v4556 = vand.u32 %v3055, 4294901760
    %4557 = vmatprep.subr.mxu0 %v4556
    %v4558 = vand.u32 %v3054, 4294901760
    %4559 = vmatpush1.msra.mxu0 %v4558
    %v4560 = vand.u32 %v3057, 4294901760
    %4561 = vmatprep.subr.mxu0 %v4560
    %v4562 = vand.u32 %v3056, 4294901760
    %4563 = vmatpush1.msra.mxu0 %v4562
    %v4564 = vand.u32 %v3059, 4294901760
    %4565 = vmatprep.subr.mxu0 %v4564
    %v4566 = vand.u32 %v3058, 4294901760
    %4567 = vmatpush1.msra.mxu0 %v4566
    %v4568 = vand.u32 %v3061, 4294901760
    %4569 = vmatprep.subr.mxu0 %v4568
    %v4570 = vand.u32 %v3060, 4294901760
    %4571 = vmatpush1.msra.mxu0 %v4570
    %v4572 = vand.u32 %v3063, 4294901760
    %4573 = vmatprep.subr.mxu0 %v4572
    %v4574 = vand.u32 %v3062, 4294901760
    %4575 = vmatpush1.msra.mxu0 %v4574
    %v4576 = vand.u32 %v3065, 4294901760
    %4577 = vmatprep.subr.mxu0 %v4576
    %v4578 = vand.u32 %v3064, 4294901760
    %4579 = vmatpush1.msra.mxu0 %v4578
    %v4580 = vand.u32 %v3067, 4294901760
    %4581 = vmatprep.subr.mxu0 %v4580
    %v4582 = vand.u32 %v3066, 4294901760
    %4583 = vmatpush1.msra.mxu0 %v4582
    %v4584 = vand.u32 %v3069, 4294901760
    %4585 = vmatprep.subr.mxu0 %v4584
    %v4586 = vand.u32 %v3068, 4294901760
    %4587 = vmatpush1.msra.mxu0 %v4586
    %v4588 = vand.u32 %v3071, 4294901760
    %4589 = vmatprep.subr.mxu0 %v4588
    %v4590 = vand.u32 %v3070, 4294901760
    %4591 = vmatpush1.msra.mxu0 %v4590
    %v4592 = vand.u32 %v3073, 4294901760
    %4593 = vmatprep.subr.mxu0 %v4592
    %v4594 = vand.u32 %v3072, 4294901760
    %4595 = vmatpush1.msra.mxu0 %v4594
    %v4596 = vand.u32 %v3075, 4294901760
    %4597 = vmatprep.subr.mxu0 %v4596
    %v4598 = vand.u32 %v3074, 4294901760
    %4599 = vmatpush1.msra.mxu0 %v4598
    %v4600 = vand.u32 %v3077, 4294901760
    %4601 = vmatprep.subr.mxu0 %v4600
    %v4602 = vand.u32 %v3076, 4294901760
    %4603 = vmatpush1.msra.mxu0 %v4602
    %v4604 = vand.u32 %v3079, 4294901760
    %4605 = vmatprep.subr.mxu0 %v4604
    %v4606 = vand.u32 %v3078, 4294901760
    %4607 = vmatpush1.msra.mxu0 %v4606
    %v4608 = vand.u32 %v3081, 4294901760
    %4609 = vmatprep.subr.mxu0 %v4608
    %v4610 = vand.u32 %v3080, 4294901760
    %4611 = vmatpush1.msra.mxu0 %v4610
    %v4612 = vand.u32 %v2309, 4294901760
    %4613 = vmatprep.mubr.f32.mxu0 %v4612
    %v4614 = vand.u32 %v2308, 4294901760
    %4615 = vmatmul.mubr.f32.gmra.mrb[0].mxu0 %v4614
    %v4616 = vpop.f32.mrb[0].mxu0
    %v4617 = vadd.f32 %v4456, %v4616
    %v4618 = vpop.f32.mrb[0].mxu0
    %v4619 = vadd.f32 %v4458, %v4618
    %v4620 = vand.u32 %v2312, 4294901760
    %4621 = vmatprep.mubr.f32.mxu0 %v4620
    %v4622 = vand.u32 %v2311, 4294901760
    %4623 = vmatmul.mubr.f32.gmra.mrb[0].mxu0 %v4622
    %v4624 = vpop.f32.mrb[0].mxu0
    %v4625 = vadd.f32 %v4464, %v4624
    %v4626 = vpop.f32.mrb[0].mxu0
    %v4627 = vadd.f32 %v4466, %v4626
    %v4628 = vand.u32 %v2315, 4294901760
    %4629 = vmatprep.mubr.f32.mxu0 %v4628
    %v4630 = vand.u32 %v2314, 4294901760
    %4631 = vmatmul.mubr.f32.gmra.mrb[0].mxu0 %v4630
    %v4632 = vpop.f32.mrb[0].mxu0
    %v4633 = vadd.f32 %v4472, %v4632
    %v4634 = vpop.f32.mrb[0].mxu0
    %v4635 = vadd.f32 %v4474, %v4634
    %v4636 = vand.u32 %v2318, 4294901760
    %4637 = vmatprep.mubr.f32.mxu0 %v4636
    %v4638 = vand.u32 %v2317, 4294901760
    %4639 = vmatmul.mubr.f32.gmra.mrb[0].mxu0 %v4638
    %v4640 = vpop.f32.mrb[0].mxu0
    %v4641 = vadd.f32 %v4480, %v4640
    %v4642 = vpop.f32.mrb[0].mxu0
    %v4643 = vadd.f32 %v4482, %v4642
    %4644 = vdwg.mxu0
    %v4645 = vand.u32 %v3083, 4294901760
    %4646 = vmatprep.subr.mxu0 %v4645
    %v4647 = vand.u32 %v3082, 4294901760
    %4648 = vmatpush1.msra.mxu0 %v4647
    %v4649 = vand.u32 %v3085, 4294901760
    %4650 = vmatprep.subr.mxu0 %v4649
    %v4651 = vand.u32 %v3084, 4294901760
    %4652 = vmatpush1.msra.mxu0 %v4651
    %v4653 = vand.u32 %v3087, 4294901760
    %4654 = vmatprep.subr.mxu0 %v4653
    %v4655 = vand.u32 %v3086, 4294901760
    %4656 = vmatpush1.msra.mxu0 %v4655
    %v4657 = vand.u32 %v3089, 4294901760
    %4658 = vmatprep.subr.mxu0 %v4657
    %v4659 = vand.u32 %v3088, 4294901760
    %4660 = vmatpush1.msra.mxu0 %v4659
    %4661 = vmatprep.subr.mxu0 0.0
    %4662 = vmatpush1.msra.mxu0 0.0
    %4663 = vmatprep.subr.mxu0 0.0
    %4664 = vmatpush1.msra.mxu0 0.0
    %4665 = vmatprep.subr.mxu0 0.0
    %4666 = vmatpush1.msra.mxu0 0.0
    %4667 = vmatprep.subr.mxu0 0.0
    %4668 = vmatpush1.msra.mxu0 0.0
    %4669 = vmatprep.subr.mxu0 0.0
    %4670 = vmatpush1.msra.mxu0 0.0
    %4671 = vmatprep.subr.mxu0 0.0
    %4672 = vmatpush1.msra.mxu0 0.0
    %4673 = vmatprep.subr.mxu0 0.0
    %4674 = vmatpush1.msra.mxu0 0.0
    %4675 = vmatprep.subr.mxu0 0.0
    %4676 = vmatpush1.msra.mxu0 0.0
    %4677 = vmatprep.subr.mxu0 0.0
    %4678 = vmatpush1.msra.mxu0 0.0
    %4679 = vmatprep.subr.mxu0 0.0
    %4680 = vmatpush1.msra.mxu0 0.0
    %4681 = vmatprep.subr.mxu0 0.0
    %4682 = vmatpush1.msra.mxu0 0.0
    %4683 = vmatprep.subr.mxu0 0.0
    %4684 = vmatpush1.msra.mxu0 0.0
    %4685 = vmatprep.subr.mxu0 0.0
    %4686 = vmatpush1.msra.mxu0 0.0
    %4687 = vmatprep.subr.mxu0 0.0
    %4688 = vmatpush1.msra.mxu0 0.0
    %4689 = vmatprep.subr.mxu0 0.0
    %4690 = vmatpush1.msra.mxu0 0.0
    %4691 = vmatprep.subr.mxu0 0.0
    %4692 = vmatpush1.msra.mxu0 0.0
    %4693 = vmatprep.subr.mxu0 0.0
    %4694 = vmatpush1.msra.mxu0 0.0
    %4695 = vmatprep.subr.mxu0 0.0
    %4696 = vmatpush1.msra.mxu0 0.0
    %4697 = vmatprep.subr.mxu0 0.0
    %4698 = vmatpush1.msra.mxu0 0.0
    %4699 = vmatprep.subr.mxu0 0.0
    %4700 = vmatpush1.msra.mxu0 0.0
    %4701 = vmatprep.subr.mxu0 0.0
    %4702 = vmatpush1.msra.mxu0 0.0
    %4703 = vmatprep.subr.mxu0 0.0
    %4704 = vmatpush1.msra.mxu0 0.0
    %4705 = vmatprep.subr.mxu0 0.0
    %4706 = vmatpush1.msra.mxu0 0.0
    %4707 = vmatprep.subr.mxu0 0.0
    %4708 = vmatpush1.msra.mxu0 0.0
    %4709 = vmatprep.subr.mxu0 0.0
    %4710 = vmatpush1.msra.mxu0 0.0
    %4711 = vmatprep.subr.mxu0 0.0
    %4712 = vmatpush1.msra.mxu0 0.0
    %4713 = vmatprep.subr.mxu0 0.0
    %4714 = vmatpush1.msra.mxu0 0.0
    %4715 = vmatprep.subr.mxu0 0.0
    %4716 = vmatpush1.msra.mxu0 0.0
    %4717 = vmatprep.mubr.f32.mxu0 0.0
    %v4718 = vand.u32 %v3164, 4294901760
    %v4719 = vsub.f32 %v3164, %v4718
    %v4720 = vand.u32 %v4719, 4294901760
    %v4721 = vsub.f32 %v4719, %v4720
    %v4722 = vand.u32 %v4721, 4294901760
    %4723 = vmatmul.mubr.f32.gmra.mrb[0].mxu0 %v4722
    %v4724 = vpop.f32.mrb[0].mxu0
    %v4725 = vadd.f32 %v4617, %v4724
    %v4726 = vpop.f32.mrb[0].mxu0
    %v4727 = vadd.f32 %v4619, %v4726
    %4728 = vmatprep.mubr.f32.mxu0 0.0
    %v4729 = vand.u32 %v3167, 4294901760
    %v4730 = vsub.f32 %v3167, %v4729
    %v4731 = vand.u32 %v4730, 4294901760
    %v4732 = vsub.f32 %v4730, %v4731
    %v4733 = vand.u32 %v4732, 4294901760
    %4734 = vmatmul.mubr.f32.gmra.mrb[0].mxu0 %v4733
    %v4735 = vpop.f32.mrb[0].mxu0
    %v4736 = vadd.f32 %v4625, %v4735
    %v4737 = vpop.f32.mrb[0].mxu0
    %v4738 = vadd.f32 %v4627, %v4737
    %4739 = vmatprep.mubr.f32.mxu0 0.0
    %v4740 = vand.u32 %v3170, 4294901760
    %v4741 = vsub.f32 %v3170, %v4740
    %v4742 = vand.u32 %v4741, 4294901760
    %v4743 = vsub.f32 %v4741, %v4742
    %v4744 = vand.u32 %v4743, 4294901760
    %4745 = vmatmul.mubr.f32.gmra.mrb[0].mxu0 %v4744
    %v4746 = vpop.f32.mrb[0].mxu0
    %v4747 = vadd.f32 %v4633, %v4746
    %v4748 = vpop.f32.mrb[0].mxu0
    %v4749 = vadd.f32 %v4635, %v4748
    %4750 = vmatprep.mubr.f32.mxu0 0.0
    %v4751 = vand.u32 %v3173, 4294901760
    %v4752 = vsub.f32 %v3173, %v4751
    %v4753 = vand.u32 %v4752, 4294901760
    %v4754 = vsub.f32 %v4752, %v4753
    %v4755 = vand.u32 %v4754, 4294901760
    %4756 = vmatmul.mubr.f32.gmra.mrb[0].mxu0 %v4755
    %v4757 = vpop.f32.mrb[0].mxu0
    %v4758 = vadd.f32 %v4641, %v4757
    %v4759 = vpop.f32.mrb[0].mxu0
    %v4760 = vadd.f32 %v4643, %v4759
    %4761 = vdwg.mxu0
    %v4762 = vand.u32 %v3083, 4294901760
    %v4763 = vsub.f32 %v3083, %v4762
    %v4764 = vand.u32 %v4763, 4294901760
    %v4765 = vsub.f32 %v4763, %v4764
    %v4766 = vand.u32 %v4765, 4294901760
    %4767 = vmatprep.subr.mxu0 %v4766
    %v4768 = vand.u32 %v3082, 4294901760
    %v4769 = vsub.f32 %v3082, %v4768
    %v4770 = vand.u32 %v4769, 4294901760
    %v4771 = vsub.f32 %v4769, %v4770
    %v4772 = vand.u32 %v4771, 4294901760
    %4773 = vmatpush1.msra.mxu0 %v4772
    %v4774 = vand.u32 %v3085, 4294901760
    %v4775 = vsub.f32 %v3085, %v4774
    %v4776 = vand.u32 %v4775, 4294901760
    %v4777 = vsub.f32 %v4775, %v4776
    %v4778 = vand.u32 %v4777, 4294901760
    %4779 = vmatprep.subr.mxu0 %v4778
    %v4780 = vand.u32 %v3084, 4294901760
    %v4781 = vsub.f32 %v3084, %v4780
    %v4782 = vand.u32 %v4781, 4294901760
    %v4783 = vsub.f32 %v4781, %v4782
    %v4784 = vand.u32 %v4783, 4294901760
    %4785 = vmatpush1.msra.mxu0 %v4784
    %v4786 = vand.u32 %v3087, 4294901760
    %v4787 = vsub.f32 %v3087, %v4786
    %v4788 = vand.u32 %v4787, 4294901760
    %v4789 = vsub.f32 %v4787, %v4788
    %v4790 = vand.u32 %v4789, 4294901760
    %4791 = vmatprep.subr.mxu0 %v4790
    %v4792 = vand.u32 %v3086, 4294901760
    %v4793 = vsub.f32 %v3086, %v4792
    %v4794 = vand.u32 %v4793, 4294901760
    %v4795 = vsub.f32 %v4793, %v4794
    %v4796 = vand.u32 %v4795, 4294901760
    %4797 = vmatpush1.msra.mxu0 %v4796
    %v4798 = vand.u32 %v3089, 4294901760
    %v4799 = vsub.f32 %v3089, %v4798
    %v4800 = vand.u32 %v4799, 4294901760
    %v4801 = vsub.f32 %v4799, %v4800
    %v4802 = vand.u32 %v4801, 4294901760
    %4803 = vmatprep.subr.mxu0 %v4802
    %v4804 = vand.u32 %v3088, 4294901760
    %v4805 = vsub.f32 %v3088, %v4804
    %v4806 = vand.u32 %v4805, 4294901760
    %v4807 = vsub.f32 %v4805, %v4806
    %v4808 = vand.u32 %v4807, 4294901760
    %4809 = vmatpush1.msra.mxu0 %v4808
    %4810 = vmatprep.subr.mxu0 0.0
    %4811 = vmatpush1.msra.mxu0 0.0
    %4812 = vmatprep.subr.mxu0 0.0
    %4813 = vmatpush1.msra.mxu0 0.0
    %4814 = vmatprep.subr.mxu0 0.0
    %4815 = vmatpush1.msra.mxu0 0.0
    %4816 = vmatprep.subr.mxu0 0.0
    %4817 = vmatpush1.msra.mxu0 0.0
    %4818 = vmatprep.subr.mxu0 0.0
    %4819 = vmatpush1.msra.mxu0 0.0
    %4820 = vmatprep.subr.mxu0 0.0
    %4821 = vmatpush1.msra.mxu0 0.0
    %4822 = vmatprep.subr.mxu0 0.0
    %4823 = vmatpush1.msra.mxu0 0.0
    %4824 = vmatprep.subr.mxu0 0.0
    %4825 = vmatpush1.msra.mxu0 0.0
    %4826 = vmatprep.subr.mxu0 0.0
    %4827 = vmatpush1.msra.mxu0 0.0
    %4828 = vmatprep.subr.mxu0 0.0
    %4829 = vmatpush1.msra.mxu0 0.0
    %4830 = vmatprep.subr.mxu0 0.0
    %4831 = vmatpush1.msra.mxu0 0.0
    %4832 = vmatprep.subr.mxu0 0.0
    %4833 = vmatpush1.msra.mxu0 0.0
    %4834 = vmatprep.subr.mxu0 0.0
    %4835 = vmatpush1.msra.mxu0 0.0
    %4836 = vmatprep.subr.mxu0 0.0
    %4837 = vmatpush1.msra.mxu0 0.0
    %4838 = vmatprep.subr.mxu0 0.0
    %4839 = vmatpush1.msra.mxu0 0.0
    %4840 = vmatprep.subr.mxu0 0.0
    %4841 = vmatpush1.msra.mxu0 0.0
    %4842 = vmatprep.subr.mxu0 0.0
    %4843 = vmatpush1.msra.mxu0 0.0
    %4844 = vmatprep.subr.mxu0 0.0
    %4845 = vmatpush1.msra.mxu0 0.0
    %4846 = vmatprep.subr.mxu0 0.0
    %4847 = vmatpush1.msra.mxu0 0.0
    %4848 = vmatprep.subr.mxu0 0.0
    %4849 = vmatpush1.msra.mxu0 0.0
    %4850 = vmatprep.subr.mxu0 0.0
    %4851 = vmatpush1.msra.mxu0 0.0
    %4852 = vmatprep.subr.mxu0 0.0
    %4853 = vmatpush1.msra.mxu0 0.0
    %4854 = vmatprep.subr.mxu0 0.0
    %4855 = vmatpush1.msra.mxu0 0.0
    %4856 = vmatprep.subr.mxu0 0.0
    %4857 = vmatpush1.msra.mxu0 0.0
    %4858 = vmatprep.subr.mxu0 0.0
    %4859 = vmatpush1.msra.mxu0 0.0
    %4860 = vmatprep.subr.mxu0 0.0
    %4861 = vmatpush1.msra.mxu0 0.0
    %4862 = vmatprep.subr.mxu0 0.0
    %4863 = vmatpush1.msra.mxu0 0.0
    %4864 = vmatprep.subr.mxu0 0.0
    %4865 = vmatpush1.msra.mxu0 0.0
    %4866 = vmatprep.mubr.f32.mxu0 0.0
    %v4867 = vand.u32 %v3164, 4294901760
    %4868 = vmatmul.mubr.f32.gmra.mrb[0].mxu0 %v4867
    %v4869 = vpop.f32.mrb[0].mxu0
    %v4870 = vadd.f32 %v4725, %v4869
    %v4871 = vpop.f32.mrb[0].mxu0
    %v4872 = vadd.f32 %v4727, %v4871
    %4873 = vmatprep.mubr.f32.mxu0 0.0
    %v4874 = vand.u32 %v3167, 4294901760
    %4875 = vmatmul.mubr.f32.gmra.mrb[0].mxu0 %v4874
    %v4876 = vpop.f32.mrb[0].mxu0
    %v4877 = vadd.f32 %v4736, %v4876
    %v4878 = vpop.f32.mrb[0].mxu0
    %v4879 = vadd.f32 %v4738, %v4878
    %4880 = vmatprep.mubr.f32.mxu0 0.0
    %v4881 = vand.u32 %v3170, 4294901760
    %4882 = vmatmul.mubr.f32.gmra.mrb[0].mxu0 %v4881
    %v4883 = vpop.f32.mrb[0].mxu0
    %v4884 = vadd.f32 %v4747, %v4883
    %v4885 = vpop.f32.mrb[0].mxu0
    %v4886 = vadd.f32 %v4749, %v4885
    %4887 = vmatprep.mubr.f32.mxu0 0.0
    %v4888 = vand.u32 %v3173, 4294901760
    %4889 = vmatmul.mubr.f32.gmra.mrb[0].mxu0 %v4888
    %v4890 = vpop.f32.mrb[0].mxu0
    %v4891 = vadd.f32 %v4758, %v4890
    %v4892 = vpop.f32.mrb[0].mxu0
    %v4893 = vadd.f32 %v4760, %v4892
    %4894 = vdwg.mxu0
    %v4895 = vand.u32 %v3083, 4294901760
    %v4896 = vsub.f32 %v3083, %v4895
    %4897 = vmatprep.subr.mxu0 %v4896
    %v4898 = vand.u32 %v3082, 4294901760
    %v4899 = vsub.f32 %v3082, %v4898
    %4900 = vmatpush1.msra.mxu0 %v4899
    %v4901 = vand.u32 %v3085, 4294901760
    %v4902 = vsub.f32 %v3085, %v4901
    %4903 = vmatprep.subr.mxu0 %v4902
    %v4904 = vand.u32 %v3084, 4294901760
    %v4905 = vsub.f32 %v3084, %v4904
    %4906 = vmatpush1.msra.mxu0 %v4905
    %v4907 = vand.u32 %v3087, 4294901760
    %v4908 = vsub.f32 %v3087, %v4907
    %4909 = vmatprep.subr.mxu0 %v4908
    %v4910 = vand.u32 %v3086, 4294901760
    %v4911 = vsub.f32 %v3086, %v4910
    %4912 = vmatpush1.msra.mxu0 %v4911
    %v4913 = vand.u32 %v3089, 4294901760
    %v4914 = vsub.f32 %v3089, %v4913
    %4915 = vmatprep.subr.mxu0 %v4914
    %v4916 = vand.u32 %v3088, 4294901760
    %v4917 = vsub.f32 %v3088, %v4916
    %4918 = vmatpush1.msra.mxu0 %v4917
    %4919 = vmatprep.subr.mxu0 0.0
    %4920 = vmatpush1.msra.mxu0 0.0
    %4921 = vmatprep.subr.mxu0 0.0
    %4922 = vmatpush1.msra.mxu0 0.0
    %4923 = vmatprep.subr.mxu0 0.0
    %4924 = vmatpush1.msra.mxu0 0.0
    %4925 = vmatprep.subr.mxu0 0.0
    %4926 = vmatpush1.msra.mxu0 0.0
    %4927 = vmatprep.subr.mxu0 0.0
    %4928 = vmatpush1.msra.mxu0 0.0
    %4929 = vmatprep.subr.mxu0 0.0
    %4930 = vmatpush1.msra.mxu0 0.0
    %4931 = vmatprep.subr.mxu0 0.0
    %4932 = vmatpush1.msra.mxu0 0.0
    %4933 = vmatprep.subr.mxu0 0.0
    %4934 = vmatpush1.msra.mxu0 0.0
    %4935 = vmatprep.subr.mxu0 0.0
    %4936 = vmatpush1.msra.mxu0 0.0
    %4937 = vmatprep.subr.mxu0 0.0
    %4938 = vmatpush1.msra.mxu0 0.0
    %4939 = vmatprep.subr.mxu0 0.0
    %4940 = vmatpush1.msra.mxu0 0.0
    %4941 = vmatprep.subr.mxu0 0.0
    %4942 = vmatpush1.msra.mxu0 0.0
    %4943 = vmatprep.subr.mxu0 0.0
    %4944 = vmatpush1.msra.mxu0 0.0
    %4945 = vmatprep.subr.mxu0 0.0
    %4946 = vmatpush1.msra.mxu0 0.0
    %4947 = vmatprep.subr.mxu0 0.0
    %4948 = vmatpush1.msra.mxu0 0.0
    %4949 = vmatprep.subr.mxu0 0.0
    %4950 = vmatpush1.msra.mxu0 0.0
    %4951 = vmatprep.subr.mxu0 0.0
    %4952 = vmatpush1.msra.mxu0 0.0
    %4953 = vmatprep.subr.mxu0 0.0
    %4954 = vmatpush1.msra.mxu0 0.0
    %4955 = vmatprep.subr.mxu0 0.0
    %4956 = vmatpush1.msra.mxu0 0.0
    %4957 = vmatprep.subr.mxu0 0.0
    %4958 = vmatpush1.msra.mxu0 0.0
    %4959 = vmatprep.subr.mxu0 0.0
    %4960 = vmatpush1.msra.mxu0 0.0
    %4961 = vmatprep.subr.mxu0 0.0
    %4962 = vmatpush1.msra.mxu0 0.0
    %4963 = vmatprep.subr.mxu0 0.0
    %4964 = vmatpush1.msra.mxu0 0.0
    %4965 = vmatprep.subr.mxu0 0.0
    %4966 = vmatpush1.msra.mxu0 0.0
    %4967 = vmatprep.subr.mxu0 0.0
    %4968 = vmatpush1.msra.mxu0 0.0
    %4969 = vmatprep.subr.mxu0 0.0
    %4970 = vmatpush1.msra.mxu0 0.0
    %4971 = vmatprep.subr.mxu0 0.0
    %4972 = vmatpush1.msra.mxu0 0.0
    %4973 = vmatprep.subr.mxu0 0.0
    %4974 = vmatpush1.msra.mxu0 0.0
    %4975 = vmatprep.mubr.f32.mxu0 0.0
    %v4976 = vand.u32 %v3164, 4294901760
    %v4977 = vsub.f32 %v3164, %v4976
    %4978 = vmatmul.mubr.f32.gmra.mrb[0].mxu0 %v4977
    %v4979 = vpop.f32.mrb[0].mxu0
    %v4980 = vadd.f32 %v4870, %v4979
    %v4981 = vpop.f32.mrb[0].mxu0
    %v4982 = vadd.f32 %v4872, %v4981
    %4983 = vmatprep.mubr.f32.mxu0 0.0
    %v4984 = vand.u32 %v3167, 4294901760
    %v4985 = vsub.f32 %v3167, %v4984
    %4986 = vmatmul.mubr.f32.gmra.mrb[0].mxu0 %v4985
    %v4987 = vpop.f32.mrb[0].mxu0
    %v4988 = vadd.f32 %v4877, %v4987
    %v4989 = vpop.f32.mrb[0].mxu0
    %v4990 = vadd.f32 %v4879, %v4989
    %4991 = vmatprep.mubr.f32.mxu0 0.0
    %v4992 = vand.u32 %v3170, 4294901760
    %v4993 = vsub.f32 %v3170, %v4992
    %4994 = vmatmul.mubr.f32.gmra.mrb[0].mxu0 %v4993
    %v4995 = vpop.f32.mrb[0].mxu0
    %v4996 = vadd.f32 %v4884, %v4995
    %v4997 = vpop.f32.mrb[0].mxu0
    %v4998 = vadd.f32 %v4886, %v4997
    %4999 = vmatprep.mubr.f32.mxu0 0.0
    %v5000 = vand.u32 %v3173, 4294901760
    %v5001 = vsub.f32 %v3173, %v5000
    %5002 = vmatmul.mubr.f32.gmra.mrb[0].mxu0 %v5001
    %v5003 = vpop.f32.mrb[0].mxu0
    %v5004 = vadd.f32 %v4891, %v5003
    %v5005 = vpop.f32.mrb[0].mxu0
    %v5006 = vadd.f32 %v4893, %v5005
    %5007 = vdwg.mxu0
    %v5008 = vand.u32 %v3083, 4294901760
    %5009 = vmatprep.subr.mxu0 %v5008
    %v5010 = vand.u32 %v3082, 4294901760
    %5011 = vmatpush1.msra.mxu0 %v5010
    %v5012 = vand.u32 %v3085, 4294901760
    %5013 = vmatprep.subr.mxu0 %v5012
    %v5014 = vand.u32 %v3084, 4294901760
    %5015 = vmatpush1.msra.mxu0 %v5014
    %v5016 = vand.u32 %v3087, 4294901760
    %5017 = vmatprep.subr.mxu0 %v5016
    %v5018 = vand.u32 %v3086, 4294901760
    %5019 = vmatpush1.msra.mxu0 %v5018
    %v5020 = vand.u32 %v3089, 4294901760
    %5021 = vmatprep.subr.mxu0 %v5020
    %v5022 = vand.u32 %v3088, 4294901760
    %5023 = vmatpush1.msra.mxu0 %v5022
    %5024 = vmatprep.subr.mxu0 0.0
    %5025 = vmatpush1.msra.mxu0 0.0
    %5026 = vmatprep.subr.mxu0 0.0
    %5027 = vmatpush1.msra.mxu0 0.0
    %5028 = vmatprep.subr.mxu0 0.0
    %5029 = vmatpush1.msra.mxu0 0.0
    %5030 = vmatprep.subr.mxu0 0.0
    %5031 = vmatpush1.msra.mxu0 0.0
    %5032 = vmatprep.subr.mxu0 0.0
    %5033 = vmatpush1.msra.mxu0 0.0
    %5034 = vmatprep.subr.mxu0 0.0
    %5035 = vmatpush1.msra.mxu0 0.0
    %5036 = vmatprep.subr.mxu0 0.0
    %5037 = vmatpush1.msra.mxu0 0.0
    %5038 = vmatprep.subr.mxu0 0.0
    %5039 = vmatpush1.msra.mxu0 0.0
    %5040 = vmatprep.subr.mxu0 0.0
    %5041 = vmatpush1.msra.mxu0 0.0
    %5042 = vmatprep.subr.mxu0 0.0
    %5043 = vmatpush1.msra.mxu0 0.0
    %5044 = vmatprep.subr.mxu0 0.0
    %5045 = vmatpush1.msra.mxu0 0.0
    %5046 = vmatprep.subr.mxu0 0.0
    %5047 = vmatpush1.msra.mxu0 0.0
    %5048 = vmatprep.subr.mxu0 0.0
    %5049 = vmatpush1.msra.mxu0 0.0
    %5050 = vmatprep.subr.mxu0 0.0
    %5051 = vmatpush1.msra.mxu0 0.0
    %5052 = vmatprep.subr.mxu0 0.0
    %5053 = vmatpush1.msra.mxu0 0.0
    %5054 = vmatprep.subr.mxu0 0.0
    %5055 = vmatpush1.msra.mxu0 0.0
    %5056 = vmatprep.subr.mxu0 0.0
    %5057 = vmatpush1.msra.mxu0 0.0
    %5058 = vmatprep.subr.mxu0 0.0
    %5059 = vmatpush1.msra.mxu0 0.0
    %5060 = vmatprep.subr.mxu0 0.0
    %5061 = vmatpush1.msra.mxu0 0.0
    %5062 = vmatprep.subr.mxu0 0.0
    %5063 = vmatpush1.msra.mxu0 0.0
    %5064 = vmatprep.subr.mxu0 0.0
    %5065 = vmatpush1.msra.mxu0 0.0
    %5066 = vmatprep.subr.mxu0 0.0
    %5067 = vmatpush1.msra.mxu0 0.0
    %5068 = vmatprep.subr.mxu0 0.0
    %5069 = vmatpush1.msra.mxu0 0.0
    %5070 = vmatprep.subr.mxu0 0.0
    %5071 = vmatpush1.msra.mxu0 0.0
    %5072 = vmatprep.subr.mxu0 0.0
    %5073 = vmatpush1.msra.mxu0 0.0
    %5074 = vmatprep.subr.mxu0 0.0
    %5075 = vmatpush1.msra.mxu0 0.0
    %5076 = vmatprep.subr.mxu0 0.0
    %5077 = vmatpush1.msra.mxu0 0.0
    %5078 = vmatprep.subr.mxu0 0.0
    %5079 = vmatpush1.msra.mxu0 0.0
    %5080 = vmatprep.mubr.f32.mxu0 0.0
    %v5081 = vand.u32 %v3164, 4294901760
    %v5082 = vsub.f32 %v3164, %v5081
    %v5083 = vand.u32 %v5082, 4294901760
    %5084 = vmatmul.mubr.f32.gmra.mrb[0].mxu0 %v5083
    %v5085 = vpop.f32.mrb[0].mxu0
    %v5086 = vadd.f32 %v4980, %v5085
    %v5087 = vpop.f32.mrb[0].mxu0
    %v5088 = vadd.f32 %v4982, %v5087
    %5089 = vmatprep.mubr.f32.mxu0 0.0
    %v5090 = vand.u32 %v3167, 4294901760
    %v5091 = vsub.f32 %v3167, %v5090
    %v5092 = vand.u32 %v5091, 4294901760
    %5093 = vmatmul.mubr.f32.gmra.mrb[0].mxu0 %v5092
    %v5094 = vpop.f32.mrb[0].mxu0
    %v5095 = vadd.f32 %v4988, %v5094
    %v5096 = vpop.f32.mrb[0].mxu0
    %v5097 = vadd.f32 %v4990, %v5096
    %5098 = vmatprep.mubr.f32.mxu0 0.0
    %v5099 = vand.u32 %v3170, 4294901760
    %v5100 = vsub.f32 %v3170, %v5099
    %v5101 = vand.u32 %v5100, 4294901760
    %5102 = vmatmul.mubr.f32.gmra.mrb[0].mxu0 %v5101
    %v5103 = vpop.f32.mrb[0].mxu0
    %v5104 = vadd.f32 %v4996, %v5103
    %v5105 = vpop.f32.mrb[0].mxu0
    %v5106 = vadd.f32 %v4998, %v5105
    %5107 = vmatprep.mubr.f32.mxu0 0.0
    %v5108 = vand.u32 %v3173, 4294901760
    %v5109 = vsub.f32 %v3173, %v5108
    %v5110 = vand.u32 %v5109, 4294901760
    %5111 = vmatmul.mubr.f32.gmra.mrb[0].mxu0 %v5110
    %v5112 = vpop.f32.mrb[0].mxu0
    %v5113 = vadd.f32 %v5004, %v5112
    %v5114 = vpop.f32.mrb[0].mxu0
    %v5115 = vadd.f32 %v5006, %v5114
    %5116 = vdwg.mxu0
    %v5117 = vand.u32 %v3083, 4294901760
    %v5118 = vsub.f32 %v3083, %v5117
    %v5119 = vand.u32 %v5118, 4294901760
    %5120 = vmatprep.subr.mxu0 %v5119
    %v5121 = vand.u32 %v3082, 4294901760
    %v5122 = vsub.f32 %v3082, %v5121
    %v5123 = vand.u32 %v5122, 4294901760
    %5124 = vmatpush1.msra.mxu0 %v5123
    %v5125 = vand.u32 %v3085, 4294901760
    %v5126 = vsub.f32 %v3085, %v5125
    %v5127 = vand.u32 %v5126, 4294901760
    %5128 = vmatprep.subr.mxu0 %v5127
    %v5129 = vand.u32 %v3084, 4294901760
    %v5130 = vsub.f32 %v3084, %v5129
    %v5131 = vand.u32 %v5130, 4294901760
    %5132 = vmatpush1.msra.mxu0 %v5131
    %v5133 = vand.u32 %v3087, 4294901760
    %v5134 = vsub.f32 %v3087, %v5133
    %v5135 = vand.u32 %v5134, 4294901760
    %5136 = vmatprep.subr.mxu0 %v5135
    %v5137 = vand.u32 %v3086, 4294901760
    %v5138 = vsub.f32 %v3086, %v5137
    %v5139 = vand.u32 %v5138, 4294901760
    %5140 = vmatpush1.msra.mxu0 %v5139
    %v5141 = vand.u32 %v3089, 4294901760
    %v5142 = vsub.f32 %v3089, %v5141
    %v5143 = vand.u32 %v5142, 4294901760
    %5144 = vmatprep.subr.mxu0 %v5143
    %v5145 = vand.u32 %v3088, 4294901760
    %v5146 = vsub.f32 %v3088, %v5145
    %v5147 = vand.u32 %v5146, 4294901760
    %5148 = vmatpush1.msra.mxu0 %v5147
    %5149 = vmatprep.subr.mxu0 0.0
    %5150 = vmatpush1.msra.mxu0 0.0
    %5151 = vmatprep.subr.mxu0 0.0
    %5152 = vmatpush1.msra.mxu0 0.0
    %5153 = vmatprep.subr.mxu0 0.0
    %5154 = vmatpush1.msra.mxu0 0.0
    %5155 = vmatprep.subr.mxu0 0.0
    %5156 = vmatpush1.msra.mxu0 0.0
    %5157 = vmatprep.subr.mxu0 0.0
    %5158 = vmatpush1.msra.mxu0 0.0
    %5159 = vmatprep.subr.mxu0 0.0
    %5160 = vmatpush1.msra.mxu0 0.0
    %5161 = vmatprep.subr.mxu0 0.0
    %5162 = vmatpush1.msra.mxu0 0.0
    %5163 = vmatprep.subr.mxu0 0.0
    %5164 = vmatpush1.msra.mxu0 0.0
    %5165 = vmatprep.subr.mxu0 0.0
    %5166 = vmatpush1.msra.mxu0 0.0
    %5167 = vmatprep.subr.mxu0 0.0
    %5168 = vmatpush1.msra.mxu0 0.0
    %5169 = vmatprep.subr.mxu0 0.0
    %5170 = vmatpush1.msra.mxu0 0.0
    %5171 = vmatprep.subr.mxu0 0.0
    %5172 = vmatpush1.msra.mxu0 0.0
    %5173 = vmatprep.subr.mxu0 0.0
    %5174 = vmatpush1.msra.mxu0 0.0
    %5175 = vmatprep.subr.mxu0 0.0
    %5176 = vmatpush1.msra.mxu0 0.0
    %5177 = vmatprep.subr.mxu0 0.0
    %5178 = vmatpush1.msra.mxu0 0.0
    %5179 = vmatprep.subr.mxu0 0.0
    %5180 = vmatpush1.msra.mxu0 0.0
    %5181 = vmatprep.subr.mxu0 0.0
    %5182 = vmatpush1.msra.mxu0 0.0
    %5183 = vmatprep.subr.mxu0 0.0
    %5184 = vmatpush1.msra.mxu0 0.0
    %5185 = vmatprep.subr.mxu0 0.0
    %5186 = vmatpush1.msra.mxu0 0.0
    %5187 = vmatprep.subr.mxu0 0.0
    %5188 = vmatpush1.msra.mxu0 0.0
    %5189 = vmatprep.subr.mxu0 0.0
    %5190 = vmatpush1.msra.mxu0 0.0
    %5191 = vmatprep.subr.mxu0 0.0
    %5192 = vmatpush1.msra.mxu0 0.0
    %5193 = vmatprep.subr.mxu0 0.0
    %5194 = vmatpush1.msra.mxu0 0.0
    %5195 = vmatprep.subr.mxu0 0.0
    %5196 = vmatpush1.msra.mxu0 0.0
    %5197 = vmatprep.subr.mxu0 0.0
    %5198 = vmatpush1.msra.mxu0 0.0
    %5199 = vmatprep.subr.mxu0 0.0
    %5200 = vmatpush1.msra.mxu0 0.0
    %5201 = vmatprep.subr.mxu0 0.0
    %5202 = vmatpush1.msra.mxu0 0.0
    %5203 = vmatprep.subr.mxu0 0.0
    %5204 = vmatpush1.msra.mxu0 0.0
    %5205 = vmatprep.mubr.f32.mxu0 0.0
    %v5206 = vand.u32 %v3164, 4294901760
    %5207 = vmatmul.mubr.f32.gmra.mrb[0].mxu0 %v5206
    %v5208 = vpop.f32.mrb[0].mxu0
    %v5209 = vadd.f32 %v5086, %v5208
    %v5210 = vpop.f32.mrb[0].mxu0
    %v5211 = vadd.f32 %v5088, %v5210
    %5212 = vmatprep.mubr.f32.mxu0 0.0
    %v5213 = vand.u32 %v3167, 4294901760
    %5214 = vmatmul.mubr.f32.gmra.mrb[0].mxu0 %v5213
    %v5215 = vpop.f32.mrb[0].mxu0
    %v5216 = vadd.f32 %v5095, %v5215
    %v5217 = vpop.f32.mrb[0].mxu0
    %v5218 = vadd.f32 %v5097, %v5217
    %5219 = vmatprep.mubr.f32.mxu0 0.0
    %v5220 = vand.u32 %v3170, 4294901760
    %5221 = vmatmul.mubr.f32.gmra.mrb[0].mxu0 %v5220
    %v5222 = vpop.f32.mrb[0].mxu0
    %v5223 = vadd.f32 %v5104, %v5222
    %v5224 = vpop.f32.mrb[0].mxu0
    %v5225 = vadd.f32 %v5106, %v5224
    %5226 = vmatprep.mubr.f32.mxu0 0.0
    %v5227 = vand.u32 %v3173, 4294901760
    %5228 = vmatmul.mubr.f32.gmra.mrb[0].mxu0 %v5227
    %v5229 = vpop.f32.mrb[0].mxu0
    %v5230 = vadd.f32 %v5113, %v5229
    %v5231 = vpop.f32.mrb[0].mxu0
    %v5232 = vadd.f32 %v5115, %v5231
    %5233 = vdwg.mxu0
    %v5234 = vand.u32 %v3083, 4294901760
    %5235 = vmatprep.subr.mxu0 %v5234
    %v5236 = vand.u32 %v3082, 4294901760
    %5237 = vmatpush1.msra.mxu0 %v5236
    %v5238 = vand.u32 %v3085, 4294901760
    %5239 = vmatprep.subr.mxu0 %v5238
    %v5240 = vand.u32 %v3084, 4294901760
    %5241 = vmatpush1.msra.mxu0 %v5240
    %v5242 = vand.u32 %v3087, 4294901760
    %5243 = vmatprep.subr.mxu0 %v5242
    %v5244 = vand.u32 %v3086, 4294901760
    %5245 = vmatpush1.msra.mxu0 %v5244
    %v5246 = vand.u32 %v3089, 4294901760
    %5247 = vmatprep.subr.mxu0 %v5246
    %v5248 = vand.u32 %v3088, 4294901760
    %5249 = vmatpush1.msra.mxu0 %v5248
    %5250 = vmatprep.subr.mxu0 0.0
    %5251 = vmatpush1.msra.mxu0 0.0
    %5252 = vmatprep.subr.mxu0 0.0
    %5253 = vmatpush1.msra.mxu0 0.0
    %5254 = vmatprep.subr.mxu0 0.0
    %5255 = vmatpush1.msra.mxu0 0.0
    %5256 = vmatprep.subr.mxu0 0.0
    %5257 = vmatpush1.msra.mxu0 0.0
    %5258 = vmatprep.subr.mxu0 0.0
    %5259 = vmatpush1.msra.mxu0 0.0
    %5260 = vmatprep.subr.mxu0 0.0
    %5261 = vmatpush1.msra.mxu0 0.0
    %5262 = vmatprep.subr.mxu0 0.0
    %5263 = vmatpush1.msra.mxu0 0.0
    %5264 = vmatprep.subr.mxu0 0.0
    %5265 = vmatpush1.msra.mxu0 0.0
    %5266 = vmatprep.subr.mxu0 0.0
    %5267 = vmatpush1.msra.mxu0 0.0
    %5268 = vmatprep.subr.mxu0 0.0
    %5269 = vmatpush1.msra.mxu0 0.0
    %5270 = vmatprep.subr.mxu0 0.0
    %5271 = vmatpush1.msra.mxu0 0.0
    %5272 = vmatprep.subr.mxu0 0.0
    %5273 = vmatpush1.msra.mxu0 0.0
    %5274 = vmatprep.subr.mxu0 0.0
    %5275 = vmatpush1.msra.mxu0 0.0
    %5276 = vmatprep.subr.mxu0 0.0
    %5277 = vmatpush1.msra.mxu0 0.0
    %5278 = vmatprep.subr.mxu0 0.0
    %5279 = vmatpush1.msra.mxu0 0.0
    %5280 = vmatprep.subr.mxu0 0.0
    %5281 = vmatpush1.msra.mxu0 0.0
    %5282 = vmatprep.subr.mxu0 0.0
    %5283 = vmatpush1.msra.mxu0 0.0
    %5284 = vmatprep.subr.mxu0 0.0
    %5285 = vmatpush1.msra.mxu0 0.0
    %5286 = vmatprep.subr.mxu0 0.0
    %5287 = vmatpush1.msra.mxu0 0.0
    %5288 = vmatprep.subr.mxu0 0.0
    %5289 = vmatpush1.msra.mxu0 0.0
    %5290 = vmatprep.subr.mxu0 0.0
    %5291 = vmatpush1.msra.mxu0 0.0
    %5292 = vmatprep.subr.mxu0 0.0
    %5293 = vmatpush1.msra.mxu0 0.0
    %5294 = vmatprep.subr.mxu0 0.0
    %5295 = vmatpush1.msra.mxu0 0.0
    %5296 = vmatprep.subr.mxu0 0.0
    %5297 = vmatpush1.msra.mxu0 0.0
    %5298 = vmatprep.subr.mxu0 0.0
    %5299 = vmatpush1.msra.mxu0 0.0
    %5300 = vmatprep.subr.mxu0 0.0
    %5301 = vmatpush1.msra.mxu0 0.0
    %5302 = vmatprep.subr.mxu0 0.0
    %5303 = vmatpush1.msra.mxu0 0.0
    %5304 = vmatprep.subr.mxu0 0.0
    %5305 = vmatpush1.msra.mxu0 0.0
    %5306 = vmatprep.mubr.f32.mxu0 0.0
    %v5307 = vand.u32 %v3164, 4294901760
    %5308 = vmatmul.mubr.f32.gmra.mrb[0].mxu0 %v5307
    %v5309 = vpop.f32.mrb[0].mxu0
    %v5310 = vadd.f32 %v5209, %v5309
    %v5311 = vpop.f32.mrb[0].mxu0
    %v5312 = vadd.f32 %v5211, %v5311
    %5313 = vmatprep.mubr.f32.mxu0 0.0
    %v5314 = vand.u32 %v3167, 4294901760
    %5315 = vmatmul.mubr.f32.gmra.mrb[0].mxu0 %v5314
    %v5316 = vpop.f32.mrb[0].mxu0
    %v5317 = vadd.f32 %v5216, %v5316
    %v5318 = vpop.f32.mrb[0].mxu0
    %v5319 = vadd.f32 %v5218, %v5318
    %5320 = vmatprep.mubr.f32.mxu0 0.0
    %v5321 = vand.u32 %v3170, 4294901760
    %5322 = vmatmul.mubr.f32.gmra.mrb[0].mxu0 %v5321
    %v5323 = vpop.f32.mrb[0].mxu0
    %v5324 = vadd.f32 %v5223, %v5323
    %v5325 = vpop.f32.mrb[0].mxu0
    %v5326 = vadd.f32 %v5225, %v5325
    %5327 = vmatprep.mubr.f32.mxu0 0.0
    %v5328 = vand.u32 %v3173, 4294901760
    %5329 = vmatmul.mubr.f32.gmra.mrb[0].mxu0 %v5328
    %v5330 = vpop.f32.mrb[0].mxu0
    %v5331 = vadd.f32 %v5230, %v5330
    %v5332 = vpop.f32.mrb[0].mxu0
    %v5333 = vadd.f32 %v5232, %v5332
    %5334 = vdwg.mxu0
    %v5335 = vmax.f32 %v5310, 0.0
    %v5336 = vmax.f32 %v5312, 0.0
    %v5337 = vmax.f32 %v5317, 0.0
    %v5338 = vmax.f32 %v5319, 0.0
    %v5339 = vmax.f32 %v5324, 0.0
    %v5340 = vmax.f32 %v5326, 0.0
    %v5341 = vmax.f32 %v5331, 0.0
    %v5342 = vmax.f32 %v5333, 0.0
    %s5343 = smul.addr %s2305, 8
    %s5344 = scalar_lea.vmem %s11, %s5343
    %v5345 = vld [vmem:[%s5344] sm:$0xff]
    %v5346 = vld [vmem:[%s5344 + $0x8] sm:$0xff]
    %v5347 = vld [vmem:[%s5344 + $0x10] sm:$0xff]
    %v5348 = vld [vmem:[%s5344 + $0x18] sm:$0xff]
    %v5349 = vld [vmem:[%s5344 + $0x20] sm:$0xff]
    %v5350 = vld [vmem:[%s5344 + $0x28] sm:$0xff]
    %v5351 = vld [vmem:[%s5344 + $0x30] sm:$0xff]
    %v5352 = vld [vmem:[%s5344 + $0x38] sm:$0xff]
    %v5353 = vld [vmem:[%s5344 + $0x40] sm:$0xff]
    %v5354 = vld [vmem:[%s5344 + $0x48] sm:$0xff]
    %v5355 = vld [vmem:[%s5344 + $0x50] sm:$0xff]
    %v5356 = vld [vmem:[%s5344 + $0x58] sm:$0xff]
    %s5357 = scalar_lea.vmem %s12, %s2320
    %v5358 = vld [vmem:[%s5357] sm:$0xff]
    %v5359 = vld [vmem:[%s5357 + $0x8] sm:$0xff]
    %v5360 = vld [vmem:[%s5357 + $0x10] sm:$0xff]
    %v5361 = vld [vmem:[%s5357 + $0x18] sm:$0xff]
    %5370 = vrot.lane.b32.xlu0 %v5335, 24
    %v5371 = vpop.permute.xlu0 %5370
    %5372 = vrot.lane.b32.xlu0 %v5336, 24
    %v5373 = vpop.permute.xlu0 %5372
    %5374 = vrot.lane.b32.xlu0 %v5337, 24
    %v5375 = vpop.permute.xlu0 %5374
    %5376 = vrot.lane.b32.xlu0 %v5338, 24
    %v5377 = vpop.permute.xlu0 %5376
    %5378 = vrot.lane.b32.xlu0 %v5339, 24
    %v5379 = vpop.permute.xlu0 %5378
    %5380 = vrot.lane.b32.xlu0 %v5340, 24
    %v5381 = vpop.permute.xlu0 %5380
    %5382 = vrot.lane.b32.xlu0 %v5341, 24
    %v5383 = vpop.permute.xlu0 %5382
    %5384 = vrot.lane.b32.xlu0 %v5342, 24
    %v5385 = vpop.permute.xlu0 %5384
    %v5386 = vsel %vm1350, %v5371, %v5373
    %v5387 = vsel %vm1350, %v5375, %v5377
    %v5388 = vsel %vm1350, %v5379, %v5381
    %v5389 = vsel %vm1350, %v5383, %v5385
    %v5402 = vsel %vm1350, 0.0, %v5371
    %v5403 = vsel %vm1350, 0.0, %v5375
    %v5404 = vsel %vm1350, 0.0, %v5379
    %v5405 = vsel %vm1350, 0.0, %v5383
    %v5406 = vsel %vm1350, %v5373, 0.0
    %v5407 = vsel %vm1350, %v5377, 0.0
    %v5408 = vsel %vm1350, %v5381, 0.0
    %v5409 = vsel %vm1350, %v5385, 0.0
    %v5410 = vmul.f32 %v5402, %v1360
    %v5411 = vmul.f32 %v5386, %v1364
    %v5412 = vmul.f32 %v5406, %v1362
    %v5413 = vmul.f32 %v5403, %v1360
    %v5414 = vmul.f32 %v5387, %v1364
    %v5415 = vmul.f32 %v5407, %v1362
    %v5416 = vmul.f32 %v5404, %v1360
    %v5417 = vmul.f32 %v5388, %v1364
    %v5418 = vmul.f32 %v5408, %v1362
    %v5419 = vmul.f32 %v5405, %v1360
    %v5420 = vmul.f32 %v5389, %v1364
    %v5421 = vmul.f32 %v5409, %v1362
    %v5422 = vmul.f32 %v5402, %v1374
    %v5423 = vmul.f32 %v5386, %v1378
    %v5424 = vmul.f32 %v5406, %v1376
    %v5425 = vmul.f32 %v5403, %v1374
    %v5426 = vmul.f32 %v5387, %v1378
    %v5427 = vmul.f32 %v5407, %v1376
    %v5428 = vmul.f32 %v5404, %v1374
    %v5429 = vmul.f32 %v5388, %v1378
    %v5430 = vmul.f32 %v5408, %v1376
    %v5431 = vmul.f32 %v5405, %v1374
    %v5432 = vmul.f32 %v5389, %v1378
    %v5433 = vmul.f32 %v5409, %v1376
    %v5434 = vmul.f32 %v5402, %v1386
    %v5435 = vmul.f32 %v5386, %v1390
    %v5436 = vmul.f32 %v5406, %v1388
    %v5437 = vmul.f32 %v5403, %v1386
    %v5438 = vmul.f32 %v5387, %v1390
    %v5439 = vmul.f32 %v5407, %v1388
    %v5440 = vmul.f32 %v5404, %v1386
    %v5441 = vmul.f32 %v5388, %v1390
    %v5442 = vmul.f32 %v5408, %v1388
    %v5443 = vmul.f32 %v5405, %v1386
    %v5444 = vmul.f32 %v5389, %v1390
    %v5445 = vmul.f32 %v5409, %v1388
    %v5446 = vmul.f32 %v5402, %v1398
    %v5447 = vmul.f32 %v5386, %v1402
    %v5448 = vmul.f32 %v5406, %v1400
    %v5449 = vmul.f32 %v5403, %v1398
    %v5450 = vmul.f32 %v5387, %v1402
    %v5451 = vmul.f32 %v5407, %v1400
    %v5452 = vmul.f32 %v5404, %v1398
    %v5453 = vmul.f32 %v5388, %v1402
    %v5454 = vmul.f32 %v5408, %v1400
    %v5455 = vmul.f32 %v5405, %v1398
    %v5456 = vmul.f32 %v5389, %v1402
    %v5457 = vmul.f32 %v5409, %v1400
    %v5458 = vmul.f32 %v5402, %v1410
    %v5459 = vmul.f32 %v5386, %v1414
    %v5460 = vmul.f32 %v5406, %v1412
    %v5461 = vmul.f32 %v5403, %v1410
    %v5462 = vmul.f32 %v5387, %v1414
    %v5463 = vmul.f32 %v5407, %v1412
    %v5464 = vmul.f32 %v5404, %v1410
    %v5465 = vmul.f32 %v5388, %v1414
    %v5466 = vmul.f32 %v5408, %v1412
    %v5467 = vmul.f32 %v5405, %v1410
    %v5468 = vmul.f32 %v5389, %v1414
    %v5469 = vmul.f32 %v5409, %v1412
    %v5470 = vmul.f32 %v5402, %v1422
    %v5471 = vmul.f32 %v5386, %v1426
    %v5472 = vmul.f32 %v5406, %v1424
    %v5473 = vmul.f32 %v5403, %v1422
    %v5474 = vmul.f32 %v5387, %v1426
    %v5475 = vmul.f32 %v5407, %v1424
    %v5476 = vmul.f32 %v5404, %v1422
    %v5477 = vmul.f32 %v5388, %v1426
    %v5478 = vmul.f32 %v5408, %v1424
    %v5479 = vmul.f32 %v5405, %v1422
    %v5480 = vmul.f32 %v5389, %v1426
    %v5481 = vmul.f32 %v5409, %v1424
    %5490 = vrot.lane.b32.xlu0 %v5402, 127
    %v5491 = vpop.permute.xlu0 %5490
    %5492 = vrot.lane.b32.xlu0 %v5386, 127
    %v5493 = vpop.permute.xlu0 %5492
    %5494 = vrot.lane.b32.xlu0 %v5406, 127
    %v5495 = vpop.permute.xlu0 %5494
    %5496 = vrot.lane.b32.xlu0 %v5403, 127
    %v5497 = vpop.permute.xlu0 %5496
    %5498 = vrot.lane.b32.xlu0 %v5387, 127
    %v5499 = vpop.permute.xlu0 %5498
    %5500 = vrot.lane.b32.xlu0 %v5407, 127
    %v5501 = vpop.permute.xlu0 %5500
    %5502 = vrot.lane.b32.xlu0 %v5404, 127
    %v5503 = vpop.permute.xlu0 %5502
    %5504 = vrot.lane.b32.xlu0 %v5388, 127
    %v5505 = vpop.permute.xlu0 %5504
    %5506 = vrot.lane.b32.xlu0 %v5408, 127
    %v5507 = vpop.permute.xlu0 %5506
    %5508 = vrot.lane.b32.xlu0 %v5405, 127
    %v5509 = vpop.permute.xlu0 %5508
    %5510 = vrot.lane.b32.xlu0 %v5389, 127
    %v5511 = vpop.permute.xlu0 %5510
    %5512 = vrot.lane.b32.xlu0 %v5409, 127
    %v5513 = vpop.permute.xlu0 %5512
    %v5514 = vsel %vm1444, %v5491, %v5493
    %v5515 = vsel %vm1444, %v5493, %v5495
    %v5516 = vsel %vm1444, %v5497, %v5499
    %v5517 = vsel %vm1444, %v5499, %v5501
    %v5518 = vsel %vm1444, %v5503, %v5505
    %v5519 = vsel %vm1444, %v5505, %v5507
    %v5520 = vsel %vm1444, %v5509, %v5511
    %v5521 = vsel %vm1444, %v5511, %v5513
    %5534 = vrot.lane.b32.xlu0 %v5422, 126
    %v5535 = vpop.permute.xlu0 %5534
    %5536 = vrot.lane.b32.xlu0 %v5423, 126
    %v5537 = vpop.permute.xlu0 %5536
    %5538 = vrot.lane.b32.xlu0 %v5424, 126
    %v5539 = vpop.permute.xlu0 %5538
    %5540 = vrot.lane.b32.xlu0 %v5425, 126
    %v5541 = vpop.permute.xlu0 %5540
    %5542 = vrot.lane.b32.xlu0 %v5426, 126
    %v5543 = vpop.permute.xlu0 %5542
    %5544 = vrot.lane.b32.xlu0 %v5427, 126
    %v5545 = vpop.permute.xlu0 %5544
    %5546 = vrot.lane.b32.xlu0 %v5428, 126
    %v5547 = vpop.permute.xlu0 %5546
    %5548 = vrot.lane.b32.xlu0 %v5429, 126
    %v5549 = vpop.permute.xlu0 %5548
    %5550 = vrot.lane.b32.xlu0 %v5430, 126
    %v5551 = vpop.permute.xlu0 %5550
    %5552 = vrot.lane.b32.xlu0 %v5431, 126
    %v5553 = vpop.permute.xlu0 %5552
    %5554 = vrot.lane.b32.xlu0 %v5432, 126
    %v5555 = vpop.permute.xlu0 %5554
    %5556 = vrot.lane.b32.xlu0 %v5433, 126
    %v5557 = vpop.permute.xlu0 %5556
    %v5558 = vsel %vm1462, %v5535, %v5537
    %v5559 = vsel %vm1462, %v5537, %v5539
    %v5560 = vsel %vm1462, %v5541, %v5543
    %v5561 = vsel %vm1462, %v5543, %v5545
    %v5562 = vsel %vm1462, %v5547, %v5549
    %v5563 = vsel %vm1462, %v5549, %v5551
    %v5564 = vsel %vm1462, %v5553, %v5555
    %v5565 = vsel %vm1462, %v5555, %v5557
    %5578 = vrot.lane.b32.xlu0 %v5434, 112
    %v5579 = vpop.permute.xlu0 %5578
    %5580 = vrot.lane.b32.xlu0 %v5435, 112
    %v5581 = vpop.permute.xlu0 %5580
    %5582 = vrot.lane.b32.xlu0 %v5436, 112
    %v5583 = vpop.permute.xlu0 %5582
    %5584 = vrot.lane.b32.xlu0 %v5437, 112
    %v5585 = vpop.permute.xlu0 %5584
    %5586 = vrot.lane.b32.xlu0 %v5438, 112
    %v5587 = vpop.permute.xlu0 %5586
    %5588 = vrot.lane.b32.xlu0 %v5439, 112
    %v5589 = vpop.permute.xlu0 %5588
    %5590 = vrot.lane.b32.xlu0 %v5440, 112
    %v5591 = vpop.permute.xlu0 %5590
    %5592 = vrot.lane.b32.xlu0 %v5441, 112
    %v5593 = vpop.permute.xlu0 %5592
    %5594 = vrot.lane.b32.xlu0 %v5442, 112
    %v5595 = vpop.permute.xlu0 %5594
    %5596 = vrot.lane.b32.xlu0 %v5443, 112
    %v5597 = vpop.permute.xlu0 %5596
    %5598 = vrot.lane.b32.xlu0 %v5444, 112
    %v5599 = vpop.permute.xlu0 %5598
    %5600 = vrot.lane.b32.xlu0 %v5445, 112
    %v5601 = vpop.permute.xlu0 %5600
    %v5602 = vsel %vm1480, %v5579, %v5581
    %v5603 = vsel %vm1480, %v5581, %v5583
    %v5604 = vsel %vm1480, %v5585, %v5587
    %v5605 = vsel %vm1480, %v5587, %v5589
    %v5606 = vsel %vm1480, %v5591, %v5593
    %v5607 = vsel %vm1480, %v5593, %v5595
    %v5608 = vsel %vm1480, %v5597, %v5599
    %v5609 = vsel %vm1480, %v5599, %v5601
    %5610 = vrot.lane.b32.xlu0 %v5402, 111
    %v5611 = vpop.permute.xlu0 %5610
    %5612 = vrot.lane.b32.xlu0 %v5386, 111
    %v5613 = vpop.permute.xlu0 %5612
    %5614 = vrot.lane.b32.xlu0 %v5406, 111
    %v5615 = vpop.permute.xlu0 %5614
    %5616 = vrot.lane.b32.xlu0 %v5403, 111
    %v5617 = vpop.permute.xlu0 %5616
    %5618 = vrot.lane.b32.xlu0 %v5387, 111
    %v5619 = vpop.permute.xlu0 %5618
    %5620 = vrot.lane.b32.xlu0 %v5407, 111
    %v5621 = vpop.permute.xlu0 %5620
    %5622 = vrot.lane.b32.xlu0 %v5404, 111
    %v5623 = vpop.permute.xlu0 %5622
    %5624 = vrot.lane.b32.xlu0 %v5388, 111
    %v5625 = vpop.permute.xlu0 %5624
    %5626 = vrot.lane.b32.xlu0 %v5408, 111
    %v5627 = vpop.permute.xlu0 %5626
    %5628 = vrot.lane.b32.xlu0 %v5405, 111
    %v5629 = vpop.permute.xlu0 %5628
    %5630 = vrot.lane.b32.xlu0 %v5389, 111
    %v5631 = vpop.permute.xlu0 %5630
    %5632 = vrot.lane.b32.xlu0 %v5409, 111
    %v5633 = vpop.permute.xlu0 %5632
    %v5634 = vsel %vm1495, %v5611, %v5613
    %v5635 = vsel %vm1495, %v5613, %v5615
    %v5636 = vsel %vm1495, %v5617, %v5619
    %v5637 = vsel %vm1495, %v5619, %v5621
    %v5638 = vsel %vm1495, %v5623, %v5625
    %v5639 = vsel %vm1495, %v5625, %v5627
    %v5640 = vsel %vm1495, %v5629, %v5631
    %v5641 = vsel %vm1495, %v5631, %v5633
    %5654 = vrot.lane.b32.xlu0 %v5446, 110
    %v5655 = vpop.permute.xlu0 %5654
    %5656 = vrot.lane.b32.xlu0 %v5447, 110
    %v5657 = vpop.permute.xlu0 %5656
    %5658 = vrot.lane.b32.xlu0 %v5448, 110
    %v5659 = vpop.permute.xlu0 %5658
    %5660 = vrot.lane.b32.xlu0 %v5449, 110
    %v5661 = vpop.permute.xlu0 %5660
    %5662 = vrot.lane.b32.xlu0 %v5450, 110
    %v5663 = vpop.permute.xlu0 %5662
    %5664 = vrot.lane.b32.xlu0 %v5451, 110
    %v5665 = vpop.permute.xlu0 %5664
    %5666 = vrot.lane.b32.xlu0 %v5452, 110
    %v5667 = vpop.permute.xlu0 %5666
    %5668 = vrot.lane.b32.xlu0 %v5453, 110
    %v5669 = vpop.permute.xlu0 %5668
    %5670 = vrot.lane.b32.xlu0 %v5454, 110
    %v5671 = vpop.permute.xlu0 %5670
    %5672 = vrot.lane.b32.xlu0 %v5455, 110
    %v5673 = vpop.permute.xlu0 %5672
    %5674 = vrot.lane.b32.xlu0 %v5456, 110
    %v5675 = vpop.permute.xlu0 %5674
    %5676 = vrot.lane.b32.xlu0 %v5457, 110
    %v5677 = vpop.permute.xlu0 %5676
    %v5678 = vsel %vm1513, %v5655, %v5657
    %v5679 = vsel %vm1513, %v5657, %v5659
    %v5680 = vsel %vm1513, %v5661, %v5663
    %v5681 = vsel %vm1513, %v5663, %v5665
    %v5682 = vsel %vm1513, %v5667, %v5669
    %v5683 = vsel %vm1513, %v5669, %v5671
    %v5684 = vsel %vm1513, %v5673, %v5675
    %v5685 = vsel %vm1513, %v5675, %v5677
    %5698 = vrot.lane.b32.xlu0 %v5458, 96
    %v5699 = vpop.permute.xlu0 %5698
    %5700 = vrot.lane.b32.xlu0 %v5459, 96
    %v5701 = vpop.permute.xlu0 %5700
    %5702 = vrot.lane.b32.xlu0 %v5460, 96
    %v5703 = vpop.permute.xlu0 %5702
    %5704 = vrot.lane.b32.xlu0 %v5461, 96
    %v5705 = vpop.permute.xlu0 %5704
    %5706 = vrot.lane.b32.xlu0 %v5462, 96
    %v5707 = vpop.permute.xlu0 %5706
    %5708 = vrot.lane.b32.xlu0 %v5463, 96
    %v5709 = vpop.permute.xlu0 %5708
    %5710 = vrot.lane.b32.xlu0 %v5464, 96
    %v5711 = vpop.permute.xlu0 %5710
    %5712 = vrot.lane.b32.xlu0 %v5465, 96
    %v5713 = vpop.permute.xlu0 %5712
    %5714 = vrot.lane.b32.xlu0 %v5466, 96
    %v5715 = vpop.permute.xlu0 %5714
    %5716 = vrot.lane.b32.xlu0 %v5467, 96
    %v5717 = vpop.permute.xlu0 %5716
    %5718 = vrot.lane.b32.xlu0 %v5468, 96
    %v5719 = vpop.permute.xlu0 %5718
    %5720 = vrot.lane.b32.xlu0 %v5469, 96
    %v5721 = vpop.permute.xlu0 %5720
    %v5722 = vsel %vm1531, %v5699, %v5701
    %v5723 = vsel %vm1531, %v5701, %v5703
    %v5724 = vsel %vm1531, %v5705, %v5707
    %v5725 = vsel %vm1531, %v5707, %v5709
    %v5726 = vsel %vm1531, %v5711, %v5713
    %v5727 = vsel %vm1531, %v5713, %v5715
    %v5728 = vsel %vm1531, %v5717, %v5719
    %v5729 = vsel %vm1531, %v5719, %v5721
    %5730 = vrot.lane.b32.xlu0 %v5402, 95
    %v5731 = vpop.permute.xlu0 %5730
    %5732 = vrot.lane.b32.xlu0 %v5386, 95
    %v5733 = vpop.permute.xlu0 %5732
    %5734 = vrot.lane.b32.xlu0 %v5406, 95
    %v5735 = vpop.permute.xlu0 %5734
    %5736 = vrot.lane.b32.xlu0 %v5403, 95
    %v5737 = vpop.permute.xlu0 %5736
    %5738 = vrot.lane.b32.xlu0 %v5387, 95
    %v5739 = vpop.permute.xlu0 %5738
    %5740 = vrot.lane.b32.xlu0 %v5407, 95
    %v5741 = vpop.permute.xlu0 %5740
    %5742 = vrot.lane.b32.xlu0 %v5404, 95
    %v5743 = vpop.permute.xlu0 %5742
    %5744 = vrot.lane.b32.xlu0 %v5388, 95
    %v5745 = vpop.permute.xlu0 %5744
    %5746 = vrot.lane.b32.xlu0 %v5408, 95
    %v5747 = vpop.permute.xlu0 %5746
    %5748 = vrot.lane.b32.xlu0 %v5405, 95
    %v5749 = vpop.permute.xlu0 %5748
    %5750 = vrot.lane.b32.xlu0 %v5389, 95
    %v5751 = vpop.permute.xlu0 %5750
    %5752 = vrot.lane.b32.xlu0 %v5409, 95
    %v5753 = vpop.permute.xlu0 %5752
    %v5754 = vsel %vm1546, %v5731, %v5733
    %v5755 = vsel %vm1546, %v5733, %v5735
    %v5756 = vsel %vm1546, %v5737, %v5739
    %v5757 = vsel %vm1546, %v5739, %v5741
    %v5758 = vsel %vm1546, %v5743, %v5745
    %v5759 = vsel %vm1546, %v5745, %v5747
    %v5760 = vsel %vm1546, %v5749, %v5751
    %v5761 = vsel %vm1546, %v5751, %v5753
    %5774 = vrot.lane.b32.xlu0 %v5470, 94
    %v5775 = vpop.permute.xlu0 %5774
    %5776 = vrot.lane.b32.xlu0 %v5471, 94
    %v5777 = vpop.permute.xlu0 %5776
    %5778 = vrot.lane.b32.xlu0 %v5472, 94
    %v5779 = vpop.permute.xlu0 %5778
    %5780 = vrot.lane.b32.xlu0 %v5473, 94
    %v5781 = vpop.permute.xlu0 %5780
    %5782 = vrot.lane.b32.xlu0 %v5474, 94
    %v5783 = vpop.permute.xlu0 %5782
    %5784 = vrot.lane.b32.xlu0 %v5475, 94
    %v5785 = vpop.permute.xlu0 %5784
    %5786 = vrot.lane.b32.xlu0 %v5476, 94
    %v5787 = vpop.permute.xlu0 %5786
    %5788 = vrot.lane.b32.xlu0 %v5477, 94
    %v5789 = vpop.permute.xlu0 %5788
    %5790 = vrot.lane.b32.xlu0 %v5478, 94
    %v5791 = vpop.permute.xlu0 %5790
    %5792 = vrot.lane.b32.xlu0 %v5479, 94
    %v5793 = vpop.permute.xlu0 %5792
    %5794 = vrot.lane.b32.xlu0 %v5480, 94
    %v5795 = vpop.permute.xlu0 %5794
    %5796 = vrot.lane.b32.xlu0 %v5481, 94
    %v5797 = vpop.permute.xlu0 %5796
    %v5798 = vsel %vm1561, %v5775, %v5777
    %v5799 = vsel %vm1561, %v5777, %v5779
    %v5800 = vsel %vm1561, %v5781, %v5783
    %v5801 = vsel %vm1561, %v5783, %v5785
    %v5802 = vsel %vm1561, %v5787, %v5789
    %v5803 = vsel %vm1561, %v5789, %v5791
    %v5804 = vsel %vm1561, %v5793, %v5795
    %v5805 = vsel %vm1561, %v5795, %v5797
    %5807 = vset.pattern.permute.xlu0 0
    %5808 = vperm.xlu0 %5807, %v5358
    %v5809 = vpop.permute.xlu0 %5808
    %5812 = vset.pattern.permute.xlu0 0
    %5813 = vperm.xlu0 %5812, %v5359
    %v5814 = vpop.permute.xlu0 %5813
    %5817 = vset.pattern.permute.xlu0 0
    %5818 = vperm.xlu0 %5817, %v5360
    %v5819 = vpop.permute.xlu0 %5818
    %5822 = vset.pattern.permute.xlu0 0
    %5823 = vperm.xlu0 %5822, %v5361
    %v5824 = vpop.permute.xlu0 %5823
    %5838 = vrot.lane.b32.xlu0 %v5410, 121
    %v5839 = vpop.permute.xlu0 %5838
    %5840 = vrot.lane.b32.xlu0 %v5411, 121
    %v5841 = vpop.permute.xlu0 %5840
    %5842 = vrot.lane.b32.xlu0 %v5412, 121
    %v5843 = vpop.permute.xlu0 %5842
    %5844 = vrot.lane.b32.xlu0 %v5413, 121
    %v5845 = vpop.permute.xlu0 %5844
    %5846 = vrot.lane.b32.xlu0 %v5414, 121
    %v5847 = vpop.permute.xlu0 %5846
    %5848 = vrot.lane.b32.xlu0 %v5415, 121
    %v5849 = vpop.permute.xlu0 %5848
    %5850 = vrot.lane.b32.xlu0 %v5416, 121
    %v5851 = vpop.permute.xlu0 %5850
    %5852 = vrot.lane.b32.xlu0 %v5417, 121
    %v5853 = vpop.permute.xlu0 %5852
    %5854 = vrot.lane.b32.xlu0 %v5418, 121
    %v5855 = vpop.permute.xlu0 %5854
    %5856 = vrot.lane.b32.xlu0 %v5419, 121
    %v5857 = vpop.permute.xlu0 %5856
    %5858 = vrot.lane.b32.xlu0 %v5420, 121
    %v5859 = vpop.permute.xlu0 %5858
    %5860 = vrot.lane.b32.xlu0 %v5421, 121
    %v5861 = vpop.permute.xlu0 %5860
    %5862 = vrot.lane.b32.xlu0 %v5514, 121
    %v5863 = vpop.permute.xlu0 %5862
    %5864 = vrot.lane.b32.xlu0 %v5515, 121
    %v5865 = vpop.permute.xlu0 %5864
    %5866 = vrot.lane.b32.xlu0 %v5495, 121
    %v5867 = vpop.permute.xlu0 %5866
    %5868 = vrot.lane.b32.xlu0 %v5516, 121
    %v5869 = vpop.permute.xlu0 %5868
    %5870 = vrot.lane.b32.xlu0 %v5517, 121
    %v5871 = vpop.permute.xlu0 %5870
    %5872 = vrot.lane.b32.xlu0 %v5501, 121
    %v5873 = vpop.permute.xlu0 %5872
    %5874 = vrot.lane.b32.xlu0 %v5518, 121
    %v5875 = vpop.permute.xlu0 %5874
    %5876 = vrot.lane.b32.xlu0 %v5519, 121
    %v5877 = vpop.permute.xlu0 %5876
    %5878 = vrot.lane.b32.xlu0 %v5507, 121
    %v5879 = vpop.permute.xlu0 %5878
    %5880 = vrot.lane.b32.xlu0 %v5520, 121
    %v5881 = vpop.permute.xlu0 %5880
    %5882 = vrot.lane.b32.xlu0 %v5521, 121
    %v5883 = vpop.permute.xlu0 %5882
    %5884 = vrot.lane.b32.xlu0 %v5513, 121
    %v5885 = vpop.permute.xlu0 %5884
    %5886 = vrot.lane.b32.xlu0 %v5558, 121
    %v5887 = vpop.permute.xlu0 %5886
    %5888 = vrot.lane.b32.xlu0 %v5559, 121
    %v5889 = vpop.permute.xlu0 %5888
    %5890 = vrot.lane.b32.xlu0 %v5539, 121
    %v5891 = vpop.permute.xlu0 %5890
    %5892 = vrot.lane.b32.xlu0 %v5560, 121
    %v5893 = vpop.permute.xlu0 %5892
    %5894 = vrot.lane.b32.xlu0 %v5561, 121
    %v5895 = vpop.permute.xlu0 %5894
    %5896 = vrot.lane.b32.xlu0 %v5545, 121
    %v5897 = vpop.permute.xlu0 %5896
    %5898 = vrot.lane.b32.xlu0 %v5562, 121
    %v5899 = vpop.permute.xlu0 %5898
    %5900 = vrot.lane.b32.xlu0 %v5563, 121
    %v5901 = vpop.permute.xlu0 %5900
    %5902 = vrot.lane.b32.xlu0 %v5551, 121
    %v5903 = vpop.permute.xlu0 %5902
    %5904 = vrot.lane.b32.xlu0 %v5564, 121
    %v5905 = vpop.permute.xlu0 %5904
    %5906 = vrot.lane.b32.xlu0 %v5565, 121
    %v5907 = vpop.permute.xlu0 %5906
    %5908 = vrot.lane.b32.xlu0 %v5557, 121
    %v5909 = vpop.permute.xlu0 %5908
    %5910 = vrot.lane.b32.xlu0 %v5602, 121
    %v5911 = vpop.permute.xlu0 %5910
    %5912 = vrot.lane.b32.xlu0 %v5603, 121
    %v5913 = vpop.permute.xlu0 %5912
    %5914 = vrot.lane.b32.xlu0 %v5583, 121
    %v5915 = vpop.permute.xlu0 %5914
    %5916 = vrot.lane.b32.xlu0 %v5604, 121
    %v5917 = vpop.permute.xlu0 %5916
    %5918 = vrot.lane.b32.xlu0 %v5605, 121
    %v5919 = vpop.permute.xlu0 %5918
    %5920 = vrot.lane.b32.xlu0 %v5589, 121
    %v5921 = vpop.permute.xlu0 %5920
    %5922 = vrot.lane.b32.xlu0 %v5606, 121
    %v5923 = vpop.permute.xlu0 %5922
    %5924 = vrot.lane.b32.xlu0 %v5607, 121
    %v5925 = vpop.permute.xlu0 %5924
    %5926 = vrot.lane.b32.xlu0 %v5595, 121
    %v5927 = vpop.permute.xlu0 %5926
    %5928 = vrot.lane.b32.xlu0 %v5608, 121
    %v5929 = vpop.permute.xlu0 %5928
    %5930 = vrot.lane.b32.xlu0 %v5609, 121
    %v5931 = vpop.permute.xlu0 %5930
    %5932 = vrot.lane.b32.xlu0 %v5601, 121
    %v5933 = vpop.permute.xlu0 %5932
    %5934 = vrot.lane.b32.xlu0 %v5634, 121
    %v5935 = vpop.permute.xlu0 %5934
    %5936 = vrot.lane.b32.xlu0 %v5635, 121
    %v5937 = vpop.permute.xlu0 %5936
    %5938 = vrot.lane.b32.xlu0 %v5615, 121
    %v5939 = vpop.permute.xlu0 %5938
    %5940 = vrot.lane.b32.xlu0 %v5636, 121
    %v5941 = vpop.permute.xlu0 %5940
    %5942 = vrot.lane.b32.xlu0 %v5637, 121
    %v5943 = vpop.permute.xlu0 %5942
    %5944 = vrot.lane.b32.xlu0 %v5621, 121
    %v5945 = vpop.permute.xlu0 %5944
    %5946 = vrot.lane.b32.xlu0 %v5638, 121
    %v5947 = vpop.permute.xlu0 %5946
    %5948 = vrot.lane.b32.xlu0 %v5639, 121
    %v5949 = vpop.permute.xlu0 %5948
    %5950 = vrot.lane.b32.xlu0 %v5627, 121
    %v5951 = vpop.permute.xlu0 %5950
    %5952 = vrot.lane.b32.xlu0 %v5640, 121
    %v5953 = vpop.permute.xlu0 %5952
    %5954 = vrot.lane.b32.xlu0 %v5641, 121
    %v5955 = vpop.permute.xlu0 %5954
    %5956 = vrot.lane.b32.xlu0 %v5633, 121
    %v5957 = vpop.permute.xlu0 %5956
    %5958 = vrot.lane.b32.xlu0 %v5678, 121
    %v5959 = vpop.permute.xlu0 %5958
    %5960 = vrot.lane.b32.xlu0 %v5679, 121
    %v5961 = vpop.permute.xlu0 %5960
    %5962 = vrot.lane.b32.xlu0 %v5659, 121
    %v5963 = vpop.permute.xlu0 %5962
    %5964 = vrot.lane.b32.xlu0 %v5680, 121
    %v5965 = vpop.permute.xlu0 %5964
    %5966 = vrot.lane.b32.xlu0 %v5681, 121
    %v5967 = vpop.permute.xlu0 %5966
    %5968 = vrot.lane.b32.xlu0 %v5665, 121
    %v5969 = vpop.permute.xlu0 %5968
    %5970 = vrot.lane.b32.xlu0 %v5682, 121
    %v5971 = vpop.permute.xlu0 %5970
    %5972 = vrot.lane.b32.xlu0 %v5683, 121
    %v5973 = vpop.permute.xlu0 %5972
    %5974 = vrot.lane.b32.xlu0 %v5671, 121
    %v5975 = vpop.permute.xlu0 %5974
    %5976 = vrot.lane.b32.xlu0 %v5684, 121
    %v5977 = vpop.permute.xlu0 %5976
    %5978 = vrot.lane.b32.xlu0 %v5685, 121
    %v5979 = vpop.permute.xlu0 %5978
    %5980 = vrot.lane.b32.xlu0 %v5677, 121
    %v5981 = vpop.permute.xlu0 %5980
    %5982 = vrot.lane.b32.xlu0 %v5722, 121
    %v5983 = vpop.permute.xlu0 %5982
    %5984 = vrot.lane.b32.xlu0 %v5723, 121
    %v5985 = vpop.permute.xlu0 %5984
    %5986 = vrot.lane.b32.xlu0 %v5703, 121
    %v5987 = vpop.permute.xlu0 %5986
    %5988 = vrot.lane.b32.xlu0 %v5724, 121
    %v5989 = vpop.permute.xlu0 %5988
    %5990 = vrot.lane.b32.xlu0 %v5725, 121
    %v5991 = vpop.permute.xlu0 %5990
    %5992 = vrot.lane.b32.xlu0 %v5709, 121
    %v5993 = vpop.permute.xlu0 %5992
    %5994 = vrot.lane.b32.xlu0 %v5726, 121
    %v5995 = vpop.permute.xlu0 %5994
    %5996 = vrot.lane.b32.xlu0 %v5727, 121
    %v5997 = vpop.permute.xlu0 %5996
    %5998 = vrot.lane.b32.xlu0 %v5715, 121
    %v5999 = vpop.permute.xlu0 %5998
    %6000 = vrot.lane.b32.xlu0 %v5728, 121
    %v6001 = vpop.permute.xlu0 %6000
    %6002 = vrot.lane.b32.xlu0 %v5729, 121
    %v6003 = vpop.permute.xlu0 %6002
    %6004 = vrot.lane.b32.xlu0 %v5721, 121
    %v6005 = vpop.permute.xlu0 %6004
    %6006 = vrot.lane.b32.xlu0 %v5754, 121
    %v6007 = vpop.permute.xlu0 %6006
    %6008 = vrot.lane.b32.xlu0 %v5755, 121
    %v6009 = vpop.permute.xlu0 %6008
    %6010 = vrot.lane.b32.xlu0 %v5735, 121
    %v6011 = vpop.permute.xlu0 %6010
    %6012 = vrot.lane.b32.xlu0 %v5756, 121
    %v6013 = vpop.permute.xlu0 %6012
    %6014 = vrot.lane.b32.xlu0 %v5757, 121
    %v6015 = vpop.permute.xlu0 %6014
    %6016 = vrot.lane.b32.xlu0 %v5741, 121
    %v6017 = vpop.permute.xlu0 %6016
    %6018 = vrot.lane.b32.xlu0 %v5758, 121
    %v6019 = vpop.permute.xlu0 %6018
    %6020 = vrot.lane.b32.xlu0 %v5759, 121
    %v6021 = vpop.permute.xlu0 %6020
    %6022 = vrot.lane.b32.xlu0 %v5747, 121
    %v6023 = vpop.permute.xlu0 %6022
    %6024 = vrot.lane.b32.xlu0 %v5760, 121
    %v6025 = vpop.permute.xlu0 %6024
    %6026 = vrot.lane.b32.xlu0 %v5761, 121
    %v6027 = vpop.permute.xlu0 %6026
    %6028 = vrot.lane.b32.xlu0 %v5753, 121
    %v6029 = vpop.permute.xlu0 %6028
    %6030 = vrot.lane.b32.xlu0 %v5798, 121
    %v6031 = vpop.permute.xlu0 %6030
    %6032 = vrot.lane.b32.xlu0 %v5799, 121
    %v6033 = vpop.permute.xlu0 %6032
    %6034 = vrot.lane.b32.xlu0 %v5779, 121
    %v6035 = vpop.permute.xlu0 %6034
    %6036 = vrot.lane.b32.xlu0 %v5800, 121
    %v6037 = vpop.permute.xlu0 %6036
    %6038 = vrot.lane.b32.xlu0 %v5801, 121
    %v6039 = vpop.permute.xlu0 %6038
    %6040 = vrot.lane.b32.xlu0 %v5785, 121
    %v6041 = vpop.permute.xlu0 %6040
    %6042 = vrot.lane.b32.xlu0 %v5802, 121
    %v6043 = vpop.permute.xlu0 %6042
    %6044 = vrot.lane.b32.xlu0 %v5803, 121
    %v6045 = vpop.permute.xlu0 %6044
    %6046 = vrot.lane.b32.xlu0 %v5791, 121
    %v6047 = vpop.permute.xlu0 %6046
    %6048 = vrot.lane.b32.xlu0 %v5804, 121
    %v6049 = vpop.permute.xlu0 %6048
    %6050 = vrot.lane.b32.xlu0 %v5805, 121
    %v6051 = vpop.permute.xlu0 %6050
    %6052 = vrot.lane.b32.xlu0 %v5797, 121
    %v6053 = vpop.permute.xlu0 %6052
    %v6054 = vsel %vm1626, %v5839, %v5841
    %v6055 = vsel %vm1626, %v5841, %v5843
    %v6056 = vsel %vm1626, %v5845, %v5847
    %v6057 = vsel %vm1626, %v5847, %v5849
    %v6058 = vsel %vm1626, %v5851, %v5853
    %v6059 = vsel %vm1626, %v5853, %v5855
    %v6060 = vsel %vm1626, %v5857, %v5859
    %v6061 = vsel %vm1626, %v5859, %v5861
    %v6062 = vsel %vm1626, %v5863, %v5865
    %v6063 = vsel %vm1626, %v5865, %v5867
    %v6064 = vsel %vm1626, %v5869, %v5871
    %v6065 = vsel %vm1626, %v5871, %v5873
    %v6066 = vsel %vm1626, %v5875, %v5877
    %v6067 = vsel %vm1626, %v5877, %v5879
    %v6068 = vsel %vm1626, %v5881, %v5883
    %v6069 = vsel %vm1626, %v5883, %v5885
    %v6070 = vsel %vm1626, %v5887, %v5889
    %v6071 = vsel %vm1626, %v5889, %v5891
    %v6072 = vsel %vm1626, %v5893, %v5895
    %v6073 = vsel %vm1626, %v5895, %v5897
    %v6074 = vsel %vm1626, %v5899, %v5901
    %v6075 = vsel %vm1626, %v5901, %v5903
    %v6076 = vsel %vm1626, %v5905, %v5907
    %v6077 = vsel %vm1626, %v5907, %v5909
    %v6078 = vsel %vm1626, %v5911, %v5913
    %v6079 = vsel %vm1626, %v5913, %v5915
    %v6080 = vsel %vm1626, %v5917, %v5919
    %v6081 = vsel %vm1626, %v5919, %v5921
    %v6082 = vsel %vm1626, %v5923, %v5925
    %v6083 = vsel %vm1626, %v5925, %v5927
    %v6084 = vsel %vm1626, %v5929, %v5931
    %v6085 = vsel %vm1626, %v5931, %v5933
    %v6086 = vsel %vm1626, %v5935, %v5937
    %v6087 = vsel %vm1626, %v5937, %v5939
    %v6088 = vsel %vm1626, %v5941, %v5943
    %v6089 = vsel %vm1626, %v5943, %v5945
    %v6090 = vsel %vm1626, %v5947, %v5949
    %v6091 = vsel %vm1626, %v5949, %v5951
    %v6092 = vsel %vm1626, %v5953, %v5955
    %v6093 = vsel %vm1626, %v5955, %v5957
    %v6094 = vsel %vm1626, %v5959, %v5961
    %v6095 = vsel %vm1626, %v5961, %v5963
    %v6096 = vsel %vm1626, %v5965, %v5967
    %v6097 = vsel %vm1626, %v5967, %v5969
    %v6098 = vsel %vm1626, %v5971, %v5973
    %v6099 = vsel %vm1626, %v5973, %v5975
    %v6100 = vsel %vm1626, %v5977, %v5979
    %v6101 = vsel %vm1626, %v5979, %v5981
    %v6102 = vsel %vm1626, %v5983, %v5985
    %v6103 = vsel %vm1626, %v5985, %v5987
    %v6104 = vsel %vm1626, %v5989, %v5991
    %v6105 = vsel %vm1626, %v5991, %v5993
    %v6106 = vsel %vm1626, %v5995, %v5997
    %v6107 = vsel %vm1626, %v5997, %v5999
    %v6108 = vsel %vm1626, %v6001, %v6003
    %v6109 = vsel %vm1626, %v6003, %v6005
    %v6110 = vsel %vm1626, %v6007, %v6009
    %v6111 = vsel %vm1626, %v6009, %v6011
    %v6112 = vsel %vm1626, %v6013, %v6015
    %v6113 = vsel %vm1626, %v6015, %v6017
    %v6114 = vsel %vm1626, %v6019, %v6021
    %v6115 = vsel %vm1626, %v6021, %v6023
    %v6116 = vsel %vm1626, %v6025, %v6027
    %v6117 = vsel %vm1626, %v6027, %v6029
    %v6118 = vsel %vm1626, %v6031, %v6033
    %v6119 = vsel %vm1626, %v6033, %v6035
    %v6120 = vsel %vm1626, %v6037, %v6039
    %v6121 = vsel %vm1626, %v6039, %v6041
    %v6122 = vsel %vm1626, %v6043, %v6045
    %v6123 = vsel %vm1626, %v6045, %v6047
    %v6124 = vsel %vm1626, %v6049, %v6051
    %v6125 = vsel %vm1626, %v6051, %v6053
    %v6199 = vsel %vm3162, %v5347, 0
    %v6202 = vsel %vm3162, %v5350, 0
    %v6205 = vsel %vm3162, %v5353, 0
    %v6208 = vsel %vm3162, %v5356, 0
    %v6210 = vand.u32 %v6055, 4294901760
    %6211 = vmatprep.subr.mxu0 %v6210
    %v6212 = vand.u32 %v6054, 4294901760
    %6213 = vmatpush1.msra.mxu0 %v6212
    %v6214 = vand.u32 %v6057, 4294901760
    %6215 = vmatprep.subr.mxu0 %v6214
    %v6216 = vand.u32 %v6056, 4294901760
    %6217 = vmatpush1.msra.mxu0 %v6216
    %v6218 = vand.u32 %v6059, 4294901760
    %6219 = vmatprep.subr.mxu0 %v6218
    %v6220 = vand.u32 %v6058, 4294901760
    %6221 = vmatpush1.msra.mxu0 %v6220
    %v6222 = vand.u32 %v6061, 4294901760
    %6223 = vmatprep.subr.mxu0 %v6222
    %v6224 = vand.u32 %v6060, 4294901760
    %6225 = vmatpush1.msra.mxu0 %v6224
    %v6226 = vand.u32 %v6063, 4294901760
    %6227 = vmatprep.subr.mxu0 %v6226
    %v6228 = vand.u32 %v6062, 4294901760
    %6229 = vmatpush1.msra.mxu0 %v6228
    %v6230 = vand.u32 %v6065, 4294901760
    %6231 = vmatprep.subr.mxu0 %v6230
    %v6232 = vand.u32 %v6064, 4294901760
    %6233 = vmatpush1.msra.mxu0 %v6232
    %v6234 = vand.u32 %v6067, 4294901760
    %6235 = vmatprep.subr.mxu0 %v6234
    %v6236 = vand.u32 %v6066, 4294901760
    %6237 = vmatpush1.msra.mxu0 %v6236
    %v6238 = vand.u32 %v6069, 4294901760
    %6239 = vmatprep.subr.mxu0 %v6238
    %v6240 = vand.u32 %v6068, 4294901760
    %6241 = vmatpush1.msra.mxu0 %v6240
    %v6242 = vand.u32 %v6071, 4294901760
    %6243 = vmatprep.subr.mxu0 %v6242
    %v6244 = vand.u32 %v6070, 4294901760
    %6245 = vmatpush1.msra.mxu0 %v6244
    %v6246 = vand.u32 %v6073, 4294901760
    %6247 = vmatprep.subr.mxu0 %v6246
    %v6248 = vand.u32 %v6072, 4294901760
    %6249 = vmatpush1.msra.mxu0 %v6248
    %v6250 = vand.u32 %v6075, 4294901760
    %6251 = vmatprep.subr.mxu0 %v6250
    %v6252 = vand.u32 %v6074, 4294901760
    %6253 = vmatpush1.msra.mxu0 %v6252
    %v6254 = vand.u32 %v6077, 4294901760
    %6255 = vmatprep.subr.mxu0 %v6254
    %v6256 = vand.u32 %v6076, 4294901760
    %6257 = vmatpush1.msra.mxu0 %v6256
    %v6258 = vand.u32 %v6079, 4294901760
    %6259 = vmatprep.subr.mxu0 %v6258
    %v6260 = vand.u32 %v6078, 4294901760
    %6261 = vmatpush1.msra.mxu0 %v6260
    %v6262 = vand.u32 %v6081, 4294901760
    %6263 = vmatprep.subr.mxu0 %v6262
    %v6264 = vand.u32 %v6080, 4294901760
    %6265 = vmatpush1.msra.mxu0 %v6264
    %v6266 = vand.u32 %v6083, 4294901760
    %6267 = vmatprep.subr.mxu0 %v6266
    %v6268 = vand.u32 %v6082, 4294901760
    %6269 = vmatpush1.msra.mxu0 %v6268
    %v6270 = vand.u32 %v6085, 4294901760
    %6271 = vmatprep.subr.mxu0 %v6270
    %v6272 = vand.u32 %v6084, 4294901760
    %6273 = vmatpush1.msra.mxu0 %v6272
    %v6274 = vand.u32 %v6087, 4294901760
    %6275 = vmatprep.subr.mxu0 %v6274
    %v6276 = vand.u32 %v6086, 4294901760
    %6277 = vmatpush1.msra.mxu0 %v6276
    %v6278 = vand.u32 %v6089, 4294901760
    %6279 = vmatprep.subr.mxu0 %v6278
    %v6280 = vand.u32 %v6088, 4294901760
    %6281 = vmatpush1.msra.mxu0 %v6280
    %v6282 = vand.u32 %v6091, 4294901760
    %6283 = vmatprep.subr.mxu0 %v6282
    %v6284 = vand.u32 %v6090, 4294901760
    %6285 = vmatpush1.msra.mxu0 %v6284
    %v6286 = vand.u32 %v6093, 4294901760
    %6287 = vmatprep.subr.mxu0 %v6286
    %v6288 = vand.u32 %v6092, 4294901760
    %6289 = vmatpush1.msra.mxu0 %v6288
    %v6290 = vand.u32 %v6095, 4294901760
    %6291 = vmatprep.subr.mxu0 %v6290
    %v6292 = vand.u32 %v6094, 4294901760
    %6293 = vmatpush1.msra.mxu0 %v6292
    %v6294 = vand.u32 %v6097, 4294901760
    %6295 = vmatprep.subr.mxu0 %v6294
    %v6296 = vand.u32 %v6096, 4294901760
    %6297 = vmatpush1.msra.mxu0 %v6296
    %v6298 = vand.u32 %v6099, 4294901760
    %6299 = vmatprep.subr.mxu0 %v6298
    %v6300 = vand.u32 %v6098, 4294901760
    %6301 = vmatpush1.msra.mxu0 %v6300
    %v6302 = vand.u32 %v6101, 4294901760
    %6303 = vmatprep.subr.mxu0 %v6302
    %v6304 = vand.u32 %v6100, 4294901760
    %6305 = vmatpush1.msra.mxu0 %v6304
    %v6306 = vand.u32 %v6103, 4294901760
    %6307 = vmatprep.subr.mxu0 %v6306
    %v6308 = vand.u32 %v6102, 4294901760
    %6309 = vmatpush1.msra.mxu0 %v6308
    %v6310 = vand.u32 %v6105, 4294901760
    %6311 = vmatprep.subr.mxu0 %v6310
    %v6312 = vand.u32 %v6104, 4294901760
    %6313 = vmatpush1.msra.mxu0 %v6312
    %v6314 = vand.u32 %v6107, 4294901760
    %6315 = vmatprep.subr.mxu0 %v6314
    %v6316 = vand.u32 %v6106, 4294901760
    %6317 = vmatpush1.msra.mxu0 %v6316
    %v6318 = vand.u32 %v6109, 4294901760
    %6319 = vmatprep.subr.mxu0 %v6318
    %v6320 = vand.u32 %v6108, 4294901760
    %6321 = vmatpush1.msra.mxu0 %v6320
    %v6322 = vand.u32 %v6111, 4294901760
    %6323 = vmatprep.subr.mxu0 %v6322
    %v6324 = vand.u32 %v6110, 4294901760
    %6325 = vmatpush1.msra.mxu0 %v6324
    %v6326 = vand.u32 %v6113, 4294901760
    %6327 = vmatprep.subr.mxu0 %v6326
    %v6328 = vand.u32 %v6112, 4294901760
    %6329 = vmatpush1.msra.mxu0 %v6328
    %v6330 = vand.u32 %v6115, 4294901760
    %6331 = vmatprep.subr.mxu0 %v6330
    %v6332 = vand.u32 %v6114, 4294901760
    %6333 = vmatpush1.msra.mxu0 %v6332
    %v6334 = vand.u32 %v6117, 4294901760
    %6335 = vmatprep.subr.mxu0 %v6334
    %v6336 = vand.u32 %v6116, 4294901760
    %6337 = vmatpush1.msra.mxu0 %v6336
    %v6338 = vand.u32 %v5346, 4294901760
    %v6339 = vsub.f32 %v5346, %v6338
    %v6340 = vand.u32 %v6339, 4294901760
    %v6341 = vsub.f32 %v6339, %v6340
    %v6342 = vand.u32 %v6341, 4294901760
    %6343 = vmatprep.mubr.f32.mxu0 %v6342
    %v6344 = vand.u32 %v5345, 4294901760
    %v6345 = vsub.f32 %v5345, %v6344
    %v6346 = vand.u32 %v6345, 4294901760
    %v6347 = vsub.f32 %v6345, %v6346
    %v6348 = vand.u32 %v6347, 4294901760
    %6349 = vmatmul.mubr.f32.gmra.mrb[0].mxu0 %v6348
    %v6350 = vpop.f32.mrb[0].mxu0
    %v6351 = vadd.f32 %v5809, %v6350
    %v6352 = vpop.f32.mrb[0].mxu0
    %v6353 = vadd.f32 %v5809, %v6352
    %v6354 = vand.u32 %v5349, 4294901760
    %v6355 = vsub.f32 %v5349, %v6354
    %v6356 = vand.u32 %v6355, 4294901760
    %v6357 = vsub.f32 %v6355, %v6356
    %v6358 = vand.u32 %v6357, 4294901760
    %6359 = vmatprep.mubr.f32.mxu0 %v6358
    %v6360 = vand.u32 %v5348, 4294901760
    %v6361 = vsub.f32 %v5348, %v6360
    %v6362 = vand.u32 %v6361, 4294901760
    %v6363 = vsub.f32 %v6361, %v6362
    %v6364 = vand.u32 %v6363, 4294901760
    %6365 = vmatmul.mubr.f32.gmra.mrb[0].mxu0 %v6364
    %v6366 = vpop.f32.mrb[0].mxu0
    %v6367 = vadd.f32 %v5814, %v6366
    %v6368 = vpop.f32.mrb[0].mxu0
    %v6369 = vadd.f32 %v5814, %v6368
    %v6370 = vand.u32 %v5352, 4294901760
    %v6371 = vsub.f32 %v5352, %v6370
    %v6372 = vand.u32 %v6371, 4294901760
    %v6373 = vsub.f32 %v6371, %v6372
    %v6374 = vand.u32 %v6373, 4294901760
    %6375 = vmatprep.mubr.f32.mxu0 %v6374
    %v6376 = vand.u32 %v5351, 4294901760
    %v6377 = vsub.f32 %v5351, %v6376
    %v6378 = vand.u32 %v6377, 4294901760
    %v6379 = vsub.f32 %v6377, %v6378
    %v6380 = vand.u32 %v6379, 4294901760
    %6381 = vmatmul.mubr.f32.gmra.mrb[0].mxu0 %v6380
    %v6382 = vpop.f32.mrb[0].mxu0
    %v6383 = vadd.f32 %v5819, %v6382
    %v6384 = vpop.f32.mrb[0].mxu0
    %v6385 = vadd.f32 %v5819, %v6384
    %v6386 = vand.u32 %v5355, 4294901760
    %v6387 = vsub.f32 %v5355, %v6386
    %v6388 = vand.u32 %v6387, 4294901760
    %v6389 = vsub.f32 %v6387, %v6388
    %v6390 = vand.u32 %v6389, 4294901760
    %6391 = vmatprep.mubr.f32.mxu0 %v6390
    %v6392 = vand.u32 %v5354, 4294901760
    %v6393 = vsub.f32 %v5354, %v6392
    %v6394 = vand.u32 %v6393, 4294901760
    %v6395 = vsub.f32 %v6393, %v6394
    %v6396 = vand.u32 %v6395, 4294901760
    %6397 = vmatmul.mubr.f32.gmra.mrb[0].mxu0 %v6396
    %v6398 = vpop.f32.mrb[0].mxu0
    %v6399 = vadd.f32 %v5824, %v6398
    %v6400 = vpop.f32.mrb[0].mxu0
    %v6401 = vadd.f32 %v5824, %v6400
    %6402 = vdwg.mxu0
    %v6403 = vand.u32 %v6055, 4294901760
    %v6404 = vsub.f32 %v6055, %v6403
    %v6405 = vand.u32 %v6404, 4294901760
    %v6406 = vsub.f32 %v6404, %v6405
    %v6407 = vand.u32 %v6406, 4294901760
    %6408 = vmatprep.subr.mxu0 %v6407
    %v6409 = vand.u32 %v6054, 4294901760
    %v6410 = vsub.f32 %v6054, %v6409
    %v6411 = vand.u32 %v6410, 4294901760
    %v6412 = vsub.f32 %v6410, %v6411
    %v6413 = vand.u32 %v6412, 4294901760
    %6414 = vmatpush1.msra.mxu0 %v6413
    %v6415 = vand.u32 %v6057, 4294901760
    %v6416 = vsub.f32 %v6057, %v6415
    %v6417 = vand.u32 %v6416, 4294901760
    %v6418 = vsub.f32 %v6416, %v6417
    %v6419 = vand.u32 %v6418, 4294901760
    %6420 = vmatprep.subr.mxu0 %v6419
    %v6421 = vand.u32 %v6056, 4294901760
    %v6422 = vsub.f32 %v6056, %v6421
    %v6423 = vand.u32 %v6422, 4294901760
    %v6424 = vsub.f32 %v6422, %v6423
    %v6425 = vand.u32 %v6424, 4294901760
    %6426 = vmatpush1.msra.mxu0 %v6425
    %v6427 = vand.u32 %v6059, 4294901760
    %v6428 = vsub.f32 %v6059, %v6427
    %v6429 = vand.u32 %v6428, 4294901760
    %v6430 = vsub.f32 %v6428, %v6429
    %v6431 = vand.u32 %v6430, 4294901760
    %6432 = vmatprep.subr.mxu0 %v6431
    %v6433 = vand.u32 %v6058, 4294901760
    %v6434 = vsub.f32 %v6058, %v6433
    %v6435 = vand.u32 %v6434, 4294901760
    %v6436 = vsub.f32 %v6434, %v6435
    %v6437 = vand.u32 %v6436, 4294901760
    %6438 = vmatpush1.msra.mxu0 %v6437
    %v6439 = vand.u32 %v6061, 4294901760
    %v6440 = vsub.f32 %v6061, %v6439
    %v6441 = vand.u32 %v6440, 4294901760
    %v6442 = vsub.f32 %v6440, %v6441
    %v6443 = vand.u32 %v6442, 4294901760
    %6444 = vmatprep.subr.mxu0 %v6443
    %v6445 = vand.u32 %v6060, 4294901760
    %v6446 = vsub.f32 %v6060, %v6445
    %v6447 = vand.u32 %v6446, 4294901760
    %v6448 = vsub.f32 %v6446, %v6447
    %v6449 = vand.u32 %v6448, 4294901760
    %6450 = vmatpush1.msra.mxu0 %v6449
    %v6451 = vand.u32 %v6063, 4294901760
    %v6452 = vsub.f32 %v6063, %v6451
    %v6453 = vand.u32 %v6452, 4294901760
    %v6454 = vsub.f32 %v6452, %v6453
    %v6455 = vand.u32 %v6454, 4294901760
    %6456 = vmatprep.subr.mxu0 %v6455
    %v6457 = vand.u32 %v6062, 4294901760
    %v6458 = vsub.f32 %v6062, %v6457
    %v6459 = vand.u32 %v6458, 4294901760
    %v6460 = vsub.f32 %v6458, %v6459
    %v6461 = vand.u32 %v6460, 4294901760
    %6462 = vmatpush1.msra.mxu0 %v6461
    %v6463 = vand.u32 %v6065, 4294901760
    %v6464 = vsub.f32 %v6065, %v6463
    %v6465 = vand.u32 %v6464, 4294901760
    %v6466 = vsub.f32 %v6464, %v6465
    %v6467 = vand.u32 %v6466, 4294901760
    %6468 = vmatprep.subr.mxu0 %v6467
    %v6469 = vand.u32 %v6064, 4294901760
    %v6470 = vsub.f32 %v6064, %v6469
    %v6471 = vand.u32 %v6470, 4294901760
    %v6472 = vsub.f32 %v6470, %v6471
    %v6473 = vand.u32 %v6472, 4294901760
    %6474 = vmatpush1.msra.mxu0 %v6473
    %v6475 = vand.u32 %v6067, 4294901760
    %v6476 = vsub.f32 %v6067, %v6475
    %v6477 = vand.u32 %v6476, 4294901760
    %v6478 = vsub.f32 %v6476, %v6477
    %v6479 = vand.u32 %v6478, 4294901760
    %6480 = vmatprep.subr.mxu0 %v6479
    %v6481 = vand.u32 %v6066, 4294901760
    %v6482 = vsub.f32 %v6066, %v6481
    %v6483 = vand.u32 %v6482, 4294901760
    %v6484 = vsub.f32 %v6482, %v6483
    %v6485 = vand.u32 %v6484, 4294901760
    %6486 = vmatpush1.msra.mxu0 %v6485
    %v6487 = vand.u32 %v6069, 4294901760
    %v6488 = vsub.f32 %v6069, %v6487
    %v6489 = vand.u32 %v6488, 4294901760
    %v6490 = vsub.f32 %v6488, %v6489
    %v6491 = vand.u32 %v6490, 4294901760
    %6492 = vmatprep.subr.mxu0 %v6491
    %v6493 = vand.u32 %v6068, 4294901760
    %v6494 = vsub.f32 %v6068, %v6493
    %v6495 = vand.u32 %v6494, 4294901760
    %v6496 = vsub.f32 %v6494, %v6495
    %v6497 = vand.u32 %v6496, 4294901760
    %6498 = vmatpush1.msra.mxu0 %v6497
    %v6499 = vand.u32 %v6071, 4294901760
    %v6500 = vsub.f32 %v6071, %v6499
    %v6501 = vand.u32 %v6500, 4294901760
    %v6502 = vsub.f32 %v6500, %v6501
    %v6503 = vand.u32 %v6502, 4294901760
    %6504 = vmatprep.subr.mxu0 %v6503
    %v6505 = vand.u32 %v6070, 4294901760
    %v6506 = vsub.f32 %v6070, %v6505
    %v6507 = vand.u32 %v6506, 4294901760
    %v6508 = vsub.f32 %v6506, %v6507
    %v6509 = vand.u32 %v6508, 4294901760
    %6510 = vmatpush1.msra.mxu0 %v6509
    %v6511 = vand.u32 %v6073, 4294901760
    %v6512 = vsub.f32 %v6073, %v6511
    %v6513 = vand.u32 %v6512, 4294901760
    %v6514 = vsub.f32 %v6512, %v6513
    %v6515 = vand.u32 %v6514, 4294901760
    %6516 = vmatprep.subr.mxu0 %v6515
    %v6517 = vand.u32 %v6072, 4294901760
    %v6518 = vsub.f32 %v6072, %v6517
    %v6519 = vand.u32 %v6518, 4294901760
    %v6520 = vsub.f32 %v6518, %v6519
    %v6521 = vand.u32 %v6520, 4294901760
    %6522 = vmatpush1.msra.mxu0 %v6521
    %v6523 = vand.u32 %v6075, 4294901760
    %v6524 = vsub.f32 %v6075, %v6523
    %v6525 = vand.u32 %v6524, 4294901760
    %v6526 = vsub.f32 %v6524, %v6525
    %v6527 = vand.u32 %v6526, 4294901760
    %6528 = vmatprep.subr.mxu0 %v6527
    %v6529 = vand.u32 %v6074, 4294901760
    %v6530 = vsub.f32 %v6074, %v6529
    %v6531 = vand.u32 %v6530, 4294901760
    %v6532 = vsub.f32 %v6530, %v6531
    %v6533 = vand.u32 %v6532, 4294901760
    %6534 = vmatpush1.msra.mxu0 %v6533
    %v6535 = vand.u32 %v6077, 4294901760
    %v6536 = vsub.f32 %v6077, %v6535
    %v6537 = vand.u32 %v6536, 4294901760
    %v6538 = vsub.f32 %v6536, %v6537
    %v6539 = vand.u32 %v6538, 4294901760
    %6540 = vmatprep.subr.mxu0 %v6539
    %v6541 = vand.u32 %v6076, 4294901760
    %v6542 = vsub.f32 %v6076, %v6541
    %v6543 = vand.u32 %v6542, 4294901760
    %v6544 = vsub.f32 %v6542, %v6543
    %v6545 = vand.u32 %v6544, 4294901760
    %6546 = vmatpush1.msra.mxu0 %v6545
    %v6547 = vand.u32 %v6079, 4294901760
    %v6548 = vsub.f32 %v6079, %v6547
    %v6549 = vand.u32 %v6548, 4294901760
    %v6550 = vsub.f32 %v6548, %v6549
    %v6551 = vand.u32 %v6550, 4294901760
    %6552 = vmatprep.subr.mxu0 %v6551
    %v6553 = vand.u32 %v6078, 4294901760
    %v6554 = vsub.f32 %v6078, %v6553
    %v6555 = vand.u32 %v6554, 4294901760
    %v6556 = vsub.f32 %v6554, %v6555
    %v6557 = vand.u32 %v6556, 4294901760
    %6558 = vmatpush1.msra.mxu0 %v6557
    %v6559 = vand.u32 %v6081, 4294901760
    %v6560 = vsub.f32 %v6081, %v6559
    %v6561 = vand.u32 %v6560, 4294901760
    %v6562 = vsub.f32 %v6560, %v6561
    %v6563 = vand.u32 %v6562, 4294901760
    %6564 = vmatprep.subr.mxu0 %v6563
    %v6565 = vand.u32 %v6080, 4294901760
    %v6566 = vsub.f32 %v6080, %v6565
    %v6567 = vand.u32 %v6566, 4294901760
    %v6568 = vsub.f32 %v6566, %v6567
    %v6569 = vand.u32 %v6568, 4294901760
    %6570 = vmatpush1.msra.mxu0 %v6569
    %v6571 = vand.u32 %v6083, 4294901760
    %v6572 = vsub.f32 %v6083, %v6571
    %v6573 = vand.u32 %v6572, 4294901760
    %v6574 = vsub.f32 %v6572, %v6573
    %v6575 = vand.u32 %v6574, 4294901760
    %6576 = vmatprep.subr.mxu0 %v6575
    %v6577 = vand.u32 %v6082, 4294901760
    %v6578 = vsub.f32 %v6082, %v6577
    %v6579 = vand.u32 %v6578, 4294901760
    %v6580 = vsub.f32 %v6578, %v6579
    %v6581 = vand.u32 %v6580, 4294901760
    %6582 = vmatpush1.msra.mxu0 %v6581
    %v6583 = vand.u32 %v6085, 4294901760
    %v6584 = vsub.f32 %v6085, %v6583
    %v6585 = vand.u32 %v6584, 4294901760
    %v6586 = vsub.f32 %v6584, %v6585
    %v6587 = vand.u32 %v6586, 4294901760
    %6588 = vmatprep.subr.mxu0 %v6587
    %v6589 = vand.u32 %v6084, 4294901760
    %v6590 = vsub.f32 %v6084, %v6589
    %v6591 = vand.u32 %v6590, 4294901760
    %v6592 = vsub.f32 %v6590, %v6591
    %v6593 = vand.u32 %v6592, 4294901760
    %6594 = vmatpush1.msra.mxu0 %v6593
    %v6595 = vand.u32 %v6087, 4294901760
    %v6596 = vsub.f32 %v6087, %v6595
    %v6597 = vand.u32 %v6596, 4294901760
    %v6598 = vsub.f32 %v6596, %v6597
    %v6599 = vand.u32 %v6598, 4294901760
    %6600 = vmatprep.subr.mxu0 %v6599
    %v6601 = vand.u32 %v6086, 4294901760
    %v6602 = vsub.f32 %v6086, %v6601
    %v6603 = vand.u32 %v6602, 4294901760
    %v6604 = vsub.f32 %v6602, %v6603
    %v6605 = vand.u32 %v6604, 4294901760
    %6606 = vmatpush1.msra.mxu0 %v6605
    %v6607 = vand.u32 %v6089, 4294901760
    %v6608 = vsub.f32 %v6089, %v6607
    %v6609 = vand.u32 %v6608, 4294901760
    %v6610 = vsub.f32 %v6608, %v6609
    %v6611 = vand.u32 %v6610, 4294901760
    %6612 = vmatprep.subr.mxu0 %v6611
    %v6613 = vand.u32 %v6088, 4294901760
    %v6614 = vsub.f32 %v6088, %v6613
    %v6615 = vand.u32 %v6614, 4294901760
    %v6616 = vsub.f32 %v6614, %v6615
    %v6617 = vand.u32 %v6616, 4294901760
    %6618 = vmatpush1.msra.mxu0 %v6617
    %v6619 = vand.u32 %v6091, 4294901760
    %v6620 = vsub.f32 %v6091, %v6619
    %v6621 = vand.u32 %v6620, 4294901760
    %v6622 = vsub.f32 %v6620, %v6621
    %v6623 = vand.u32 %v6622, 4294901760
    %6624 = vmatprep.subr.mxu0 %v6623
    %v6625 = vand.u32 %v6090, 4294901760
    %v6626 = vsub.f32 %v6090, %v6625
    %v6627 = vand.u32 %v6626, 4294901760
    %v6628 = vsub.f32 %v6626, %v6627
    %v6629 = vand.u32 %v6628, 4294901760
    %6630 = vmatpush1.msra.mxu0 %v6629
    %v6631 = vand.u32 %v6093, 4294901760
    %v6632 = vsub.f32 %v6093, %v6631
    %v6633 = vand.u32 %v6632, 4294901760
    %v6634 = vsub.f32 %v6632, %v6633
    %v6635 = vand.u32 %v6634, 4294901760
    %6636 = vmatprep.subr.mxu0 %v6635
    %v6637 = vand.u32 %v6092, 4294901760
    %v6638 = vsub.f32 %v6092, %v6637
    %v6639 = vand.u32 %v6638, 4294901760
    %v6640 = vsub.f32 %v6638, %v6639
    %v6641 = vand.u32 %v6640, 4294901760
    %6642 = vmatpush1.msra.mxu0 %v6641
    %v6643 = vand.u32 %v6095, 4294901760
    %v6644 = vsub.f32 %v6095, %v6643
    %v6645 = vand.u32 %v6644, 4294901760
    %v6646 = vsub.f32 %v6644, %v6645
    %v6647 = vand.u32 %v6646, 4294901760
    %6648 = vmatprep.subr.mxu0 %v6647
    %v6649 = vand.u32 %v6094, 4294901760
    %v6650 = vsub.f32 %v6094, %v6649
    %v6651 = vand.u32 %v6650, 4294901760
    %v6652 = vsub.f32 %v6650, %v6651
    %v6653 = vand.u32 %v6652, 4294901760
    %6654 = vmatpush1.msra.mxu0 %v6653
    %v6655 = vand.u32 %v6097, 4294901760
    %v6656 = vsub.f32 %v6097, %v6655
    %v6657 = vand.u32 %v6656, 4294901760
    %v6658 = vsub.f32 %v6656, %v6657
    %v6659 = vand.u32 %v6658, 4294901760
    %6660 = vmatprep.subr.mxu0 %v6659
    %v6661 = vand.u32 %v6096, 4294901760
    %v6662 = vsub.f32 %v6096, %v6661
    %v6663 = vand.u32 %v6662, 4294901760
    %v6664 = vsub.f32 %v6662, %v6663
    %v6665 = vand.u32 %v6664, 4294901760
    %6666 = vmatpush1.msra.mxu0 %v6665
    %v6667 = vand.u32 %v6099, 4294901760
    %v6668 = vsub.f32 %v6099, %v6667
    %v6669 = vand.u32 %v6668, 4294901760
    %v6670 = vsub.f32 %v6668, %v6669
    %v6671 = vand.u32 %v6670, 4294901760
    %6672 = vmatprep.subr.mxu0 %v6671
    %v6673 = vand.u32 %v6098, 4294901760
    %v6674 = vsub.f32 %v6098, %v6673
    %v6675 = vand.u32 %v6674, 4294901760
    %v6676 = vsub.f32 %v6674, %v6675
    %v6677 = vand.u32 %v6676, 4294901760
    %6678 = vmatpush1.msra.mxu0 %v6677
    %v6679 = vand.u32 %v6101, 4294901760
    %v6680 = vsub.f32 %v6101, %v6679
    %v6681 = vand.u32 %v6680, 4294901760
    %v6682 = vsub.f32 %v6680, %v6681
    %v6683 = vand.u32 %v6682, 4294901760
    %6684 = vmatprep.subr.mxu0 %v6683
    %v6685 = vand.u32 %v6100, 4294901760
    %v6686 = vsub.f32 %v6100, %v6685
    %v6687 = vand.u32 %v6686, 4294901760
    %v6688 = vsub.f32 %v6686, %v6687
    %v6689 = vand.u32 %v6688, 4294901760
    %6690 = vmatpush1.msra.mxu0 %v6689
    %v6691 = vand.u32 %v6103, 4294901760
    %v6692 = vsub.f32 %v6103, %v6691
    %v6693 = vand.u32 %v6692, 4294901760
    %v6694 = vsub.f32 %v6692, %v6693
    %v6695 = vand.u32 %v6694, 4294901760
    %6696 = vmatprep.subr.mxu0 %v6695
    %v6697 = vand.u32 %v6102, 4294901760
    %v6698 = vsub.f32 %v6102, %v6697
    %v6699 = vand.u32 %v6698, 4294901760
    %v6700 = vsub.f32 %v6698, %v6699
    %v6701 = vand.u32 %v6700, 4294901760
    %6702 = vmatpush1.msra.mxu0 %v6701
    %v6703 = vand.u32 %v6105, 4294901760
    %v6704 = vsub.f32 %v6105, %v6703
    %v6705 = vand.u32 %v6704, 4294901760
    %v6706 = vsub.f32 %v6704, %v6705
    %v6707 = vand.u32 %v6706, 4294901760
    %6708 = vmatprep.subr.mxu0 %v6707
    %v6709 = vand.u32 %v6104, 4294901760
    %v6710 = vsub.f32 %v6104, %v6709
    %v6711 = vand.u32 %v6710, 4294901760
    %v6712 = vsub.f32 %v6710, %v6711
    %v6713 = vand.u32 %v6712, 4294901760
    %6714 = vmatpush1.msra.mxu0 %v6713
    %v6715 = vand.u32 %v6107, 4294901760
    %v6716 = vsub.f32 %v6107, %v6715
    %v6717 = vand.u32 %v6716, 4294901760
    %v6718 = vsub.f32 %v6716, %v6717
    %v6719 = vand.u32 %v6718, 4294901760
    %6720 = vmatprep.subr.mxu0 %v6719
    %v6721 = vand.u32 %v6106, 4294901760
    %v6722 = vsub.f32 %v6106, %v6721
    %v6723 = vand.u32 %v6722, 4294901760
    %v6724 = vsub.f32 %v6722, %v6723
    %v6725 = vand.u32 %v6724, 4294901760
    %6726 = vmatpush1.msra.mxu0 %v6725
    %v6727 = vand.u32 %v6109, 4294901760
    %v6728 = vsub.f32 %v6109, %v6727
    %v6729 = vand.u32 %v6728, 4294901760
    %v6730 = vsub.f32 %v6728, %v6729
    %v6731 = vand.u32 %v6730, 4294901760
    %6732 = vmatprep.subr.mxu0 %v6731
    %v6733 = vand.u32 %v6108, 4294901760
    %v6734 = vsub.f32 %v6108, %v6733
    %v6735 = vand.u32 %v6734, 4294901760
    %v6736 = vsub.f32 %v6734, %v6735
    %v6737 = vand.u32 %v6736, 4294901760
    %6738 = vmatpush1.msra.mxu0 %v6737
    %v6739 = vand.u32 %v6111, 4294901760
    %v6740 = vsub.f32 %v6111, %v6739
    %v6741 = vand.u32 %v6740, 4294901760
    %v6742 = vsub.f32 %v6740, %v6741
    %v6743 = vand.u32 %v6742, 4294901760
    %6744 = vmatprep.subr.mxu0 %v6743
    %v6745 = vand.u32 %v6110, 4294901760
    %v6746 = vsub.f32 %v6110, %v6745
    %v6747 = vand.u32 %v6746, 4294901760
    %v6748 = vsub.f32 %v6746, %v6747
    %v6749 = vand.u32 %v6748, 4294901760
    %6750 = vmatpush1.msra.mxu0 %v6749
    %v6751 = vand.u32 %v6113, 4294901760
    %v6752 = vsub.f32 %v6113, %v6751
    %v6753 = vand.u32 %v6752, 4294901760
    %v6754 = vsub.f32 %v6752, %v6753
    %v6755 = vand.u32 %v6754, 4294901760
    %6756 = vmatprep.subr.mxu0 %v6755
    %v6757 = vand.u32 %v6112, 4294901760
    %v6758 = vsub.f32 %v6112, %v6757
    %v6759 = vand.u32 %v6758, 4294901760
    %v6760 = vsub.f32 %v6758, %v6759
    %v6761 = vand.u32 %v6760, 4294901760
    %6762 = vmatpush1.msra.mxu0 %v6761
    %v6763 = vand.u32 %v6115, 4294901760
    %v6764 = vsub.f32 %v6115, %v6763
    %v6765 = vand.u32 %v6764, 4294901760
    %v6766 = vsub.f32 %v6764, %v6765
    %v6767 = vand.u32 %v6766, 4294901760
    %6768 = vmatprep.subr.mxu0 %v6767
    %v6769 = vand.u32 %v6114, 4294901760
    %v6770 = vsub.f32 %v6114, %v6769
    %v6771 = vand.u32 %v6770, 4294901760
    %v6772 = vsub.f32 %v6770, %v6771
    %v6773 = vand.u32 %v6772, 4294901760
    %6774 = vmatpush1.msra.mxu0 %v6773
    %v6775 = vand.u32 %v6117, 4294901760
    %v6776 = vsub.f32 %v6117, %v6775
    %v6777 = vand.u32 %v6776, 4294901760
    %v6778 = vsub.f32 %v6776, %v6777
    %v6779 = vand.u32 %v6778, 4294901760
    %6780 = vmatprep.subr.mxu0 %v6779
    %v6781 = vand.u32 %v6116, 4294901760
    %v6782 = vsub.f32 %v6116, %v6781
    %v6783 = vand.u32 %v6782, 4294901760
    %v6784 = vsub.f32 %v6782, %v6783
    %v6785 = vand.u32 %v6784, 4294901760
    %6786 = vmatpush1.msra.mxu0 %v6785
    %v6787 = vand.u32 %v5346, 4294901760
    %6788 = vmatprep.mubr.f32.mxu0 %v6787
    %v6789 = vand.u32 %v5345, 4294901760
    %6790 = vmatmul.mubr.f32.gmra.mrb[0].mxu0 %v6789
    %v6791 = vpop.f32.mrb[0].mxu0
    %v6792 = vadd.f32 %v6351, %v6791
    %v6793 = vpop.f32.mrb[0].mxu0
    %v6794 = vadd.f32 %v6353, %v6793
    %v6795 = vand.u32 %v5349, 4294901760
    %6796 = vmatprep.mubr.f32.mxu0 %v6795
    %v6797 = vand.u32 %v5348, 4294901760
    %6798 = vmatmul.mubr.f32.gmra.mrb[0].mxu0 %v6797
    %v6799 = vpop.f32.mrb[0].mxu0
    %v6800 = vadd.f32 %v6367, %v6799
    %v6801 = vpop.f32.mrb[0].mxu0
    %v6802 = vadd.f32 %v6369, %v6801
    %v6803 = vand.u32 %v5352, 4294901760
    %6804 = vmatprep.mubr.f32.mxu0 %v6803
    %v6805 = vand.u32 %v5351, 4294901760
    %6806 = vmatmul.mubr.f32.gmra.mrb[0].mxu0 %v6805
    %v6807 = vpop.f32.mrb[0].mxu0
    %v6808 = vadd.f32 %v6383, %v6807
    %v6809 = vpop.f32.mrb[0].mxu0
    %v6810 = vadd.f32 %v6385, %v6809
    %v6811 = vand.u32 %v5355, 4294901760
    %6812 = vmatprep.mubr.f32.mxu0 %v6811
    %v6813 = vand.u32 %v5354, 4294901760
    %6814 = vmatmul.mubr.f32.gmra.mrb[0].mxu0 %v6813
    %v6815 = vpop.f32.mrb[0].mxu0
    %v6816 = vadd.f32 %v6399, %v6815
    %v6817 = vpop.f32.mrb[0].mxu0
    %v6818 = vadd.f32 %v6401, %v6817
    %6819 = vdwg.mxu0
    %v6820 = vand.u32 %v6055, 4294901760
    %v6821 = vsub.f32 %v6055, %v6820
    %6822 = vmatprep.subr.mxu0 %v6821
    %v6823 = vand.u32 %v6054, 4294901760
    %v6824 = vsub.f32 %v6054, %v6823
    %6825 = vmatpush1.msra.mxu0 %v6824
    %v6826 = vand.u32 %v6057, 4294901760
    %v6827 = vsub.f32 %v6057, %v6826
    %6828 = vmatprep.subr.mxu0 %v6827
    %v6829 = vand.u32 %v6056, 4294901760
    %v6830 = vsub.f32 %v6056, %v6829
    %6831 = vmatpush1.msra.mxu0 %v6830
    %v6832 = vand.u32 %v6059, 4294901760
    %v6833 = vsub.f32 %v6059, %v6832
    %6834 = vmatprep.subr.mxu0 %v6833
    %v6835 = vand.u32 %v6058, 4294901760
    %v6836 = vsub.f32 %v6058, %v6835
    %6837 = vmatpush1.msra.mxu0 %v6836
    %v6838 = vand.u32 %v6061, 4294901760
    %v6839 = vsub.f32 %v6061, %v6838
    %6840 = vmatprep.subr.mxu0 %v6839
    %v6841 = vand.u32 %v6060, 4294901760
    %v6842 = vsub.f32 %v6060, %v6841
    %6843 = vmatpush1.msra.mxu0 %v6842
    %v6844 = vand.u32 %v6063, 4294901760
    %v6845 = vsub.f32 %v6063, %v6844
    %6846 = vmatprep.subr.mxu0 %v6845
    %v6847 = vand.u32 %v6062, 4294901760
    %v6848 = vsub.f32 %v6062, %v6847
    %6849 = vmatpush1.msra.mxu0 %v6848
    %v6850 = vand.u32 %v6065, 4294901760
    %v6851 = vsub.f32 %v6065, %v6850
    %6852 = vmatprep.subr.mxu0 %v6851
    %v6853 = vand.u32 %v6064, 4294901760
    %v6854 = vsub.f32 %v6064, %v6853
    %6855 = vmatpush1.msra.mxu0 %v6854
    %v6856 = vand.u32 %v6067, 4294901760
    %v6857 = vsub.f32 %v6067, %v6856
    %6858 = vmatprep.subr.mxu0 %v6857
    %v6859 = vand.u32 %v6066, 4294901760
    %v6860 = vsub.f32 %v6066, %v6859
    %6861 = vmatpush1.msra.mxu0 %v6860
    %v6862 = vand.u32 %v6069, 4294901760
    %v6863 = vsub.f32 %v6069, %v6862
    %6864 = vmatprep.subr.mxu0 %v6863
    %v6865 = vand.u32 %v6068, 4294901760
    %v6866 = vsub.f32 %v6068, %v6865
    %6867 = vmatpush1.msra.mxu0 %v6866
    %v6868 = vand.u32 %v6071, 4294901760
    %v6869 = vsub.f32 %v6071, %v6868
    %6870 = vmatprep.subr.mxu0 %v6869
    %v6871 = vand.u32 %v6070, 4294901760
    %v6872 = vsub.f32 %v6070, %v6871
    %6873 = vmatpush1.msra.mxu0 %v6872
    %v6874 = vand.u32 %v6073, 4294901760
    %v6875 = vsub.f32 %v6073, %v6874
    %6876 = vmatprep.subr.mxu0 %v6875
    %v6877 = vand.u32 %v6072, 4294901760
    %v6878 = vsub.f32 %v6072, %v6877
    %6879 = vmatpush1.msra.mxu0 %v6878
    %v6880 = vand.u32 %v6075, 4294901760
    %v6881 = vsub.f32 %v6075, %v6880
    %6882 = vmatprep.subr.mxu0 %v6881
    %v6883 = vand.u32 %v6074, 4294901760
    %v6884 = vsub.f32 %v6074, %v6883
    %6885 = vmatpush1.msra.mxu0 %v6884
    %v6886 = vand.u32 %v6077, 4294901760
    %v6887 = vsub.f32 %v6077, %v6886
    %6888 = vmatprep.subr.mxu0 %v6887
    %v6889 = vand.u32 %v6076, 4294901760
    %v6890 = vsub.f32 %v6076, %v6889
    %6891 = vmatpush1.msra.mxu0 %v6890
    %v6892 = vand.u32 %v6079, 4294901760
    %v6893 = vsub.f32 %v6079, %v6892
    %6894 = vmatprep.subr.mxu0 %v6893
    %v6895 = vand.u32 %v6078, 4294901760
    %v6896 = vsub.f32 %v6078, %v6895
    %6897 = vmatpush1.msra.mxu0 %v6896
    %v6898 = vand.u32 %v6081, 4294901760
    %v6899 = vsub.f32 %v6081, %v6898
    %6900 = vmatprep.subr.mxu0 %v6899
    %v6901 = vand.u32 %v6080, 4294901760
    %v6902 = vsub.f32 %v6080, %v6901
    %6903 = vmatpush1.msra.mxu0 %v6902
    %v6904 = vand.u32 %v6083, 4294901760
    %v6905 = vsub.f32 %v6083, %v6904
    %6906 = vmatprep.subr.mxu0 %v6905
    %v6907 = vand.u32 %v6082, 4294901760
    %v6908 = vsub.f32 %v6082, %v6907
    %6909 = vmatpush1.msra.mxu0 %v6908
    %v6910 = vand.u32 %v6085, 4294901760
    %v6911 = vsub.f32 %v6085, %v6910
    %6912 = vmatprep.subr.mxu0 %v6911
    %v6913 = vand.u32 %v6084, 4294901760
    %v6914 = vsub.f32 %v6084, %v6913
    %6915 = vmatpush1.msra.mxu0 %v6914
    %v6916 = vand.u32 %v6087, 4294901760
    %v6917 = vsub.f32 %v6087, %v6916
    %6918 = vmatprep.subr.mxu0 %v6917
    %v6919 = vand.u32 %v6086, 4294901760
    %v6920 = vsub.f32 %v6086, %v6919
    %6921 = vmatpush1.msra.mxu0 %v6920
    %v6922 = vand.u32 %v6089, 4294901760
    %v6923 = vsub.f32 %v6089, %v6922
    %6924 = vmatprep.subr.mxu0 %v6923
    %v6925 = vand.u32 %v6088, 4294901760
    %v6926 = vsub.f32 %v6088, %v6925
    %6927 = vmatpush1.msra.mxu0 %v6926
    %v6928 = vand.u32 %v6091, 4294901760
    %v6929 = vsub.f32 %v6091, %v6928
    %6930 = vmatprep.subr.mxu0 %v6929
    %v6931 = vand.u32 %v6090, 4294901760
    %v6932 = vsub.f32 %v6090, %v6931
    %6933 = vmatpush1.msra.mxu0 %v6932
    %v6934 = vand.u32 %v6093, 4294901760
    %v6935 = vsub.f32 %v6093, %v6934
    %6936 = vmatprep.subr.mxu0 %v6935
    %v6937 = vand.u32 %v6092, 4294901760
    %v6938 = vsub.f32 %v6092, %v6937
    %6939 = vmatpush1.msra.mxu0 %v6938
    %v6940 = vand.u32 %v6095, 4294901760
    %v6941 = vsub.f32 %v6095, %v6940
    %6942 = vmatprep.subr.mxu0 %v6941
    %v6943 = vand.u32 %v6094, 4294901760
    %v6944 = vsub.f32 %v6094, %v6943
    %6945 = vmatpush1.msra.mxu0 %v6944
    %v6946 = vand.u32 %v6097, 4294901760
    %v6947 = vsub.f32 %v6097, %v6946
    %6948 = vmatprep.subr.mxu0 %v6947
    %v6949 = vand.u32 %v6096, 4294901760
    %v6950 = vsub.f32 %v6096, %v6949
    %6951 = vmatpush1.msra.mxu0 %v6950
    %v6952 = vand.u32 %v6099, 4294901760
    %v6953 = vsub.f32 %v6099, %v6952
    %6954 = vmatprep.subr.mxu0 %v6953
    %v6955 = vand.u32 %v6098, 4294901760
    %v6956 = vsub.f32 %v6098, %v6955
    %6957 = vmatpush1.msra.mxu0 %v6956
    %v6958 = vand.u32 %v6101, 4294901760
    %v6959 = vsub.f32 %v6101, %v6958
    %6960 = vmatprep.subr.mxu0 %v6959
    %v6961 = vand.u32 %v6100, 4294901760
    %v6962 = vsub.f32 %v6100, %v6961
    %6963 = vmatpush1.msra.mxu0 %v6962
    %v6964 = vand.u32 %v6103, 4294901760
    %v6965 = vsub.f32 %v6103, %v6964
    %6966 = vmatprep.subr.mxu0 %v6965
    %v6967 = vand.u32 %v6102, 4294901760
    %v6968 = vsub.f32 %v6102, %v6967
    %6969 = vmatpush1.msra.mxu0 %v6968
    %v6970 = vand.u32 %v6105, 4294901760
    %v6971 = vsub.f32 %v6105, %v6970
    %6972 = vmatprep.subr.mxu0 %v6971
    %v6973 = vand.u32 %v6104, 4294901760
    %v6974 = vsub.f32 %v6104, %v6973
    %6975 = vmatpush1.msra.mxu0 %v6974
    %v6976 = vand.u32 %v6107, 4294901760
    %v6977 = vsub.f32 %v6107, %v6976
    %6978 = vmatprep.subr.mxu0 %v6977
    %v6979 = vand.u32 %v6106, 4294901760
    %v6980 = vsub.f32 %v6106, %v6979
    %6981 = vmatpush1.msra.mxu0 %v6980
    %v6982 = vand.u32 %v6109, 4294901760
    %v6983 = vsub.f32 %v6109, %v6982
    %6984 = vmatprep.subr.mxu0 %v6983
    %v6985 = vand.u32 %v6108, 4294901760
    %v6986 = vsub.f32 %v6108, %v6985
    %6987 = vmatpush1.msra.mxu0 %v6986
    %v6988 = vand.u32 %v6111, 4294901760
    %v6989 = vsub.f32 %v6111, %v6988
    %6990 = vmatprep.subr.mxu0 %v6989
    %v6991 = vand.u32 %v6110, 4294901760
    %v6992 = vsub.f32 %v6110, %v6991
    %6993 = vmatpush1.msra.mxu0 %v6992
    %v6994 = vand.u32 %v6113, 4294901760
    %v6995 = vsub.f32 %v6113, %v6994
    %6996 = vmatprep.subr.mxu0 %v6995
    %v6997 = vand.u32 %v6112, 4294901760
    %v6998 = vsub.f32 %v6112, %v6997
    %6999 = vmatpush1.msra.mxu0 %v6998
    %v7000 = vand.u32 %v6115, 4294901760
    %v7001 = vsub.f32 %v6115, %v7000
    %7002 = vmatprep.subr.mxu0 %v7001
    %v7003 = vand.u32 %v6114, 4294901760
    %v7004 = vsub.f32 %v6114, %v7003
    %7005 = vmatpush1.msra.mxu0 %v7004
    %v7006 = vand.u32 %v6117, 4294901760
    %v7007 = vsub.f32 %v6117, %v7006
    %7008 = vmatprep.subr.mxu0 %v7007
    %v7009 = vand.u32 %v6116, 4294901760
    %v7010 = vsub.f32 %v6116, %v7009
    %7011 = vmatpush1.msra.mxu0 %v7010
    %v7012 = vand.u32 %v5346, 4294901760
    %v7013 = vsub.f32 %v5346, %v7012
    %7014 = vmatprep.mubr.f32.mxu0 %v7013
    %v7015 = vand.u32 %v5345, 4294901760
    %v7016 = vsub.f32 %v5345, %v7015
    %7017 = vmatmul.mubr.f32.gmra.mrb[0].mxu0 %v7016
    %v7018 = vpop.f32.mrb[0].mxu0
    %v7019 = vadd.f32 %v6792, %v7018
    %v7020 = vpop.f32.mrb[0].mxu0
    %v7021 = vadd.f32 %v6794, %v7020
    %v7022 = vand.u32 %v5349, 4294901760
    %v7023 = vsub.f32 %v5349, %v7022
    %7024 = vmatprep.mubr.f32.mxu0 %v7023
    %v7025 = vand.u32 %v5348, 4294901760
    %v7026 = vsub.f32 %v5348, %v7025
    %7027 = vmatmul.mubr.f32.gmra.mrb[0].mxu0 %v7026
    %v7028 = vpop.f32.mrb[0].mxu0
    %v7029 = vadd.f32 %v6800, %v7028
    %v7030 = vpop.f32.mrb[0].mxu0
    %v7031 = vadd.f32 %v6802, %v7030
    %v7032 = vand.u32 %v5352, 4294901760
    %v7033 = vsub.f32 %v5352, %v7032
    %7034 = vmatprep.mubr.f32.mxu0 %v7033
    %v7035 = vand.u32 %v5351, 4294901760
    %v7036 = vsub.f32 %v5351, %v7035
    %7037 = vmatmul.mubr.f32.gmra.mrb[0].mxu0 %v7036
    %v7038 = vpop.f32.mrb[0].mxu0
    %v7039 = vadd.f32 %v6808, %v7038
    %v7040 = vpop.f32.mrb[0].mxu0
    %v7041 = vadd.f32 %v6810, %v7040
    %v7042 = vand.u32 %v5355, 4294901760
    %v7043 = vsub.f32 %v5355, %v7042
    %7044 = vmatprep.mubr.f32.mxu0 %v7043
    %v7045 = vand.u32 %v5354, 4294901760
    %v7046 = vsub.f32 %v5354, %v7045
    %7047 = vmatmul.mubr.f32.gmra.mrb[0].mxu0 %v7046
    %v7048 = vpop.f32.mrb[0].mxu0
    %v7049 = vadd.f32 %v6816, %v7048
    %v7050 = vpop.f32.mrb[0].mxu0
    %v7051 = vadd.f32 %v6818, %v7050
    %7052 = vdwg.mxu0
    %v7053 = vand.u32 %v6055, 4294901760
    %7054 = vmatprep.subr.mxu0 %v7053
    %v7055 = vand.u32 %v6054, 4294901760
    %7056 = vmatpush1.msra.mxu0 %v7055
    %v7057 = vand.u32 %v6057, 4294901760
    %7058 = vmatprep.subr.mxu0 %v7057
    %v7059 = vand.u32 %v6056, 4294901760
    %7060 = vmatpush1.msra.mxu0 %v7059
    %v7061 = vand.u32 %v6059, 4294901760
    %7062 = vmatprep.subr.mxu0 %v7061
    %v7063 = vand.u32 %v6058, 4294901760
    %7064 = vmatpush1.msra.mxu0 %v7063
    %v7065 = vand.u32 %v6061, 4294901760
    %7066 = vmatprep.subr.mxu0 %v7065
    %v7067 = vand.u32 %v6060, 4294901760
    %7068 = vmatpush1.msra.mxu0 %v7067
    %v7069 = vand.u32 %v6063, 4294901760
    %7070 = vmatprep.subr.mxu0 %v7069
    %v7071 = vand.u32 %v6062, 4294901760
    %7072 = vmatpush1.msra.mxu0 %v7071
    %v7073 = vand.u32 %v6065, 4294901760
    %7074 = vmatprep.subr.mxu0 %v7073
    %v7075 = vand.u32 %v6064, 4294901760
    %7076 = vmatpush1.msra.mxu0 %v7075
    %v7077 = vand.u32 %v6067, 4294901760
    %7078 = vmatprep.subr.mxu0 %v7077
    %v7079 = vand.u32 %v6066, 4294901760
    %7080 = vmatpush1.msra.mxu0 %v7079
    %v7081 = vand.u32 %v6069, 4294901760
    %7082 = vmatprep.subr.mxu0 %v7081
    %v7083 = vand.u32 %v6068, 4294901760
    %7084 = vmatpush1.msra.mxu0 %v7083
    %v7085 = vand.u32 %v6071, 4294901760
    %7086 = vmatprep.subr.mxu0 %v7085
    %v7087 = vand.u32 %v6070, 4294901760
    %7088 = vmatpush1.msra.mxu0 %v7087
    %v7089 = vand.u32 %v6073, 4294901760
    %7090 = vmatprep.subr.mxu0 %v7089
    %v7091 = vand.u32 %v6072, 4294901760
    %7092 = vmatpush1.msra.mxu0 %v7091
    %v7093 = vand.u32 %v6075, 4294901760
    %7094 = vmatprep.subr.mxu0 %v7093
    %v7095 = vand.u32 %v6074, 4294901760
    %7096 = vmatpush1.msra.mxu0 %v7095
    %v7097 = vand.u32 %v6077, 4294901760
    %7098 = vmatprep.subr.mxu0 %v7097
    %v7099 = vand.u32 %v6076, 4294901760
    %7100 = vmatpush1.msra.mxu0 %v7099
    %v7101 = vand.u32 %v6079, 4294901760
    %7102 = vmatprep.subr.mxu0 %v7101
    %v7103 = vand.u32 %v6078, 4294901760
    %7104 = vmatpush1.msra.mxu0 %v7103
    %v7105 = vand.u32 %v6081, 4294901760
    %7106 = vmatprep.subr.mxu0 %v7105
    %v7107 = vand.u32 %v6080, 4294901760
    %7108 = vmatpush1.msra.mxu0 %v7107
    %v7109 = vand.u32 %v6083, 4294901760
    %7110 = vmatprep.subr.mxu0 %v7109
    %v7111 = vand.u32 %v6082, 4294901760
    %7112 = vmatpush1.msra.mxu0 %v7111
    %v7113 = vand.u32 %v6085, 4294901760
    %7114 = vmatprep.subr.mxu0 %v7113
    %v7115 = vand.u32 %v6084, 4294901760
    %7116 = vmatpush1.msra.mxu0 %v7115
    %v7117 = vand.u32 %v6087, 4294901760
    %7118 = vmatprep.subr.mxu0 %v7117
    %v7119 = vand.u32 %v6086, 4294901760
    %7120 = vmatpush1.msra.mxu0 %v7119
    %v7121 = vand.u32 %v6089, 4294901760
    %7122 = vmatprep.subr.mxu0 %v7121
    %v7123 = vand.u32 %v6088, 4294901760
    %7124 = vmatpush1.msra.mxu0 %v7123
    %v7125 = vand.u32 %v6091, 4294901760
    %7126 = vmatprep.subr.mxu0 %v7125
    %v7127 = vand.u32 %v6090, 4294901760
    %7128 = vmatpush1.msra.mxu0 %v7127
    %v7129 = vand.u32 %v6093, 4294901760
    %7130 = vmatprep.subr.mxu0 %v7129
    %v7131 = vand.u32 %v6092, 4294901760
    %7132 = vmatpush1.msra.mxu0 %v7131
    %v7133 = vand.u32 %v6095, 4294901760
    %7134 = vmatprep.subr.mxu0 %v7133
    %v7135 = vand.u32 %v6094, 4294901760
    %7136 = vmatpush1.msra.mxu0 %v7135
    %v7137 = vand.u32 %v6097, 4294901760
    %7138 = vmatprep.subr.mxu0 %v7137
    %v7139 = vand.u32 %v6096, 4294901760
    %7140 = vmatpush1.msra.mxu0 %v7139
    %v7141 = vand.u32 %v6099, 4294901760
    %7142 = vmatprep.subr.mxu0 %v7141
    %v7143 = vand.u32 %v6098, 4294901760
    %7144 = vmatpush1.msra.mxu0 %v7143
    %v7145 = vand.u32 %v6101, 4294901760
    %7146 = vmatprep.subr.mxu0 %v7145
    %v7147 = vand.u32 %v6100, 4294901760
    %7148 = vmatpush1.msra.mxu0 %v7147
    %v7149 = vand.u32 %v6103, 4294901760
    %7150 = vmatprep.subr.mxu0 %v7149
    %v7151 = vand.u32 %v6102, 4294901760
    %7152 = vmatpush1.msra.mxu0 %v7151
    %v7153 = vand.u32 %v6105, 4294901760
    %7154 = vmatprep.subr.mxu0 %v7153
    %v7155 = vand.u32 %v6104, 4294901760
    %7156 = vmatpush1.msra.mxu0 %v7155
    %v7157 = vand.u32 %v6107, 4294901760
    %7158 = vmatprep.subr.mxu0 %v7157
    %v7159 = vand.u32 %v6106, 4294901760
    %7160 = vmatpush1.msra.mxu0 %v7159
    %v7161 = vand.u32 %v6109, 4294901760
    %7162 = vmatprep.subr.mxu0 %v7161
    %v7163 = vand.u32 %v6108, 4294901760
    %7164 = vmatpush1.msra.mxu0 %v7163
    %v7165 = vand.u32 %v6111, 4294901760
    %7166 = vmatprep.subr.mxu0 %v7165
    %v7167 = vand.u32 %v6110, 4294901760
    %7168 = vmatpush1.msra.mxu0 %v7167
    %v7169 = vand.u32 %v6113, 4294901760
    %7170 = vmatprep.subr.mxu0 %v7169
    %v7171 = vand.u32 %v6112, 4294901760
    %7172 = vmatpush1.msra.mxu0 %v7171
    %v7173 = vand.u32 %v6115, 4294901760
    %7174 = vmatprep.subr.mxu0 %v7173
    %v7175 = vand.u32 %v6114, 4294901760
    %7176 = vmatpush1.msra.mxu0 %v7175
    %v7177 = vand.u32 %v6117, 4294901760
    %7178 = vmatprep.subr.mxu0 %v7177
    %v7179 = vand.u32 %v6116, 4294901760
    %7180 = vmatpush1.msra.mxu0 %v7179
    %v7181 = vand.u32 %v5346, 4294901760
    %v7182 = vsub.f32 %v5346, %v7181
    %v7183 = vand.u32 %v7182, 4294901760
    %7184 = vmatprep.mubr.f32.mxu0 %v7183
    %v7185 = vand.u32 %v5345, 4294901760
    %v7186 = vsub.f32 %v5345, %v7185
    %v7187 = vand.u32 %v7186, 4294901760
    %7188 = vmatmul.mubr.f32.gmra.mrb[0].mxu0 %v7187
    %v7189 = vpop.f32.mrb[0].mxu0
    %v7190 = vadd.f32 %v7019, %v7189
    %v7191 = vpop.f32.mrb[0].mxu0
    %v7192 = vadd.f32 %v7021, %v7191
    %v7193 = vand.u32 %v5349, 4294901760
    %v7194 = vsub.f32 %v5349, %v7193
    %v7195 = vand.u32 %v7194, 4294901760
    %7196 = vmatprep.mubr.f32.mxu0 %v7195
    %v7197 = vand.u32 %v5348, 4294901760
    %v7198 = vsub.f32 %v5348, %v7197
    %v7199 = vand.u32 %v7198, 4294901760
    %7200 = vmatmul.mubr.f32.gmra.mrb[0].mxu0 %v7199
    %v7201 = vpop.f32.mrb[0].mxu0
    %v7202 = vadd.f32 %v7029, %v7201
    %v7203 = vpop.f32.mrb[0].mxu0
    %v7204 = vadd.f32 %v7031, %v7203
    %v7205 = vand.u32 %v5352, 4294901760
    %v7206 = vsub.f32 %v5352, %v7205
    %v7207 = vand.u32 %v7206, 4294901760
    %7208 = vmatprep.mubr.f32.mxu0 %v7207
    %v7209 = vand.u32 %v5351, 4294901760
    %v7210 = vsub.f32 %v5351, %v7209
    %v7211 = vand.u32 %v7210, 4294901760
    %7212 = vmatmul.mubr.f32.gmra.mrb[0].mxu0 %v7211
    %v7213 = vpop.f32.mrb[0].mxu0
    %v7214 = vadd.f32 %v7039, %v7213
    %v7215 = vpop.f32.mrb[0].mxu0
    %v7216 = vadd.f32 %v7041, %v7215
    %v7217 = vand.u32 %v5355, 4294901760
    %v7218 = vsub.f32 %v5355, %v7217
    %v7219 = vand.u32 %v7218, 4294901760
    %7220 = vmatprep.mubr.f32.mxu0 %v7219
    %v7221 = vand.u32 %v5354, 4294901760
    %v7222 = vsub.f32 %v5354, %v7221
    %v7223 = vand.u32 %v7222, 4294901760
    %7224 = vmatmul.mubr.f32.gmra.mrb[0].mxu0 %v7223
    %v7225 = vpop.f32.mrb[0].mxu0
    %v7226 = vadd.f32 %v7049, %v7225
    %v7227 = vpop.f32.mrb[0].mxu0
    %v7228 = vadd.f32 %v7051, %v7227
    %7229 = vdwg.mxu0
    %v7230 = vand.u32 %v6055, 4294901760
    %v7231 = vsub.f32 %v6055, %v7230
    %v7232 = vand.u32 %v7231, 4294901760
    %7233 = vmatprep.subr.mxu0 %v7232
    %v7234 = vand.u32 %v6054, 4294901760
    %v7235 = vsub.f32 %v6054, %v7234
    %v7236 = vand.u32 %v7235, 4294901760
    %7237 = vmatpush1.msra.mxu0 %v7236
    %v7238 = vand.u32 %v6057, 4294901760
    %v7239 = vsub.f32 %v6057, %v7238
    %v7240 = vand.u32 %v7239, 4294901760
    %7241 = vmatprep.subr.mxu0 %v7240
    %v7242 = vand.u32 %v6056, 4294901760
    %v7243 = vsub.f32 %v6056, %v7242
    %v7244 = vand.u32 %v7243, 4294901760
    %7245 = vmatpush1.msra.mxu0 %v7244
    %v7246 = vand.u32 %v6059, 4294901760
    %v7247 = vsub.f32 %v6059, %v7246
    %v7248 = vand.u32 %v7247, 4294901760
    %7249 = vmatprep.subr.mxu0 %v7248
    %v7250 = vand.u32 %v6058, 4294901760
    %v7251 = vsub.f32 %v6058, %v7250
    %v7252 = vand.u32 %v7251, 4294901760
    %7253 = vmatpush1.msra.mxu0 %v7252
    %v7254 = vand.u32 %v6061, 4294901760
    %v7255 = vsub.f32 %v6061, %v7254
    %v7256 = vand.u32 %v7255, 4294901760
    %7257 = vmatprep.subr.mxu0 %v7256
    %v7258 = vand.u32 %v6060, 4294901760
    %v7259 = vsub.f32 %v6060, %v7258
    %v7260 = vand.u32 %v7259, 4294901760
    %7261 = vmatpush1.msra.mxu0 %v7260
    %v7262 = vand.u32 %v6063, 4294901760
    %v7263 = vsub.f32 %v6063, %v7262
    %v7264 = vand.u32 %v7263, 4294901760
    %7265 = vmatprep.subr.mxu0 %v7264
    %v7266 = vand.u32 %v6062, 4294901760
    %v7267 = vsub.f32 %v6062, %v7266
    %v7268 = vand.u32 %v7267, 4294901760
    %7269 = vmatpush1.msra.mxu0 %v7268
    %v7270 = vand.u32 %v6065, 4294901760
    %v7271 = vsub.f32 %v6065, %v7270
    %v7272 = vand.u32 %v7271, 4294901760
    %7273 = vmatprep.subr.mxu0 %v7272
    %v7274 = vand.u32 %v6064, 4294901760
    %v7275 = vsub.f32 %v6064, %v7274
    %v7276 = vand.u32 %v7275, 4294901760
    %7277 = vmatpush1.msra.mxu0 %v7276
    %v7278 = vand.u32 %v6067, 4294901760
    %v7279 = vsub.f32 %v6067, %v7278
    %v7280 = vand.u32 %v7279, 4294901760
    %7281 = vmatprep.subr.mxu0 %v7280
    %v7282 = vand.u32 %v6066, 4294901760
    %v7283 = vsub.f32 %v6066, %v7282
    %v7284 = vand.u32 %v7283, 4294901760
    %7285 = vmatpush1.msra.mxu0 %v7284
    %v7286 = vand.u32 %v6069, 4294901760
    %v7287 = vsub.f32 %v6069, %v7286
    %v7288 = vand.u32 %v7287, 4294901760
    %7289 = vmatprep.subr.mxu0 %v7288
    %v7290 = vand.u32 %v6068, 4294901760
    %v7291 = vsub.f32 %v6068, %v7290
    %v7292 = vand.u32 %v7291, 4294901760
    %7293 = vmatpush1.msra.mxu0 %v7292
    %v7294 = vand.u32 %v6071, 4294901760
    %v7295 = vsub.f32 %v6071, %v7294
    %v7296 = vand.u32 %v7295, 4294901760
    %7297 = vmatprep.subr.mxu0 %v7296
    %v7298 = vand.u32 %v6070, 4294901760
    %v7299 = vsub.f32 %v6070, %v7298
    %v7300 = vand.u32 %v7299, 4294901760
    %7301 = vmatpush1.msra.mxu0 %v7300
    %v7302 = vand.u32 %v6073, 4294901760
    %v7303 = vsub.f32 %v6073, %v7302
    %v7304 = vand.u32 %v7303, 4294901760
    %7305 = vmatprep.subr.mxu0 %v7304
    %v7306 = vand.u32 %v6072, 4294901760
    %v7307 = vsub.f32 %v6072, %v7306
    %v7308 = vand.u32 %v7307, 4294901760
    %7309 = vmatpush1.msra.mxu0 %v7308
    %v7310 = vand.u32 %v6075, 4294901760
    %v7311 = vsub.f32 %v6075, %v7310
    %v7312 = vand.u32 %v7311, 4294901760
    %7313 = vmatprep.subr.mxu0 %v7312
    %v7314 = vand.u32 %v6074, 4294901760
    %v7315 = vsub.f32 %v6074, %v7314
    %v7316 = vand.u32 %v7315, 4294901760
    %7317 = vmatpush1.msra.mxu0 %v7316
    %v7318 = vand.u32 %v6077, 4294901760
    %v7319 = vsub.f32 %v6077, %v7318
    %v7320 = vand.u32 %v7319, 4294901760
    %7321 = vmatprep.subr.mxu0 %v7320
    %v7322 = vand.u32 %v6076, 4294901760
    %v7323 = vsub.f32 %v6076, %v7322
    %v7324 = vand.u32 %v7323, 4294901760
    %7325 = vmatpush1.msra.mxu0 %v7324
    %v7326 = vand.u32 %v6079, 4294901760
    %v7327 = vsub.f32 %v6079, %v7326
    %v7328 = vand.u32 %v7327, 4294901760
    %7329 = vmatprep.subr.mxu0 %v7328
    %v7330 = vand.u32 %v6078, 4294901760
    %v7331 = vsub.f32 %v6078, %v7330
    %v7332 = vand.u32 %v7331, 4294901760
    %7333 = vmatpush1.msra.mxu0 %v7332
    %v7334 = vand.u32 %v6081, 4294901760
    %v7335 = vsub.f32 %v6081, %v7334
    %v7336 = vand.u32 %v7335, 4294901760
    %7337 = vmatprep.subr.mxu0 %v7336
    %v7338 = vand.u32 %v6080, 4294901760
    %v7339 = vsub.f32 %v6080, %v7338
    %v7340 = vand.u32 %v7339, 4294901760
    %7341 = vmatpush1.msra.mxu0 %v7340
    %v7342 = vand.u32 %v6083, 4294901760
    %v7343 = vsub.f32 %v6083, %v7342
    %v7344 = vand.u32 %v7343, 4294901760
    %7345 = vmatprep.subr.mxu0 %v7344
    %v7346 = vand.u32 %v6082, 4294901760
    %v7347 = vsub.f32 %v6082, %v7346
    %v7348 = vand.u32 %v7347, 4294901760
    %7349 = vmatpush1.msra.mxu0 %v7348
    %v7350 = vand.u32 %v6085, 4294901760
    %v7351 = vsub.f32 %v6085, %v7350
    %v7352 = vand.u32 %v7351, 4294901760
    %7353 = vmatprep.subr.mxu0 %v7352
    %v7354 = vand.u32 %v6084, 4294901760
    %v7355 = vsub.f32 %v6084, %v7354
    %v7356 = vand.u32 %v7355, 4294901760
    %7357 = vmatpush1.msra.mxu0 %v7356
    %v7358 = vand.u32 %v6087, 4294901760
    %v7359 = vsub.f32 %v6087, %v7358
    %v7360 = vand.u32 %v7359, 4294901760
    %7361 = vmatprep.subr.mxu0 %v7360
    %v7362 = vand.u32 %v6086, 4294901760
    %v7363 = vsub.f32 %v6086, %v7362
    %v7364 = vand.u32 %v7363, 4294901760
    %7365 = vmatpush1.msra.mxu0 %v7364
    %v7366 = vand.u32 %v6089, 4294901760
    %v7367 = vsub.f32 %v6089, %v7366
    %v7368 = vand.u32 %v7367, 4294901760
    %7369 = vmatprep.subr.mxu0 %v7368
    %v7370 = vand.u32 %v6088, 4294901760
    %v7371 = vsub.f32 %v6088, %v7370
    %v7372 = vand.u32 %v7371, 4294901760
    %7373 = vmatpush1.msra.mxu0 %v7372
    %v7374 = vand.u32 %v6091, 4294901760
    %v7375 = vsub.f32 %v6091, %v7374
    %v7376 = vand.u32 %v7375, 4294901760
    %7377 = vmatprep.subr.mxu0 %v7376
    %v7378 = vand.u32 %v6090, 4294901760
    %v7379 = vsub.f32 %v6090, %v7378
    %v7380 = vand.u32 %v7379, 4294901760
    %7381 = vmatpush1.msra.mxu0 %v7380
    %v7382 = vand.u32 %v6093, 4294901760
    %v7383 = vsub.f32 %v6093, %v7382
    %v7384 = vand.u32 %v7383, 4294901760
    %7385 = vmatprep.subr.mxu0 %v7384
    %v7386 = vand.u32 %v6092, 4294901760
    %v7387 = vsub.f32 %v6092, %v7386
    %v7388 = vand.u32 %v7387, 4294901760
    %7389 = vmatpush1.msra.mxu0 %v7388
    %v7390 = vand.u32 %v6095, 4294901760
    %v7391 = vsub.f32 %v6095, %v7390
    %v7392 = vand.u32 %v7391, 4294901760
    %7393 = vmatprep.subr.mxu0 %v7392
    %v7394 = vand.u32 %v6094, 4294901760
    %v7395 = vsub.f32 %v6094, %v7394
    %v7396 = vand.u32 %v7395, 4294901760
    %7397 = vmatpush1.msra.mxu0 %v7396
    %v7398 = vand.u32 %v6097, 4294901760
    %v7399 = vsub.f32 %v6097, %v7398
    %v7400 = vand.u32 %v7399, 4294901760
    %7401 = vmatprep.subr.mxu0 %v7400
    %v7402 = vand.u32 %v6096, 4294901760
    %v7403 = vsub.f32 %v6096, %v7402
    %v7404 = vand.u32 %v7403, 4294901760
    %7405 = vmatpush1.msra.mxu0 %v7404
    %v7406 = vand.u32 %v6099, 4294901760
    %v7407 = vsub.f32 %v6099, %v7406
    %v7408 = vand.u32 %v7407, 4294901760
    %7409 = vmatprep.subr.mxu0 %v7408
    %v7410 = vand.u32 %v6098, 4294901760
    %v7411 = vsub.f32 %v6098, %v7410
    %v7412 = vand.u32 %v7411, 4294901760
    %7413 = vmatpush1.msra.mxu0 %v7412
    %v7414 = vand.u32 %v6101, 4294901760
    %v7415 = vsub.f32 %v6101, %v7414
    %v7416 = vand.u32 %v7415, 4294901760
    %7417 = vmatprep.subr.mxu0 %v7416
    %v7418 = vand.u32 %v6100, 4294901760
    %v7419 = vsub.f32 %v6100, %v7418
    %v7420 = vand.u32 %v7419, 4294901760
    %7421 = vmatpush1.msra.mxu0 %v7420
    %v7422 = vand.u32 %v6103, 4294901760
    %v7423 = vsub.f32 %v6103, %v7422
    %v7424 = vand.u32 %v7423, 4294901760
    %7425 = vmatprep.subr.mxu0 %v7424
    %v7426 = vand.u32 %v6102, 4294901760
    %v7427 = vsub.f32 %v6102, %v7426
    %v7428 = vand.u32 %v7427, 4294901760
    %7429 = vmatpush1.msra.mxu0 %v7428
    %v7430 = vand.u32 %v6105, 4294901760
    %v7431 = vsub.f32 %v6105, %v7430
    %v7432 = vand.u32 %v7431, 4294901760
    %7433 = vmatprep.subr.mxu0 %v7432
    %v7434 = vand.u32 %v6104, 4294901760
    %v7435 = vsub.f32 %v6104, %v7434
    %v7436 = vand.u32 %v7435, 4294901760
    %7437 = vmatpush1.msra.mxu0 %v7436
    %v7438 = vand.u32 %v6107, 4294901760
    %v7439 = vsub.f32 %v6107, %v7438
    %v7440 = vand.u32 %v7439, 4294901760
    %7441 = vmatprep.subr.mxu0 %v7440
    %v7442 = vand.u32 %v6106, 4294901760
    %v7443 = vsub.f32 %v6106, %v7442
    %v7444 = vand.u32 %v7443, 4294901760
    %7445 = vmatpush1.msra.mxu0 %v7444
    %v7446 = vand.u32 %v6109, 4294901760
    %v7447 = vsub.f32 %v6109, %v7446
    %v7448 = vand.u32 %v7447, 4294901760
    %7449 = vmatprep.subr.mxu0 %v7448
    %v7450 = vand.u32 %v6108, 4294901760
    %v7451 = vsub.f32 %v6108, %v7450
    %v7452 = vand.u32 %v7451, 4294901760
    %7453 = vmatpush1.msra.mxu0 %v7452
    %v7454 = vand.u32 %v6111, 4294901760
    %v7455 = vsub.f32 %v6111, %v7454
    %v7456 = vand.u32 %v7455, 4294901760
    %7457 = vmatprep.subr.mxu0 %v7456
    %v7458 = vand.u32 %v6110, 4294901760
    %v7459 = vsub.f32 %v6110, %v7458
    %v7460 = vand.u32 %v7459, 4294901760
    %7461 = vmatpush1.msra.mxu0 %v7460
    %v7462 = vand.u32 %v6113, 4294901760
    %v7463 = vsub.f32 %v6113, %v7462
    %v7464 = vand.u32 %v7463, 4294901760
    %7465 = vmatprep.subr.mxu0 %v7464
    %v7466 = vand.u32 %v6112, 4294901760
    %v7467 = vsub.f32 %v6112, %v7466
    %v7468 = vand.u32 %v7467, 4294901760
    %7469 = vmatpush1.msra.mxu0 %v7468
    %v7470 = vand.u32 %v6115, 4294901760
    %v7471 = vsub.f32 %v6115, %v7470
    %v7472 = vand.u32 %v7471, 4294901760
    %7473 = vmatprep.subr.mxu0 %v7472
    %v7474 = vand.u32 %v6114, 4294901760
    %v7475 = vsub.f32 %v6114, %v7474
    %v7476 = vand.u32 %v7475, 4294901760
    %7477 = vmatpush1.msra.mxu0 %v7476
    %v7478 = vand.u32 %v6117, 4294901760
    %v7479 = vsub.f32 %v6117, %v7478
    %v7480 = vand.u32 %v7479, 4294901760
    %7481 = vmatprep.subr.mxu0 %v7480
    %v7482 = vand.u32 %v6116, 4294901760
    %v7483 = vsub.f32 %v6116, %v7482
    %v7484 = vand.u32 %v7483, 4294901760
    %7485 = vmatpush1.msra.mxu0 %v7484
    %v7486 = vand.u32 %v5346, 4294901760
    %7487 = vmatprep.mubr.f32.mxu0 %v7486
    %v7488 = vand.u32 %v5345, 4294901760
    %7489 = vmatmul.mubr.f32.gmra.mrb[0].mxu0 %v7488
    %v7490 = vpop.f32.mrb[0].mxu0
    %v7491 = vadd.f32 %v7190, %v7490
    %v7492 = vpop.f32.mrb[0].mxu0
    %v7493 = vadd.f32 %v7192, %v7492
    %v7494 = vand.u32 %v5349, 4294901760
    %7495 = vmatprep.mubr.f32.mxu0 %v7494
    %v7496 = vand.u32 %v5348, 4294901760
    %7497 = vmatmul.mubr.f32.gmra.mrb[0].mxu0 %v7496
    %v7498 = vpop.f32.mrb[0].mxu0
    %v7499 = vadd.f32 %v7202, %v7498
    %v7500 = vpop.f32.mrb[0].mxu0
    %v7501 = vadd.f32 %v7204, %v7500
    %v7502 = vand.u32 %v5352, 4294901760
    %7503 = vmatprep.mubr.f32.mxu0 %v7502
    %v7504 = vand.u32 %v5351, 4294901760
    %7505 = vmatmul.mubr.f32.gmra.mrb[0].mxu0 %v7504
    %v7506 = vpop.f32.mrb[0].mxu0
    %v7507 = vadd.f32 %v7214, %v7506
    %v7508 = vpop.f32.mrb[0].mxu0
    %v7509 = vadd.f32 %v7216, %v7508
    %v7510 = vand.u32 %v5355, 4294901760
    %7511 = vmatprep.mubr.f32.mxu0 %v7510
    %v7512 = vand.u32 %v5354, 4294901760
    %7513 = vmatmul.mubr.f32.gmra.mrb[0].mxu0 %v7512
    %v7514 = vpop.f32.mrb[0].mxu0
    %v7515 = vadd.f32 %v7226, %v7514
    %v7516 = vpop.f32.mrb[0].mxu0
    %v7517 = vadd.f32 %v7228, %v7516
    %7518 = vdwg.mxu0
    %v7519 = vand.u32 %v6055, 4294901760
    %7520 = vmatprep.subr.mxu0 %v7519
    %v7521 = vand.u32 %v6054, 4294901760
    %7522 = vmatpush1.msra.mxu0 %v7521
    %v7523 = vand.u32 %v6057, 4294901760
    %7524 = vmatprep.subr.mxu0 %v7523
    %v7525 = vand.u32 %v6056, 4294901760
    %7526 = vmatpush1.msra.mxu0 %v7525
    %v7527 = vand.u32 %v6059, 4294901760
    %7528 = vmatprep.subr.mxu0 %v7527
    %v7529 = vand.u32 %v6058, 4294901760
    %7530 = vmatpush1.msra.mxu0 %v7529
    %v7531 = vand.u32 %v6061, 4294901760
    %7532 = vmatprep.subr.mxu0 %v7531
    %v7533 = vand.u32 %v6060, 4294901760
    %7534 = vmatpush1.msra.mxu0 %v7533
    %v7535 = vand.u32 %v6063, 4294901760
    %7536 = vmatprep.subr.mxu0 %v7535
    %v7537 = vand.u32 %v6062, 4294901760
    %7538 = vmatpush1.msra.mxu0 %v7537
    %v7539 = vand.u32 %v6065, 4294901760
    %7540 = vmatprep.subr.mxu0 %v7539
    %v7541 = vand.u32 %v6064, 4294901760
    %7542 = vmatpush1.msra.mxu0 %v7541
    %v7543 = vand.u32 %v6067, 4294901760
    %7544 = vmatprep.subr.mxu0 %v7543
    %v7545 = vand.u32 %v6066, 4294901760
    %7546 = vmatpush1.msra.mxu0 %v7545
    %v7547 = vand.u32 %v6069, 4294901760
    %7548 = vmatprep.subr.mxu0 %v7547
    %v7549 = vand.u32 %v6068, 4294901760
    %7550 = vmatpush1.msra.mxu0 %v7549
    %v7551 = vand.u32 %v6071, 4294901760
    %7552 = vmatprep.subr.mxu0 %v7551
    %v7553 = vand.u32 %v6070, 4294901760
    %7554 = vmatpush1.msra.mxu0 %v7553
    %v7555 = vand.u32 %v6073, 4294901760
    %7556 = vmatprep.subr.mxu0 %v7555
    %v7557 = vand.u32 %v6072, 4294901760
    %7558 = vmatpush1.msra.mxu0 %v7557
    %v7559 = vand.u32 %v6075, 4294901760
    %7560 = vmatprep.subr.mxu0 %v7559
    %v7561 = vand.u32 %v6074, 4294901760
    %7562 = vmatpush1.msra.mxu0 %v7561
    %v7563 = vand.u32 %v6077, 4294901760
    %7564 = vmatprep.subr.mxu0 %v7563
    %v7565 = vand.u32 %v6076, 4294901760
    %7566 = vmatpush1.msra.mxu0 %v7565
    %v7567 = vand.u32 %v6079, 4294901760
    %7568 = vmatprep.subr.mxu0 %v7567
    %v7569 = vand.u32 %v6078, 4294901760
    %7570 = vmatpush1.msra.mxu0 %v7569
    %v7571 = vand.u32 %v6081, 4294901760
    %7572 = vmatprep.subr.mxu0 %v7571
    %v7573 = vand.u32 %v6080, 4294901760
    %7574 = vmatpush1.msra.mxu0 %v7573
    %v7575 = vand.u32 %v6083, 4294901760
    %7576 = vmatprep.subr.mxu0 %v7575
    %v7577 = vand.u32 %v6082, 4294901760
    %7578 = vmatpush1.msra.mxu0 %v7577
    %v7579 = vand.u32 %v6085, 4294901760
    %7580 = vmatprep.subr.mxu0 %v7579
    %v7581 = vand.u32 %v6084, 4294901760
    %7582 = vmatpush1.msra.mxu0 %v7581
    %v7583 = vand.u32 %v6087, 4294901760
    %7584 = vmatprep.subr.mxu0 %v7583
    %v7585 = vand.u32 %v6086, 4294901760
    %7586 = vmatpush1.msra.mxu0 %v7585
    %v7587 = vand.u32 %v6089, 4294901760
    %7588 = vmatprep.subr.mxu0 %v7587
    %v7589 = vand.u32 %v6088, 4294901760
    %7590 = vmatpush1.msra.mxu0 %v7589
    %v7591 = vand.u32 %v6091, 4294901760
    %7592 = vmatprep.subr.mxu0 %v7591
    %v7593 = vand.u32 %v6090, 4294901760
    %7594 = vmatpush1.msra.mxu0 %v7593
    %v7595 = vand.u32 %v6093, 4294901760
    %7596 = vmatprep.subr.mxu0 %v7595
    %v7597 = vand.u32 %v6092, 4294901760
    %7598 = vmatpush1.msra.mxu0 %v7597
    %v7599 = vand.u32 %v6095, 4294901760
    %7600 = vmatprep.subr.mxu0 %v7599
    %v7601 = vand.u32 %v6094, 4294901760
    %7602 = vmatpush1.msra.mxu0 %v7601
    %v7603 = vand.u32 %v6097, 4294901760
    %7604 = vmatprep.subr.mxu0 %v7603
    %v7605 = vand.u32 %v6096, 4294901760
    %7606 = vmatpush1.msra.mxu0 %v7605
    %v7607 = vand.u32 %v6099, 4294901760
    %7608 = vmatprep.subr.mxu0 %v7607
    %v7609 = vand.u32 %v6098, 4294901760
    %7610 = vmatpush1.msra.mxu0 %v7609
    %v7611 = vand.u32 %v6101, 4294901760
    %7612 = vmatprep.subr.mxu0 %v7611
    %v7613 = vand.u32 %v6100, 4294901760
    %7614 = vmatpush1.msra.mxu0 %v7613
    %v7615 = vand.u32 %v6103, 4294901760
    %7616 = vmatprep.subr.mxu0 %v7615
    %v7617 = vand.u32 %v6102, 4294901760
    %7618 = vmatpush1.msra.mxu0 %v7617
    %v7619 = vand.u32 %v6105, 4294901760
    %7620 = vmatprep.subr.mxu0 %v7619
    %v7621 = vand.u32 %v6104, 4294901760
    %7622 = vmatpush1.msra.mxu0 %v7621
    %v7623 = vand.u32 %v6107, 4294901760
    %7624 = vmatprep.subr.mxu0 %v7623
    %v7625 = vand.u32 %v6106, 4294901760
    %7626 = vmatpush1.msra.mxu0 %v7625
    %v7627 = vand.u32 %v6109, 4294901760
    %7628 = vmatprep.subr.mxu0 %v7627
    %v7629 = vand.u32 %v6108, 4294901760
    %7630 = vmatpush1.msra.mxu0 %v7629
    %v7631 = vand.u32 %v6111, 4294901760
    %7632 = vmatprep.subr.mxu0 %v7631
    %v7633 = vand.u32 %v6110, 4294901760
    %7634 = vmatpush1.msra.mxu0 %v7633
    %v7635 = vand.u32 %v6113, 4294901760
    %7636 = vmatprep.subr.mxu0 %v7635
    %v7637 = vand.u32 %v6112, 4294901760
    %7638 = vmatpush1.msra.mxu0 %v7637
    %v7639 = vand.u32 %v6115, 4294901760
    %7640 = vmatprep.subr.mxu0 %v7639
    %v7641 = vand.u32 %v6114, 4294901760
    %7642 = vmatpush1.msra.mxu0 %v7641
    %v7643 = vand.u32 %v6117, 4294901760
    %7644 = vmatprep.subr.mxu0 %v7643
    %v7645 = vand.u32 %v6116, 4294901760
    %7646 = vmatpush1.msra.mxu0 %v7645
    %v7647 = vand.u32 %v5346, 4294901760
    %7648 = vmatprep.mubr.f32.mxu0 %v7647
    %v7649 = vand.u32 %v5345, 4294901760
    %7650 = vmatmul.mubr.f32.gmra.mrb[0].mxu0 %v7649
    %v7651 = vpop.f32.mrb[0].mxu0
    %v7652 = vadd.f32 %v7491, %v7651
    %v7653 = vpop.f32.mrb[0].mxu0
    %v7654 = vadd.f32 %v7493, %v7653
    %v7655 = vand.u32 %v5349, 4294901760
    %7656 = vmatprep.mubr.f32.mxu0 %v7655
    %v7657 = vand.u32 %v5348, 4294901760
    %7658 = vmatmul.mubr.f32.gmra.mrb[0].mxu0 %v7657
    %v7659 = vpop.f32.mrb[0].mxu0
    %v7660 = vadd.f32 %v7499, %v7659
    %v7661 = vpop.f32.mrb[0].mxu0
    %v7662 = vadd.f32 %v7501, %v7661
    %v7663 = vand.u32 %v5352, 4294901760
    %7664 = vmatprep.mubr.f32.mxu0 %v7663
    %v7665 = vand.u32 %v5351, 4294901760
    %7666 = vmatmul.mubr.f32.gmra.mrb[0].mxu0 %v7665
    %v7667 = vpop.f32.mrb[0].mxu0
    %v7668 = vadd.f32 %v7507, %v7667
    %v7669 = vpop.f32.mrb[0].mxu0
    %v7670 = vadd.f32 %v7509, %v7669
    %v7671 = vand.u32 %v5355, 4294901760
    %7672 = vmatprep.mubr.f32.mxu0 %v7671
    %v7673 = vand.u32 %v5354, 4294901760
    %7674 = vmatmul.mubr.f32.gmra.mrb[0].mxu0 %v7673
    %v7675 = vpop.f32.mrb[0].mxu0
    %v7676 = vadd.f32 %v7515, %v7675
    %v7677 = vpop.f32.mrb[0].mxu0
    %v7678 = vadd.f32 %v7517, %v7677
    %7679 = vdwg.mxu0
    %v7680 = vand.u32 %v6119, 4294901760
    %7681 = vmatprep.subr.mxu0 %v7680
    %v7682 = vand.u32 %v6118, 4294901760
    %7683 = vmatpush1.msra.mxu0 %v7682
    %v7684 = vand.u32 %v6121, 4294901760
    %7685 = vmatprep.subr.mxu0 %v7684
    %v7686 = vand.u32 %v6120, 4294901760
    %7687 = vmatpush1.msra.mxu0 %v7686
    %v7688 = vand.u32 %v6123, 4294901760
    %7689 = vmatprep.subr.mxu0 %v7688
    %v7690 = vand.u32 %v6122, 4294901760
    %7691 = vmatpush1.msra.mxu0 %v7690
    %v7692 = vand.u32 %v6125, 4294901760
    %7693 = vmatprep.subr.mxu0 %v7692
    %v7694 = vand.u32 %v6124, 4294901760
    %7695 = vmatpush1.msra.mxu0 %v7694
    %7696 = vmatprep.subr.mxu0 0.0
    %7697 = vmatpush1.msra.mxu0 0.0
    %7698 = vmatprep.subr.mxu0 0.0
    %7699 = vmatpush1.msra.mxu0 0.0
    %7700 = vmatprep.subr.mxu0 0.0
    %7701 = vmatpush1.msra.mxu0 0.0
    %7702 = vmatprep.subr.mxu0 0.0
    %7703 = vmatpush1.msra.mxu0 0.0
    %7704 = vmatprep.subr.mxu0 0.0
    %7705 = vmatpush1.msra.mxu0 0.0
    %7706 = vmatprep.subr.mxu0 0.0
    %7707 = vmatpush1.msra.mxu0 0.0
    %7708 = vmatprep.subr.mxu0 0.0
    %7709 = vmatpush1.msra.mxu0 0.0
    %7710 = vmatprep.subr.mxu0 0.0
    %7711 = vmatpush1.msra.mxu0 0.0
    %7712 = vmatprep.subr.mxu0 0.0
    %7713 = vmatpush1.msra.mxu0 0.0
    %7714 = vmatprep.subr.mxu0 0.0
    %7715 = vmatpush1.msra.mxu0 0.0
    %7716 = vmatprep.subr.mxu0 0.0
    %7717 = vmatpush1.msra.mxu0 0.0
    %7718 = vmatprep.subr.mxu0 0.0
    %7719 = vmatpush1.msra.mxu0 0.0
    %7720 = vmatprep.subr.mxu0 0.0
    %7721 = vmatpush1.msra.mxu0 0.0
    %7722 = vmatprep.subr.mxu0 0.0
    %7723 = vmatpush1.msra.mxu0 0.0
    %7724 = vmatprep.subr.mxu0 0.0
    %7725 = vmatpush1.msra.mxu0 0.0
    %7726 = vmatprep.subr.mxu0 0.0
    %7727 = vmatpush1.msra.mxu0 0.0
    %7728 = vmatprep.subr.mxu0 0.0
    %7729 = vmatpush1.msra.mxu0 0.0
    %7730 = vmatprep.subr.mxu0 0.0
    %7731 = vmatpush1.msra.mxu0 0.0
    %7732 = vmatprep.subr.mxu0 0.0
    %7733 = vmatpush1.msra.mxu0 0.0
    %7734 = vmatprep.subr.mxu0 0.0
    %7735 = vmatpush1.msra.mxu0 0.0
    %7736 = vmatprep.subr.mxu0 0.0
    %7737 = vmatpush1.msra.mxu0 0.0
    %7738 = vmatprep.subr.mxu0 0.0
    %7739 = vmatpush1.msra.mxu0 0.0
    %7740 = vmatprep.subr.mxu0 0.0
    %7741 = vmatpush1.msra.mxu0 0.0
    %7742 = vmatprep.subr.mxu0 0.0
    %7743 = vmatpush1.msra.mxu0 0.0
    %7744 = vmatprep.subr.mxu0 0.0
    %7745 = vmatpush1.msra.mxu0 0.0
    %7746 = vmatprep.subr.mxu0 0.0
    %7747 = vmatpush1.msra.mxu0 0.0
    %7748 = vmatprep.subr.mxu0 0.0
    %7749 = vmatpush1.msra.mxu0 0.0
    %7750 = vmatprep.subr.mxu0 0.0
    %7751 = vmatpush1.msra.mxu0 0.0
    %7752 = vmatprep.mubr.f32.mxu0 0.0
    %v7753 = vand.u32 %v6199, 4294901760
    %v7754 = vsub.f32 %v6199, %v7753
    %v7755 = vand.u32 %v7754, 4294901760
    %v7756 = vsub.f32 %v7754, %v7755
    %v7757 = vand.u32 %v7756, 4294901760
    %7758 = vmatmul.mubr.f32.gmra.mrb[0].mxu0 %v7757
    %v7759 = vpop.f32.mrb[0].mxu0
    %v7760 = vadd.f32 %v7652, %v7759
    %v7761 = vpop.f32.mrb[0].mxu0
    %v7762 = vadd.f32 %v7654, %v7761
    %7763 = vmatprep.mubr.f32.mxu0 0.0
    %v7764 = vand.u32 %v6202, 4294901760
    %v7765 = vsub.f32 %v6202, %v7764
    %v7766 = vand.u32 %v7765, 4294901760
    %v7767 = vsub.f32 %v7765, %v7766
    %v7768 = vand.u32 %v7767, 4294901760
    %7769 = vmatmul.mubr.f32.gmra.mrb[0].mxu0 %v7768
    %v7770 = vpop.f32.mrb[0].mxu0
    %v7771 = vadd.f32 %v7660, %v7770
    %v7772 = vpop.f32.mrb[0].mxu0
    %v7773 = vadd.f32 %v7662, %v7772
    %7774 = vmatprep.mubr.f32.mxu0 0.0
    %v7775 = vand.u32 %v6205, 4294901760
    %v7776 = vsub.f32 %v6205, %v7775
    %v7777 = vand.u32 %v7776, 4294901760
    %v7778 = vsub.f32 %v7776, %v7777
    %v7779 = vand.u32 %v7778, 4294901760
    %7780 = vmatmul.mubr.f32.gmra.mrb[0].mxu0 %v7779
    %v7781 = vpop.f32.mrb[0].mxu0
    %v7782 = vadd.f32 %v7668, %v7781
    %v7783 = vpop.f32.mrb[0].mxu0
    %v7784 = vadd.f32 %v7670, %v7783
    %7785 = vmatprep.mubr.f32.mxu0 0.0
    %v7786 = vand.u32 %v6208, 4294901760
    %v7787 = vsub.f32 %v6208, %v7786
    %v7788 = vand.u32 %v7787, 4294901760
    %v7789 = vsub.f32 %v7787, %v7788
    %v7790 = vand.u32 %v7789, 4294901760
    %7791 = vmatmul.mubr.f32.gmra.mrb[0].mxu0 %v7790
    %v7792 = vpop.f32.mrb[0].mxu0
    %v7793 = vadd.f32 %v7676, %v7792
    %v7794 = vpop.f32.mrb[0].mxu0
    %v7795 = vadd.f32 %v7678, %v7794
    %7796 = vdwg.mxu0
    %v7797 = vand.u32 %v6119, 4294901760
    %v7798 = vsub.f32 %v6119, %v7797
    %v7799 = vand.u32 %v7798, 4294901760
    %v7800 = vsub.f32 %v7798, %v7799
    %v7801 = vand.u32 %v7800, 4294901760
    %7802 = vmatprep.subr.mxu0 %v7801
    %v7803 = vand.u32 %v6118, 4294901760
    %v7804 = vsub.f32 %v6118, %v7803
    %v7805 = vand.u32 %v7804, 4294901760
    %v7806 = vsub.f32 %v7804, %v7805
    %v7807 = vand.u32 %v7806, 4294901760
    %7808 = vmatpush1.msra.mxu0 %v7807
    %v7809 = vand.u32 %v6121, 4294901760
    %v7810 = vsub.f32 %v6121, %v7809
    %v7811 = vand.u32 %v7810, 4294901760
    %v7812 = vsub.f32 %v7810, %v7811
    %v7813 = vand.u32 %v7812, 4294901760
    %7814 = vmatprep.subr.mxu0 %v7813
    %v7815 = vand.u32 %v6120, 4294901760
    %v7816 = vsub.f32 %v6120, %v7815
    %v7817 = vand.u32 %v7816, 4294901760
    %v7818 = vsub.f32 %v7816, %v7817
    %v7819 = vand.u32 %v7818, 4294901760
    %7820 = vmatpush1.msra.mxu0 %v7819
    %v7821 = vand.u32 %v6123, 4294901760
    %v7822 = vsub.f32 %v6123, %v7821
    %v7823 = vand.u32 %v7822, 4294901760
    %v7824 = vsub.f32 %v7822, %v7823
    %v7825 = vand.u32 %v7824, 4294901760
    %7826 = vmatprep.subr.mxu0 %v7825
    %v7827 = vand.u32 %v6122, 4294901760
    %v7828 = vsub.f32 %v6122, %v7827
    %v7829 = vand.u32 %v7828, 4294901760
    %v7830 = vsub.f32 %v7828, %v7829
    %v7831 = vand.u32 %v7830, 4294901760
    %7832 = vmatpush1.msra.mxu0 %v7831
    %v7833 = vand.u32 %v6125, 4294901760
    %v7834 = vsub.f32 %v6125, %v7833
    %v7835 = vand.u32 %v7834, 4294901760
    %v7836 = vsub.f32 %v7834, %v7835
    %v7837 = vand.u32 %v7836, 4294901760
    %7838 = vmatprep.subr.mxu0 %v7837
    %v7839 = vand.u32 %v6124, 4294901760
    %v7840 = vsub.f32 %v6124, %v7839
    %v7841 = vand.u32 %v7840, 4294901760
    %v7842 = vsub.f32 %v7840, %v7841
    %v7843 = vand.u32 %v7842, 4294901760
    %7844 = vmatpush1.msra.mxu0 %v7843
    %7845 = vmatprep.subr.mxu0 0.0
    %7846 = vmatpush1.msra.mxu0 0.0
    %7847 = vmatprep.subr.mxu0 0.0
    %7848 = vmatpush1.msra.mxu0 0.0
    %7849 = vmatprep.subr.mxu0 0.0
    %7850 = vmatpush1.msra.mxu0 0.0
    %7851 = vmatprep.subr.mxu0 0.0
    %7852 = vmatpush1.msra.mxu0 0.0
    %7853 = vmatprep.subr.mxu0 0.0
    %7854 = vmatpush1.msra.mxu0 0.0
    %7855 = vmatprep.subr.mxu0 0.0
    %7856 = vmatpush1.msra.mxu0 0.0
    %7857 = vmatprep.subr.mxu0 0.0
    %7858 = vmatpush1.msra.mxu0 0.0
    %7859 = vmatprep.subr.mxu0 0.0
    %7860 = vmatpush1.msra.mxu0 0.0
    %7861 = vmatprep.subr.mxu0 0.0
    %7862 = vmatpush1.msra.mxu0 0.0
    %7863 = vmatprep.subr.mxu0 0.0
    %7864 = vmatpush1.msra.mxu0 0.0
    %7865 = vmatprep.subr.mxu0 0.0
    %7866 = vmatpush1.msra.mxu0 0.0
    %7867 = vmatprep.subr.mxu0 0.0
    %7868 = vmatpush1.msra.mxu0 0.0
    %7869 = vmatprep.subr.mxu0 0.0
    %7870 = vmatpush1.msra.mxu0 0.0
    %7871 = vmatprep.subr.mxu0 0.0
    %7872 = vmatpush1.msra.mxu0 0.0
    %7873 = vmatprep.subr.mxu0 0.0
    %7874 = vmatpush1.msra.mxu0 0.0
    %7875 = vmatprep.subr.mxu0 0.0
    %7876 = vmatpush1.msra.mxu0 0.0
    %7877 = vmatprep.subr.mxu0 0.0
    %7878 = vmatpush1.msra.mxu0 0.0
    %7879 = vmatprep.subr.mxu0 0.0
    %7880 = vmatpush1.msra.mxu0 0.0
    %7881 = vmatprep.subr.mxu0 0.0
    %7882 = vmatpush1.msra.mxu0 0.0
    %7883 = vmatprep.subr.mxu0 0.0
    %7884 = vmatpush1.msra.mxu0 0.0
    %7885 = vmatprep.subr.mxu0 0.0
    %7886 = vmatpush1.msra.mxu0 0.0
    %7887 = vmatprep.subr.mxu0 0.0
    %7888 = vmatpush1.msra.mxu0 0.0
    %7889 = vmatprep.subr.mxu0 0.0
    %7890 = vmatpush1.msra.mxu0 0.0
    %7891 = vmatprep.subr.mxu0 0.0
    %7892 = vmatpush1.msra.mxu0 0.0
    %7893 = vmatprep.subr.mxu0 0.0
    %7894 = vmatpush1.msra.mxu0 0.0
    %7895 = vmatprep.subr.mxu0 0.0
    %7896 = vmatpush1.msra.mxu0 0.0
    %7897 = vmatprep.subr.mxu0 0.0
    %7898 = vmatpush1.msra.mxu0 0.0
    %7899 = vmatprep.subr.mxu0 0.0
    %7900 = vmatpush1.msra.mxu0 0.0
    %7901 = vmatprep.mubr.f32.mxu0 0.0
    %v7902 = vand.u32 %v6199, 4294901760
    %7903 = vmatmul.mubr.f32.gmra.mrb[0].mxu0 %v7902
    %v7904 = vpop.f32.mrb[0].mxu0
    %v7905 = vadd.f32 %v7760, %v7904
    %v7906 = vpop.f32.mrb[0].mxu0
    %v7907 = vadd.f32 %v7762, %v7906
    %7908 = vmatprep.mubr.f32.mxu0 0.0
    %v7909 = vand.u32 %v6202, 4294901760
    %7910 = vmatmul.mubr.f32.gmra.mrb[0].mxu0 %v7909
    %v7911 = vpop.f32.mrb[0].mxu0
    %v7912 = vadd.f32 %v7771, %v7911
    %v7913 = vpop.f32.mrb[0].mxu0
    %v7914 = vadd.f32 %v7773, %v7913
    %7915 = vmatprep.mubr.f32.mxu0 0.0
    %v7916 = vand.u32 %v6205, 4294901760
    %7917 = vmatmul.mubr.f32.gmra.mrb[0].mxu0 %v7916
    %v7918 = vpop.f32.mrb[0].mxu0
    %v7919 = vadd.f32 %v7782, %v7918
    %v7920 = vpop.f32.mrb[0].mxu0
    %v7921 = vadd.f32 %v7784, %v7920
    %7922 = vmatprep.mubr.f32.mxu0 0.0
    %v7923 = vand.u32 %v6208, 4294901760
    %7924 = vmatmul.mubr.f32.gmra.mrb[0].mxu0 %v7923
    %v7925 = vpop.f32.mrb[0].mxu0
    %v7926 = vadd.f32 %v7793, %v7925
    %v7927 = vpop.f32.mrb[0].mxu0
    %v7928 = vadd.f32 %v7795, %v7927
    %7929 = vdwg.mxu0
    %v7930 = vand.u32 %v6119, 4294901760
    %v7931 = vsub.f32 %v6119, %v7930
    %7932 = vmatprep.subr.mxu0 %v7931
    %v7933 = vand.u32 %v6118, 4294901760
    %v7934 = vsub.f32 %v6118, %v7933
    %7935 = vmatpush1.msra.mxu0 %v7934
    %v7936 = vand.u32 %v6121, 4294901760
    %v7937 = vsub.f32 %v6121, %v7936
    %7938 = vmatprep.subr.mxu0 %v7937
    %v7939 = vand.u32 %v6120, 4294901760
    %v7940 = vsub.f32 %v6120, %v7939
    %7941 = vmatpush1.msra.mxu0 %v7940
    %v7942 = vand.u32 %v6123, 4294901760
    %v7943 = vsub.f32 %v6123, %v7942
    %7944 = vmatprep.subr.mxu0 %v7943
    %v7945 = vand.u32 %v6122, 4294901760
    %v7946 = vsub.f32 %v6122, %v7945
    %7947 = vmatpush1.msra.mxu0 %v7946
    %v7948 = vand.u32 %v6125, 4294901760
    %v7949 = vsub.f32 %v6125, %v7948
    %7950 = vmatprep.subr.mxu0 %v7949
    %v7951 = vand.u32 %v6124, 4294901760
    %v7952 = vsub.f32 %v6124, %v7951
    %7953 = vmatpush1.msra.mxu0 %v7952
    %7954 = vmatprep.subr.mxu0 0.0
    %7955 = vmatpush1.msra.mxu0 0.0
    %7956 = vmatprep.subr.mxu0 0.0
    %7957 = vmatpush1.msra.mxu0 0.0
    %7958 = vmatprep.subr.mxu0 0.0
    %7959 = vmatpush1.msra.mxu0 0.0
    %7960 = vmatprep.subr.mxu0 0.0
    %7961 = vmatpush1.msra.mxu0 0.0
    %7962 = vmatprep.subr.mxu0 0.0
    %7963 = vmatpush1.msra.mxu0 0.0
    %7964 = vmatprep.subr.mxu0 0.0
    %7965 = vmatpush1.msra.mxu0 0.0
    %7966 = vmatprep.subr.mxu0 0.0
    %7967 = vmatpush1.msra.mxu0 0.0
    %7968 = vmatprep.subr.mxu0 0.0
    %7969 = vmatpush1.msra.mxu0 0.0
    %7970 = vmatprep.subr.mxu0 0.0
    %7971 = vmatpush1.msra.mxu0 0.0
    %7972 = vmatprep.subr.mxu0 0.0
    %7973 = vmatpush1.msra.mxu0 0.0
    %7974 = vmatprep.subr.mxu0 0.0
    %7975 = vmatpush1.msra.mxu0 0.0
    %7976 = vmatprep.subr.mxu0 0.0
    %7977 = vmatpush1.msra.mxu0 0.0
    %7978 = vmatprep.subr.mxu0 0.0
    %7979 = vmatpush1.msra.mxu0 0.0
    %7980 = vmatprep.subr.mxu0 0.0
    %7981 = vmatpush1.msra.mxu0 0.0
    %7982 = vmatprep.subr.mxu0 0.0
    %7983 = vmatpush1.msra.mxu0 0.0
    %7984 = vmatprep.subr.mxu0 0.0
    %7985 = vmatpush1.msra.mxu0 0.0
    %7986 = vmatprep.subr.mxu0 0.0
    %7987 = vmatpush1.msra.mxu0 0.0
    %7988 = vmatprep.subr.mxu0 0.0
    %7989 = vmatpush1.msra.mxu0 0.0
    %7990 = vmatprep.subr.mxu0 0.0
    %7991 = vmatpush1.msra.mxu0 0.0
    %7992 = vmatprep.subr.mxu0 0.0
    %7993 = vmatpush1.msra.mxu0 0.0
    %7994 = vmatprep.subr.mxu0 0.0
    %7995 = vmatpush1.msra.mxu0 0.0
    %7996 = vmatprep.subr.mxu0 0.0
    %7997 = vmatpush1.msra.mxu0 0.0
    %7998 = vmatprep.subr.mxu0 0.0
    %7999 = vmatpush1.msra.mxu0 0.0
    %8000 = vmatprep.subr.mxu0 0.0
    %8001 = vmatpush1.msra.mxu0 0.0
    %8002 = vmatprep.subr.mxu0 0.0
    %8003 = vmatpush1.msra.mxu0 0.0
    %8004 = vmatprep.subr.mxu0 0.0
    %8005 = vmatpush1.msra.mxu0 0.0
    %8006 = vmatprep.subr.mxu0 0.0
    %8007 = vmatpush1.msra.mxu0 0.0
    %8008 = vmatprep.subr.mxu0 0.0
    %8009 = vmatpush1.msra.mxu0 0.0
    %8010 = vmatprep.mubr.f32.mxu0 0.0
    %v8011 = vand.u32 %v6199, 4294901760
    %v8012 = vsub.f32 %v6199, %v8011
    %8013 = vmatmul.mubr.f32.gmra.mrb[0].mxu0 %v8012
    %v8014 = vpop.f32.mrb[0].mxu0
    %v8015 = vadd.f32 %v7905, %v8014
    %v8016 = vpop.f32.mrb[0].mxu0
    %v8017 = vadd.f32 %v7907, %v8016
    %8018 = vmatprep.mubr.f32.mxu0 0.0
    %v8019 = vand.u32 %v6202, 4294901760
    %v8020 = vsub.f32 %v6202, %v8019
    %8021 = vmatmul.mubr.f32.gmra.mrb[0].mxu0 %v8020
    %v8022 = vpop.f32.mrb[0].mxu0
    %v8023 = vadd.f32 %v7912, %v8022
    %v8024 = vpop.f32.mrb[0].mxu0
    %v8025 = vadd.f32 %v7914, %v8024
    %8026 = vmatprep.mubr.f32.mxu0 0.0
    %v8027 = vand.u32 %v6205, 4294901760
    %v8028 = vsub.f32 %v6205, %v8027
    %8029 = vmatmul.mubr.f32.gmra.mrb[0].mxu0 %v8028
    %v8030 = vpop.f32.mrb[0].mxu0
    %v8031 = vadd.f32 %v7919, %v8030
    %v8032 = vpop.f32.mrb[0].mxu0
    %v8033 = vadd.f32 %v7921, %v8032
    %8034 = vmatprep.mubr.f32.mxu0 0.0
    %v8035 = vand.u32 %v6208, 4294901760
    %v8036 = vsub.f32 %v6208, %v8035
    %8037 = vmatmul.mubr.f32.gmra.mrb[0].mxu0 %v8036
    %v8038 = vpop.f32.mrb[0].mxu0
    %v8039 = vadd.f32 %v7926, %v8038
    %v8040 = vpop.f32.mrb[0].mxu0
    %v8041 = vadd.f32 %v7928, %v8040
    %8042 = vdwg.mxu0
    %v8043 = vand.u32 %v6119, 4294901760
    %8044 = vmatprep.subr.mxu0 %v8043
    %v8045 = vand.u32 %v6118, 4294901760
    %8046 = vmatpush1.msra.mxu0 %v8045
    %v8047 = vand.u32 %v6121, 4294901760
    %8048 = vmatprep.subr.mxu0 %v8047
    %v8049 = vand.u32 %v6120, 4294901760
    %8050 = vmatpush1.msra.mxu0 %v8049
    %v8051 = vand.u32 %v6123, 4294901760
    %8052 = vmatprep.subr.mxu0 %v8051
    %v8053 = vand.u32 %v6122, 4294901760
    %8054 = vmatpush1.msra.mxu0 %v8053
    %v8055 = vand.u32 %v6125, 4294901760
    %8056 = vmatprep.subr.mxu0 %v8055
    %v8057 = vand.u32 %v6124, 4294901760
    %8058 = vmatpush1.msra.mxu0 %v8057
    %8059 = vmatprep.subr.mxu0 0.0
    %8060 = vmatpush1.msra.mxu0 0.0
    %8061 = vmatprep.subr.mxu0 0.0
    %8062 = vmatpush1.msra.mxu0 0.0
    %8063 = vmatprep.subr.mxu0 0.0
    %8064 = vmatpush1.msra.mxu0 0.0
    %8065 = vmatprep.subr.mxu0 0.0
    %8066 = vmatpush1.msra.mxu0 0.0
    %8067 = vmatprep.subr.mxu0 0.0
    %8068 = vmatpush1.msra.mxu0 0.0
    %8069 = vmatprep.subr.mxu0 0.0
    %8070 = vmatpush1.msra.mxu0 0.0
    %8071 = vmatprep.subr.mxu0 0.0
    %8072 = vmatpush1.msra.mxu0 0.0
    %8073 = vmatprep.subr.mxu0 0.0
    %8074 = vmatpush1.msra.mxu0 0.0
    %8075 = vmatprep.subr.mxu0 0.0
    %8076 = vmatpush1.msra.mxu0 0.0
    %8077 = vmatprep.subr.mxu0 0.0
    %8078 = vmatpush1.msra.mxu0 0.0
    %8079 = vmatprep.subr.mxu0 0.0
    %8080 = vmatpush1.msra.mxu0 0.0
    %8081 = vmatprep.subr.mxu0 0.0
    %8082 = vmatpush1.msra.mxu0 0.0
    %8083 = vmatprep.subr.mxu0 0.0
    %8084 = vmatpush1.msra.mxu0 0.0
    %8085 = vmatprep.subr.mxu0 0.0
    %8086 = vmatpush1.msra.mxu0 0.0
    %8087 = vmatprep.subr.mxu0 0.0
    %8088 = vmatpush1.msra.mxu0 0.0
    %8089 = vmatprep.subr.mxu0 0.0
    %8090 = vmatpush1.msra.mxu0 0.0
    %8091 = vmatprep.subr.mxu0 0.0
    %8092 = vmatpush1.msra.mxu0 0.0
    %8093 = vmatprep.subr.mxu0 0.0
    %8094 = vmatpush1.msra.mxu0 0.0
    %8095 = vmatprep.subr.mxu0 0.0
    %8096 = vmatpush1.msra.mxu0 0.0
    %8097 = vmatprep.subr.mxu0 0.0
    %8098 = vmatpush1.msra.mxu0 0.0
    %8099 = vmatprep.subr.mxu0 0.0
    %8100 = vmatpush1.msra.mxu0 0.0
    %8101 = vmatprep.subr.mxu0 0.0
    %8102 = vmatpush1.msra.mxu0 0.0
    %8103 = vmatprep.subr.mxu0 0.0
    %8104 = vmatpush1.msra.mxu0 0.0
    %8105 = vmatprep.subr.mxu0 0.0
    %8106 = vmatpush1.msra.mxu0 0.0
    %8107 = vmatprep.subr.mxu0 0.0
    %8108 = vmatpush1.msra.mxu0 0.0
    %8109 = vmatprep.subr.mxu0 0.0
    %8110 = vmatpush1.msra.mxu0 0.0
    %8111 = vmatprep.subr.mxu0 0.0
    %8112 = vmatpush1.msra.mxu0 0.0
    %8113 = vmatprep.subr.mxu0 0.0
    %8114 = vmatpush1.msra.mxu0 0.0
    %8115 = vmatprep.mubr.f32.mxu0 0.0
    %v8116 = vand.u32 %v6199, 4294901760
    %v8117 = vsub.f32 %v6199, %v8116
    %v8118 = vand.u32 %v8117, 4294901760
    %8119 = vmatmul.mubr.f32.gmra.mrb[0].mxu0 %v8118
    %v8120 = vpop.f32.mrb[0].mxu0
    %v8121 = vadd.f32 %v8015, %v8120
    %v8122 = vpop.f32.mrb[0].mxu0
    %v8123 = vadd.f32 %v8017, %v8122
    %8124 = vmatprep.mubr.f32.mxu0 0.0
    %v8125 = vand.u32 %v6202, 4294901760
    %v8126 = vsub.f32 %v6202, %v8125
    %v8127 = vand.u32 %v8126, 4294901760
    %8128 = vmatmul.mubr.f32.gmra.mrb[0].mxu0 %v8127
    %v8129 = vpop.f32.mrb[0].mxu0
    %v8130 = vadd.f32 %v8023, %v8129
    %v8131 = vpop.f32.mrb[0].mxu0
    %v8132 = vadd.f32 %v8025, %v8131
    %8133 = vmatprep.mubr.f32.mxu0 0.0
    %v8134 = vand.u32 %v6205, 4294901760
    %v8135 = vsub.f32 %v6205, %v8134
    %v8136 = vand.u32 %v8135, 4294901760
    %8137 = vmatmul.mubr.f32.gmra.mrb[0].mxu0 %v8136
    %v8138 = vpop.f32.mrb[0].mxu0
    %v8139 = vadd.f32 %v8031, %v8138
    %v8140 = vpop.f32.mrb[0].mxu0
    %v8141 = vadd.f32 %v8033, %v8140
    %8142 = vmatprep.mubr.f32.mxu0 0.0
    %v8143 = vand.u32 %v6208, 4294901760
    %v8144 = vsub.f32 %v6208, %v8143
    %v8145 = vand.u32 %v8144, 4294901760
    %8146 = vmatmul.mubr.f32.gmra.mrb[0].mxu0 %v8145
    %v8147 = vpop.f32.mrb[0].mxu0
    %v8148 = vadd.f32 %v8039, %v8147
    %v8149 = vpop.f32.mrb[0].mxu0
    %v8150 = vadd.f32 %v8041, %v8149
    %8151 = vdwg.mxu0
    %v8152 = vand.u32 %v6119, 4294901760
    %v8153 = vsub.f32 %v6119, %v8152
    %v8154 = vand.u32 %v8153, 4294901760
    %8155 = vmatprep.subr.mxu0 %v8154
    %v8156 = vand.u32 %v6118, 4294901760
    %v8157 = vsub.f32 %v6118, %v8156
    %v8158 = vand.u32 %v8157, 4294901760
    %8159 = vmatpush1.msra.mxu0 %v8158
    %v8160 = vand.u32 %v6121, 4294901760
    %v8161 = vsub.f32 %v6121, %v8160
    %v8162 = vand.u32 %v8161, 4294901760
    %8163 = vmatprep.subr.mxu0 %v8162
    %v8164 = vand.u32 %v6120, 4294901760
    %v8165 = vsub.f32 %v6120, %v8164
    %v8166 = vand.u32 %v8165, 4294901760
    %8167 = vmatpush1.msra.mxu0 %v8166
    %v8168 = vand.u32 %v6123, 4294901760
    %v8169 = vsub.f32 %v6123, %v8168
    %v8170 = vand.u32 %v8169, 4294901760
    %8171 = vmatprep.subr.mxu0 %v8170
    %v8172 = vand.u32 %v6122, 4294901760
    %v8173 = vsub.f32 %v6122, %v8172
    %v8174 = vand.u32 %v8173, 4294901760
    %8175 = vmatpush1.msra.mxu0 %v8174
    %v8176 = vand.u32 %v6125, 4294901760
    %v8177 = vsub.f32 %v6125, %v8176
    %v8178 = vand.u32 %v8177, 4294901760
    %8179 = vmatprep.subr.mxu0 %v8178
    %v8180 = vand.u32 %v6124, 4294901760
    %v8181 = vsub.f32 %v6124, %v8180
    %v8182 = vand.u32 %v8181, 4294901760
    %8183 = vmatpush1.msra.mxu0 %v8182
    %8184 = vmatprep.subr.mxu0 0.0
    %8185 = vmatpush1.msra.mxu0 0.0
    %8186 = vmatprep.subr.mxu0 0.0
    %8187 = vmatpush1.msra.mxu0 0.0
    %8188 = vmatprep.subr.mxu0 0.0
    %8189 = vmatpush1.msra.mxu0 0.0
    %8190 = vmatprep.subr.mxu0 0.0
    %8191 = vmatpush1.msra.mxu0 0.0
    %8192 = vmatprep.subr.mxu0 0.0
    %8193 = vmatpush1.msra.mxu0 0.0
    %8194 = vmatprep.subr.mxu0 0.0
    %8195 = vmatpush1.msra.mxu0 0.0
    %8196 = vmatprep.subr.mxu0 0.0
    %8197 = vmatpush1.msra.mxu0 0.0
    %8198 = vmatprep.subr.mxu0 0.0
    %8199 = vmatpush1.msra.mxu0 0.0
    %8200 = vmatprep.subr.mxu0 0.0
    %8201 = vmatpush1.msra.mxu0 0.0
    %8202 = vmatprep.subr.mxu0 0.0
    %8203 = vmatpush1.msra.mxu0 0.0
    %8204 = vmatprep.subr.mxu0 0.0
    %8205 = vmatpush1.msra.mxu0 0.0
    %8206 = vmatprep.subr.mxu0 0.0
    %8207 = vmatpush1.msra.mxu0 0.0
    %8208 = vmatprep.subr.mxu0 0.0
    %8209 = vmatpush1.msra.mxu0 0.0
    %8210 = vmatprep.subr.mxu0 0.0
    %8211 = vmatpush1.msra.mxu0 0.0
    %8212 = vmatprep.subr.mxu0 0.0
    %8213 = vmatpush1.msra.mxu0 0.0
    %8214 = vmatprep.subr.mxu0 0.0
    %8215 = vmatpush1.msra.mxu0 0.0
    %8216 = vmatprep.subr.mxu0 0.0
    %8217 = vmatpush1.msra.mxu0 0.0
    %8218 = vmatprep.subr.mxu0 0.0
    %8219 = vmatpush1.msra.mxu0 0.0
    %8220 = vmatprep.subr.mxu0 0.0
    %8221 = vmatpush1.msra.mxu0 0.0
    %8222 = vmatprep.subr.mxu0 0.0
    %8223 = vmatpush1.msra.mxu0 0.0
    %8224 = vmatprep.subr.mxu0 0.0
    %8225 = vmatpush1.msra.mxu0 0.0
    %8226 = vmatprep.subr.mxu0 0.0
    %8227 = vmatpush1.msra.mxu0 0.0
    %8228 = vmatprep.subr.mxu0 0.0
    %8229 = vmatpush1.msra.mxu0 0.0
    %8230 = vmatprep.subr.mxu0 0.0
    %8231 = vmatpush1.msra.mxu0 0.0
    %8232 = vmatprep.subr.mxu0 0.0
    %8233 = vmatpush1.msra.mxu0 0.0
    %8234 = vmatprep.subr.mxu0 0.0
    %8235 = vmatpush1.msra.mxu0 0.0
    %8236 = vmatprep.subr.mxu0 0.0
    %8237 = vmatpush1.msra.mxu0 0.0
    %8238 = vmatprep.subr.mxu0 0.0
    %8239 = vmatpush1.msra.mxu0 0.0
    %8240 = vmatprep.mubr.f32.mxu0 0.0
    %v8241 = vand.u32 %v6199, 4294901760
    %8242 = vmatmul.mubr.f32.gmra.mrb[0].mxu0 %v8241
    %v8243 = vpop.f32.mrb[0].mxu0
    %v8244 = vadd.f32 %v8121, %v8243
    %v8245 = vpop.f32.mrb[0].mxu0
    %v8246 = vadd.f32 %v8123, %v8245
    %8247 = vmatprep.mubr.f32.mxu0 0.0
    %v8248 = vand.u32 %v6202, 4294901760
    %8249 = vmatmul.mubr.f32.gmra.mrb[0].mxu0 %v8248
    %v8250 = vpop.f32.mrb[0].mxu0
    %v8251 = vadd.f32 %v8130, %v8250
    %v8252 = vpop.f32.mrb[0].mxu0
    %v8253 = vadd.f32 %v8132, %v8252
    %8254 = vmatprep.mubr.f32.mxu0 0.0
    %v8255 = vand.u32 %v6205, 4294901760
    %8256 = vmatmul.mubr.f32.gmra.mrb[0].mxu0 %v8255
    %v8257 = vpop.f32.mrb[0].mxu0
    %v8258 = vadd.f32 %v8139, %v8257
    %v8259 = vpop.f32.mrb[0].mxu0
    %v8260 = vadd.f32 %v8141, %v8259
    %8261 = vmatprep.mubr.f32.mxu0 0.0
    %v8262 = vand.u32 %v6208, 4294901760
    %8263 = vmatmul.mubr.f32.gmra.mrb[0].mxu0 %v8262
    %v8264 = vpop.f32.mrb[0].mxu0
    %v8265 = vadd.f32 %v8148, %v8264
    %v8266 = vpop.f32.mrb[0].mxu0
    %v8267 = vadd.f32 %v8150, %v8266
    %8268 = vdwg.mxu0
    %v8269 = vand.u32 %v6119, 4294901760
    %8270 = vmatprep.subr.mxu0 %v8269
    %v8271 = vand.u32 %v6118, 4294901760
    %8272 = vmatpush1.msra.mxu0 %v8271
    %v8273 = vand.u32 %v6121, 4294901760
    %8274 = vmatprep.subr.mxu0 %v8273
    %v8275 = vand.u32 %v6120, 4294901760
    %8276 = vmatpush1.msra.mxu0 %v8275
    %v8277 = vand.u32 %v6123, 4294901760
    %8278 = vmatprep.subr.mxu0 %v8277
    %v8279 = vand.u32 %v6122, 4294901760
    %8280 = vmatpush1.msra.mxu0 %v8279
    %v8281 = vand.u32 %v6125, 4294901760
    %8282 = vmatprep.subr.mxu0 %v8281
    %v8283 = vand.u32 %v6124, 4294901760
    %8284 = vmatpush1.msra.mxu0 %v8283
    %8285 = vmatprep.subr.mxu0 0.0
    %8286 = vmatpush1.msra.mxu0 0.0
    %8287 = vmatprep.subr.mxu0 0.0
    %8288 = vmatpush1.msra.mxu0 0.0
    %8289 = vmatprep.subr.mxu0 0.0
    %8290 = vmatpush1.msra.mxu0 0.0
    %8291 = vmatprep.subr.mxu0 0.0
    %8292 = vmatpush1.msra.mxu0 0.0
    %8293 = vmatprep.subr.mxu0 0.0
    %8294 = vmatpush1.msra.mxu0 0.0
    %8295 = vmatprep.subr.mxu0 0.0
    %8296 = vmatpush1.msra.mxu0 0.0
    %8297 = vmatprep.subr.mxu0 0.0
    %8298 = vmatpush1.msra.mxu0 0.0
    %8299 = vmatprep.subr.mxu0 0.0
    %8300 = vmatpush1.msra.mxu0 0.0
    %8301 = vmatprep.subr.mxu0 0.0
    %8302 = vmatpush1.msra.mxu0 0.0
    %8303 = vmatprep.subr.mxu0 0.0
    %8304 = vmatpush1.msra.mxu0 0.0
    %8305 = vmatprep.subr.mxu0 0.0
    %8306 = vmatpush1.msra.mxu0 0.0
    %8307 = vmatprep.subr.mxu0 0.0
    %8308 = vmatpush1.msra.mxu0 0.0
    %8309 = vmatprep.subr.mxu0 0.0
    %8310 = vmatpush1.msra.mxu0 0.0
    %8311 = vmatprep.subr.mxu0 0.0
    %8312 = vmatpush1.msra.mxu0 0.0
    %8313 = vmatprep.subr.mxu0 0.0
    %8314 = vmatpush1.msra.mxu0 0.0
    %8315 = vmatprep.subr.mxu0 0.0
    %8316 = vmatpush1.msra.mxu0 0.0
    %8317 = vmatprep.subr.mxu0 0.0
    %8318 = vmatpush1.msra.mxu0 0.0
    %8319 = vmatprep.subr.mxu0 0.0
    %8320 = vmatpush1.msra.mxu0 0.0
    %8321 = vmatprep.subr.mxu0 0.0
    %8322 = vmatpush1.msra.mxu0 0.0
    %8323 = vmatprep.subr.mxu0 0.0
    %8324 = vmatpush1.msra.mxu0 0.0
    %8325 = vmatprep.subr.mxu0 0.0
    %8326 = vmatpush1.msra.mxu0 0.0
    %8327 = vmatprep.subr.mxu0 0.0
    %8328 = vmatpush1.msra.mxu0 0.0
    %8329 = vmatprep.subr.mxu0 0.0
    %8330 = vmatpush1.msra.mxu0 0.0
    %8331 = vmatprep.subr.mxu0 0.0
    %8332 = vmatpush1.msra.mxu0 0.0
    %8333 = vmatprep.subr.mxu0 0.0
    %8334 = vmatpush1.msra.mxu0 0.0
    %8335 = vmatprep.subr.mxu0 0.0
    %8336 = vmatpush1.msra.mxu0 0.0
    %8337 = vmatprep.subr.mxu0 0.0
    %8338 = vmatpush1.msra.mxu0 0.0
    %8339 = vmatprep.subr.mxu0 0.0
    %8340 = vmatpush1.msra.mxu0 0.0
    %8341 = vmatprep.mubr.f32.mxu0 0.0
    %v8342 = vand.u32 %v6199, 4294901760
    %8343 = vmatmul.mubr.f32.gmra.mrb[0].mxu0 %v8342
    %v8344 = vpop.f32.mrb[0].mxu0
    %v8345 = vadd.f32 %v8244, %v8344
    %v8346 = vpop.f32.mrb[0].mxu0
    %v8347 = vadd.f32 %v8246, %v8346
    %8348 = vmatprep.mubr.f32.mxu0 0.0
    %v8349 = vand.u32 %v6202, 4294901760
    %8350 = vmatmul.mubr.f32.gmra.mrb[0].mxu0 %v8349
    %v8351 = vpop.f32.mrb[0].mxu0
    %v8352 = vadd.f32 %v8251, %v8351
    %v8353 = vpop.f32.mrb[0].mxu0
    %v8354 = vadd.f32 %v8253, %v8353
    %8355 = vmatprep.mubr.f32.mxu0 0.0
    %v8356 = vand.u32 %v6205, 4294901760
    %8357 = vmatmul.mubr.f32.gmra.mrb[0].mxu0 %v8356
    %v8358 = vpop.f32.mrb[0].mxu0
    %v8359 = vadd.f32 %v8258, %v8358
    %v8360 = vpop.f32.mrb[0].mxu0
    %v8361 = vadd.f32 %v8260, %v8360
    %8362 = vmatprep.mubr.f32.mxu0 0.0
    %v8363 = vand.u32 %v6208, 4294901760
    %8364 = vmatmul.mubr.f32.gmra.mrb[0].mxu0 %v8363
    %v8365 = vpop.f32.mrb[0].mxu0
    %v8366 = vadd.f32 %v8265, %v8365
    %v8367 = vpop.f32.mrb[0].mxu0
    %v8368 = vadd.f32 %v8267, %v8367
    %8369 = vdwg.mxu0
    %8371 = vset.pattern.permute.xlu0 0
    %8372 = vperm.xlu0 %8371, %v2287
    %v8373 = vpop.permute.xlu0 %8372
    %8376 = vset.pattern.permute.xlu0 0
    %8377 = vperm.xlu0 %8376, %v2288
    %v8378 = vpop.permute.xlu0 %8377
    %8381 = vset.pattern.permute.xlu0 0
    %8382 = vperm.xlu0 %8381, %v2289
    %v8383 = vpop.permute.xlu0 %8382
    %8386 = vset.pattern.permute.xlu0 0
    %8387 = vperm.xlu0 %8386, %v2290
    %v8388 = vpop.permute.xlu0 %8387
    %v8390 = vmul.f32 %v8345, %v8373
    %v8391 = vmul.f32 %v8347, %v8373
    %v8392 = vmul.f32 %v8352, %v8378
    %v8393 = vmul.f32 %v8354, %v8378
    %v8394 = vmul.f32 %v8359, %v8383
    %v8395 = vmul.f32 %v8361, %v8383
    %v8396 = vmul.f32 %v8366, %v8388
    %v8397 = vmul.f32 %v8368, %v8388
    %v8398 = vadd.f32 %v2297, %v8390
    %v8399 = vadd.f32 %v2298, %v8391
    %v8400 = vadd.f32 %v2299, %v8392
    %v8401 = vadd.f32 %v2300, %v8393
    %v8402 = vadd.f32 %v2301, %v8394
    %v8403 = vadd.f32 %v2302, %v8395
    %v8404 = vadd.f32 %v2303, %v8396
    %v8405 = vadd.f32 %v2304, %v8397
  $region66: #{basic_block_forward.1} parent=0 // loop_footer
    %s2296 = sadd.s32 1, %s2292
  $region67: #{basic_block_forward.1} parent=0 // loop_footer_branch
    %2291 = sbr.rel target = $region63
  $region68: #{basic_block_forward.1} parent=0 // loop_exit
    _
  %v8406 = vld [vmem:[%s13] sm:$0x7]
  %v8407 = vld [vmem:[#allocation3] sm:$0x1]
  %8416 = vrot.lane.b32.xlu0 %v2297, 24
  %v8417 = vpop.permute.xlu0 %8416
  %8418 = vrot.lane.b32.xlu0 %v2298, 24
  %v8419 = vpop.permute.xlu0 %8418
  %8420 = vrot.lane.b32.xlu0 %v2299, 24
  %v8421 = vpop.permute.xlu0 %8420
  %8422 = vrot.lane.b32.xlu0 %v2300, 24
  %v8423 = vpop.permute.xlu0 %8422
  %8424 = vrot.lane.b32.xlu0 %v2301, 24
  %v8425 = vpop.permute.xlu0 %8424
  %8426 = vrot.lane.b32.xlu0 %v2302, 24
  %v8427 = vpop.permute.xlu0 %8426
  %8428 = vrot.lane.b32.xlu0 %v2303, 24
  %v8429 = vpop.permute.xlu0 %8428
  %8430 = vrot.lane.b32.xlu0 %v2304, 24
  %v8431 = vpop.permute.xlu0 %8430
  %v8432 = vsel %vm1350, %v8417, %v8419
  %v8433 = vsel %vm1350, %v8421, %v8423
  %v8434 = vsel %vm1350, %v8425, %v8427
  %v8435 = vsel %vm1350, %v8429, %v8431
  %v8448 = vsel %vm1350, 0.0, %v8417
  %v8449 = vsel %vm1350, 0.0, %v8421
  %v8450 = vsel %vm1350, 0.0, %v8425
  %v8451 = vsel %vm1350, 0.0, %v8429
  %v8452 = vsel %vm1350, %v8419, 0.0
  %v8453 = vsel %vm1350, %v8423, 0.0
  %v8454 = vsel %vm1350, %v8427, 0.0
  %v8455 = vsel %vm1350, %v8431, 0.0
  %v8456 = vmul.f32 %v8448, %v1360
  %v8457 = vmul.f32 %v8432, %v1364
  %v8458 = vmul.f32 %v8452, %v1362
  %v8459 = vmul.f32 %v8449, %v1360
  %v8460 = vmul.f32 %v8433, %v1364
  %v8461 = vmul.f32 %v8453, %v1362
  %v8462 = vmul.f32 %v8450, %v1360
  %v8463 = vmul.f32 %v8434, %v1364
  %v8464 = vmul.f32 %v8454, %v1362
  %v8465 = vmul.f32 %v8451, %v1360
  %v8466 = vmul.f32 %v8435, %v1364
  %v8467 = vmul.f32 %v8455, %v1362
  %v8468 = vmul.f32 %v8448, %v1374
  %v8469 = vmul.f32 %v8432, %v1378
  %v8470 = vmul.f32 %v8452, %v1376
  %v8471 = vmul.f32 %v8449, %v1374
  %v8472 = vmul.f32 %v8433, %v1378
  %v8473 = vmul.f32 %v8453, %v1376
  %v8474 = vmul.f32 %v8450, %v1374
  %v8475 = vmul.f32 %v8434, %v1378
  %v8476 = vmul.f32 %v8454, %v1376
  %v8477 = vmul.f32 %v8451, %v1374
  %v8478 = vmul.f32 %v8435, %v1378
  %v8479 = vmul.f32 %v8455, %v1376
  %v8480 = vmul.f32 %v8448, %v1386
  %v8481 = vmul.f32 %v8432, %v1390
  %v8482 = vmul.f32 %v8452, %v1388
  %v8483 = vmul.f32 %v8449, %v1386
  %v8484 = vmul.f32 %v8433, %v1390
  %v8485 = vmul.f32 %v8453, %v1388
  %v8486 = vmul.f32 %v8450, %v1386
  %v8487 = vmul.f32 %v8434, %v1390
  %v8488 = vmul.f32 %v8454, %v1388
  %v8489 = vmul.f32 %v8451, %v1386
  %v8490 = vmul.f32 %v8435, %v1390
  %v8491 = vmul.f32 %v8455, %v1388
  %v8492 = vmul.f32 %v8448, %v1398
  %v8493 = vmul.f32 %v8432, %v1402
  %v8494 = vmul.f32 %v8452, %v1400
  %v8495 = vmul.f32 %v8449, %v1398
  %v8496 = vmul.f32 %v8433, %v1402
  %v8497 = vmul.f32 %v8453, %v1400
  %v8498 = vmul.f32 %v8450, %v1398
  %v8499 = vmul.f32 %v8434, %v1402
  %v8500 = vmul.f32 %v8454, %v1400
  %v8501 = vmul.f32 %v8451, %v1398
  %v8502 = vmul.f32 %v8435, %v1402
  %v8503 = vmul.f32 %v8455, %v1400
  %v8504 = vmul.f32 %v8448, %v1410
  %v8505 = vmul.f32 %v8432, %v1414
  %v8506 = vmul.f32 %v8452, %v1412
  %v8507 = vmul.f32 %v8449, %v1410
  %v8508 = vmul.f32 %v8433, %v1414
  %v8509 = vmul.f32 %v8453, %v1412
  %v8510 = vmul.f32 %v8450, %v1410
  %v8511 = vmul.f32 %v8434, %v1414
  %v8512 = vmul.f32 %v8454, %v1412
  %v8513 = vmul.f32 %v8451, %v1410
  %v8514 = vmul.f32 %v8435, %v1414
  %v8515 = vmul.f32 %v8455, %v1412
  %v8516 = vmul.f32 %v8448, %v1422
  %v8517 = vmul.f32 %v8432, %v1426
  %v8518 = vmul.f32 %v8452, %v1424
  %v8519 = vmul.f32 %v8449, %v1422
  %v8520 = vmul.f32 %v8433, %v1426
  %v8521 = vmul.f32 %v8453, %v1424
  %v8522 = vmul.f32 %v8450, %v1422
  %v8523 = vmul.f32 %v8434, %v1426
  %v8524 = vmul.f32 %v8454, %v1424
  %v8525 = vmul.f32 %v8451, %v1422
  %v8526 = vmul.f32 %v8435, %v1426
  %v8527 = vmul.f32 %v8455, %v1424
  %8536 = vrot.lane.b32.xlu0 %v8448, 127
  %v8537 = vpop.permute.xlu0 %8536
  %8538 = vrot.lane.b32.xlu0 %v8432, 127
  %v8539 = vpop.permute.xlu0 %8538
  %8540 = vrot.lane.b32.xlu0 %v8452, 127
  %v8541 = vpop.permute.xlu0 %8540
  %8542 = vrot.lane.b32.xlu0 %v8449, 127
  %v8543 = vpop.permute.xlu0 %8542
  %8544 = vrot.lane.b32.xlu0 %v8433, 127
  %v8545 = vpop.permute.xlu0 %8544
  %8546 = vrot.lane.b32.xlu0 %v8453, 127
  %v8547 = vpop.permute.xlu0 %8546
  %8548 = vrot.lane.b32.xlu0 %v8450, 127
  %v8549 = vpop.permute.xlu0 %8548
  %8550 = vrot.lane.b32.xlu0 %v8434, 127
  %v8551 = vpop.permute.xlu0 %8550
  %8552 = vrot.lane.b32.xlu0 %v8454, 127
  %v8553 = vpop.permute.xlu0 %8552
  %8554 = vrot.lane.b32.xlu0 %v8451, 127
  %v8555 = vpop.permute.xlu0 %8554
  %8556 = vrot.lane.b32.xlu0 %v8435, 127
  %v8557 = vpop.permute.xlu0 %8556
  %8558 = vrot.lane.b32.xlu0 %v8455, 127
  %v8559 = vpop.permute.xlu0 %8558
  %v8560 = vsel %vm1444, %v8537, %v8539
  %v8561 = vsel %vm1444, %v8539, %v8541
  %v8562 = vsel %vm1444, %v8543, %v8545
  %v8563 = vsel %vm1444, %v8545, %v8547
  %v8564 = vsel %vm1444, %v8549, %v8551
  %v8565 = vsel %vm1444, %v8551, %v8553
  %v8566 = vsel %vm1444, %v8555, %v8557
  %v8567 = vsel %vm1444, %v8557, %v8559
  %8580 = vrot.lane.b32.xlu0 %v8468, 126
  %v8581 = vpop.permute.xlu0 %8580
  %8582 = vrot.lane.b32.xlu0 %v8469, 126
  %v8583 = vpop.permute.xlu0 %8582
  %8584 = vrot.lane.b32.xlu0 %v8470, 126
  %v8585 = vpop.permute.xlu0 %8584
  %8586 = vrot.lane.b32.xlu0 %v8471, 126
  %v8587 = vpop.permute.xlu0 %8586
  %8588 = vrot.lane.b32.xlu0 %v8472, 126
  %v8589 = vpop.permute.xlu0 %8588
  %8590 = vrot.lane.b32.xlu0 %v8473, 126
  %v8591 = vpop.permute.xlu0 %8590
  %8592 = vrot.lane.b32.xlu0 %v8474, 126
  %v8593 = vpop.permute.xlu0 %8592
  %8594 = vrot.lane.b32.xlu0 %v8475, 126
  %v8595 = vpop.permute.xlu0 %8594
  %8596 = vrot.lane.b32.xlu0 %v8476, 126
  %v8597 = vpop.permute.xlu0 %8596
  %8598 = vrot.lane.b32.xlu0 %v8477, 126
  %v8599 = vpop.permute.xlu0 %8598
  %8600 = vrot.lane.b32.xlu0 %v8478, 126
  %v8601 = vpop.permute.xlu0 %8600
  %8602 = vrot.lane.b32.xlu0 %v8479, 126
  %v8603 = vpop.permute.xlu0 %8602
  %v8604 = vsel %vm1462, %v8581, %v8583
  %v8605 = vsel %vm1462, %v8583, %v8585
  %v8606 = vsel %vm1462, %v8587, %v8589
  %v8607 = vsel %vm1462, %v8589, %v8591
  %v8608 = vsel %vm1462, %v8593, %v8595
  %v8609 = vsel %vm1462, %v8595, %v8597
  %v8610 = vsel %vm1462, %v8599, %v8601
  %v8611 = vsel %vm1462, %v8601, %v8603
  %8624 = vrot.lane.b32.xlu0 %v8480, 112
  %v8625 = vpop.permute.xlu0 %8624
  %8626 = vrot.lane.b32.xlu0 %v8481, 112
  %v8627 = vpop.permute.xlu0 %8626
  %8628 = vrot.lane.b32.xlu0 %v8482, 112
  %v8629 = vpop.permute.xlu0 %8628
  %8630 = vrot.lane.b32.xlu0 %v8483, 112
  %v8631 = vpop.permute.xlu0 %8630
  %8632 = vrot.lane.b32.xlu0 %v8484, 112
  %v8633 = vpop.permute.xlu0 %8632
  %8634 = vrot.lane.b32.xlu0 %v8485, 112
  %v8635 = vpop.permute.xlu0 %8634
  %8636 = vrot.lane.b32.xlu0 %v8486, 112
  %v8637 = vpop.permute.xlu0 %8636
  %8638 = vrot.lane.b32.xlu0 %v8487, 112
  %v8639 = vpop.permute.xlu0 %8638
  %8640 = vrot.lane.b32.xlu0 %v8488, 112
  %v8641 = vpop.permute.xlu0 %8640
  %8642 = vrot.lane.b32.xlu0 %v8489, 112
  %v8643 = vpop.permute.xlu0 %8642
  %8644 = vrot.lane.b32.xlu0 %v8490, 112
  %v8645 = vpop.permute.xlu0 %8644
  %8646 = vrot.lane.b32.xlu0 %v8491, 112
  %v8647 = vpop.permute.xlu0 %8646
  %v8648 = vsel %vm1480, %v8625, %v8627
  %v8649 = vsel %vm1480, %v8627, %v8629
  %v8650 = vsel %vm1480, %v8631, %v8633
  %v8651 = vsel %vm1480, %v8633, %v8635
  %v8652 = vsel %vm1480, %v8637, %v8639
  %v8653 = vsel %vm1480, %v8639, %v8641
  %v8654 = vsel %vm1480, %v8643, %v8645
  %v8655 = vsel %vm1480, %v8645, %v8647
  %8656 = vrot.lane.b32.xlu0 %v8448, 111
  %v8657 = vpop.permute.xlu0 %8656
  %8658 = vrot.lane.b32.xlu0 %v8432, 111
  %v8659 = vpop.permute.xlu0 %8658
  %8660 = vrot.lane.b32.xlu0 %v8452, 111
  %v8661 = vpop.permute.xlu0 %8660
  %8662 = vrot.lane.b32.xlu0 %v8449, 111
  %v8663 = vpop.permute.xlu0 %8662
  %8664 = vrot.lane.b32.xlu0 %v8433, 111
  %v8665 = vpop.permute.xlu0 %8664
  %8666 = vrot.lane.b32.xlu0 %v8453, 111
  %v8667 = vpop.permute.xlu0 %8666
  %8668 = vrot.lane.b32.xlu0 %v8450, 111
  %v8669 = vpop.permute.xlu0 %8668
  %8670 = vrot.lane.b32.xlu0 %v8434, 111
  %v8671 = vpop.permute.xlu0 %8670
  %8672 = vrot.lane.b32.xlu0 %v8454, 111
  %v8673 = vpop.permute.xlu0 %8672
  %8674 = vrot.lane.b32.xlu0 %v8451, 111
  %v8675 = vpop.permute.xlu0 %8674
  %8676 = vrot.lane.b32.xlu0 %v8435, 111
  %v8677 = vpop.permute.xlu0 %8676
  %8678 = vrot.lane.b32.xlu0 %v8455, 111
  %v8679 = vpop.permute.xlu0 %8678
  %v8680 = vsel %vm1495, %v8657, %v8659
  %v8681 = vsel %vm1495, %v8659, %v8661
  %v8682 = vsel %vm1495, %v8663, %v8665
  %v8683 = vsel %vm1495, %v8665, %v8667
  %v8684 = vsel %vm1495, %v8669, %v8671
  %v8685 = vsel %vm1495, %v8671, %v8673
  %v8686 = vsel %vm1495, %v8675, %v8677
  %v8687 = vsel %vm1495, %v8677, %v8679
  %8700 = vrot.lane.b32.xlu0 %v8492, 110
  %v8701 = vpop.permute.xlu0 %8700
  %8702 = vrot.lane.b32.xlu0 %v8493, 110
  %v8703 = vpop.permute.xlu0 %8702
  %8704 = vrot.lane.b32.xlu0 %v8494, 110
  %v8705 = vpop.permute.xlu0 %8704
  %8706 = vrot.lane.b32.xlu0 %v8495, 110
  %v8707 = vpop.permute.xlu0 %8706
  %8708 = vrot.lane.b32.xlu0 %v8496, 110
  %v8709 = vpop.permute.xlu0 %8708
  %8710 = vrot.lane.b32.xlu0 %v8497, 110
  %v8711 = vpop.permute.xlu0 %8710
  %8712 = vrot.lane.b32.xlu0 %v8498, 110
  %v8713 = vpop.permute.xlu0 %8712
  %8714 = vrot.lane.b32.xlu0 %v8499, 110
  %v8715 = vpop.permute.xlu0 %8714
  %8716 = vrot.lane.b32.xlu0 %v8500, 110
  %v8717 = vpop.permute.xlu0 %8716
  %8718 = vrot.lane.b32.xlu0 %v8501, 110
  %v8719 = vpop.permute.xlu0 %8718
  %8720 = vrot.lane.b32.xlu0 %v8502, 110
  %v8721 = vpop.permute.xlu0 %8720
  %8722 = vrot.lane.b32.xlu0 %v8503, 110
  %v8723 = vpop.permute.xlu0 %8722
  %v8724 = vsel %vm1513, %v8701, %v8703
  %v8725 = vsel %vm1513, %v8703, %v8705
  %v8726 = vsel %vm1513, %v8707, %v8709
  %v8727 = vsel %vm1513, %v8709, %v8711
  %v8728 = vsel %vm1513, %v8713, %v8715
  %v8729 = vsel %vm1513, %v8715, %v8717
  %v8730 = vsel %vm1513, %v8719, %v8721
  %v8731 = vsel %vm1513, %v8721, %v8723
  %8744 = vrot.lane.b32.xlu0 %v8504, 96
  %v8745 = vpop.permute.xlu0 %8744
  %8746 = vrot.lane.b32.xlu0 %v8505, 96
  %v8747 = vpop.permute.xlu0 %8746
  %8748 = vrot.lane.b32.xlu0 %v8506, 96
  %v8749 = vpop.permute.xlu0 %8748
  %8750 = vrot.lane.b32.xlu0 %v8507, 96
  %v8751 = vpop.permute.xlu0 %8750
  %8752 = vrot.lane.b32.xlu0 %v8508, 96
  %v8753 = vpop.permute.xlu0 %8752
  %8754 = vrot.lane.b32.xlu0 %v8509, 96
  %v8755 = vpop.permute.xlu0 %8754
  %8756 = vrot.lane.b32.xlu0 %v8510, 96
  %v8757 = vpop.permute.xlu0 %8756
  %8758 = vrot.lane.b32.xlu0 %v8511, 96
  %v8759 = vpop.permute.xlu0 %8758
  %8760 = vrot.lane.b32.xlu0 %v8512, 96
  %v8761 = vpop.permute.xlu0 %8760
  %8762 = vrot.lane.b32.xlu0 %v8513, 96
  %v8763 = vpop.permute.xlu0 %8762
  %8764 = vrot.lane.b32.xlu0 %v8514, 96
  %v8765 = vpop.permute.xlu0 %8764
  %8766 = vrot.lane.b32.xlu0 %v8515, 96
  %v8767 = vpop.permute.xlu0 %8766
  %v8768 = vsel %vm1531, %v8745, %v8747
  %v8769 = vsel %vm1531, %v8747, %v8749
  %v8770 = vsel %vm1531, %v8751, %v8753
  %v8771 = vsel %vm1531, %v8753, %v8755
  %v8772 = vsel %vm1531, %v8757, %v8759
  %v8773 = vsel %vm1531, %v8759, %v8761
  %v8774 = vsel %vm1531, %v8763, %v8765
  %v8775 = vsel %vm1531, %v8765, %v8767
  %8776 = vrot.lane.b32.xlu0 %v8448, 95
  %v8777 = vpop.permute.xlu0 %8776
  %8778 = vrot.lane.b32.xlu0 %v8432, 95
  %v8779 = vpop.permute.xlu0 %8778
  %8780 = vrot.lane.b32.xlu0 %v8452, 95
  %v8781 = vpop.permute.xlu0 %8780
  %8782 = vrot.lane.b32.xlu0 %v8449, 95
  %v8783 = vpop.permute.xlu0 %8782
  %8784 = vrot.lane.b32.xlu0 %v8433, 95
  %v8785 = vpop.permute.xlu0 %8784
  %8786 = vrot.lane.b32.xlu0 %v8453, 95
  %v8787 = vpop.permute.xlu0 %8786
  %8788 = vrot.lane.b32.xlu0 %v8450, 95
  %v8789 = vpop.permute.xlu0 %8788
  %8790 = vrot.lane.b32.xlu0 %v8434, 95
  %v8791 = vpop.permute.xlu0 %8790
  %8792 = vrot.lane.b32.xlu0 %v8454, 95
  %v8793 = vpop.permute.xlu0 %8792
  %8794 = vrot.lane.b32.xlu0 %v8451, 95
  %v8795 = vpop.permute.xlu0 %8794
  %8796 = vrot.lane.b32.xlu0 %v8435, 95
  %v8797 = vpop.permute.xlu0 %8796
  %8798 = vrot.lane.b32.xlu0 %v8455, 95
  %v8799 = vpop.permute.xlu0 %8798
  %v8800 = vsel %vm1546, %v8777, %v8779
  %v8801 = vsel %vm1546, %v8779, %v8781
  %v8802 = vsel %vm1546, %v8783, %v8785
  %v8803 = vsel %vm1546, %v8785, %v8787
  %v8804 = vsel %vm1546, %v8789, %v8791
  %v8805 = vsel %vm1546, %v8791, %v8793
  %v8806 = vsel %vm1546, %v8795, %v8797
  %v8807 = vsel %vm1546, %v8797, %v8799
  %8820 = vrot.lane.b32.xlu0 %v8516, 94
  %v8821 = vpop.permute.xlu0 %8820
  %8822 = vrot.lane.b32.xlu0 %v8517, 94
  %v8823 = vpop.permute.xlu0 %8822
  %8824 = vrot.lane.b32.xlu0 %v8518, 94
  %v8825 = vpop.permute.xlu0 %8824
  %8826 = vrot.lane.b32.xlu0 %v8519, 94
  %v8827 = vpop.permute.xlu0 %8826
  %8828 = vrot.lane.b32.xlu0 %v8520, 94
  %v8829 = vpop.permute.xlu0 %8828
  %8830 = vrot.lane.b32.xlu0 %v8521, 94
  %v8831 = vpop.permute.xlu0 %8830
  %8832 = vrot.lane.b32.xlu0 %v8522, 94
  %v8833 = vpop.permute.xlu0 %8832
  %8834 = vrot.lane.b32.xlu0 %v8523, 94
  %v8835 = vpop.permute.xlu0 %8834
  %8836 = vrot.lane.b32.xlu0 %v8524, 94
  %v8837 = vpop.permute.xlu0 %8836
  %8838 = vrot.lane.b32.xlu0 %v8525, 94
  %v8839 = vpop.permute.xlu0 %8838
  %8840 = vrot.lane.b32.xlu0 %v8526, 94
  %v8841 = vpop.permute.xlu0 %8840
  %8842 = vrot.lane.b32.xlu0 %v8527, 94
  %v8843 = vpop.permute.xlu0 %8842
  %v8844 = vsel %vm1561, %v8821, %v8823
  %v8845 = vsel %vm1561, %v8823, %v8825
  %v8846 = vsel %vm1561, %v8827, %v8829
  %v8847 = vsel %vm1561, %v8829, %v8831
  %v8848 = vsel %vm1561, %v8833, %v8835
  %v8849 = vsel %vm1561, %v8835, %v8837
  %v8850 = vsel %vm1561, %v8839, %v8841
  %v8851 = vsel %vm1561, %v8841, %v8843
  %8853 = vset.pattern.permute.xlu0 0
  %8854 = vperm.xlu0 %8853, %v8407
  %v8855 = vpop.permute.xlu0 %8854
  %v8857 = vlaneseq
  %v8858 = vshrl.u32 %v8857, 7
  %v8859 = vsub.s32 0, %v8858
  %v8860 = vrot.slane %v8855, %v8859
  %v8862 = vlaneseq
  %v8863 = vshrl.u32 %v8862, 7
  %v8864 = vsub.s32 0, %v8863
  %v8865 = vrot.slane %v8406, %v8864
  %v8866 = vlaneseq
  %v8867 = vshrl.u32 %v8866, 7
  %v8868 = vsub.s32 1, %v8867
  %v8869 = vrot.slane %v8406, %v8868
  %v8870 = vlaneseq
  %v8871 = vshrl.u32 %v8870, 7
  %v8872 = vsub.s32 2, %v8871
  %v8873 = vrot.slane %v8406, %v8872
  %8888 = vrot.lane.b32.xlu0 %v8456, 121
  %v8889 = vpop.permute.xlu0 %8888
  %8890 = vrot.lane.b32.xlu0 %v8457, 121
  %v8891 = vpop.permute.xlu0 %8890
  %8892 = vrot.lane.b32.xlu0 %v8458, 121
  %v8893 = vpop.permute.xlu0 %8892
  %8894 = vrot.lane.b32.xlu0 %v8459, 121
  %v8895 = vpop.permute.xlu0 %8894
  %8896 = vrot.lane.b32.xlu0 %v8460, 121
  %v8897 = vpop.permute.xlu0 %8896
  %8898 = vrot.lane.b32.xlu0 %v8461, 121
  %v8899 = vpop.permute.xlu0 %8898
  %8900 = vrot.lane.b32.xlu0 %v8462, 121
  %v8901 = vpop.permute.xlu0 %8900
  %8902 = vrot.lane.b32.xlu0 %v8463, 121
  %v8903 = vpop.permute.xlu0 %8902
  %8904 = vrot.lane.b32.xlu0 %v8464, 121
  %v8905 = vpop.permute.xlu0 %8904
  %8906 = vrot.lane.b32.xlu0 %v8465, 121
  %v8907 = vpop.permute.xlu0 %8906
  %8908 = vrot.lane.b32.xlu0 %v8466, 121
  %v8909 = vpop.permute.xlu0 %8908
  %8910 = vrot.lane.b32.xlu0 %v8467, 121
  %v8911 = vpop.permute.xlu0 %8910
  %8912 = vrot.lane.b32.xlu0 %v8560, 121
  %v8913 = vpop.permute.xlu0 %8912
  %8914 = vrot.lane.b32.xlu0 %v8561, 121
  %v8915 = vpop.permute.xlu0 %8914
  %8916 = vrot.lane.b32.xlu0 %v8541, 121
  %v8917 = vpop.permute.xlu0 %8916
  %8918 = vrot.lane.b32.xlu0 %v8562, 121
  %v8919 = vpop.permute.xlu0 %8918
  %8920 = vrot.lane.b32.xlu0 %v8563, 121
  %v8921 = vpop.permute.xlu0 %8920
  %8922 = vrot.lane.b32.xlu0 %v8547, 121
  %v8923 = vpop.permute.xlu0 %8922
  %8924 = vrot.lane.b32.xlu0 %v8564, 121
  %v8925 = vpop.permute.xlu0 %8924
  %8926 = vrot.lane.b32.xlu0 %v8565, 121
  %v8927 = vpop.permute.xlu0 %8926
  %8928 = vrot.lane.b32.xlu0 %v8553, 121
  %v8929 = vpop.permute.xlu0 %8928
  %8930 = vrot.lane.b32.xlu0 %v8566, 121
  %v8931 = vpop.permute.xlu0 %8930
  %8932 = vrot.lane.b32.xlu0 %v8567, 121
  %v8933 = vpop.permute.xlu0 %8932
  %8934 = vrot.lane.b32.xlu0 %v8559, 121
  %v8935 = vpop.permute.xlu0 %8934
  %8936 = vrot.lane.b32.xlu0 %v8604, 121
  %v8937 = vpop.permute.xlu0 %8936
  %8938 = vrot.lane.b32.xlu0 %v8605, 121
  %v8939 = vpop.permute.xlu0 %8938
  %8940 = vrot.lane.b32.xlu0 %v8585, 121
  %v8941 = vpop.permute.xlu0 %8940
  %8942 = vrot.lane.b32.xlu0 %v8606, 121
  %v8943 = vpop.permute.xlu0 %8942
  %8944 = vrot.lane.b32.xlu0 %v8607, 121
  %v8945 = vpop.permute.xlu0 %8944
  %8946 = vrot.lane.b32.xlu0 %v8591, 121
  %v8947 = vpop.permute.xlu0 %8946
  %8948 = vrot.lane.b32.xlu0 %v8608, 121
  %v8949 = vpop.permute.xlu0 %8948
  %8950 = vrot.lane.b32.xlu0 %v8609, 121
  %v8951 = vpop.permute.xlu0 %8950
  %8952 = vrot.lane.b32.xlu0 %v8597, 121
  %v8953 = vpop.permute.xlu0 %8952
  %8954 = vrot.lane.b32.xlu0 %v8610, 121
  %v8955 = vpop.permute.xlu0 %8954
  %8956 = vrot.lane.b32.xlu0 %v8611, 121
  %v8957 = vpop.permute.xlu0 %8956
  %8958 = vrot.lane.b32.xlu0 %v8603, 121
  %v8959 = vpop.permute.xlu0 %8958
  %8960 = vrot.lane.b32.xlu0 %v8648, 121
  %v8961 = vpop.permute.xlu0 %8960
  %8962 = vrot.lane.b32.xlu0 %v8649, 121
  %v8963 = vpop.permute.xlu0 %8962
  %8964 = vrot.lane.b32.xlu0 %v8629, 121
  %v8965 = vpop.permute.xlu0 %8964
  %8966 = vrot.lane.b32.xlu0 %v8650, 121
  %v8967 = vpop.permute.xlu0 %8966
  %8968 = vrot.lane.b32.xlu0 %v8651, 121
  %v8969 = vpop.permute.xlu0 %8968
  %8970 = vrot.lane.b32.xlu0 %v8635, 121
  %v8971 = vpop.permute.xlu0 %8970
  %8972 = vrot.lane.b32.xlu0 %v8652, 121
  %v8973 = vpop.permute.xlu0 %8972
  %8974 = vrot.lane.b32.xlu0 %v8653, 121
  %v8975 = vpop.permute.xlu0 %8974
  %8976 = vrot.lane.b32.xlu0 %v8641, 121
  %v8977 = vpop.permute.xlu0 %8976
  %8978 = vrot.lane.b32.xlu0 %v8654, 121
  %v8979 = vpop.permute.xlu0 %8978
  %8980 = vrot.lane.b32.xlu0 %v8655, 121
  %v8981 = vpop.permute.xlu0 %8980
  %8982 = vrot.lane.b32.xlu0 %v8647, 121
  %v8983 = vpop.permute.xlu0 %8982
  %8984 = vrot.lane.b32.xlu0 %v8680, 121
  %v8985 = vpop.permute.xlu0 %8984
  %8986 = vrot.lane.b32.xlu0 %v8681, 121
  %v8987 = vpop.permute.xlu0 %8986
  %8988 = vrot.lane.b32.xlu0 %v8661, 121
  %v8989 = vpop.permute.xlu0 %8988
  %8990 = vrot.lane.b32.xlu0 %v8682, 121
  %v8991 = vpop.permute.xlu0 %8990
  %8992 = vrot.lane.b32.xlu0 %v8683, 121
  %v8993 = vpop.permute.xlu0 %8992
  %8994 = vrot.lane.b32.xlu0 %v8667, 121
  %v8995 = vpop.permute.xlu0 %8994
  %8996 = vrot.lane.b32.xlu0 %v8684, 121
  %v8997 = vpop.permute.xlu0 %8996
  %8998 = vrot.lane.b32.xlu0 %v8685, 121
  %v8999 = vpop.permute.xlu0 %8998
  %9000 = vrot.lane.b32.xlu0 %v8673, 121
  %v9001 = vpop.permute.xlu0 %9000
  %9002 = vrot.lane.b32.xlu0 %v8686, 121
  %v9003 = vpop.permute.xlu0 %9002
  %9004 = vrot.lane.b32.xlu0 %v8687, 121
  %v9005 = vpop.permute.xlu0 %9004
  %9006 = vrot.lane.b32.xlu0 %v8679, 121
  %v9007 = vpop.permute.xlu0 %9006
  %9008 = vrot.lane.b32.xlu0 %v8724, 121
  %v9009 = vpop.permute.xlu0 %9008
  %9010 = vrot.lane.b32.xlu0 %v8725, 121
  %v9011 = vpop.permute.xlu0 %9010
  %9012 = vrot.lane.b32.xlu0 %v8705, 121
  %v9013 = vpop.permute.xlu0 %9012
  %9014 = vrot.lane.b32.xlu0 %v8726, 121
  %v9015 = vpop.permute.xlu0 %9014
  %9016 = vrot.lane.b32.xlu0 %v8727, 121
  %v9017 = vpop.permute.xlu0 %9016
  %9018 = vrot.lane.b32.xlu0 %v8711, 121
  %v9019 = vpop.permute.xlu0 %9018
  %9020 = vrot.lane.b32.xlu0 %v8728, 121
  %v9021 = vpop.permute.xlu0 %9020
  %9022 = vrot.lane.b32.xlu0 %v8729, 121
  %v9023 = vpop.permute.xlu0 %9022
  %9024 = vrot.lane.b32.xlu0 %v8717, 121
  %v9025 = vpop.permute.xlu0 %9024
  %9026 = vrot.lane.b32.xlu0 %v8730, 121
  %v9027 = vpop.permute.xlu0 %9026
  %9028 = vrot.lane.b32.xlu0 %v8731, 121
  %v9029 = vpop.permute.xlu0 %9028
  %9030 = vrot.lane.b32.xlu0 %v8723, 121
  %v9031 = vpop.permute.xlu0 %9030
  %9032 = vrot.lane.b32.xlu0 %v8768, 121
  %v9033 = vpop.permute.xlu0 %9032
  %9034 = vrot.lane.b32.xlu0 %v8769, 121
  %v9035 = vpop.permute.xlu0 %9034
  %9036 = vrot.lane.b32.xlu0 %v8749, 121
  %v9037 = vpop.permute.xlu0 %9036
  %9038 = vrot.lane.b32.xlu0 %v8770, 121
  %v9039 = vpop.permute.xlu0 %9038
  %9040 = vrot.lane.b32.xlu0 %v8771, 121
  %v9041 = vpop.permute.xlu0 %9040
  %9042 = vrot.lane.b32.xlu0 %v8755, 121
  %v9043 = vpop.permute.xlu0 %9042
  %9044 = vrot.lane.b32.xlu0 %v8772, 121
  %v9045 = vpop.permute.xlu0 %9044
  %9046 = vrot.lane.b32.xlu0 %v8773, 121
  %v9047 = vpop.permute.xlu0 %9046
  %9048 = vrot.lane.b32.xlu0 %v8761, 121
  %v9049 = vpop.permute.xlu0 %9048
  %9050 = vrot.lane.b32.xlu0 %v8774, 121
  %v9051 = vpop.permute.xlu0 %9050
  %9052 = vrot.lane.b32.xlu0 %v8775, 121
  %v9053 = vpop.permute.xlu0 %9052
  %9054 = vrot.lane.b32.xlu0 %v8767, 121
  %v9055 = vpop.permute.xlu0 %9054
  %9056 = vrot.lane.b32.xlu0 %v8800, 121
  %v9057 = vpop.permute.xlu0 %9056
  %9058 = vrot.lane.b32.xlu0 %v8801, 121
  %v9059 = vpop.permute.xlu0 %9058
  %9060 = vrot.lane.b32.xlu0 %v8781, 121
  %v9061 = vpop.permute.xlu0 %9060
  %9062 = vrot.lane.b32.xlu0 %v8802, 121
  %v9063 = vpop.permute.xlu0 %9062
  %9064 = vrot.lane.b32.xlu0 %v8803, 121
  %v9065 = vpop.permute.xlu0 %9064
  %9066 = vrot.lane.b32.xlu0 %v8787, 121
  %v9067 = vpop.permute.xlu0 %9066
  %9068 = vrot.lane.b32.xlu0 %v8804, 121
  %v9069 = vpop.permute.xlu0 %9068
  %9070 = vrot.lane.b32.xlu0 %v8805, 121
  %v9071 = vpop.permute.xlu0 %9070
  %9072 = vrot.lane.b32.xlu0 %v8793, 121
  %v9073 = vpop.permute.xlu0 %9072
  %9074 = vrot.lane.b32.xlu0 %v8806, 121
  %v9075 = vpop.permute.xlu0 %9074
  %9076 = vrot.lane.b32.xlu0 %v8807, 121
  %v9077 = vpop.permute.xlu0 %9076
  %9078 = vrot.lane.b32.xlu0 %v8799, 121
  %v9079 = vpop.permute.xlu0 %9078
  %9080 = vrot.lane.b32.xlu0 %v8844, 121
  %v9081 = vpop.permute.xlu0 %9080
  %9082 = vrot.lane.b32.xlu0 %v8845, 121
  %v9083 = vpop.permute.xlu0 %9082
  %9084 = vrot.lane.b32.xlu0 %v8825, 121
  %v9085 = vpop.permute.xlu0 %9084
  %9086 = vrot.lane.b32.xlu0 %v8846, 121
  %v9087 = vpop.permute.xlu0 %9086
  %9088 = vrot.lane.b32.xlu0 %v8847, 121
  %v9089 = vpop.permute.xlu0 %9088
  %9090 = vrot.lane.b32.xlu0 %v8831, 121
  %v9091 = vpop.permute.xlu0 %9090
  %9092 = vrot.lane.b32.xlu0 %v8848, 121
  %v9093 = vpop.permute.xlu0 %9092
  %9094 = vrot.lane.b32.xlu0 %v8849, 121
  %v9095 = vpop.permute.xlu0 %9094
  %9096 = vrot.lane.b32.xlu0 %v8837, 121
  %v9097 = vpop.permute.xlu0 %9096
  %9098 = vrot.lane.b32.xlu0 %v8850, 121
  %v9099 = vpop.permute.xlu0 %9098
  %9100 = vrot.lane.b32.xlu0 %v8851, 121
  %v9101 = vpop.permute.xlu0 %9100
  %9102 = vrot.lane.b32.xlu0 %v8843, 121
  %v9103 = vpop.permute.xlu0 %9102
  %v9104 = vsel %vm1626, %v8889, %v8891
  %v9105 = vsel %vm1626, %v8891, %v8893
  %v9106 = vsel %vm1626, %v8895, %v8897
  %v9107 = vsel %vm1626, %v8897, %v8899
  %v9108 = vsel %vm1626, %v8901, %v8903
  %v9109 = vsel %vm1626, %v8903, %v8905
  %v9110 = vsel %vm1626, %v8907, %v8909
  %v9111 = vsel %vm1626, %v8909, %v8911
  %v9112 = vsel %vm1626, %v8913, %v8915
  %v9113 = vsel %vm1626, %v8915, %v8917
  %v9114 = vsel %vm1626, %v8919, %v8921
  %v9115 = vsel %vm1626, %v8921, %v8923
  %v9116 = vsel %vm1626, %v8925, %v8927
  %v9117 = vsel %vm1626, %v8927, %v8929
  %v9118 = vsel %vm1626, %v8931, %v8933
  %v9119 = vsel %vm1626, %v8933, %v8935
  %v9120 = vsel %vm1626, %v8937, %v8939
  %v9121 = vsel %vm1626, %v8939, %v8941
  %v9122 = vsel %vm1626, %v8943, %v8945
  %v9123 = vsel %vm1626, %v8945, %v8947
  %v9124 = vsel %vm1626, %v8949, %v8951
  %v9125 = vsel %vm1626, %v8951, %v8953
  %v9126 = vsel %vm1626, %v8955, %v8957
  %v9127 = vsel %vm1626, %v8957, %v8959
  %v9128 = vsel %vm1626, %v8961, %v8963
  %v9129 = vsel %vm1626, %v8963, %v8965
  %v9130 = vsel %vm1626, %v8967, %v8969
  %v9131 = vsel %vm1626, %v8969, %v8971
  %v9132 = vsel %vm1626, %v8973, %v8975
  %v9133 = vsel %vm1626, %v8975, %v8977
  %v9134 = vsel %vm1626, %v8979, %v8981
  %v9135 = vsel %vm1626, %v8981, %v8983
  %v9136 = vsel %vm1626, %v8985, %v8987
  %v9137 = vsel %vm1626, %v8987, %v8989
  %v9138 = vsel %vm1626, %v8991, %v8993
  %v9139 = vsel %vm1626, %v8993, %v8995
  %v9140 = vsel %vm1626, %v8997, %v8999
  %v9141 = vsel %vm1626, %v8999, %v9001
  %v9142 = vsel %vm1626, %v9003, %v9005
  %v9143 = vsel %vm1626, %v9005, %v9007
  %v9144 = vsel %vm1626, %v9009, %v9011
  %v9145 = vsel %vm1626, %v9011, %v9013
  %v9146 = vsel %vm1626, %v9015, %v9017
  %v9147 = vsel %vm1626, %v9017, %v9019
  %v9148 = vsel %vm1626, %v9021, %v9023
  %v9149 = vsel %vm1626, %v9023, %v9025
  %v9150 = vsel %vm1626, %v9027, %v9029
  %v9151 = vsel %vm1626, %v9029, %v9031
  %v9152 = vsel %vm1626, %v9033, %v9035
  %v9153 = vsel %vm1626, %v9035, %v9037
  %v9154 = vsel %vm1626, %v9039, %v9041
  %v9155 = vsel %vm1626, %v9041, %v9043
  %v9156 = vsel %vm1626, %v9045, %v9047
  %v9157 = vsel %vm1626, %v9047, %v9049
  %v9158 = vsel %vm1626, %v9051, %v9053
  %v9159 = vsel %vm1626, %v9053, %v9055
  %v9160 = vsel %vm1626, %v9057, %v9059
  %v9161 = vsel %vm1626, %v9059, %v9061
  %v9162 = vsel %vm1626, %v9063, %v9065
  %v9163 = vsel %vm1626, %v9065, %v9067
  %v9164 = vsel %vm1626, %v9069, %v9071
  %v9165 = vsel %vm1626, %v9071, %v9073
  %v9166 = vsel %vm1626, %v9075, %v9077
  %v9167 = vsel %vm1626, %v9077, %v9079
  %v9168 = vsel %vm1626, %v9081, %v9083
  %v9169 = vsel %vm1626, %v9083, %v9085
  %v9170 = vsel %vm1626, %v9087, %v9089
  %v9171 = vsel %vm1626, %v9089, %v9091
  %v9172 = vsel %vm1626, %v9093, %v9095
  %v9173 = vsel %vm1626, %v9095, %v9097
  %v9174 = vsel %vm1626, %v9099, %v9101
  %v9175 = vsel %vm1626, %v9101, %v9103
  %vm9248 = vcmask 261120
  %v9249 = vsel %vm9248, %v8873, 0
  %v9251 = vand.u32 %v9105, 4294901760
  %9252 = vmatprep.subr.mxu0 %v9251
  %v9253 = vand.u32 %v9104, 4294901760
  %9254 = vmatpush1.msra.mxu0 %v9253
  %v9255 = vand.u32 %v9107, 4294901760
  %9256 = vmatprep.subr.mxu0 %v9255
  %v9257 = vand.u32 %v9106, 4294901760
  %9258 = vmatpush1.msra.mxu0 %v9257
  %v9259 = vand.u32 %v9109, 4294901760
  %9260 = vmatprep.subr.mxu0 %v9259
  %v9261 = vand.u32 %v9108, 4294901760
  %9262 = vmatpush1.msra.mxu0 %v9261
  %v9263 = vand.u32 %v9111, 4294901760
  %9264 = vmatprep.subr.mxu0 %v9263
  %v9265 = vand.u32 %v9110, 4294901760
  %9266 = vmatpush1.msra.mxu0 %v9265
  %v9267 = vand.u32 %v9113, 4294901760
  %9268 = vmatprep.subr.mxu0 %v9267
  %v9269 = vand.u32 %v9112, 4294901760
  %9270 = vmatpush1.msra.mxu0 %v9269
  %v9271 = vand.u32 %v9115, 4294901760
  %9272 = vmatprep.subr.mxu0 %v9271
  %v9273 = vand.u32 %v9114, 4294901760
  %9274 = vmatpush1.msra.mxu0 %v9273
  %v9275 = vand.u32 %v9117, 4294901760
  %9276 = vmatprep.subr.mxu0 %v9275
  %v9277 = vand.u32 %v9116, 4294901760
  %9278 = vmatpush1.msra.mxu0 %v9277
  %v9279 = vand.u32 %v9119, 4294901760
  %9280 = vmatprep.subr.mxu0 %v9279
  %v9281 = vand.u32 %v9118, 4294901760
  %9282 = vmatpush1.msra.mxu0 %v9281
  %v9283 = vand.u32 %v9121, 4294901760
  %9284 = vmatprep.subr.mxu0 %v9283
  %v9285 = vand.u32 %v9120, 4294901760
  %9286 = vmatpush1.msra.mxu0 %v9285
  %v9287 = vand.u32 %v9123, 4294901760
  %9288 = vmatprep.subr.mxu0 %v9287
  %v9289 = vand.u32 %v9122, 4294901760
  %9290 = vmatpush1.msra.mxu0 %v9289
  %v9291 = vand.u32 %v9125, 4294901760
  %9292 = vmatprep.subr.mxu0 %v9291
  %v9293 = vand.u32 %v9124, 4294901760
  %9294 = vmatpush1.msra.mxu0 %v9293
  %v9295 = vand.u32 %v9127, 4294901760
  %9296 = vmatprep.subr.mxu0 %v9295
  %v9297 = vand.u32 %v9126, 4294901760
  %9298 = vmatpush1.msra.mxu0 %v9297
  %v9299 = vand.u32 %v9129, 4294901760
  %9300 = vmatprep.subr.mxu0 %v9299
  %v9301 = vand.u32 %v9128, 4294901760
  %9302 = vmatpush1.msra.mxu0 %v9301
  %v9303 = vand.u32 %v9131, 4294901760
  %9304 = vmatprep.subr.mxu0 %v9303
  %v9305 = vand.u32 %v9130, 4294901760
  %9306 = vmatpush1.msra.mxu0 %v9305
  %v9307 = vand.u32 %v9133, 4294901760
  %9308 = vmatprep.subr.mxu0 %v9307
  %v9309 = vand.u32 %v9132, 4294901760
  %9310 = vmatpush1.msra.mxu0 %v9309
  %v9311 = vand.u32 %v9135, 4294901760
  %9312 = vmatprep.subr.mxu0 %v9311
  %v9313 = vand.u32 %v9134, 4294901760
  %9314 = vmatpush1.msra.mxu0 %v9313
  %v9315 = vand.u32 %v9137, 4294901760
  %9316 = vmatprep.subr.mxu0 %v9315
  %v9317 = vand.u32 %v9136, 4294901760
  %9318 = vmatpush1.msra.mxu0 %v9317
  %v9319 = vand.u32 %v9139, 4294901760
  %9320 = vmatprep.subr.mxu0 %v9319
  %v9321 = vand.u32 %v9138, 4294901760
  %9322 = vmatpush1.msra.mxu0 %v9321
  %v9323 = vand.u32 %v9141, 4294901760
  %9324 = vmatprep.subr.mxu0 %v9323
  %v9325 = vand.u32 %v9140, 4294901760
  %9326 = vmatpush1.msra.mxu0 %v9325
  %v9327 = vand.u32 %v9143, 4294901760
  %9328 = vmatprep.subr.mxu0 %v9327
  %v9329 = vand.u32 %v9142, 4294901760
  %9330 = vmatpush1.msra.mxu0 %v9329
  %v9331 = vand.u32 %v9145, 4294901760
  %9332 = vmatprep.subr.mxu0 %v9331
  %v9333 = vand.u32 %v9144, 4294901760
  %9334 = vmatpush1.msra.mxu0 %v9333
  %v9335 = vand.u32 %v9147, 4294901760
  %9336 = vmatprep.subr.mxu0 %v9335
  %v9337 = vand.u32 %v9146, 4294901760
  %9338 = vmatpush1.msra.mxu0 %v9337
  %v9339 = vand.u32 %v9149, 4294901760
  %9340 = vmatprep.subr.mxu0 %v9339
  %v9341 = vand.u32 %v9148, 4294901760
  %9342 = vmatpush1.msra.mxu0 %v9341
  %v9343 = vand.u32 %v9151, 4294901760
  %9344 = vmatprep.subr.mxu0 %v9343
  %v9345 = vand.u32 %v9150, 4294901760
  %9346 = vmatpush1.msra.mxu0 %v9345
  %v9347 = vand.u32 %v9153, 4294901760
  %9348 = vmatprep.subr.mxu0 %v9347
  %v9349 = vand.u32 %v9152, 4294901760
  %9350 = vmatpush1.msra.mxu0 %v9349
  %v9351 = vand.u32 %v9155, 4294901760
  %9352 = vmatprep.subr.mxu0 %v9351
  %v9353 = vand.u32 %v9154, 4294901760
  %9354 = vmatpush1.msra.mxu0 %v9353
  %v9355 = vand.u32 %v9157, 4294901760
  %9356 = vmatprep.subr.mxu0 %v9355
  %v9357 = vand.u32 %v9156, 4294901760
  %9358 = vmatpush1.msra.mxu0 %v9357
  %v9359 = vand.u32 %v9159, 4294901760
  %9360 = vmatprep.subr.mxu0 %v9359
  %v9361 = vand.u32 %v9158, 4294901760
  %9362 = vmatpush1.msra.mxu0 %v9361
  %v9363 = vand.u32 %v9161, 4294901760
  %9364 = vmatprep.subr.mxu0 %v9363
  %v9365 = vand.u32 %v9160, 4294901760
  %9366 = vmatpush1.msra.mxu0 %v9365
  %v9367 = vand.u32 %v9163, 4294901760
  %9368 = vmatprep.subr.mxu0 %v9367
  %v9369 = vand.u32 %v9162, 4294901760
  %9370 = vmatpush1.msra.mxu0 %v9369
  %v9371 = vand.u32 %v9165, 4294901760
  %9372 = vmatprep.subr.mxu0 %v9371
  %v9373 = vand.u32 %v9164, 4294901760
  %9374 = vmatpush1.msra.mxu0 %v9373
  %v9375 = vand.u32 %v9167, 4294901760
  %9376 = vmatprep.subr.mxu0 %v9375
  %v9377 = vand.u32 %v9166, 4294901760
  %9378 = vmatpush1.msra.mxu0 %v9377
  %v9379 = vand.u32 %v8869, 4294901760
  %v9380 = vsub.f32 %v8869, %v9379
  %v9381 = vand.u32 %v9380, 4294901760
  %v9382 = vsub.f32 %v9380, %v9381
  %v9383 = vand.u32 %v9382, 4294901760
  %9384 = vmatprep.mubr.f32.mxu0 %v9383
  %v9385 = vand.u32 %v8865, 4294901760
  %v9386 = vsub.f32 %v8865, %v9385
  %v9387 = vand.u32 %v9386, 4294901760
  %v9388 = vsub.f32 %v9386, %v9387
  %v9389 = vand.u32 %v9388, 4294901760
  %9390 = vmatmul.mubr.f32.gmra.mrb[0].mxu0 %v9389
  %v9391 = vpop.f32.mrb[0].mxu0
  %v9392 = vadd.f32 %v8860, %v9391
  %v9393 = vpop.f32.mrb[0].mxu0
  %v9394 = vadd.f32 %v8860, %v9393
  %9395 = vdwg.mxu0
  %v9396 = vand.u32 %v9105, 4294901760
  %v9397 = vsub.f32 %v9105, %v9396
  %v9398 = vand.u32 %v9397, 4294901760
  %v9399 = vsub.f32 %v9397, %v9398
  %v9400 = vand.u32 %v9399, 4294901760
  %9401 = vmatprep.subr.mxu0 %v9400
  %v9402 = vand.u32 %v9104, 4294901760
  %v9403 = vsub.f32 %v9104, %v9402
  %v9404 = vand.u32 %v9403, 4294901760
  %v9405 = vsub.f32 %v9403, %v9404
  %v9406 = vand.u32 %v9405, 4294901760
  %9407 = vmatpush1.msra.mxu0 %v9406
  %v9408 = vand.u32 %v9107, 4294901760
  %v9409 = vsub.f32 %v9107, %v9408
  %v9410 = vand.u32 %v9409, 4294901760
  %v9411 = vsub.f32 %v9409, %v9410
  %v9412 = vand.u32 %v9411, 4294901760
  %9413 = vmatprep.subr.mxu0 %v9412
  %v9414 = vand.u32 %v9106, 4294901760
  %v9415 = vsub.f32 %v9106, %v9414
  %v9416 = vand.u32 %v9415, 4294901760
  %v9417 = vsub.f32 %v9415, %v9416
  %v9418 = vand.u32 %v9417, 4294901760
  %9419 = vmatpush1.msra.mxu0 %v9418
  %v9420 = vand.u32 %v9109, 4294901760
  %v9421 = vsub.f32 %v9109, %v9420
  %v9422 = vand.u32 %v9421, 4294901760
  %v9423 = vsub.f32 %v9421, %v9422
  %v9424 = vand.u32 %v9423, 4294901760
  %9425 = vmatprep.subr.mxu0 %v9424
  %v9426 = vand.u32 %v9108, 4294901760
  %v9427 = vsub.f32 %v9108, %v9426
  %v9428 = vand.u32 %v9427, 4294901760
  %v9429 = vsub.f32 %v9427, %v9428
  %v9430 = vand.u32 %v9429, 4294901760
  %9431 = vmatpush1.msra.mxu0 %v9430
  %v9432 = vand.u32 %v9111, 4294901760
  %v9433 = vsub.f32 %v9111, %v9432
  %v9434 = vand.u32 %v9433, 4294901760
  %v9435 = vsub.f32 %v9433, %v9434
  %v9436 = vand.u32 %v9435, 4294901760
  %9437 = vmatprep.subr.mxu0 %v9436
  %v9438 = vand.u32 %v9110, 4294901760
  %v9439 = vsub.f32 %v9110, %v9438
  %v9440 = vand.u32 %v9439, 4294901760
  %v9441 = vsub.f32 %v9439, %v9440
  %v9442 = vand.u32 %v9441, 4294901760
  %9443 = vmatpush1.msra.mxu0 %v9442
  %v9444 = vand.u32 %v9113, 4294901760
  %v9445 = vsub.f32 %v9113, %v9444
  %v9446 = vand.u32 %v9445, 4294901760
  %v9447 = vsub.f32 %v9445, %v9446
  %v9448 = vand.u32 %v9447, 4294901760
  %9449 = vmatprep.subr.mxu0 %v9448
  %v9450 = vand.u32 %v9112, 4294901760
  %v9451 = vsub.f32 %v9112, %v9450
  %v9452 = vand.u32 %v9451, 4294901760
  %v9453 = vsub.f32 %v9451, %v9452
  %v9454 = vand.u32 %v9453, 4294901760
  %9455 = vmatpush1.msra.mxu0 %v9454
  %v9456 = vand.u32 %v9115, 4294901760
  %v9457 = vsub.f32 %v9115, %v9456
  %v9458 = vand.u32 %v9457, 4294901760
  %v9459 = vsub.f32 %v9457, %v9458
  %v9460 = vand.u32 %v9459, 4294901760
  %9461 = vmatprep.subr.mxu0 %v9460
  %v9462 = vand.u32 %v9114, 4294901760
  %v9463 = vsub.f32 %v9114, %v9462
  %v9464 = vand.u32 %v9463, 4294901760
  %v9465 = vsub.f32 %v9463, %v9464
  %v9466 = vand.u32 %v9465, 4294901760
  %9467 = vmatpush1.msra.mxu0 %v9466
  %v9468 = vand.u32 %v9117, 4294901760
  %v9469 = vsub.f32 %v9117, %v9468
  %v9470 = vand.u32 %v9469, 4294901760
  %v9471 = vsub.f32 %v9469, %v9470
  %v9472 = vand.u32 %v9471, 4294901760
  %9473 = vmatprep.subr.mxu0 %v9472
  %v9474 = vand.u32 %v9116, 4294901760
  %v9475 = vsub.f32 %v9116, %v9474
  %v9476 = vand.u32 %v9475, 4294901760
  %v9477 = vsub.f32 %v9475, %v9476
  %v9478 = vand.u32 %v9477, 4294901760
  %9479 = vmatpush1.msra.mxu0 %v9478
  %v9480 = vand.u32 %v9119, 4294901760
  %v9481 = vsub.f32 %v9119, %v9480
  %v9482 = vand.u32 %v9481, 4294901760
  %v9483 = vsub.f32 %v9481, %v9482
  %v9484 = vand.u32 %v9483, 4294901760
  %9485 = vmatprep.subr.mxu0 %v9484
  %v9486 = vand.u32 %v9118, 4294901760
  %v9487 = vsub.f32 %v9118, %v9486
  %v9488 = vand.u32 %v9487, 4294901760
  %v9489 = vsub.f32 %v9487, %v9488
  %v9490 = vand.u32 %v9489, 4294901760
  %9491 = vmatpush1.msra.mxu0 %v9490
  %v9492 = vand.u32 %v9121, 4294901760
  %v9493 = vsub.f32 %v9121, %v9492
  %v9494 = vand.u32 %v9493, 4294901760
  %v9495 = vsub.f32 %v9493, %v9494
  %v9496 = vand.u32 %v9495, 4294901760
  %9497 = vmatprep.subr.mxu0 %v9496
  %v9498 = vand.u32 %v9120, 4294901760
  %v9499 = vsub.f32 %v9120, %v9498
  %v9500 = vand.u32 %v9499, 4294901760
  %v9501 = vsub.f32 %v9499, %v9500
  %v9502 = vand.u32 %v9501, 4294901760
  %9503 = vmatpush1.msra.mxu0 %v9502
  %v9504 = vand.u32 %v9123, 4294901760
  %v9505 = vsub.f32 %v9123, %v9504
  %v9506 = vand.u32 %v9505, 4294901760
  %v9507 = vsub.f32 %v9505, %v9506
  %v9508 = vand.u32 %v9507, 4294901760
  %9509 = vmatprep.subr.mxu0 %v9508
  %v9510 = vand.u32 %v9122, 4294901760
  %v9511 = vsub.f32 %v9122, %v9510
  %v9512 = vand.u32 %v9511, 4294901760
  %v9513 = vsub.f32 %v9511, %v9512
  %v9514 = vand.u32 %v9513, 4294901760
  %9515 = vmatpush1.msra.mxu0 %v9514
  %v9516 = vand.u32 %v9125, 4294901760
  %v9517 = vsub.f32 %v9125, %v9516
  %v9518 = vand.u32 %v9517, 4294901760
  %v9519 = vsub.f32 %v9517, %v9518
  %v9520 = vand.u32 %v9519, 4294901760
  %9521 = vmatprep.subr.mxu0 %v9520
  %v9522 = vand.u32 %v9124, 4294901760
  %v9523 = vsub.f32 %v9124, %v9522
  %v9524 = vand.u32 %v9523, 4294901760
  %v9525 = vsub.f32 %v9523, %v9524
  %v9526 = vand.u32 %v9525, 4294901760
  %9527 = vmatpush1.msra.mxu0 %v9526
  %v9528 = vand.u32 %v9127, 4294901760
  %v9529 = vsub.f32 %v9127, %v9528
  %v9530 = vand.u32 %v9529, 4294901760
  %v9531 = vsub.f32 %v9529, %v9530
  %v9532 = vand.u32 %v9531, 4294901760
  %9533 = vmatprep.subr.mxu0 %v9532
  %v9534 = vand.u32 %v9126, 4294901760
  %v9535 = vsub.f32 %v9126, %v9534
  %v9536 = vand.u32 %v9535, 4294901760
  %v9537 = vsub.f32 %v9535, %v9536
  %v9538 = vand.u32 %v9537, 4294901760
  %9539 = vmatpush1.msra.mxu0 %v9538
  %v9540 = vand.u32 %v9129, 4294901760
  %v9541 = vsub.f32 %v9129, %v9540
  %v9542 = vand.u32 %v9541, 4294901760
  %v9543 = vsub.f32 %v9541, %v9542
  %v9544 = vand.u32 %v9543, 4294901760
  %9545 = vmatprep.subr.mxu0 %v9544
  %v9546 = vand.u32 %v9128, 4294901760
  %v9547 = vsub.f32 %v9128, %v9546
  %v9548 = vand.u32 %v9547, 4294901760
  %v9549 = vsub.f32 %v9547, %v9548
  %v9550 = vand.u32 %v9549, 4294901760
  %9551 = vmatpush1.msra.mxu0 %v9550
  %v9552 = vand.u32 %v9131, 4294901760
  %v9553 = vsub.f32 %v9131, %v9552
  %v9554 = vand.u32 %v9553, 4294901760
  %v9555 = vsub.f32 %v9553, %v9554
  %v9556 = vand.u32 %v9555, 4294901760
  %9557 = vmatprep.subr.mxu0 %v9556
  %v9558 = vand.u32 %v9130, 4294901760
  %v9559 = vsub.f32 %v9130, %v9558
  %v9560 = vand.u32 %v9559, 4294901760
  %v9561 = vsub.f32 %v9559, %v9560
  %v9562 = vand.u32 %v9561, 4294901760
  %9563 = vmatpush1.msra.mxu0 %v9562
  %v9564 = vand.u32 %v9133, 4294901760
  %v9565 = vsub.f32 %v9133, %v9564
  %v9566 = vand.u32 %v9565, 4294901760
  %v9567 = vsub.f32 %v9565, %v9566
  %v9568 = vand.u32 %v9567, 4294901760
  %9569 = vmatprep.subr.mxu0 %v9568
  %v9570 = vand.u32 %v9132, 4294901760
  %v9571 = vsub.f32 %v9132, %v9570
  %v9572 = vand.u32 %v9571, 4294901760
  %v9573 = vsub.f32 %v9571, %v9572
  %v9574 = vand.u32 %v9573, 4294901760
  %9575 = vmatpush1.msra.mxu0 %v9574
  %v9576 = vand.u32 %v9135, 4294901760
  %v9577 = vsub.f32 %v9135, %v9576
  %v9578 = vand.u32 %v9577, 4294901760
  %v9579 = vsub.f32 %v9577, %v9578
  %v9580 = vand.u32 %v9579, 4294901760
  %9581 = vmatprep.subr.mxu0 %v9580
  %v9582 = vand.u32 %v9134, 4294901760
  %v9583 = vsub.f32 %v9134, %v9582
  %v9584 = vand.u32 %v9583, 4294901760
  %v9585 = vsub.f32 %v9583, %v9584
  %v9586 = vand.u32 %v9585, 4294901760
  %9587 = vmatpush1.msra.mxu0 %v9586
  %v9588 = vand.u32 %v9137, 4294901760
  %v9589 = vsub.f32 %v9137, %v9588
  %v9590 = vand.u32 %v9589, 4294901760
  %v9591 = vsub.f32 %v9589, %v9590
  %v9592 = vand.u32 %v9591, 4294901760
  %9593 = vmatprep.subr.mxu0 %v9592
  %v9594 = vand.u32 %v9136, 4294901760
  %v9595 = vsub.f32 %v9136, %v9594
  %v9596 = vand.u32 %v9595, 4294901760
  %v9597 = vsub.f32 %v9595, %v9596
  %v9598 = vand.u32 %v9597, 4294901760
  %9599 = vmatpush1.msra.mxu0 %v9598
  %v9600 = vand.u32 %v9139, 4294901760
  %v9601 = vsub.f32 %v9139, %v9600
  %v9602 = vand.u32 %v9601, 4294901760
  %v9603 = vsub.f32 %v9601, %v9602
  %v9604 = vand.u32 %v9603, 4294901760
  %9605 = vmatprep.subr.mxu0 %v9604
  %v9606 = vand.u32 %v9138, 4294901760
  %v9607 = vsub.f32 %v9138, %v9606
  %v9608 = vand.u32 %v9607, 4294901760
  %v9609 = vsub.f32 %v9607, %v9608
  %v9610 = vand.u32 %v9609, 4294901760
  %9611 = vmatpush1.msra.mxu0 %v9610
  %v9612 = vand.u32 %v9141, 4294901760
  %v9613 = vsub.f32 %v9141, %v9612
  %v9614 = vand.u32 %v9613, 4294901760
  %v9615 = vsub.f32 %v9613, %v9614
  %v9616 = vand.u32 %v9615, 4294901760
  %9617 = vmatprep.subr.mxu0 %v9616
  %v9618 = vand.u32 %v9140, 4294901760
  %v9619 = vsub.f32 %v9140, %v9618
  %v9620 = vand.u32 %v9619, 4294901760
  %v9621 = vsub.f32 %v9619, %v9620
  %v9622 = vand.u32 %v9621, 4294901760
  %9623 = vmatpush1.msra.mxu0 %v9622
  %v9624 = vand.u32 %v9143, 4294901760
  %v9625 = vsub.f32 %v9143, %v9624
  %v9626 = vand.u32 %v9625, 4294901760
  %v9627 = vsub.f32 %v9625, %v9626
  %v9628 = vand.u32 %v9627, 4294901760
  %9629 = vmatprep.subr.mxu0 %v9628
  %v9630 = vand.u32 %v9142, 4294901760
  %v9631 = vsub.f32 %v9142, %v9630
  %v9632 = vand.u32 %v9631, 4294901760
  %v9633 = vsub.f32 %v9631, %v9632
  %v9634 = vand.u32 %v9633, 4294901760
  %9635 = vmatpush1.msra.mxu0 %v9634
  %v9636 = vand.u32 %v9145, 4294901760
  %v9637 = vsub.f32 %v9145, %v9636
  %v9638 = vand.u32 %v9637, 4294901760
  %v9639 = vsub.f32 %v9637, %v9638
  %v9640 = vand.u32 %v9639, 4294901760
  %9641 = vmatprep.subr.mxu0 %v9640
  %v9642 = vand.u32 %v9144, 4294901760
  %v9643 = vsub.f32 %v9144, %v9642
  %v9644 = vand.u32 %v9643, 4294901760
  %v9645 = vsub.f32 %v9643, %v9644
  %v9646 = vand.u32 %v9645, 4294901760
  %9647 = vmatpush1.msra.mxu0 %v9646
  %v9648 = vand.u32 %v9147, 4294901760
  %v9649 = vsub.f32 %v9147, %v9648
  %v9650 = vand.u32 %v9649, 4294901760
  %v9651 = vsub.f32 %v9649, %v9650
  %v9652 = vand.u32 %v9651, 4294901760
  %9653 = vmatprep.subr.mxu0 %v9652
  %v9654 = vand.u32 %v9146, 4294901760
  %v9655 = vsub.f32 %v9146, %v9654
  %v9656 = vand.u32 %v9655, 4294901760
  %v9657 = vsub.f32 %v9655, %v9656
  %v9658 = vand.u32 %v9657, 4294901760
  %9659 = vmatpush1.msra.mxu0 %v9658
  %v9660 = vand.u32 %v9149, 4294901760
  %v9661 = vsub.f32 %v9149, %v9660
  %v9662 = vand.u32 %v9661, 4294901760
  %v9663 = vsub.f32 %v9661, %v9662
  %v9664 = vand.u32 %v9663, 4294901760
  %9665 = vmatprep.subr.mxu0 %v9664
  %v9666 = vand.u32 %v9148, 4294901760
  %v9667 = vsub.f32 %v9148, %v9666
  %v9668 = vand.u32 %v9667, 4294901760
  %v9669 = vsub.f32 %v9667, %v9668
  %v9670 = vand.u32 %v9669, 4294901760
  %9671 = vmatpush1.msra.mxu0 %v9670
  %v9672 = vand.u32 %v9151, 4294901760
  %v9673 = vsub.f32 %v9151, %v9672
  %v9674 = vand.u32 %v9673, 4294901760
  %v9675 = vsub.f32 %v9673, %v9674
  %v9676 = vand.u32 %v9675, 4294901760
  %9677 = vmatprep.subr.mxu0 %v9676
  %v9678 = vand.u32 %v9150, 4294901760
  %v9679 = vsub.f32 %v9150, %v9678
  %v9680 = vand.u32 %v9679, 4294901760
  %v9681 = vsub.f32 %v9679, %v9680
  %v9682 = vand.u32 %v9681, 4294901760
  %9683 = vmatpush1.msra.mxu0 %v9682
  %v9684 = vand.u32 %v9153, 4294901760
  %v9685 = vsub.f32 %v9153, %v9684
  %v9686 = vand.u32 %v9685, 4294901760
  %v9687 = vsub.f32 %v9685, %v9686
  %v9688 = vand.u32 %v9687, 4294901760
  %9689 = vmatprep.subr.mxu0 %v9688
  %v9690 = vand.u32 %v9152, 4294901760
  %v9691 = vsub.f32 %v9152, %v9690
  %v9692 = vand.u32 %v9691, 4294901760
  %v9693 = vsub.f32 %v9691, %v9692
  %v9694 = vand.u32 %v9693, 4294901760
  %9695 = vmatpush1.msra.mxu0 %v9694
  %v9696 = vand.u32 %v9155, 4294901760
  %v9697 = vsub.f32 %v9155, %v9696
  %v9698 = vand.u32 %v9697, 4294901760
  %v9699 = vsub.f32 %v9697, %v9698
  %v9700 = vand.u32 %v9699, 4294901760
  %9701 = vmatprep.subr.mxu0 %v9700
  %v9702 = vand.u32 %v9154, 4294901760
  %v9703 = vsub.f32 %v9154, %v9702
  %v9704 = vand.u32 %v9703, 4294901760
  %v9705 = vsub.f32 %v9703, %v9704
  %v9706 = vand.u32 %v9705, 4294901760
  %9707 = vmatpush1.msra.mxu0 %v9706
  %v9708 = vand.u32 %v9157, 4294901760
  %v9709 = vsub.f32 %v9157, %v9708
  %v9710 = vand.u32 %v9709, 4294901760
  %v9711 = vsub.f32 %v9709, %v9710
  %v9712 = vand.u32 %v9711, 4294901760
  %9713 = vmatprep.subr.mxu0 %v9712
  %v9714 = vand.u32 %v9156, 4294901760
  %v9715 = vsub.f32 %v9156, %v9714
  %v9716 = vand.u32 %v9715, 4294901760
  %v9717 = vsub.f32 %v9715, %v9716
  %v9718 = vand.u32 %v9717, 4294901760
  %9719 = vmatpush1.msra.mxu0 %v9718
  %v9720 = vand.u32 %v9159, 4294901760
  %v9721 = vsub.f32 %v9159, %v9720
  %v9722 = vand.u32 %v9721, 4294901760
  %v9723 = vsub.f32 %v9721, %v9722
  %v9724 = vand.u32 %v9723, 4294901760
  %9725 = vmatprep.subr.mxu0 %v9724
  %v9726 = vand.u32 %v9158, 4294901760
  %v9727 = vsub.f32 %v9158, %v9726
  %v9728 = vand.u32 %v9727, 4294901760
  %v9729 = vsub.f32 %v9727, %v9728
  %v9730 = vand.u32 %v9729, 4294901760
  %9731 = vmatpush1.msra.mxu0 %v9730
  %v9732 = vand.u32 %v9161, 4294901760
  %v9733 = vsub.f32 %v9161, %v9732
  %v9734 = vand.u32 %v9733, 4294901760
  %v9735 = vsub.f32 %v9733, %v9734
  %v9736 = vand.u32 %v9735, 4294901760
  %9737 = vmatprep.subr.mxu0 %v9736
  %v9738 = vand.u32 %v9160, 4294901760
  %v9739 = vsub.f32 %v9160, %v9738
  %v9740 = vand.u32 %v9739, 4294901760
  %v9741 = vsub.f32 %v9739, %v9740
  %v9742 = vand.u32 %v9741, 4294901760
  %9743 = vmatpush1.msra.mxu0 %v9742
  %v9744 = vand.u32 %v9163, 4294901760
  %v9745 = vsub.f32 %v9163, %v9744
  %v9746 = vand.u32 %v9745, 4294901760
  %v9747 = vsub.f32 %v9745, %v9746
  %v9748 = vand.u32 %v9747, 4294901760
  %9749 = vmatprep.subr.mxu0 %v9748
  %v9750 = vand.u32 %v9162, 4294901760
  %v9751 = vsub.f32 %v9162, %v9750
  %v9752 = vand.u32 %v9751, 4294901760
  %v9753 = vsub.f32 %v9751, %v9752
  %v9754 = vand.u32 %v9753, 4294901760
  %9755 = vmatpush1.msra.mxu0 %v9754
  %v9756 = vand.u32 %v9165, 4294901760
  %v9757 = vsub.f32 %v9165, %v9756
  %v9758 = vand.u32 %v9757, 4294901760
  %v9759 = vsub.f32 %v9757, %v9758
  %v9760 = vand.u32 %v9759, 4294901760
  %9761 = vmatprep.subr.mxu0 %v9760
  %v9762 = vand.u32 %v9164, 4294901760
  %v9763 = vsub.f32 %v9164, %v9762
  %v9764 = vand.u32 %v9763, 4294901760
  %v9765 = vsub.f32 %v9763, %v9764
  %v9766 = vand.u32 %v9765, 4294901760
  %9767 = vmatpush1.msra.mxu0 %v9766
  %v9768 = vand.u32 %v9167, 4294901760
  %v9769 = vsub.f32 %v9167, %v9768
  %v9770 = vand.u32 %v9769, 4294901760
  %v9771 = vsub.f32 %v9769, %v9770
  %v9772 = vand.u32 %v9771, 4294901760
  %9773 = vmatprep.subr.mxu0 %v9772
  %v9774 = vand.u32 %v9166, 4294901760
  %v9775 = vsub.f32 %v9166, %v9774
  %v9776 = vand.u32 %v9775, 4294901760
  %v9777 = vsub.f32 %v9775, %v9776
  %v9778 = vand.u32 %v9777, 4294901760
  %9779 = vmatpush1.msra.mxu0 %v9778
  %v9780 = vand.u32 %v8869, 4294901760
  %9781 = vmatprep.mubr.f32.mxu0 %v9780
  %v9782 = vand.u32 %v8865, 4294901760
  %9783 = vmatmul.mubr.f32.gmra.mrb[0].mxu0 %v9782
  %v9784 = vpop.f32.mrb[0].mxu0
  %v9785 = vadd.f32 %v9392, %v9784
  %v9786 = vpop.f32.mrb[0].mxu0
  %v9787 = vadd.f32 %v9394, %v9786
  %9788 = vdwg.mxu0
  %v9789 = vand.u32 %v9105, 4294901760
  %v9790 = vsub.f32 %v9105, %v9789
  %9791 = vmatprep.subr.mxu0 %v9790
  %v9792 = vand.u32 %v9104, 4294901760
  %v9793 = vsub.f32 %v9104, %v9792
  %9794 = vmatpush1.msra.mxu0 %v9793
  %v9795 = vand.u32 %v9107, 4294901760
  %v9796 = vsub.f32 %v9107, %v9795
  %9797 = vmatprep.subr.mxu0 %v9796
  %v9798 = vand.u32 %v9106, 4294901760
  %v9799 = vsub.f32 %v9106, %v9798
  %9800 = vmatpush1.msra.mxu0 %v9799
  %v9801 = vand.u32 %v9109, 4294901760
  %v9802 = vsub.f32 %v9109, %v9801
  %9803 = vmatprep.subr.mxu0 %v9802
  %v9804 = vand.u32 %v9108, 4294901760
  %v9805 = vsub.f32 %v9108, %v9804
  %9806 = vmatpush1.msra.mxu0 %v9805
  %v9807 = vand.u32 %v9111, 4294901760
  %v9808 = vsub.f32 %v9111, %v9807
  %9809 = vmatprep.subr.mxu0 %v9808
  %v9810 = vand.u32 %v9110, 4294901760
  %v9811 = vsub.f32 %v9110, %v9810
  %9812 = vmatpush1.msra.mxu0 %v9811
  %v9813 = vand.u32 %v9113, 4294901760
  %v9814 = vsub.f32 %v9113, %v9813
  %9815 = vmatprep.subr.mxu0 %v9814
  %v9816 = vand.u32 %v9112, 4294901760
  %v9817 = vsub.f32 %v9112, %v9816
  %9818 = vmatpush1.msra.mxu0 %v9817
  %v9819 = vand.u32 %v9115, 4294901760
  %v9820 = vsub.f32 %v9115, %v9819
  %9821 = vmatprep.subr.mxu0 %v9820
  %v9822 = vand.u32 %v9114, 4294901760
  %v9823 = vsub.f32 %v9114, %v9822
  %9824 = vmatpush1.msra.mxu0 %v9823
  %v9825 = vand.u32 %v9117, 4294901760
  %v9826 = vsub.f32 %v9117, %v9825
  %9827 = vmatprep.subr.mxu0 %v9826
  %v9828 = vand.u32 %v9116, 4294901760
  %v9829 = vsub.f32 %v9116, %v9828
  %9830 = vmatpush1.msra.mxu0 %v9829
  %v9831 = vand.u32 %v9119, 4294901760
  %v9832 = vsub.f32 %v9119, %v9831
  %9833 = vmatprep.subr.mxu0 %v9832
  %v9834 = vand.u32 %v9118, 4294901760
  %v9835 = vsub.f32 %v9118, %v9834
  %9836 = vmatpush1.msra.mxu0 %v9835
  %v9837 = vand.u32 %v9121, 4294901760
  %v9838 = vsub.f32 %v9121, %v9837
  %9839 = vmatprep.subr.mxu0 %v9838
  %v9840 = vand.u32 %v9120, 4294901760
  %v9841 = vsub.f32 %v9120, %v9840
  %9842 = vmatpush1.msra.mxu0 %v9841
  %v9843 = vand.u32 %v9123, 4294901760
  %v9844 = vsub.f32 %v9123, %v9843
  %9845 = vmatprep.subr.mxu0 %v9844
  %v9846 = vand.u32 %v9122, 4294901760
  %v9847 = vsub.f32 %v9122, %v9846
  %9848 = vmatpush1.msra.mxu0 %v9847
  %v9849 = vand.u32 %v9125, 4294901760
  %v9850 = vsub.f32 %v9125, %v9849
  %9851 = vmatprep.subr.mxu0 %v9850
  %v9852 = vand.u32 %v9124, 4294901760
  %v9853 = vsub.f32 %v9124, %v9852
  %9854 = vmatpush1.msra.mxu0 %v9853
  %v9855 = vand.u32 %v9127, 4294901760
  %v9856 = vsub.f32 %v9127, %v9855
  %9857 = vmatprep.subr.mxu0 %v9856
  %v9858 = vand.u32 %v9126, 4294901760
  %v9859 = vsub.f32 %v9126, %v9858
  %9860 = vmatpush1.msra.mxu0 %v9859
  %v9861 = vand.u32 %v9129, 4294901760
  %v9862 = vsub.f32 %v9129, %v9861
  %9863 = vmatprep.subr.mxu0 %v9862
  %v9864 = vand.u32 %v9128, 4294901760
  %v9865 = vsub.f32 %v9128, %v9864
  %9866 = vmatpush1.msra.mxu0 %v9865
  %v9867 = vand.u32 %v9131, 4294901760
  %v9868 = vsub.f32 %v9131, %v9867
  %9869 = vmatprep.subr.mxu0 %v9868
  %v9870 = vand.u32 %v9130, 4294901760
  %v9871 = vsub.f32 %v9130, %v9870
  %9872 = vmatpush1.msra.mxu0 %v9871
  %v9873 = vand.u32 %v9133, 4294901760
  %v9874 = vsub.f32 %v9133, %v9873
  %9875 = vmatprep.subr.mxu0 %v9874
  %v9876 = vand.u32 %v9132, 4294901760
  %v9877 = vsub.f32 %v9132, %v9876
  %9878 = vmatpush1.msra.mxu0 %v9877
  %v9879 = vand.u32 %v9135, 4294901760
  %v9880 = vsub.f32 %v9135, %v9879
  %9881 = vmatprep.subr.mxu0 %v9880
  %v9882 = vand.u32 %v9134, 4294901760
  %v9883 = vsub.f32 %v9134, %v9882
  %9884 = vmatpush1.msra.mxu0 %v9883
  %v9885 = vand.u32 %v9137, 4294901760
  %v9886 = vsub.f32 %v9137, %v9885
  %9887 = vmatprep.subr.mxu0 %v9886
  %v9888 = vand.u32 %v9136, 4294901760
  %v9889 = vsub.f32 %v9136, %v9888
  %9890 = vmatpush1.msra.mxu0 %v9889
  %v9891 = vand.u32 %v9139, 4294901760
  %v9892 = vsub.f32 %v9139, %v9891
  %9893 = vmatprep.subr.mxu0 %v9892
  %v9894 = vand.u32 %v9138, 4294901760
  %v9895 = vsub.f32 %v9138, %v9894
  %9896 = vmatpush1.msra.mxu0 %v9895
  %v9897 = vand.u32 %v9141, 4294901760
  %v9898 = vsub.f32 %v9141, %v9897
  %9899 = vmatprep.subr.mxu0 %v9898
  %v9900 = vand.u32 %v9140, 4294901760
  %v9901 = vsub.f32 %v9140, %v9900
  %9902 = vmatpush1.msra.mxu0 %v9901
  %v9903 = vand.u32 %v9143, 4294901760
  %v9904 = vsub.f32 %v9143, %v9903
  %9905 = vmatprep.subr.mxu0 %v9904
  %v9906 = vand.u32 %v9142, 4294901760
  %v9907 = vsub.f32 %v9142, %v9906
  %9908 = vmatpush1.msra.mxu0 %v9907
  %v9909 = vand.u32 %v9145, 4294901760
  %v9910 = vsub.f32 %v9145, %v9909
  %9911 = vmatprep.subr.mxu0 %v9910
  %v9912 = vand.u32 %v9144, 4294901760
  %v9913 = vsub.f32 %v9144, %v9912
  %9914 = vmatpush1.msra.mxu0 %v9913
  %v9915 = vand.u32 %v9147, 4294901760
  %v9916 = vsub.f32 %v9147, %v9915
  %9917 = vmatprep.subr.mxu0 %v9916
  %v9918 = vand.u32 %v9146, 4294901760
  %v9919 = vsub.f32 %v9146, %v9918
  %9920 = vmatpush1.msra.mxu0 %v9919
  %v9921 = vand.u32 %v9149, 4294901760
  %v9922 = vsub.f32 %v9149, %v9921
  %9923 = vmatprep.subr.mxu0 %v9922
  %v9924 = vand.u32 %v9148, 4294901760
  %v9925 = vsub.f32 %v9148, %v9924
  %9926 = vmatpush1.msra.mxu0 %v9925
  %v9927 = vand.u32 %v9151, 4294901760
  %v9928 = vsub.f32 %v9151, %v9927
  %9929 = vmatprep.subr.mxu0 %v9928
  %v9930 = vand.u32 %v9150, 4294901760
  %v9931 = vsub.f32 %v9150, %v9930
  %9932 = vmatpush1.msra.mxu0 %v9931
  %v9933 = vand.u32 %v9153, 4294901760
  %v9934 = vsub.f32 %v9153, %v9933
  %9935 = vmatprep.subr.mxu0 %v9934
  %v9936 = vand.u32 %v9152, 4294901760
  %v9937 = vsub.f32 %v9152, %v9936
  %9938 = vmatpush1.msra.mxu0 %v9937
  %v9939 = vand.u32 %v9155, 4294901760
  %v9940 = vsub.f32 %v9155, %v9939
  %9941 = vmatprep.subr.mxu0 %v9940
  %v9942 = vand.u32 %v9154, 4294901760
  %v9943 = vsub.f32 %v9154, %v9942
  %9944 = vmatpush1.msra.mxu0 %v9943
  %v9945 = vand.u32 %v9157, 4294901760
  %v9946 = vsub.f32 %v9157, %v9945
  %9947 = vmatprep.subr.mxu0 %v9946
  %v9948 = vand.u32 %v9156, 4294901760
  %v9949 = vsub.f32 %v9156, %v9948
  %9950 = vmatpush1.msra.mxu0 %v9949
  %v9951 = vand.u32 %v9159, 4294901760
  %v9952 = vsub.f32 %v9159, %v9951
  %9953 = vmatprep.subr.mxu0 %v9952
  %v9954 = vand.u32 %v9158, 4294901760
  %v9955 = vsub.f32 %v9158, %v9954
  %9956 = vmatpush1.msra.mxu0 %v9955
  %v9957 = vand.u32 %v9161, 4294901760
  %v9958 = vsub.f32 %v9161, %v9957
  %9959 = vmatprep.subr.mxu0 %v9958
  %v9960 = vand.u32 %v9160, 4294901760
  %v9961 = vsub.f32 %v9160, %v9960
  %9962 = vmatpush1.msra.mxu0 %v9961
  %v9963 = vand.u32 %v9163, 4294901760
  %v9964 = vsub.f32 %v9163, %v9963
  %9965 = vmatprep.subr.mxu0 %v9964
  %v9966 = vand.u32 %v9162, 4294901760
  %v9967 = vsub.f32 %v9162, %v9966
  %9968 = vmatpush1.msra.mxu0 %v9967
  %v9969 = vand.u32 %v9165, 4294901760
  %v9970 = vsub.f32 %v9165, %v9969
  %9971 = vmatprep.subr.mxu0 %v9970
  %v9972 = vand.u32 %v9164, 4294901760
  %v9973 = vsub.f32 %v9164, %v9972
  %9974 = vmatpush1.msra.mxu0 %v9973
  %v9975 = vand.u32 %v9167, 4294901760
  %v9976 = vsub.f32 %v9167, %v9975
  %9977 = vmatprep.subr.mxu0 %v9976
  %v9978 = vand.u32 %v9166, 4294901760
  %v9979 = vsub.f32 %v9166, %v9978
  %9980 = vmatpush1.msra.mxu0 %v9979
  %v9981 = vand.u32 %v8869, 4294901760
  %v9982 = vsub.f32 %v8869, %v9981
  %9983 = vmatprep.mubr.f32.mxu0 %v9982
  %v9984 = vand.u32 %v8865, 4294901760
  %v9985 = vsub.f32 %v8865, %v9984
  %9986 = vmatmul.mubr.f32.gmra.mrb[0].mxu0 %v9985
  %v9987 = vpop.f32.mrb[0].mxu0
  %v9988 = vadd.f32 %v9785, %v9987
  %v9989 = vpop.f32.mrb[0].mxu0
  %v9990 = vadd.f32 %v9787, %v9989
  %9991 = vdwg.mxu0
  %v9992 = vand.u32 %v9105, 4294901760
  %9993 = vmatprep.subr.mxu0 %v9992
  %v9994 = vand.u32 %v9104, 4294901760
  %9995 = vmatpush1.msra.mxu0 %v9994
  %v9996 = vand.u32 %v9107, 4294901760
  %9997 = vmatprep.subr.mxu0 %v9996
  %v9998 = vand.u32 %v9106, 4294901760
  %9999 = vmatpush1.msra.mxu0 %v9998
  %v10000 = vand.u32 %v9109, 4294901760
  %10001 = vmatprep.subr.mxu0 %v10000
  %v10002 = vand.u32 %v9108, 4294901760
  %10003 = vmatpush1.msra.mxu0 %v10002
  %v10004 = vand.u32 %v9111, 4294901760
  %10005 = vmatprep.subr.mxu0 %v10004
  %v10006 = vand.u32 %v9110, 4294901760
  %10007 = vmatpush1.msra.mxu0 %v10006
  %v10008 = vand.u32 %v9113, 4294901760
  %10009 = vmatprep.subr.mxu0 %v10008
  %v10010 = vand.u32 %v9112, 4294901760
  %10011 = vmatpush1.msra.mxu0 %v10010
  %v10012 = vand.u32 %v9115, 4294901760
  %10013 = vmatprep.subr.mxu0 %v10012
  %v10014 = vand.u32 %v9114, 4294901760
  %10015 = vmatpush1.msra.mxu0 %v10014
  %v10016 = vand.u32 %v9117, 4294901760
  %10017 = vmatprep.subr.mxu0 %v10016
  %v10018 = vand.u32 %v9116, 4294901760
  %10019 = vmatpush1.msra.mxu0 %v10018
  %v10020 = vand.u32 %v9119, 4294901760
  %10021 = vmatprep.subr.mxu0 %v10020
  %v10022 = vand.u32 %v9118, 4294901760
  %10023 = vmatpush1.msra.mxu0 %v10022
  %v10024 = vand.u32 %v9121, 4294901760
  %10025 = vmatprep.subr.mxu0 %v10024
  %v10026 = vand.u32 %v9120, 4294901760
  %10027 = vmatpush1.msra.mxu0 %v10026
  %v10028 = vand.u32 %v9123, 4294901760
  %10029 = vmatprep.subr.mxu0 %v10028
  %v10030 = vand.u32 %v9122, 4294901760
  %10031 = vmatpush1.msra.mxu0 %v10030
  %v10032 = vand.u32 %v9125, 4294901760
  %10033 = vmatprep.subr.mxu0 %v10032
  %v10034 = vand.u32 %v9124, 4294901760
  %10035 = vmatpush1.msra.mxu0 %v10034
  %v10036 = vand.u32 %v9127, 4294901760
  %10037 = vmatprep.subr.mxu0 %v10036
  %v10038 = vand.u32 %v9126, 4294901760
  %10039 = vmatpush1.msra.mxu0 %v10038
  %v10040 = vand.u32 %v9129, 4294901760
  %10041 = vmatprep.subr.mxu0 %v10040
  %v10042 = vand.u32 %v9128, 4294901760
  %10043 = vmatpush1.msra.mxu0 %v10042
  %v10044 = vand.u32 %v9131, 4294901760
  %10045 = vmatprep.subr.mxu0 %v10044
  %v10046 = vand.u32 %v9130, 4294901760
  %10047 = vmatpush1.msra.mxu0 %v10046
  %v10048 = vand.u32 %v9133, 4294901760
  %10049 = vmatprep.subr.mxu0 %v10048
  %v10050 = vand.u32 %v9132, 4294901760
  %10051 = vmatpush1.msra.mxu0 %v10050
  %v10052 = vand.u32 %v9135, 4294901760
  %10053 = vmatprep.subr.mxu0 %v10052
  %v10054 = vand.u32 %v9134, 4294901760
  %10055 = vmatpush1.msra.mxu0 %v10054
  %v10056 = vand.u32 %v9137, 4294901760
  %10057 = vmatprep.subr.mxu0 %v10056
  %v10058 = vand.u32 %v9136, 4294901760
  %10059 = vmatpush1.msra.mxu0 %v10058
  %v10060 = vand.u32 %v9139, 4294901760
  %10061 = vmatprep.subr.mxu0 %v10060
  %v10062 = vand.u32 %v9138, 4294901760
  %10063 = vmatpush1.msra.mxu0 %v10062
  %v10064 = vand.u32 %v9141, 4294901760
  %10065 = vmatprep.subr.mxu0 %v10064
  %v10066 = vand.u32 %v9140, 4294901760
  %10067 = vmatpush1.msra.mxu0 %v10066
  %v10068 = vand.u32 %v9143, 4294901760
  %10069 = vmatprep.subr.mxu0 %v10068
  %v10070 = vand.u32 %v9142, 4294901760
  %10071 = vmatpush1.msra.mxu0 %v10070
  %v10072 = vand.u32 %v9145, 4294901760
  %10073 = vmatprep.subr.mxu0 %v10072
  %v10074 = vand.u32 %v9144, 4294901760
  %10075 = vmatpush1.msra.mxu0 %v10074
  %v10076 = vand.u32 %v9147, 4294901760
  %10077 = vmatprep.subr.mxu0 %v10076
  %v10078 = vand.u32 %v9146, 4294901760
  %10079 = vmatpush1.msra.mxu0 %v10078
  %v10080 = vand.u32 %v9149, 4294901760
  %10081 = vmatprep.subr.mxu0 %v10080
  %v10082 = vand.u32 %v9148, 4294901760
  %10083 = vmatpush1.msra.mxu0 %v10082
  %v10084 = vand.u32 %v9151, 4294901760
  %10085 = vmatprep.subr.mxu0 %v10084
  %v10086 = vand.u32 %v9150, 4294901760
  %10087 = vmatpush1.msra.mxu0 %v10086
  %v10088 = vand.u32 %v9153, 4294901760
  %10089 = vmatprep.subr.mxu0 %v10088
  %v10090 = vand.u32 %v9152, 4294901760
  %10091 = vmatpush1.msra.mxu0 %v10090
  %v10092 = vand.u32 %v9155, 4294901760
  %10093 = vmatprep.subr.mxu0 %v10092
  %v10094 = vand.u32 %v9154, 4294901760
  %10095 = vmatpush1.msra.mxu0 %v10094
  %v10096 = vand.u32 %v9157, 4294901760
  %10097 = vmatprep.subr.mxu0 %v10096
  %v10098 = vand.u32 %v9156, 4294901760
  %10099 = vmatpush1.msra.mxu0 %v10098
  %v10100 = vand.u32 %v9159, 4294901760
  %10101 = vmatprep.subr.mxu0 %v10100
  %v10102 = vand.u32 %v9158, 4294901760
  %10103 = vmatpush1.msra.mxu0 %v10102
  %v10104 = vand.u32 %v9161, 4294901760
  %10105 = vmatprep.subr.mxu0 %v10104
  %v10106 = vand.u32 %v9160, 4294901760
  %10107 = vmatpush1.msra.mxu0 %v10106
  %v10108 = vand.u32 %v9163, 4294901760
  %10109 = vmatprep.subr.mxu0 %v10108
  %v10110 = vand.u32 %v9162, 4294901760
  %10111 = vmatpush1.msra.mxu0 %v10110
  %v10112 = vand.u32 %v9165, 4294901760
  %10113 = vmatprep.subr.mxu0 %v10112
  %v10114 = vand.u32 %v9164, 4294901760
  %10115 = vmatpush1.msra.mxu0 %v10114
  %v10116 = vand.u32 %v9167, 4294901760
  %10117 = vmatprep.subr.mxu0 %v10116
  %v10118 = vand.u32 %v9166, 4294901760
  %10119 = vmatpush1.msra.mxu0 %v10118
  %v10120 = vand.u32 %v8869, 4294901760
  %v10121 = vsub.f32 %v8869, %v10120
  %v10122 = vand.u32 %v10121, 4294901760
  %10123 = vmatprep.mubr.f32.mxu0 %v10122
  %v10124 = vand.u32 %v8865, 4294901760
  %v10125 = vsub.f32 %v8865, %v10124
  %v10126 = vand.u32 %v10125, 4294901760
  %10127 = vmatmul.mubr.f32.gmra.mrb[0].mxu0 %v10126
  %v10128 = vpop.f32.mrb[0].mxu0
  %v10129 = vadd.f32 %v9988, %v10128
  %v10130 = vpop.f32.mrb[0].mxu0
  %v10131 = vadd.f32 %v9990, %v10130
  %10132 = vdwg.mxu0
  %v10133 = vand.u32 %v9105, 4294901760
  %v10134 = vsub.f32 %v9105, %v10133
  %v10135 = vand.u32 %v10134, 4294901760
  %10136 = vmatprep.subr.mxu0 %v10135
  %v10137 = vand.u32 %v9104, 4294901760
  %v10138 = vsub.f32 %v9104, %v10137
  %v10139 = vand.u32 %v10138, 4294901760
  %10140 = vmatpush1.msra.mxu0 %v10139
  %v10141 = vand.u32 %v9107, 4294901760
  %v10142 = vsub.f32 %v9107, %v10141
  %v10143 = vand.u32 %v10142, 4294901760
  %10144 = vmatprep.subr.mxu0 %v10143
  %v10145 = vand.u32 %v9106, 4294901760
  %v10146 = vsub.f32 %v9106, %v10145
  %v10147 = vand.u32 %v10146, 4294901760
  %10148 = vmatpush1.msra.mxu0 %v10147
  %v10149 = vand.u32 %v9109, 4294901760
  %v10150 = vsub.f32 %v9109, %v10149
  %v10151 = vand.u32 %v10150, 4294901760
  %10152 = vmatprep.subr.mxu0 %v10151
  %v10153 = vand.u32 %v9108, 4294901760
  %v10154 = vsub.f32 %v9108, %v10153
  %v10155 = vand.u32 %v10154, 4294901760
  %10156 = vmatpush1.msra.mxu0 %v10155
  %v10157 = vand.u32 %v9111, 4294901760
  %v10158 = vsub.f32 %v9111, %v10157
  %v10159 = vand.u32 %v10158, 4294901760
  %10160 = vmatprep.subr.mxu0 %v10159
  %v10161 = vand.u32 %v9110, 4294901760
  %v10162 = vsub.f32 %v9110, %v10161
  %v10163 = vand.u32 %v10162, 4294901760
  %10164 = vmatpush1.msra.mxu0 %v10163
  %v10165 = vand.u32 %v9113, 4294901760
  %v10166 = vsub.f32 %v9113, %v10165
  %v10167 = vand.u32 %v10166, 4294901760
  %10168 = vmatprep.subr.mxu0 %v10167
  %v10169 = vand.u32 %v9112, 4294901760
  %v10170 = vsub.f32 %v9112, %v10169
  %v10171 = vand.u32 %v10170, 4294901760
  %10172 = vmatpush1.msra.mxu0 %v10171
  %v10173 = vand.u32 %v9115, 4294901760
  %v10174 = vsub.f32 %v9115, %v10173
  %v10175 = vand.u32 %v10174, 4294901760
  %10176 = vmatprep.subr.mxu0 %v10175
  %v10177 = vand.u32 %v9114, 4294901760
  %v10178 = vsub.f32 %v9114, %v10177
  %v10179 = vand.u32 %v10178, 4294901760
  %10180 = vmatpush1.msra.mxu0 %v10179
  %v10181 = vand.u32 %v9117, 4294901760
  %v10182 = vsub.f32 %v9117, %v10181
  %v10183 = vand.u32 %v10182, 4294901760
  %10184 = vmatprep.subr.mxu0 %v10183
  %v10185 = vand.u32 %v9116, 4294901760
  %v10186 = vsub.f32 %v9116, %v10185
  %v10187 = vand.u32 %v10186, 4294901760
  %10188 = vmatpush1.msra.mxu0 %v10187
  %v10189 = vand.u32 %v9119, 4294901760
  %v10190 = vsub.f32 %v9119, %v10189
  %v10191 = vand.u32 %v10190, 4294901760
  %10192 = vmatprep.subr.mxu0 %v10191
  %v10193 = vand.u32 %v9118, 4294901760
  %v10194 = vsub.f32 %v9118, %v10193
  %v10195 = vand.u32 %v10194, 4294901760
  %10196 = vmatpush1.msra.mxu0 %v10195
  %v10197 = vand.u32 %v9121, 4294901760
  %v10198 = vsub.f32 %v9121, %v10197
  %v10199 = vand.u32 %v10198, 4294901760
  %10200 = vmatprep.subr.mxu0 %v10199
  %v10201 = vand.u32 %v9120, 4294901760
  %v10202 = vsub.f32 %v9120, %v10201
  %v10203 = vand.u32 %v10202, 4294901760
  %10204 = vmatpush1.msra.mxu0 %v10203
  %v10205 = vand.u32 %v9123, 4294901760
  %v10206 = vsub.f32 %v9123, %v10205
  %v10207 = vand.u32 %v10206, 4294901760
  %10208 = vmatprep.subr.mxu0 %v10207
  %v10209 = vand.u32 %v9122, 4294901760
  %v10210 = vsub.f32 %v9122, %v10209
  %v10211 = vand.u32 %v10210, 4294901760
  %10212 = vmatpush1.msra.mxu0 %v10211
  %v10213 = vand.u32 %v9125, 4294901760
  %v10214 = vsub.f32 %v9125, %v10213
  %v10215 = vand.u32 %v10214, 4294901760
  %10216 = vmatprep.subr.mxu0 %v10215
  %v10217 = vand.u32 %v9124, 4294901760
  %v10218 = vsub.f32 %v9124, %v10217
  %v10219 = vand.u32 %v10218, 4294901760
  %10220 = vmatpush1.msra.mxu0 %v10219
  %v10221 = vand.u32 %v9127, 4294901760
  %v10222 = vsub.f32 %v9127, %v10221
  %v10223 = vand.u32 %v10222, 4294901760
  %10224 = vmatprep.subr.mxu0 %v10223
  %v10225 = vand.u32 %v9126, 4294901760
  %v10226 = vsub.f32 %v9126, %v10225
  %v10227 = vand.u32 %v10226, 4294901760
  %10228 = vmatpush1.msra.mxu0 %v10227
  %v10229 = vand.u32 %v9129, 4294901760
  %v10230 = vsub.f32 %v9129, %v10229
  %v10231 = vand.u32 %v10230, 4294901760
  %10232 = vmatprep.subr.mxu0 %v10231
  %v10233 = vand.u32 %v9128, 4294901760
  %v10234 = vsub.f32 %v9128, %v10233
  %v10235 = vand.u32 %v10234, 4294901760
  %10236 = vmatpush1.msra.mxu0 %v10235
  %v10237 = vand.u32 %v9131, 4294901760
  %v10238 = vsub.f32 %v9131, %v10237
  %v10239 = vand.u32 %v10238, 4294901760
  %10240 = vmatprep.subr.mxu0 %v10239
  %v10241 = vand.u32 %v9130, 4294901760
  %v10242 = vsub.f32 %v9130, %v10241
  %v10243 = vand.u32 %v10242, 4294901760
  %10244 = vmatpush1.msra.mxu0 %v10243
  %v10245 = vand.u32 %v9133, 4294901760
  %v10246 = vsub.f32 %v9133, %v10245
  %v10247 = vand.u32 %v10246, 4294901760
  %10248 = vmatprep.subr.mxu0 %v10247
  %v10249 = vand.u32 %v9132, 4294901760
  %v10250 = vsub.f32 %v9132, %v10249
  %v10251 = vand.u32 %v10250, 4294901760
  %10252 = vmatpush1.msra.mxu0 %v10251
  %v10253 = vand.u32 %v9135, 4294901760
  %v10254 = vsub.f32 %v9135, %v10253
  %v10255 = vand.u32 %v10254, 4294901760
  %10256 = vmatprep.subr.mxu0 %v10255
  %v10257 = vand.u32 %v9134, 4294901760
  %v10258 = vsub.f32 %v9134, %v10257
  %v10259 = vand.u32 %v10258, 4294901760
  %10260 = vmatpush1.msra.mxu0 %v10259
  %v10261 = vand.u32 %v9137, 4294901760
  %v10262 = vsub.f32 %v9137, %v10261
  %v10263 = vand.u32 %v10262, 4294901760
  %10264 = vmatprep.subr.mxu0 %v10263
  %v10265 = vand.u32 %v9136, 4294901760
  %v10266 = vsub.f32 %v9136, %v10265
  %v10267 = vand.u32 %v10266, 4294901760
  %10268 = vmatpush1.msra.mxu0 %v10267
  %v10269 = vand.u32 %v9139, 4294901760
  %v10270 = vsub.f32 %v9139, %v10269
  %v10271 = vand.u32 %v10270, 4294901760
  %10272 = vmatprep.subr.mxu0 %v10271
  %v10273 = vand.u32 %v9138, 4294901760
  %v10274 = vsub.f32 %v9138, %v10273
  %v10275 = vand.u32 %v10274, 4294901760
  %10276 = vmatpush1.msra.mxu0 %v10275
  %v10277 = vand.u32 %v9141, 4294901760
  %v10278 = vsub.f32 %v9141, %v10277
  %v10279 = vand.u32 %v10278, 4294901760
  %10280 = vmatprep.subr.mxu0 %v10279
  %v10281 = vand.u32 %v9140, 4294901760
  %v10282 = vsub.f32 %v9140, %v10281
  %v10283 = vand.u32 %v10282, 4294901760
  %10284 = vmatpush1.msra.mxu0 %v10283
  %v10285 = vand.u32 %v9143, 4294901760
  %v10286 = vsub.f32 %v9143, %v10285
  %v10287 = vand.u32 %v10286, 4294901760
  %10288 = vmatprep.subr.mxu0 %v10287
  %v10289 = vand.u32 %v9142, 4294901760
  %v10290 = vsub.f32 %v9142, %v10289
  %v10291 = vand.u32 %v10290, 4294901760
  %10292 = vmatpush1.msra.mxu0 %v10291
  %v10293 = vand.u32 %v9145, 4294901760
  %v10294 = vsub.f32 %v9145, %v10293
  %v10295 = vand.u32 %v10294, 4294901760
  %10296 = vmatprep.subr.mxu0 %v10295
  %v10297 = vand.u32 %v9144, 4294901760
  %v10298 = vsub.f32 %v9144, %v10297
  %v10299 = vand.u32 %v10298, 4294901760
  %10300 = vmatpush1.msra.mxu0 %v10299
  %v10301 = vand.u32 %v9147, 4294901760
  %v10302 = vsub.f32 %v9147, %v10301
  %v10303 = vand.u32 %v10302, 4294901760
  %10304 = vmatprep.subr.mxu0 %v10303
  %v10305 = vand.u32 %v9146, 4294901760
  %v10306 = vsub.f32 %v9146, %v10305
  %v10307 = vand.u32 %v10306, 4294901760
  %10308 = vmatpush1.msra.mxu0 %v10307
  %v10309 = vand.u32 %v9149, 4294901760
  %v10310 = vsub.f32 %v9149, %v10309
  %v10311 = vand.u32 %v10310, 4294901760
  %10312 = vmatprep.subr.mxu0 %v10311
  %v10313 = vand.u32 %v9148, 4294901760
  %v10314 = vsub.f32 %v9148, %v10313
  %v10315 = vand.u32 %v10314, 4294901760
  %10316 = vmatpush1.msra.mxu0 %v10315
  %v10317 = vand.u32 %v9151, 4294901760
  %v10318 = vsub.f32 %v9151, %v10317
  %v10319 = vand.u32 %v10318, 4294901760
  %10320 = vmatprep.subr.mxu0 %v10319
  %v10321 = vand.u32 %v9150, 4294901760
  %v10322 = vsub.f32 %v9150, %v10321
  %v10323 = vand.u32 %v10322, 4294901760
  %10324 = vmatpush1.msra.mxu0 %v10323
  %v10325 = vand.u32 %v9153, 4294901760
  %v10326 = vsub.f32 %v9153, %v10325
  %v10327 = vand.u32 %v10326, 4294901760
  %10328 = vmatprep.subr.mxu0 %v10327
  %v10329 = vand.u32 %v9152, 4294901760
  %v10330 = vsub.f32 %v9152, %v10329
  %v10331 = vand.u32 %v10330, 4294901760
  %10332 = vmatpush1.msra.mxu0 %v10331
  %v10333 = vand.u32 %v9155, 4294901760
  %v10334 = vsub.f32 %v9155, %v10333
  %v10335 = vand.u32 %v10334, 4294901760
  %10336 = vmatprep.subr.mxu0 %v10335
  %v10337 = vand.u32 %v9154, 4294901760
  %v10338 = vsub.f32 %v9154, %v10337
  %v10339 = vand.u32 %v10338, 4294901760
  %10340 = vmatpush1.msra.mxu0 %v10339
  %v10341 = vand.u32 %v9157, 4294901760
  %v10342 = vsub.f32 %v9157, %v10341
  %v10343 = vand.u32 %v10342, 4294901760
  %10344 = vmatprep.subr.mxu0 %v10343
  %v10345 = vand.u32 %v9156, 4294901760
  %v10346 = vsub.f32 %v9156, %v10345
  %v10347 = vand.u32 %v10346, 4294901760
  %10348 = vmatpush1.msra.mxu0 %v10347
  %v10349 = vand.u32 %v9159, 4294901760
  %v10350 = vsub.f32 %v9159, %v10349
  %v10351 = vand.u32 %v10350, 4294901760
  %10352 = vmatprep.subr.mxu0 %v10351
  %v10353 = vand.u32 %v9158, 4294901760
  %v10354 = vsub.f32 %v9158, %v10353
  %v10355 = vand.u32 %v10354, 4294901760
  %10356 = vmatpush1.msra.mxu0 %v10355
  %v10357 = vand.u32 %v9161, 4294901760
  %v10358 = vsub.f32 %v9161, %v10357
  %v10359 = vand.u32 %v10358, 4294901760
  %10360 = vmatprep.subr.mxu0 %v10359
  %v10361 = vand.u32 %v9160, 4294901760
  %v10362 = vsub.f32 %v9160, %v10361
  %v10363 = vand.u32 %v10362, 4294901760
  %10364 = vmatpush1.msra.mxu0 %v10363
  %v10365 = vand.u32 %v9163, 4294901760
  %v10366 = vsub.f32 %v9163, %v10365
  %v10367 = vand.u32 %v10366, 4294901760
  %10368 = vmatprep.subr.mxu0 %v10367
  %v10369 = vand.u32 %v9162, 4294901760
  %v10370 = vsub.f32 %v9162, %v10369
  %v10371 = vand.u32 %v10370, 4294901760
  %10372 = vmatpush1.msra.mxu0 %v10371
  %v10373 = vand.u32 %v9165, 4294901760
  %v10374 = vsub.f32 %v9165, %v10373
  %v10375 = vand.u32 %v10374, 4294901760
  %10376 = vmatprep.subr.mxu0 %v10375
  %v10377 = vand.u32 %v9164, 4294901760
  %v10378 = vsub.f32 %v9164, %v10377
  %v10379 = vand.u32 %v10378, 4294901760
  %10380 = vmatpush1.msra.mxu0 %v10379
  %v10381 = vand.u32 %v9167, 4294901760
  %v10382 = vsub.f32 %v9167, %v10381
  %v10383 = vand.u32 %v10382, 4294901760
  %10384 = vmatprep.subr.mxu0 %v10383
  %v10385 = vand.u32 %v9166, 4294901760
  %v10386 = vsub.f32 %v9166, %v10385
  %v10387 = vand.u32 %v10386, 4294901760
  %10388 = vmatpush1.msra.mxu0 %v10387
  %v10389 = vand.u32 %v8869, 4294901760
  %10390 = vmatprep.mubr.f32.mxu0 %v10389
  %v10391 = vand.u32 %v8865, 4294901760
  %10392 = vmatmul.mubr.f32.gmra.mrb[0].mxu0 %v10391
  %v10393 = vpop.f32.mrb[0].mxu0
  %v10394 = vadd.f32 %v10129, %v10393
  %v10395 = vpop.f32.mrb[0].mxu0
  %v10396 = vadd.f32 %v10131, %v10395
  %10397 = vdwg.mxu0
  %v10398 = vand.u32 %v9105, 4294901760
  %10399 = vmatprep.subr.mxu0 %v10398
  %v10400 = vand.u32 %v9104, 4294901760
  %10401 = vmatpush1.msra.mxu0 %v10400
  %v10402 = vand.u32 %v9107, 4294901760
  %10403 = vmatprep.subr.mxu0 %v10402
  %v10404 = vand.u32 %v9106, 4294901760
  %10405 = vmatpush1.msra.mxu0 %v10404
  %v10406 = vand.u32 %v9109, 4294901760
  %10407 = vmatprep.subr.mxu0 %v10406
  %v10408 = vand.u32 %v9108, 4294901760
  %10409 = vmatpush1.msra.mxu0 %v10408
  %v10410 = vand.u32 %v9111, 4294901760
  %10411 = vmatprep.subr.mxu0 %v10410
  %v10412 = vand.u32 %v9110, 4294901760
  %10413 = vmatpush1.msra.mxu0 %v10412
  %v10414 = vand.u32 %v9113, 4294901760
  %10415 = vmatprep.subr.mxu0 %v10414
  %v10416 = vand.u32 %v9112, 4294901760
  %10417 = vmatpush1.msra.mxu0 %v10416
  %v10418 = vand.u32 %v9115, 4294901760
  %10419 = vmatprep.subr.mxu0 %v10418
  %v10420 = vand.u32 %v9114, 4294901760
  %10421 = vmatpush1.msra.mxu0 %v10420
  %v10422 = vand.u32 %v9117, 4294901760
  %10423 = vmatprep.subr.mxu0 %v10422
  %v10424 = vand.u32 %v9116, 4294901760
  %10425 = vmatpush1.msra.mxu0 %v10424
  %v10426 = vand.u32 %v9119, 4294901760
  %10427 = vmatprep.subr.mxu0 %v10426
  %v10428 = vand.u32 %v9118, 4294901760
  %10429 = vmatpush1.msra.mxu0 %v10428
  %v10430 = vand.u32 %v9121, 4294901760
  %10431 = vmatprep.subr.mxu0 %v10430
  %v10432 = vand.u32 %v9120, 4294901760
  %10433 = vmatpush1.msra.mxu0 %v10432
  %v10434 = vand.u32 %v9123, 4294901760
  %10435 = vmatprep.subr.mxu0 %v10434
  %v10436 = vand.u32 %v9122, 4294901760
  %10437 = vmatpush1.msra.mxu0 %v10436
  %v10438 = vand.u32 %v9125, 4294901760
  %10439 = vmatprep.subr.mxu0 %v10438
  %v10440 = vand.u32 %v9124, 4294901760
  %10441 = vmatpush1.msra.mxu0 %v10440
  %v10442 = vand.u32 %v9127, 4294901760
  %10443 = vmatprep.subr.mxu0 %v10442
  %v10444 = vand.u32 %v9126, 4294901760
  %10445 = vmatpush1.msra.mxu0 %v10444
  %v10446 = vand.u32 %v9129, 4294901760
  %10447 = vmatprep.subr.mxu0 %v10446
  %v10448 = vand.u32 %v9128, 4294901760
  %10449 = vmatpush1.msra.mxu0 %v10448
  %v10450 = vand.u32 %v9131, 4294901760
  %10451 = vmatprep.subr.mxu0 %v10450
  %v10452 = vand.u32 %v9130, 4294901760
  %10453 = vmatpush1.msra.mxu0 %v10452
  %v10454 = vand.u32 %v9133, 4294901760
  %10455 = vmatprep.subr.mxu0 %v10454
  %v10456 = vand.u32 %v9132, 4294901760
  %10457 = vmatpush1.msra.mxu0 %v10456
  %v10458 = vand.u32 %v9135, 4294901760
  %10459 = vmatprep.subr.mxu0 %v10458
  %v10460 = vand.u32 %v9134, 4294901760
  %10461 = vmatpush1.msra.mxu0 %v10460
  %v10462 = vand.u32 %v9137, 4294901760
  %10463 = vmatprep.subr.mxu0 %v10462
  %v10464 = vand.u32 %v9136, 4294901760
  %10465 = vmatpush1.msra.mxu0 %v10464
  %v10466 = vand.u32 %v9139, 4294901760
  %10467 = vmatprep.subr.mxu0 %v10466
  %v10468 = vand.u32 %v9138, 4294901760
  %10469 = vmatpush1.msra.mxu0 %v10468
  %v10470 = vand.u32 %v9141, 4294901760
  %10471 = vmatprep.subr.mxu0 %v10470
  %v10472 = vand.u32 %v9140, 4294901760
  %10473 = vmatpush1.msra.mxu0 %v10472
  %v10474 = vand.u32 %v9143, 4294901760
  %10475 = vmatprep.subr.mxu0 %v10474
  %v10476 = vand.u32 %v9142, 4294901760
  %10477 = vmatpush1.msra.mxu0 %v10476
  %v10478 = vand.u32 %v9145, 4294901760
  %10479 = vmatprep.subr.mxu0 %v10478
  %v10480 = vand.u32 %v9144, 4294901760
  %10481 = vmatpush1.msra.mxu0 %v10480
  %v10482 = vand.u32 %v9147, 4294901760
  %10483 = vmatprep.subr.mxu0 %v10482
  %v10484 = vand.u32 %v9146, 4294901760
  %10485 = vmatpush1.msra.mxu0 %v10484
  %v10486 = vand.u32 %v9149, 4294901760
  %10487 = vmatprep.subr.mxu0 %v10486
  %v10488 = vand.u32 %v9148, 4294901760
  %10489 = vmatpush1.msra.mxu0 %v10488
  %v10490 = vand.u32 %v9151, 4294901760
  %10491 = vmatprep.subr.mxu0 %v10490
  %v10492 = vand.u32 %v9150, 4294901760
  %10493 = vmatpush1.msra.mxu0 %v10492
  %v10494 = vand.u32 %v9153, 4294901760
  %10495 = vmatprep.subr.mxu0 %v10494
  %v10496 = vand.u32 %v9152, 4294901760
  %10497 = vmatpush1.msra.mxu0 %v10496
  %v10498 = vand.u32 %v9155, 4294901760
  %10499 = vmatprep.subr.mxu0 %v10498
  %v10500 = vand.u32 %v9154, 4294901760
  %10501 = vmatpush1.msra.mxu0 %v10500
  %v10502 = vand.u32 %v9157, 4294901760
  %10503 = vmatprep.subr.mxu0 %v10502
  %v10504 = vand.u32 %v9156, 4294901760
  %10505 = vmatpush1.msra.mxu0 %v10504
  %v10506 = vand.u32 %v9159, 4294901760
  %10507 = vmatprep.subr.mxu0 %v10506
  %v10508 = vand.u32 %v9158, 4294901760
  %10509 = vmatpush1.msra.mxu0 %v10508
  %v10510 = vand.u32 %v9161, 4294901760
  %10511 = vmatprep.subr.mxu0 %v10510
  %v10512 = vand.u32 %v9160, 4294901760
  %10513 = vmatpush1.msra.mxu0 %v10512
  %v10514 = vand.u32 %v9163, 4294901760
  %10515 = vmatprep.subr.mxu0 %v10514
  %v10516 = vand.u32 %v9162, 4294901760
  %10517 = vmatpush1.msra.mxu0 %v10516
  %v10518 = vand.u32 %v9165, 4294901760
  %10519 = vmatprep.subr.mxu0 %v10518
  %v10520 = vand.u32 %v9164, 4294901760
  %10521 = vmatpush1.msra.mxu0 %v10520
  %v10522 = vand.u32 %v9167, 4294901760
  %10523 = vmatprep.subr.mxu0 %v10522
  %v10524 = vand.u32 %v9166, 4294901760
  %10525 = vmatpush1.msra.mxu0 %v10524
  %v10526 = vand.u32 %v8869, 4294901760
  %10527 = vmatprep.mubr.f32.mxu0 %v10526
  %v10528 = vand.u32 %v8865, 4294901760
  %10529 = vmatmul.mubr.f32.gmra.mrb[0].mxu0 %v10528
  %v10530 = vpop.f32.mrb[0].mxu0
  %v10531 = vadd.f32 %v10394, %v10530
  %v10532 = vpop.f32.mrb[0].mxu0
  %v10533 = vadd.f32 %v10396, %v10532
  %10534 = vdwg.mxu0
  %v10535 = vand.u32 %v9169, 4294901760
  %10536 = vmatprep.subr.mxu0 %v10535
  %v10537 = vand.u32 %v9168, 4294901760
  %10538 = vmatpush1.msra.mxu0 %v10537
  %v10539 = vand.u32 %v9171, 4294901760
  %10540 = vmatprep.subr.mxu0 %v10539
  %v10541 = vand.u32 %v9170, 4294901760
  %10542 = vmatpush1.msra.mxu0 %v10541
  %v10543 = vand.u32 %v9173, 4294901760
  %10544 = vmatprep.subr.mxu0 %v10543
  %v10545 = vand.u32 %v9172, 4294901760
  %10546 = vmatpush1.msra.mxu0 %v10545
  %v10547 = vand.u32 %v9175, 4294901760
  %10548 = vmatprep.subr.mxu0 %v10547
  %v10549 = vand.u32 %v9174, 4294901760
  %10550 = vmatpush1.msra.mxu0 %v10549
  %10551 = vmatprep.subr.mxu0 0.0
  %10552 = vmatpush1.msra.mxu0 0.0
  %10553 = vmatprep.subr.mxu0 0.0
  %10554 = vmatpush1.msra.mxu0 0.0
  %10555 = vmatprep.subr.mxu0 0.0
  %10556 = vmatpush1.msra.mxu0 0.0
  %10557 = vmatprep.subr.mxu0 0.0
  %10558 = vmatpush1.msra.mxu0 0.0
  %10559 = vmatprep.subr.mxu0 0.0
  %10560 = vmatpush1.msra.mxu0 0.0
  %10561 = vmatprep.subr.mxu0 0.0
  %10562 = vmatpush1.msra.mxu0 0.0
  %10563 = vmatprep.subr.mxu0 0.0
  %10564 = vmatpush1.msra.mxu0 0.0
  %10565 = vmatprep.subr.mxu0 0.0
  %10566 = vmatpush1.msra.mxu0 0.0
  %10567 = vmatprep.subr.mxu0 0.0
  %10568 = vmatpush1.msra.mxu0 0.0
  %10569 = vmatprep.subr.mxu0 0.0
  %10570 = vmatpush1.msra.mxu0 0.0
  %10571 = vmatprep.subr.mxu0 0.0
  %10572 = vmatpush1.msra.mxu0 0.0
  %10573 = vmatprep.subr.mxu0 0.0
  %10574 = vmatpush1.msra.mxu0 0.0
  %10575 = vmatprep.subr.mxu0 0.0
  %10576 = vmatpush1.msra.mxu0 0.0
  %10577 = vmatprep.subr.mxu0 0.0
  %10578 = vmatpush1.msra.mxu0 0.0
  %10579 = vmatprep.subr.mxu0 0.0
  %10580 = vmatpush1.msra.mxu0 0.0
  %10581 = vmatprep.subr.mxu0 0.0
  %10582 = vmatpush1.msra.mxu0 0.0
  %10583 = vmatprep.subr.mxu0 0.0
  %10584 = vmatpush1.msra.mxu0 0.0
  %10585 = vmatprep.subr.mxu0 0.0
  %10586 = vmatpush1.msra.mxu0 0.0
  %10587 = vmatprep.subr.mxu0 0.0
  %10588 = vmatpush1.msra.mxu0 0.0
  %10589 = vmatprep.subr.mxu0 0.0
  %10590 = vmatpush1.msra.mxu0 0.0
  %10591 = vmatprep.subr.mxu0 0.0
  %10592 = vmatpush1.msra.mxu0 0.0
  %10593 = vmatprep.subr.mxu0 0.0
  %10594 = vmatpush1.msra.mxu0 0.0
  %10595 = vmatprep.subr.mxu0 0.0
  %10596 = vmatpush1.msra.mxu0 0.0
  %10597 = vmatprep.subr.mxu0 0.0
  %10598 = vmatpush1.msra.mxu0 0.0
  %10599 = vmatprep.subr.mxu0 0.0
  %10600 = vmatpush1.msra.mxu0 0.0
  %10601 = vmatprep.subr.mxu0 0.0
  %10602 = vmatpush1.msra.mxu0 0.0
  %10603 = vmatprep.subr.mxu0 0.0
  %10604 = vmatpush1.msra.mxu0 0.0
  %10605 = vmatprep.subr.mxu0 0.0
  %10606 = vmatpush1.msra.mxu0 0.0
  %10607 = vmatprep.mubr.f32.mxu0 0.0
  %v10608 = vand.u32 %v9249, 4294901760
  %v10609 = vsub.f32 %v9249, %v10608
  %v10610 = vand.u32 %v10609, 4294901760
  %v10611 = vsub.f32 %v10609, %v10610
  %v10612 = vand.u32 %v10611, 4294901760
  %10613 = vmatmul.mubr.f32.gmra.mrb[0].mxu0 %v10612
  %v10614 = vpop.f32.mrb[0].mxu0
  %v10615 = vadd.f32 %v10531, %v10614
  %v10616 = vpop.f32.mrb[0].mxu0
  %v10617 = vadd.f32 %v10533, %v10616
  %10618 = vdwg.mxu0
  %v10619 = vand.u32 %v9169, 4294901760
  %v10620 = vsub.f32 %v9169, %v10619
  %v10621 = vand.u32 %v10620, 4294901760
  %v10622 = vsub.f32 %v10620, %v10621
  %v10623 = vand.u32 %v10622, 4294901760
  %10624 = vmatprep.subr.mxu0 %v10623
  %v10625 = vand.u32 %v9168, 4294901760
  %v10626 = vsub.f32 %v9168, %v10625
  %v10627 = vand.u32 %v10626, 4294901760
  %v10628 = vsub.f32 %v10626, %v10627
  %v10629 = vand.u32 %v10628, 4294901760
  %10630 = vmatpush1.msra.mxu0 %v10629
  %v10631 = vand.u32 %v9171, 4294901760
  %v10632 = vsub.f32 %v9171, %v10631
  %v10633 = vand.u32 %v10632, 4294901760
  %v10634 = vsub.f32 %v10632, %v10633
  %v10635 = vand.u32 %v10634, 4294901760
  %10636 = vmatprep.subr.mxu0 %v10635
  %v10637 = vand.u32 %v9170, 4294901760
  %v10638 = vsub.f32 %v9170, %v10637
  %v10639 = vand.u32 %v10638, 4294901760
  %v10640 = vsub.f32 %v10638, %v10639
  %v10641 = vand.u32 %v10640, 4294901760
  %10642 = vmatpush1.msra.mxu0 %v10641
  %v10643 = vand.u32 %v9173, 4294901760
  %v10644 = vsub.f32 %v9173, %v10643
  %v10645 = vand.u32 %v10644, 4294901760
  %v10646 = vsub.f32 %v10644, %v10645
  %v10647 = vand.u32 %v10646, 4294901760
  %10648 = vmatprep.subr.mxu0 %v10647
  %v10649 = vand.u32 %v9172, 4294901760
  %v10650 = vsub.f32 %v9172, %v10649
  %v10651 = vand.u32 %v10650, 4294901760
  %v10652 = vsub.f32 %v10650, %v10651
  %v10653 = vand.u32 %v10652, 4294901760
  %10654 = vmatpush1.msra.mxu0 %v10653
  %v10655 = vand.u32 %v9175, 4294901760
  %v10656 = vsub.f32 %v9175, %v10655
  %v10657 = vand.u32 %v10656, 4294901760
  %v10658 = vsub.f32 %v10656, %v10657
  %v10659 = vand.u32 %v10658, 4294901760
  %10660 = vmatprep.subr.mxu0 %v10659
  %v10661 = vand.u32 %v9174, 4294901760
  %v10662 = vsub.f32 %v9174, %v10661
  %v10663 = vand.u32 %v10662, 4294901760
  %v10664 = vsub.f32 %v10662, %v10663
  %v10665 = vand.u32 %v10664, 4294901760
  %10666 = vmatpush1.msra.mxu0 %v10665
  %10667 = vmatprep.subr.mxu0 0.0
  %10668 = vmatpush1.msra.mxu0 0.0
  %10669 = vmatprep.subr.mxu0 0.0
  %10670 = vmatpush1.msra.mxu0 0.0
  %10671 = vmatprep.subr.mxu0 0.0
  %10672 = vmatpush1.msra.mxu0 0.0
  %10673 = vmatprep.subr.mxu0 0.0
  %10674 = vmatpush1.msra.mxu0 0.0
  %10675 = vmatprep.subr.mxu0 0.0
  %10676 = vmatpush1.msra.mxu0 0.0
  %10677 = vmatprep.subr.mxu0 0.0
  %10678 = vmatpush1.msra.mxu0 0.0
  %10679 = vmatprep.subr.mxu0 0.0
  %10680 = vmatpush1.msra.mxu0 0.0
  %10681 = vmatprep.subr.mxu0 0.0
  %10682 = vmatpush1.msra.mxu0 0.0
  %10683 = vmatprep.subr.mxu0 0.0
  %10684 = vmatpush1.msra.mxu0 0.0
  %10685 = vmatprep.subr.mxu0 0.0
  %10686 = vmatpush1.msra.mxu0 0.0
  %10687 = vmatprep.subr.mxu0 0.0
  %10688 = vmatpush1.msra.mxu0 0.0
  %10689 = vmatprep.subr.mxu0 0.0
  %10690 = vmatpush1.msra.mxu0 0.0
  %10691 = vmatprep.subr.mxu0 0.0
  %10692 = vmatpush1.msra.mxu0 0.0
  %10693 = vmatprep.subr.mxu0 0.0
  %10694 = vmatpush1.msra.mxu0 0.0
  %10695 = vmatprep.subr.mxu0 0.0
  %10696 = vmatpush1.msra.mxu0 0.0
  %10697 = vmatprep.subr.mxu0 0.0
  %10698 = vmatpush1.msra.mxu0 0.0
  %10699 = vmatprep.subr.mxu0 0.0
  %10700 = vmatpush1.msra.mxu0 0.0
  %10701 = vmatprep.subr.mxu0 0.0
  %10702 = vmatpush1.msra.mxu0 0.0
  %10703 = vmatprep.subr.mxu0 0.0
  %10704 = vmatpush1.msra.mxu0 0.0
  %10705 = vmatprep.subr.mxu0 0.0
  %10706 = vmatpush1.msra.mxu0 0.0
  %10707 = vmatprep.subr.mxu0 0.0
  %10708 = vmatpush1.msra.mxu0 0.0
  %10709 = vmatprep.subr.mxu0 0.0
  %10710 = vmatpush1.msra.mxu0 0.0
  %10711 = vmatprep.subr.mxu0 0.0
  %10712 = vmatpush1.msra.mxu0 0.0
  %10713 = vmatprep.subr.mxu0 0.0
  %10714 = vmatpush1.msra.mxu0 0.0
  %10715 = vmatprep.subr.mxu0 0.0
  %10716 = vmatpush1.msra.mxu0 0.0
  %10717 = vmatprep.subr.mxu0 0.0
  %10718 = vmatpush1.msra.mxu0 0.0
  %10719 = vmatprep.subr.mxu0 0.0
  %10720 = vmatpush1.msra.mxu0 0.0
  %10721 = vmatprep.subr.mxu0 0.0
  %10722 = vmatpush1.msra.mxu0 0.0
  %10723 = vmatprep.mubr.f32.mxu0 0.0
  %v10724 = vand.u32 %v9249, 4294901760
  %10725 = vmatmul.mubr.f32.gmra.mrb[0].mxu0 %v10724
  %v10726 = vpop.f32.mrb[0].mxu0
  %v10727 = vadd.f32 %v10615, %v10726
  %v10728 = vpop.f32.mrb[0].mxu0
  %v10729 = vadd.f32 %v10617, %v10728
  %10730 = vdwg.mxu0
  %v10731 = vand.u32 %v9169, 4294901760
  %v10732 = vsub.f32 %v9169, %v10731
  %10733 = vmatprep.subr.mxu0 %v10732
  %v10734 = vand.u32 %v9168, 4294901760
  %v10735 = vsub.f32 %v9168, %v10734
  %10736 = vmatpush1.msra.mxu0 %v10735
  %v10737 = vand.u32 %v9171, 4294901760
  %v10738 = vsub.f32 %v9171, %v10737
  %10739 = vmatprep.subr.mxu0 %v10738
  %v10740 = vand.u32 %v9170, 4294901760
  %v10741 = vsub.f32 %v9170, %v10740
  %10742 = vmatpush1.msra.mxu0 %v10741
  %v10743 = vand.u32 %v9173, 4294901760
  %v10744 = vsub.f32 %v9173, %v10743
  %10745 = vmatprep.subr.mxu0 %v10744
  %v10746 = vand.u32 %v9172, 4294901760
  %v10747 = vsub.f32 %v9172, %v10746
  %10748 = vmatpush1.msra.mxu0 %v10747
  %v10749 = vand.u32 %v9175, 4294901760
  %v10750 = vsub.f32 %v9175, %v10749
  %10751 = vmatprep.subr.mxu0 %v10750
  %v10752 = vand.u32 %v9174, 4294901760
  %v10753 = vsub.f32 %v9174, %v10752
  %10754 = vmatpush1.msra.mxu0 %v10753
  %10755 = vmatprep.subr.mxu0 0.0
  %10756 = vmatpush1.msra.mxu0 0.0
  %10757 = vmatprep.subr.mxu0 0.0
  %10758 = vmatpush1.msra.mxu0 0.0
  %10759 = vmatprep.subr.mxu0 0.0
  %10760 = vmatpush1.msra.mxu0 0.0
  %10761 = vmatprep.subr.mxu0 0.0
  %10762 = vmatpush1.msra.mxu0 0.0
  %10763 = vmatprep.subr.mxu0 0.0
  %10764 = vmatpush1.msra.mxu0 0.0
  %10765 = vmatprep.subr.mxu0 0.0
  %10766 = vmatpush1.msra.mxu0 0.0
  %10767 = vmatprep.subr.mxu0 0.0
  %10768 = vmatpush1.msra.mxu0 0.0
  %10769 = vmatprep.subr.mxu0 0.0
  %10770 = vmatpush1.msra.mxu0 0.0
  %10771 = vmatprep.subr.mxu0 0.0
  %10772 = vmatpush1.msra.mxu0 0.0
  %10773 = vmatprep.subr.mxu0 0.0
  %10774 = vmatpush1.msra.mxu0 0.0
  %10775 = vmatprep.subr.mxu0 0.0
  %10776 = vmatpush1.msra.mxu0 0.0
  %10777 = vmatprep.subr.mxu0 0.0
  %10778 = vmatpush1.msra.mxu0 0.0
  %10779 = vmatprep.subr.mxu0 0.0
  %10780 = vmatpush1.msra.mxu0 0.0
  %10781 = vmatprep.subr.mxu0 0.0
  %10782 = vmatpush1.msra.mxu0 0.0
  %10783 = vmatprep.subr.mxu0 0.0
  %10784 = vmatpush1.msra.mxu0 0.0
  %10785 = vmatprep.subr.mxu0 0.0
  %10786 = vmatpush1.msra.mxu0 0.0
  %10787 = vmatprep.subr.mxu0 0.0
  %10788 = vmatpush1.msra.mxu0 0.0
  %10789 = vmatprep.subr.mxu0 0.0
  %10790 = vmatpush1.msra.mxu0 0.0
  %10791 = vmatprep.subr.mxu0 0.0
  %10792 = vmatpush1.msra.mxu0 0.0
  %10793 = vmatprep.subr.mxu0 0.0
  %10794 = vmatpush1.msra.mxu0 0.0
  %10795 = vmatprep.subr.mxu0 0.0
  %10796 = vmatpush1.msra.mxu0 0.0
  %10797 = vmatprep.subr.mxu0 0.0
  %10798 = vmatpush1.msra.mxu0 0.0
  %10799 = vmatprep.subr.mxu0 0.0
  %10800 = vmatpush1.msra.mxu0 0.0
  %10801 = vmatprep.subr.mxu0 0.0
  %10802 = vmatpush1.msra.mxu0 0.0
  %10803 = vmatprep.subr.mxu0 0.0
  %10804 = vmatpush1.msra.mxu0 0.0
  %10805 = vmatprep.subr.mxu0 0.0
  %10806 = vmatpush1.msra.mxu0 0.0
  %10807 = vmatprep.subr.mxu0 0.0
  %10808 = vmatpush1.msra.mxu0 0.0
  %10809 = vmatprep.subr.mxu0 0.0
  %10810 = vmatpush1.msra.mxu0 0.0
  %10811 = vmatprep.mubr.f32.mxu0 0.0
  %v10812 = vand.u32 %v9249, 4294901760
  %v10813 = vsub.f32 %v9249, %v10812
  %10814 = vmatmul.mubr.f32.gmra.mrb[0].mxu0 %v10813
  %v10815 = vpop.f32.mrb[0].mxu0
  %v10816 = vadd.f32 %v10727, %v10815
  %v10817 = vpop.f32.mrb[0].mxu0
  %v10818 = vadd.f32 %v10729, %v10817
  %10819 = vdwg.mxu0
  %v10820 = vand.u32 %v9169, 4294901760
  %10821 = vmatprep.subr.mxu0 %v10820
  %v10822 = vand.u32 %v9168, 4294901760
  %10823 = vmatpush1.msra.mxu0 %v10822
  %v10824 = vand.u32 %v9171, 4294901760
  %10825 = vmatprep.subr.mxu0 %v10824
  %v10826 = vand.u32 %v9170, 4294901760
  %10827 = vmatpush1.msra.mxu0 %v10826
  %v10828 = vand.u32 %v9173, 4294901760
  %10829 = vmatprep.subr.mxu0 %v10828
  %v10830 = vand.u32 %v9172, 4294901760
  %10831 = vmatpush1.msra.mxu0 %v10830
  %v10832 = vand.u32 %v9175, 4294901760
  %10833 = vmatprep.subr.mxu0 %v10832
  %v10834 = vand.u32 %v9174, 4294901760
  %10835 = vmatpush1.msra.mxu0 %v10834
  %10836 = vmatprep.subr.mxu0 0.0
  %10837 = vmatpush1.msra.mxu0 0.0
  %10838 = vmatprep.subr.mxu0 0.0
  %10839 = vmatpush1.msra.mxu0 0.0
  %10840 = vmatprep.subr.mxu0 0.0
  %10841 = vmatpush1.msra.mxu0 0.0
  %10842 = vmatprep.subr.mxu0 0.0
  %10843 = vmatpush1.msra.mxu0 0.0
  %10844 = vmatprep.subr.mxu0 0.0
  %10845 = vmatpush1.msra.mxu0 0.0
  %10846 = vmatprep.subr.mxu0 0.0
  %10847 = vmatpush1.msra.mxu0 0.0
  %10848 = vmatprep.subr.mxu0 0.0
  %10849 = vmatpush1.msra.mxu0 0.0
  %10850 = vmatprep.subr.mxu0 0.0
  %10851 = vmatpush1.msra.mxu0 0.0
  %10852 = vmatprep.subr.mxu0 0.0
  %10853 = vmatpush1.msra.mxu0 0.0
  %10854 = vmatprep.subr.mxu0 0.0
  %10855 = vmatpush1.msra.mxu0 0.0
  %10856 = vmatprep.subr.mxu0 0.0
  %10857 = vmatpush1.msra.mxu0 0.0
  %10858 = vmatprep.subr.mxu0 0.0
  %10859 = vmatpush1.msra.mxu0 0.0
  %10860 = vmatprep.subr.mxu0 0.0
  %10861 = vmatpush1.msra.mxu0 0.0
  %10862 = vmatprep.subr.mxu0 0.0
  %10863 = vmatpush1.msra.mxu0 0.0
  %10864 = vmatprep.subr.mxu0 0.0
  %10865 = vmatpush1.msra.mxu0 0.0
  %10866 = vmatprep.subr.mxu0 0.0
  %10867 = vmatpush1.msra.mxu0 0.0
  %10868 = vmatprep.subr.mxu0 0.0
  %10869 = vmatpush1.msra.mxu0 0.0
  %10870 = vmatprep.subr.mxu0 0.0
  %10871 = vmatpush1.msra.mxu0 0.0
  %10872 = vmatprep.subr.mxu0 0.0
  %10873 = vmatpush1.msra.mxu0 0.0
  %10874 = vmatprep.subr.mxu0 0.0
  %10875 = vmatpush1.msra.mxu0 0.0
  %10876 = vmatprep.subr.mxu0 0.0
  %10877 = vmatpush1.msra.mxu0 0.0
  %10878 = vmatprep.subr.mxu0 0.0
  %10879 = vmatpush1.msra.mxu0 0.0
  %10880 = vmatprep.subr.mxu0 0.0
  %10881 = vmatpush1.msra.mxu0 0.0
  %10882 = vmatprep.subr.mxu0 0.0
  %10883 = vmatpush1.msra.mxu0 0.0
  %10884 = vmatprep.subr.mxu0 0.0
  %10885 = vmatpush1.msra.mxu0 0.0
  %10886 = vmatprep.subr.mxu0 0.0
  %10887 = vmatpush1.msra.mxu0 0.0
  %10888 = vmatprep.subr.mxu0 0.0
  %10889 = vmatpush1.msra.mxu0 0.0
  %10890 = vmatprep.subr.mxu0 0.0
  %10891 = vmatpush1.msra.mxu0 0.0
  %10892 = vmatprep.mubr.f32.mxu0 0.0
  %v10893 = vand.u32 %v9249, 4294901760
  %v10894 = vsub.f32 %v9249, %v10893
  %v10895 = vand.u32 %v10894, 4294901760
  %10896 = vmatmul.mubr.f32.gmra.mrb[0].mxu0 %v10895
  %v10897 = vpop.f32.mrb[0].mxu0
  %v10898 = vadd.f32 %v10816, %v10897
  %v10899 = vpop.f32.mrb[0].mxu0
  %v10900 = vadd.f32 %v10818, %v10899
  %10901 = vdwg.mxu0
  %v10902 = vand.u32 %v9169, 4294901760
  %v10903 = vsub.f32 %v9169, %v10902
  %v10904 = vand.u32 %v10903, 4294901760
  %10905 = vmatprep.subr.mxu0 %v10904
  %v10906 = vand.u32 %v9168, 4294901760
  %v10907 = vsub.f32 %v9168, %v10906
  %v10908 = vand.u32 %v10907, 4294901760
  %10909 = vmatpush1.msra.mxu0 %v10908
  %v10910 = vand.u32 %v9171, 4294901760
  %v10911 = vsub.f32 %v9171, %v10910
  %v10912 = vand.u32 %v10911, 4294901760
  %10913 = vmatprep.subr.mxu0 %v10912
  %v10914 = vand.u32 %v9170, 4294901760
  %v10915 = vsub.f32 %v9170, %v10914
  %v10916 = vand.u32 %v10915, 4294901760
  %10917 = vmatpush1.msra.mxu0 %v10916
  %v10918 = vand.u32 %v9173, 4294901760
  %v10919 = vsub.f32 %v9173, %v10918
  %v10920 = vand.u32 %v10919, 4294901760
  %10921 = vmatprep.subr.mxu0 %v10920
  %v10922 = vand.u32 %v9172, 4294901760
  %v10923 = vsub.f32 %v9172, %v10922
  %v10924 = vand.u32 %v10923, 4294901760
  %10925 = vmatpush1.msra.mxu0 %v10924
  %v10926 = vand.u32 %v9175, 4294901760
  %v10927 = vsub.f32 %v9175, %v10926
  %v10928 = vand.u32 %v10927, 4294901760
  %10929 = vmatprep.subr.mxu0 %v10928
  %v10930 = vand.u32 %v9174, 4294901760
  %v10931 = vsub.f32 %v9174, %v10930
  %v10932 = vand.u32 %v10931, 4294901760
  %10933 = vmatpush1.msra.mxu0 %v10932
  %10934 = vmatprep.subr.mxu0 0.0
  %10935 = vmatpush1.msra.mxu0 0.0
  %10936 = vmatprep.subr.mxu0 0.0
  %10937 = vmatpush1.msra.mxu0 0.0
  %10938 = vmatprep.subr.mxu0 0.0
  %10939 = vmatpush1.msra.mxu0 0.0
  %10940 = vmatprep.subr.mxu0 0.0
  %10941 = vmatpush1.msra.mxu0 0.0
  %10942 = vmatprep.subr.mxu0 0.0
  %10943 = vmatpush1.msra.mxu0 0.0
  %10944 = vmatprep.subr.mxu0 0.0
  %10945 = vmatpush1.msra.mxu0 0.0
  %10946 = vmatprep.subr.mxu0 0.0
  %10947 = vmatpush1.msra.mxu0 0.0
  %10948 = vmatprep.subr.mxu0 0.0
  %10949 = vmatpush1.msra.mxu0 0.0
  %10950 = vmatprep.subr.mxu0 0.0
  %10951 = vmatpush1.msra.mxu0 0.0
  %10952 = vmatprep.subr.mxu0 0.0
  %10953 = vmatpush1.msra.mxu0 0.0
  %10954 = vmatprep.subr.mxu0 0.0
  %10955 = vmatpush1.msra.mxu0 0.0
  %10956 = vmatprep.subr.mxu0 0.0
  %10957 = vmatpush1.msra.mxu0 0.0
  %10958 = vmatprep.subr.mxu0 0.0
  %10959 = vmatpush1.msra.mxu0 0.0
  %10960 = vmatprep.subr.mxu0 0.0
  %10961 = vmatpush1.msra.mxu0 0.0
  %10962 = vmatprep.subr.mxu0 0.0
  %10963 = vmatpush1.msra.mxu0 0.0
  %10964 = vmatprep.subr.mxu0 0.0
  %10965 = vmatpush1.msra.mxu0 0.0
  %10966 = vmatprep.subr.mxu0 0.0
  %10967 = vmatpush1.msra.mxu0 0.0
  %10968 = vmatprep.subr.mxu0 0.0
  %10969 = vmatpush1.msra.mxu0 0.0
  %10970 = vmatprep.subr.mxu0 0.0
  %10971 = vmatpush1.msra.mxu0 0.0
  %10972 = vmatprep.subr.mxu0 0.0
  %10973 = vmatpush1.msra.mxu0 0.0
  %10974 = vmatprep.subr.mxu0 0.0
  %10975 = vmatpush1.msra.mxu0 0.0
  %10976 = vmatprep.subr.mxu0 0.0
  %10977 = vmatpush1.msra.mxu0 0.0
  %10978 = vmatprep.subr.mxu0 0.0
  %10979 = vmatpush1.msra.mxu0 0.0
  %10980 = vmatprep.subr.mxu0 0.0
  %10981 = vmatpush1.msra.mxu0 0.0
  %10982 = vmatprep.subr.mxu0 0.0
  %10983 = vmatpush1.msra.mxu0 0.0
  %10984 = vmatprep.subr.mxu0 0.0
  %10985 = vmatpush1.msra.mxu0 0.0
  %10986 = vmatprep.subr.mxu0 0.0
  %10987 = vmatpush1.msra.mxu0 0.0
  %10988 = vmatprep.subr.mxu0 0.0
  %10989 = vmatpush1.msra.mxu0 0.0
  %10990 = vmatprep.mubr.f32.mxu0 0.0
  %v10991 = vand.u32 %v9249, 4294901760
  %10992 = vmatmul.mubr.f32.gmra.mrb[0].mxu0 %v10991
  %v10993 = vpop.f32.mrb[0].mxu0
  %v10994 = vadd.f32 %v10898, %v10993
  %v10995 = vpop.f32.mrb[0].mxu0
  %v10996 = vadd.f32 %v10900, %v10995
  %10997 = vdwg.mxu0
  %v10998 = vand.u32 %v9169, 4294901760
  %10999 = vmatprep.subr.mxu0 %v10998
  %v11000 = vand.u32 %v9168, 4294901760
  %11001 = vmatpush1.msra.mxu0 %v11000
  %v11002 = vand.u32 %v9171, 4294901760
  %11003 = vmatprep.subr.mxu0 %v11002
  %v11004 = vand.u32 %v9170, 4294901760
  %11005 = vmatpush1.msra.mxu0 %v11004
  %v11006 = vand.u32 %v9173, 4294901760
  %11007 = vmatprep.subr.mxu0 %v11006
  %v11008 = vand.u32 %v9172, 4294901760
  %11009 = vmatpush1.msra.mxu0 %v11008
  %v11010 = vand.u32 %v9175, 4294901760
  %11011 = vmatprep.subr.mxu0 %v11010
  %v11012 = vand.u32 %v9174, 4294901760
  %11013 = vmatpush1.msra.mxu0 %v11012
  %11014 = vmatprep.subr.mxu0 0.0
  %11015 = vmatpush1.msra.mxu0 0.0
  %11016 = vmatprep.subr.mxu0 0.0
  %11017 = vmatpush1.msra.mxu0 0.0
  %11018 = vmatprep.subr.mxu0 0.0
  %11019 = vmatpush1.msra.mxu0 0.0
  %11020 = vmatprep.subr.mxu0 0.0
  %11021 = vmatpush1.msra.mxu0 0.0
  %11022 = vmatprep.subr.mxu0 0.0
  %11023 = vmatpush1.msra.mxu0 0.0
  %11024 = vmatprep.subr.mxu0 0.0
  %11025 = vmatpush1.msra.mxu0 0.0
  %11026 = vmatprep.subr.mxu0 0.0
  %11027 = vmatpush1.msra.mxu0 0.0
  %11028 = vmatprep.subr.mxu0 0.0
  %11029 = vmatpush1.msra.mxu0 0.0
  %11030 = vmatprep.subr.mxu0 0.0
  %11031 = vmatpush1.msra.mxu0 0.0
  %11032 = vmatprep.subr.mxu0 0.0
  %11033 = vmatpush1.msra.mxu0 0.0
  %11034 = vmatprep.subr.mxu0 0.0
  %11035 = vmatpush1.msra.mxu0 0.0
  %11036 = vmatprep.subr.mxu0 0.0
  %11037 = vmatpush1.msra.mxu0 0.0
  %11038 = vmatprep.subr.mxu0 0.0
  %11039 = vmatpush1.msra.mxu0 0.0
  %11040 = vmatprep.subr.mxu0 0.0
  %11041 = vmatpush1.msra.mxu0 0.0
  %11042 = vmatprep.subr.mxu0 0.0
  %11043 = vmatpush1.msra.mxu0 0.0
  %11044 = vmatprep.subr.mxu0 0.0
  %11045 = vmatpush1.msra.mxu0 0.0
  %11046 = vmatprep.subr.mxu0 0.0
  %11047 = vmatpush1.msra.mxu0 0.0
  %11048 = vmatprep.subr.mxu0 0.0
  %11049 = vmatpush1.msra.mxu0 0.0
  %11050 = vmatprep.subr.mxu0 0.0
  %11051 = vmatpush1.msra.mxu0 0.0
  %11052 = vmatprep.subr.mxu0 0.0
  %11053 = vmatpush1.msra.mxu0 0.0
  %11054 = vmatprep.subr.mxu0 0.0
  %11055 = vmatpush1.msra.mxu0 0.0
  %11056 = vmatprep.subr.mxu0 0.0
  %11057 = vmatpush1.msra.mxu0 0.0
  %11058 = vmatprep.subr.mxu0 0.0
  %11059 = vmatpush1.msra.mxu0 0.0
  %11060 = vmatprep.subr.mxu0 0.0
  %11061 = vmatpush1.msra.mxu0 0.0
  %11062 = vmatprep.subr.mxu0 0.0
  %11063 = vmatpush1.msra.mxu0 0.0
  %11064 = vmatprep.subr.mxu0 0.0
  %11065 = vmatpush1.msra.mxu0 0.0
  %11066 = vmatprep.subr.mxu0 0.0
  %11067 = vmatpush1.msra.mxu0 0.0
  %11068 = vmatprep.subr.mxu0 0.0
  %11069 = vmatpush1.msra.mxu0 0.0
  %11070 = vmatprep.mubr.f32.mxu0 0.0
  %v11071 = vand.u32 %v9249, 4294901760
  %11072 = vmatmul.mubr.f32.gmra.mrb[0].mxu0 %v11071
  %v11073 = vpop.f32.mrb[0].mxu0
  %v11074 = vadd.f32 %v10994, %v11073
  %v11075 = vpop.f32.mrb[0].mxu0
  %v11076 = vadd.f32 %v10996, %v11075
  %11077 = vdwg.mxu0
  %v11078 = vadd.f32 %v1289, %v11074
  %v11079 = vadd.f32 %v1296, %v11076
  %v11082 = vcombine.low %v11078, %v11079
  %v11084 = vunpack.c.l.s4 1966171168
  %v11085 = vunpack.c.0.s8 %v11084
  %v11086 = vlaneseq
  %v11087 = vshrl.u32 %v11086, 7
  %v11088 = vsub.s32 %v11085, %v11087
  %v11089 = vrot.slane %v11082, %v11088
  %v11091 = vunpack.c.l.s4 1966171168
  %v11092 = vunpack.c.0.s8 %v11091
  %v11093 = vlaneseq
  %v11094 = vshrl.u32 %v11093, 7
  %v11095 = vsub.s32 %v11092, %v11094
  %v11096 = vrot.slane %v11089, %v11095
  %v11098 = vlaneseq
  %vm11099 = vcmp.ge.s32.totalorder %v11098, 0
  %vm11100 = vcmp.lt.s32.totalorder %v11098, 256
  %vm11101 = vmand %vm11099, %vm11100
  %11102 = vst.msk [vmem:[%s15] sm:$0x3] %vm11101, %v11096
  // Predicated region
  $region69: #{basic_block_forward.1} parent=0 // pred_check
    _
  $region70: #{basic_block_forward.1} parent=0 // pred_check_branch
    %11104 = sbr.rel (0) target = $region72
  $region71: #{basic_block_forward.1} parent=0 // pred_region
    _
  $region72: #{basic_block_forward.1} parent=0 // pred_fallthru
    _
  // Predicated region
  $region73: #{basic_block_forward.1} parent=0 // pred_check
    _
  $region74: #{basic_block_forward.1} parent=0 // pred_check_branch
    %11106 = sbr.rel (0) target = $region76
  $region75: #{basic_block_forward.1} parent=0 // pred_region
    _
  $region76: #{basic_block_forward.1} parent=0 // pred_fallthru
    _

</llo_original>
